<compile_context>
chip_gen: v5e
topology: v5e:2x2
jax: 0.10.0
libtpu: 0.0.40
codegen_flags: <defaults>
</compile_context>

<pallas_src>
import numpy as np
import jax
import jax.numpy as jnp
from jax import lax
from jax.experimental import pallas as pl
from jax.experimental.pallas import tpu as pltpu

# Kept only for the XLA-side eigh and the pure-JAX reference; every in-kernel dot now carries an
# explicit precision, so this setting no longer inflates the Pallas kernels' MXU pass counts.
jax.config.update("jax_default_matmul_precision", "highest")

REEIG_EPS = 1e-4


# ------------------------------ Pallas kernels ------------------------------

def graph_bimap_bn_kernel(xw_ref, m_ref, bblk_ref, o_ref, blk_ref):
    """Fused graph mixing + BatchNormSPD(eval) + BiMap congruence.

    xw_ref  : (C*n, N*n)    input SPD stack, block (c, b) = x[b, c]       (wrapper layout plumbing)
    m_ref   : (C*n, C*n)    fused left factor, block (c, d) = P[c,d] * B_c with B_c = A @ W_c^T
    bblk_ref: (C*n, C*n)    block_diag(B_c)   (right factor; transposed inside the dot_general)
    o_ref   : (N, C, n, n)  Z[b, c] = B_c (sum_d P[c,d] x[b,d]) B_c^T
    blk_ref : (C*n, C*n)    VMEM scratch holding block_diag(T[b, c])
    """
    N, C, n = o_ref.shape[0], o_ref.shape[1], o_ref.shape[2]

    # Stage 1: ONE MXU matmul = graph mix + BN(eval) + left BiMap factor for the whole batch.
    # HIGHEST here keeps z numerically symmetric/accurate before the downstream eigh.
    t = lax.dot_general(m_ref[...], xw_ref[...], (((1,), (0,)), ((), ())),
                        precision=lax.Precision.HIGHEST,
                        preferred_element_type=jnp.float32)              # (C*n, N*n), blk (c,b)=B_c Xg[b,c]

    blk_ref[...] = jnp.zeros_like(blk_ref)                               # off-diag blocks stay 0
    for b in range(N):                                                   # N tiny: static unroll
        # scatter T[b, :] onto the scratch diagonal (static (24,24) slice copies)
        for c in range(C):
            blk_ref[c * n:(c + 1) * n, c * n:(c + 1) * n] = \
                t[c * n:(c + 1) * n, b * n:(b + 1) * n]
        # Stage 2: one (C*n)^3 matmul applies every per-channel right factor at once:
        # block_diag(T[b,c]) @ block_diag(B_c)^T = block_diag(T[b,c] @ B_c^T) = block_diag(Z[b,c]).
        zfull = lax.dot_general(blk_ref[...], bblk_ref[...], (((1,), (1,)), ((), ())),
                                precision=lax.Precision.HIGHEST,
                                preferred_element_type=jnp.float32)      # (C*n, C*n)
        for c in range(C):
            o_ref[b, c] = zfull[c * n:(c + 1) * n, c * n:(c + 1) * n].astype(o_ref.dtype)


def logeig_kernel(s_ref, u_ref, o_ref):
    """Fused ReEig clamp + LogEig reconstruction  U * log(max(S, eps)) * U^T.

    s_ref: (M, 1, n) eigenvalues, u_ref: (M, n, n) eigenvectors, o_ref: (M, n, n); M = N*C.
    Contract-last-dims dot supplies U^T (no pre-transposed ut input / extra DMA).
    """
    f = jnp.log(jnp.maximum(s_ref[...], REEIG_EPS))                      # (M, 1, n)
    uf = u_ref[...] * f                                                  # scale eigenvector columns
    # HIGHEST costs nothing here (N*C microscopic 24^3 matmuls) and keeps the log-map exact in f32.
    o_ref[...] = jnp.einsum('mik,mjk->mij', uf, u_ref[...],
                            precision=lax.Precision.HIGHEST,
                            preferred_element_type=jnp.float32).astype(o_ref.dtype)


def classifier_kernel(zf_ref, w_ref, bias_ref, o_ref):
    """Linear classifier on the lane-dense flattened log-SPD features.

    zf_ref: (N, F) flattened U log(S) U^T features (F = C*n*n, lane-dense)
    w_ref : (K, F) classifier weight (natural layout; dot contracts last dims = zf @ W^T)
    bias_ref: (1, K), o_ref: (N, K)
    """
    # DEFAULT precision: the long F=2304 contraction is where pass count matters, and the f32
    # accumulate keeps the bf16 input rounding well inside the 5e-3 validation tolerance.
    logits = lax.dot_general(zf_ref[...], w_ref[...], (((1,), (1,)), ((), ())),
                             precision=lax.Precision.DEFAULT,
                             preferred_element_type=jnp.float32)         # (N, K)
    o_ref[...] = (logits + bias_ref[...]).astype(o_ref.dtype)


# --------------------------------- wrapper -----------------------------------

def prepare_params(P, W, A, Wc, bias):
    """One-time host-side weight folding (hoisted out of the per-step jit per the perf review)."""
    f32 = jnp.float32
    C, n, _ = W.shape
    K = Wc.shape[0]
    P = P.astype(f32)
    B = jnp.einsum('ij,ckj->cik', A.astype(f32), W.astype(f32))          # B_c = A @ W_c^T, (C, n, n)
    # Fused left factor: M[c*n+i, d*n+j] = P[c, d] * B[c, i, j]
    M = (P[:, None, :, None] * B[:, :, None, :]).reshape(C * n, C * n)
    # Block-diagonal right factor: Bblk[c*n+i, d*n+j] = delta_{cd} * B[c, i, j]
    Bblk = (jnp.eye(C, dtype=f32)[:, None, :, None] * B[:, :, None, :]).reshape(C * n, C * n)
    return M, Bblk, Wc.astype(f32), bias.astype(f32).reshape(1, K)


@jax.jit
def graph_cspnet_forward(x, M, Bblk, Wc, bias2):
    N, C, n, _ = x.shape
    K = Wc.shape[0]
    f32 = jnp.float32
    x = x.astype(f32)
    vmem = pl.BlockSpec(memory_space=pltpu.MemorySpace.VMEM)

    # Layout plumbing only: (N, C, n, n) -> (C*n, N*n) with block (c, b) = x[b, c].
    x_wide = jnp.transpose(x, (1, 2, 0, 3)).reshape(C * n, N * n)

    # Stage 1: Graph_BiMap + BatchNormSPD (folded), single gridless launch over the whole batch.
    z = pl.pallas_call(
        graph_bimap_bn_kernel,
        out_shape=jax.ShapeDtypeStruct((N, C, n, n), f32),
        in_specs=[vmem, vmem, vmem],
        out_specs=vmem,
        scratch_shapes=[pltpu.VMEM((C * n, C * n), f32)],
    )(x_wide, M, Bblk)

    # Stage 2: ONE eigh (ReEig + LogEig share the eigenbasis since nothing sits between them).
    # jnp.linalg.eigh symmetrizes its input, so the (~1e-7) matmul asymmetry in z is benign.
    s, u = jnp.linalg.eigh(z)

    # Stage 3: fused ReEig clamp + LogEig reconstruction, batched over N*C, single launch.
    zlog = pl.pallas_call(
        logeig_kernel,
        out_shape=jax.ShapeDtypeStruct((N * C, n, n), f32),
        in_specs=[vmem, vmem],
        out_specs=vmem,
    )(s.reshape(N * C, 1, n).astype(f32), u.reshape(N * C, n, n).astype(f32))

    # Stage 4: Linear classifier on the lane-dense flattened features (free metadata reshape;
    # flatten order matches the PyTorch z.view(N, -1) / Wc (K, C*n*n) layout).
    zf = zlog.reshape(N, C * n * n)
    y = pl.pallas_call(
        classifier_kernel,
        out_shape=jax.ShapeDtypeStruct((N, K), f32),
        in_specs=[vmem, vmem, vmem],
        out_specs=vmem,
    )(zf, Wc, bias2)
    return y


# ------------------------------ reference (JAX) ------------------------------

def sym_mat_power(Mat, p):
    s, u = jnp.linalg.eigh(Mat)
    return (u * (s ** p)[None, :]) @ u.T


def reference_forward(x, P, W, A, Wc, bias):
    """Faithful two-eigh reference matching the PyTorch module structure."""
    N, C, n, _ = x.shape
    xg = jnp.einsum('cd,bdij->bcij', P, x)
    y = jnp.einsum('cji,bcjk,ckl->bcil', W, xg, W)            # W^T Xg W   (Graph_BiMap)
    z = jnp.einsum('ij,bcjk,lk->bcil', A, y, A)               # A Y A^T    (BatchNormSPD, eval)
    s, u = jnp.linalg.eigh(z)
    s = jnp.where(s > REEIG_EPS, s, REEIG_EPS)
    z = jnp.einsum('bcij,bcj,bckj->bcik', u, s, u)            # ReEig
    s, u = jnp.linalg.eigh(z)
    z = jnp.einsum('bcij,bcj,bckj->bcik', u, jnp.log(s), u)   # LogEig
    vec = z.reshape(N, -1)
    return vec @ Wc.T + bias[None, :]


# ----------------------------------- main ------------------------------------

if __name__ == "__main__":
    # channel_num = 4, dims = [24] (fixed by the module), num_classes = 4, batch = 2
    N, C, n, num_classes = 2, 4, 24, 4
    key = jax.random.PRNGKey(0)
    kx, kP, kW, kc, kb = jax.random.split(key, 5)

    # SPD input x: (N, C, n, n)
    Bx = jax.random.normal(kx, (N, C, n, n), jnp.float32)
    x = jnp.einsum('bcij,bckj->bcik', Bx, Bx) / n + 0.5 * jnp.eye(n, dtype=jnp.float32)

    # Graph matrix P: (C, C), symmetric, nonnegative, row-normalized
    Praw = jnp.abs(jax.random.normal(kP, (C, C), jnp.float32)) + C * jnp.eye(C, dtype=jnp.float32)
    Praw = 0.5 * (Praw + Praw.T)
    P = Praw / Praw.sum(axis=1, keepdims=True)

    # Graph_BiMap Stiefel weights W: (C, n, n)  (mimics PyTorch init: svd(v @ v^T) left vectors)
    v = jax.random.uniform(kW, (C, n, n), jnp.float32)
    vvt = jnp.einsum('cij,ckj->cik', v, v)
    u_w, _, _ = jnp.linalg.svd(vvt)
    W = u_w[:, :, :n]

    # BatchNormSPD (eval): running_mean = I, weight = I  ->  A = weight^{1/2} @ running_mean^{-1/2}
    bn_running_mean = jnp.eye(n, dtype=jnp.float32)
    bn_weight = jnp.eye(n, dtype=jnp.float32)
    A = sym_mat_power(bn_weight, 0.5) @ sym_mat_power(bn_running_mean, -0.5)

    # Classifier Linear(C*n*n, num_classes), PyTorch-default-style uniform init
    F = C * n * n
    bound = 1.0 / float(np.sqrt(F))
    Wc = jax.random.uniform(kc, (num_classes, F), jnp.float32, minval=-bound, maxval=bound)
    bias = jax.random.uniform(kb, (num_classes,), jnp.float32, minval=-bound, maxval=bound)

    # One-time weight folding (kept out of the per-step jit)
    M, Bblk, Wc_f32, bias2 = prepare_params(P, W, A, Wc, bias)

    y = graph_cspnet_forward(x, M, Bblk, Wc_f32, bias2)
    jax.block_until_ready(y)
    assert y.shape == (N, num_classes) and y.dtype == jnp.float32

    y_ref = reference_forward(x, P, W, A, Wc, bias)
    np.testing.assert_allclose(np.asarray(y), np.asarray(y_ref), rtol=5e-3, atol=5e-3)

    print("KERNEL_OK")
</pallas_src>

<mosaic_0001>
module attributes {stable_mosaic.version = 11 : i64} {
  func.func @graph_bimap_bn_kernel(%arg0: memref<96x48xf32, #tpu.memory_space<vmem>>, %arg1: memref<96x96xf32, #tpu.memory_space<vmem>>, %arg2: memref<96x96xf32, #tpu.memory_space<vmem>>, %arg3: memref<2x4x24x24xf32, #tpu.memory_space<vmem>>, %arg4: memref<96x96xf32, #tpu.memory_space<vmem>>) attributes {dimension_semantics = [], scalar_prefetch = 0 : i64, scratch_operands = 1 : i64, tpu.core_type = #tpu.core_type<tc>} {
    %c0 = arith.constant 0 : index
    %c0_0 = arith.constant 0 : index
    %0 = vector.load %arg1[%c0, %c0_0] : memref<96x96xf32, #tpu.memory_space<vmem>>, vector<96x96xf32>
    %c0_1 = arith.constant 0 : index
    %c0_2 = arith.constant 0 : index
    %1 = vector.load %arg0[%c0_1, %c0_2] : memref<96x48xf32, #tpu.memory_space<vmem>>, vector<96x48xf32>
    %cst = arith.constant dense<0.000000e+00> : vector<96x48xf32>
    %2 = tpu.matmul %0, %1, %cst {dimension_numbers = #tpu.dot_dimension_numbers<[1], [0], [0], [1], [0, 0, 1, 1], [], []>, precision = #tpu.contract_precision<fp32>} : vector<96x96xf32>, vector<96x48xf32>, vector<96x48xf32> -> vector<96x48xf32>
    %cst_3 = arith.constant 0.000000e+00 : f32
    %3 = vector.broadcast %cst_3 : f32 to vector<96x96xf32>
    %c0_4 = arith.constant 0 : index
    %c0_5 = arith.constant 0 : index
    %4 = vector.load %arg4[%c0_4, %c0_5] : memref<96x96xf32, #tpu.memory_space<vmem>>, vector<96x96xf32>
    tpu.vector_store %arg4[%c0_4, %c0_5], %3 {strides = array<i32>} : memref<96x96xf32, #tpu.memory_space<vmem>>, vector<96x96xf32>,
    %5 = vector.extract_strided_slice %2 {offsets = [0, 0], sizes = [24, 24], strides = [1, 1]} : vector<96x48xf32> to vector<24x24xf32>
    %c0_6 = arith.constant 0 : index
    %c0_7 = arith.constant 0 : index
    %6 = vector.load %arg4[%c0_6, %c0_7] : memref<96x96xf32, #tpu.memory_space<vmem>>, vector<24x24xf32>
    tpu.vector_store %arg4[%c0_6, %c0_7], %5 {strides = array<i32>} : memref<96x96xf32, #tpu.memory_space<vmem>>, vector<24x24xf32>,
    %7 = vector.extract_strided_slice %2 {offsets = [24, 0], sizes = [24, 24], strides = [1, 1]} : vector<96x48xf32> to vector<24x24xf32>
    %c24 = arith.constant 24 : index
    %c24_8 = arith.constant 24 : index
    %8 = vector.load %arg4[%c24, %c24_8] : memref<96x96xf32, #tpu.memory_space<vmem>>, vector<24x24xf32>
    tpu.vector_store %arg4[%c24, %c24_8], %7 {strides = array<i32>} : memref<96x96xf32, #tpu.memory_space<vmem>>, vector<24x24xf32>,
    %9 = vector.extract_strided_slice %2 {offsets = [48, 0], sizes = [24, 24], strides = [1, 1]} : vector<96x48xf32> to vector<24x24xf32>
    %c48 = arith.constant 48 : index
    %c48_9 = arith.constant 48 : index
    %10 = vector.load %arg4[%c48, %c48_9] : memref<96x96xf32, #tpu.memory_space<vmem>>, vector<24x24xf32>
    tpu.vector_store %arg4[%c48, %c48_9], %9 {strides = array<i32>} : memref<96x96xf32, #tpu.memory_space<vmem>>, vector<24x24xf32>,
    %11 = vector.extract_strided_slice %2 {offsets = [72, 0], sizes = [24, 24], strides = [1, 1]} : vector<96x48xf32> to vector<24x24xf32>
    %c72 = arith.constant 72 : index
    %c72_10 = arith.constant 72 : index
    %12 = vector.load %arg4[%c72, %c72_10] : memref<96x96xf32, #tpu.memory_space<vmem>>, vector<24x24xf32>
    tpu.vector_store %arg4[%c72, %c72_10], %11 {strides = array<i32>} : memref<96x96xf32, #tpu.memory_space<vmem>>, vector<24x24xf32>,
    %c0_11 = arith.constant 0 : index
    %c0_12 = arith.constant 0 : index
    %13 = vector.load %arg4[%c0_11, %c0_12] : memref<96x96xf32, #tpu.memory_space<vmem>>, vector<96x96xf32>
    %c0_13 = arith.constant 0 : index
    %c0_14 = arith.constant 0 : index
    %14 = vector.load %arg2[%c0_13, %c0_14] : memref<96x96xf32, #tpu.memory_space<vmem>>, vector<96x96xf32>
    %cst_15 = arith.constant dense<0.000000e+00> : vector<96x96xf32>
    %15 = tpu.matmul %13, %14, %cst_15 {dimension_numbers = #tpu.dot_dimension_numbers<[1], [1], [0], [0], [0, 0, 1, 0], [], []>, precision = #tpu.contract_precision<fp32>} : vector<96x96xf32>, vector<96x96xf32>, vector<96x96xf32> -> vector<96x96xf32>
    %16 = vector.extract_strided_slice %15 {offsets = [0, 0], sizes = [24, 24], strides = [1, 1]} : vector<96x96xf32> to vector<24x24xf32>
    %c0_16 = arith.constant 0 : index
    %c0_17 = arith.constant 0 : index
    %c0_18 = arith.constant 0 : index
    %c0_19 = arith.constant 0 : index
    %17 = vector.load %arg3[%c0_16, %c0_17, %c0_18, %c0_19] : memref<2x4x24x24xf32, #tpu.memory_space<vmem>>, vector<1x1x24x24xf32>
    %18 = vector.shape_cast %17 : vector<1x1x24x24xf32> to vector<24x24xf32>
    %19 = vector.shape_cast %16 : vector<24x24xf32> to vector<1x1x24x24xf32>
    tpu.vector_store %arg3[%c0_16, %c0_17, %c0_18, %c0_19], %19 {strides = array<i32>} : memref<2x4x24x24xf32, #tpu.memory_space<vmem>>, vector<1x1x24x24xf32>,
    %20 = vector.extract_strided_slice %15 {offsets = [24, 24], sizes = [24, 24], strides = [1, 1]} : vector<96x96xf32> to vector<24x24xf32>
    %c0_20 = arith.constant 0 : index
    %c1 = arith.constant 1 : index
    %c0_21 = arith.constant 0 : index
    %c0_22 = arith.constant 0 : index
    %21 = vector.load %arg3[%c0_20, %c1, %c0_21, %c0_22] : memref<2x4x24x24xf32, #tpu.memory_space<vmem>>, vector<1x1x24x24xf32>
    %22 = vector.shape_cast %21 : vector<1x1x24x24xf32> to vector<24x24xf32>
    %23 = vector.shape_cast %20 : vector<24x24xf32> to vector<1x1x24x24xf32>
    tpu.vector_store %arg3[%c0_20, %c1, %c0_21, %c0_22], %23 {strides = array<i32>} : memref<2x4x24x24xf32, #tpu.memory_space<vmem>>, vector<1x1x24x24xf32>,
    %24 = vector.extract_strided_slice %15 {offsets = [48, 48], sizes = [24, 24], strides = [1, 1]} : vector<96x96xf32> to vector<24x24xf32>
    %c0_23 = arith.constant 0 : index
    %c2 = arith.constant 2 : index
    %c0_24 = arith.constant 0 : index
    %c0_25 = arith.constant 0 : index
    %25 = vector.load %arg3[%c0_23, %c2, %c0_24, %c0_25] : memref<2x4x24x24xf32, #tpu.memory_space<vmem>>, vector<1x1x24x24xf32>
    %26 = vector.shape_cast %25 : vector<1x1x24x24xf32> to vector<24x24xf32>
    %27 = vector.shape_cast %24 : vector<24x24xf32> to vector<1x1x24x24xf32>
    tpu.vector_store %arg3[%c0_23, %c2, %c0_24, %c0_25], %27 {strides = array<i32>} : memref<2x4x24x24xf32, #tpu.memory_space<vmem>>, vector<1x1x24x24xf32>,
    %28 = vector.extract_strided_slice %15 {offsets = [72, 72], sizes = [24, 24], strides = [1, 1]} : vector<96x96xf32> to vector<24x24xf32>
    %c0_26 = arith.constant 0 : index
    %c3 = arith.constant 3 : index
    %c0_27 = arith.constant 0 : index
    %c0_28 = arith.constant 0 : index
    %29 = vector.load %arg3[%c0_26, %c3, %c0_27, %c0_28] : memref<2x4x24x24xf32, #tpu.memory_space<vmem>>, vector<1x1x24x24xf32>
    %30 = vector.shape_cast %29 : vector<1x1x24x24xf32> to vector<24x24xf32>
    %31 = vector.shape_cast %28 : vector<24x24xf32> to vector<1x1x24x24xf32>
    tpu.vector_store %arg3[%c0_26, %c3, %c0_27, %c0_28], %31 {strides = array<i32>} : memref<2x4x24x24xf32, #tpu.memory_space<vmem>>, vector<1x1x24x24xf32>,
    %32 = vector.extract_strided_slice %2 {offsets = [0, 24], sizes = [24, 24], strides = [1, 1]} : vector<96x48xf32> to vector<24x24xf32>
    %c0_29 = arith.constant 0 : index
    %c0_30 = arith.constant 0 : index
    %33 = vector.load %arg4[%c0_29, %c0_30] : memref<96x96xf32, #tpu.memory_space<vmem>>, vector<24x24xf32>
    tpu.vector_store %arg4[%c0_29, %c0_30], %32 {strides = array<i32>} : memref<96x96xf32, #tpu.memory_space<vmem>>, vector<24x24xf32>,
    %34 = vector.extract_strided_slice %2 {offsets = [24, 24], sizes = [24, 24], strides = [1, 1]} : vector<96x48xf32> to vector<24x24xf32>
    %c24_31 = arith.constant 24 : index
    %c24_32 = arith.constant 24 : index
    %35 = vector.load %arg4[%c24_31, %c24_32] : memref<96x96xf32, #tpu.memory_space<vmem>>, vector<24x24xf32>
    tpu.vector_store %arg4[%c24_31, %c24_32], %34 {strides = array<i32>} : memref<96x96xf32, #tpu.memory_space<vmem>>, vector<24x24xf32>,
    %36 = vector.extract_strided_slice %2 {offsets = [48, 24], sizes = [24, 24], strides = [1, 1]} : vector<96x48xf32> to vector<24x24xf32>
    %c48_33 = arith.constant 48 : index
    %c48_34 = arith.constant 48 : index
    %37 = vector.load %arg4[%c48_33, %c48_34] : memref<96x96xf32, #tpu.memory_space<vmem>>, vector<24x24xf32>
    tpu.vector_store %arg4[%c48_33, %c48_34], %36 {strides = array<i32>} : memref<96x96xf32, #tpu.memory_space<vmem>>, vector<24x24xf32>,
    %38 = vector.extract_strided_slice %2 {offsets = [72, 24], sizes = [24, 24], strides = [1, 1]} : vector<96x48xf32> to vector<24x24xf32>
    %c72_35 = arith.constant 72 : index
    %c72_36 = arith.constant 72 : index
    %39 = vector.load %arg4[%c72_35, %c72_36] : memref<96x96xf32, #tpu.memory_space<vmem>>, vector<24x24xf32>
    tpu.vector_store %arg4[%c72_35, %c72_36], %38 {strides = array<i32>} : memref<96x96xf32, #tpu.memory_space<vmem>>, vector<24x24xf32>,
    %c0_37 = arith.constant 0 : index
    %c0_38 = arith.constant 0 : index
    %40 = vector.load %arg4[%c0_37, %c0_38] : memref<96x96xf32, #tpu.memory_space<vmem>>, vector<96x96xf32>
    %c0_39 = arith.constant 0 : index
    %c0_40 = arith.constant 0 : index
    %41 = vector.load %arg2[%c0_39, %c0_40] : memref<96x96xf32, #tpu.memory_space<vmem>>, vector<96x96xf32>
    %cst_41 = arith.constant dense<0.000000e+00> : vector<96x96xf32>
    %42 = tpu.matmul %40, %41, %cst_41 {dimension_numbers = #tpu.dot_dimension_numbers<[1], [1], [0], [0], [0, 0, 1, 0], [], []>, precision = #tpu.contract_precision<fp32>} : vector<96x96xf32>, vector<96x96xf32>, vector<96x96xf32> -> vector<96x96xf32>
    %43 = vector.extract_strided_slice %42 {offsets = [0, 0], sizes = [24, 24], strides = [1, 1]} : vector<96x96xf32> to vector<24x24xf32>
    %c1_42 = arith.constant 1 : index
    %c0_43 = arith.constant 0 : index
    %c0_44 = arith.constant 0 : index
    %c0_45 = arith.constant 0 : index
    %44 = vector.load %arg3[%c1_42, %c0_43, %c0_44, %c0_45] : memref<2x4x24x24xf32, #tpu.memory_space<vmem>>, vector<1x1x24x24xf32>
    %45 = vector.shape_cast %44 : vector<1x1x24x24xf32> to vector<24x24xf32>
    %46 = vector.shape_cast %43 : vector<24x24xf32> to vector<1x1x24x24xf32>
    tpu.vector_store %arg3[%c1_42, %c0_43, %c0_44, %c0_45], %46 {strides = array<i32>} : memref<2x4x24x24xf32, #tpu.memory_space<vmem>>, vector<1x1x24x24xf32>,
    %47 = vector.extract_strided_slice %42 {offsets = [24, 24], sizes = [24, 24], strides = [1, 1]} : vector<96x96xf32> to vector<24x24xf32>
    %c1_46 = arith.constant 1 : index
    %c1_47 = arith.constant 1 : index
    %c0_48 = arith.constant 0 : index
    %c0_49 = arith.constant 0 : index
    %48 = vector.load %arg3[%c1_46, %c1_47, %c0_48, %c0_49] : memref<2x4x24x24xf32, #tpu.memory_space<vmem>>, vector<1x1x24x24xf32>
    %49 = vector.shape_cast %48 : vector<1x1x24x24xf32> to vector<24x24xf32>
    %50 = vector.shape_cast %47 : vector<24x24xf32> to vector<1x1x24x24xf32>
    tpu.vector_store %arg3[%c1_46, %c1_47, %c0_48, %c0_49], %50 {strides = array<i32>} : memref<2x4x24x24xf32, #tpu.memory_space<vmem>>, vector<1x1x24x24xf32>,
    %51 = vector.extract_strided_slice %42 {offsets = [48, 48], sizes = [24, 24], strides = [1, 1]} : vector<96x96xf32> to vector<24x24xf32>
    %c1_50 = arith.constant 1 : index
    %c2_51 = arith.constant 2 : index
    %c0_52 = arith.constant 0 : index
    %c0_53 = arith.constant 0 : index
    %52 = vector.load %arg3[%c1_50, %c2_51, %c0_52, %c0_53] : memref<2x4x24x24xf32, #tpu.memory_space<vmem>>, vector<1x1x24x24xf32>
    %53 = vector.shape_cast %52 : vector<1x1x24x24xf32> to vector<24x24xf32>
    %54 = vector.shape_cast %51 : vector<24x24xf32> to vector<1x1x24x24xf32>
    tpu.vector_store %arg3[%c1_50, %c2_51, %c0_52, %c0_53], %54 {strides = array<i32>} : memref<2x4x24x24xf32, #tpu.memory_space<vmem>>, vector<1x1x24x24xf32>,
    %55 = vector.extract_strided_slice %42 {offsets = [72, 72], sizes = [24, 24], strides = [1, 1]} : vector<96x96xf32> to vector<24x24xf32>
    %c1_54 = arith.constant 1 : index
    %c3_55 = arith.constant 3 : index
    %c0_56 = arith.constant 0 : index
    %c0_57 = arith.constant 0 : index
    %56 = vector.load %arg3[%c1_54, %c3_55, %c0_56, %c0_57] : memref<2x4x24x24xf32, #tpu.memory_space<vmem>>, vector<1x1x24x24xf32>
    %57 = vector.shape_cast %56 : vector<1x1x24x24xf32> to vector<24x24xf32>
    %58 = vector.shape_cast %55 : vector<24x24xf32> to vector<1x1x24x24xf32>
    tpu.vector_store %arg3[%c1_54, %c3_55, %c0_56, %c0_57], %58 {strides = array<i32>} : memref<2x4x24x24xf32, #tpu.memory_space<vmem>>, vector<1x1x24x24xf32>,
    return
  }
}

module attributes {stable_mosaic.version = 11 : i64} {
  func.func @logeig_kernel(%arg0: memref<8x1x24xf32, #tpu.memory_space<vmem>>, %arg1: memref<8x24x24xf32, #tpu.memory_space<vmem>>, %arg2: memref<8x24x24xf32, #tpu.memory_space<vmem>>) attributes {dimension_semantics = [], scalar_prefetch = 0 : i64, scratch_operands = 0 : i64, tpu.core_type = #tpu.core_type<tc>} {
    %c0 = arith.constant 0 : index
    %c0_0 = arith.constant 0 : index
    %c0_1 = arith.constant 0 : index
    %0 = vector.load %arg0[%c0, %c0_0, %c0_1] : memref<8x1x24xf32, #tpu.memory_space<vmem>>, vector<8x1x24xf32>
    %cst = arith.constant 9.99999974E-5 : f32
    %1 = vector.broadcast %cst : f32 to vector<8x1x24xf32>
    %2 = arith.maximumf %0, %1 : vector<8x1x24xf32>
    %3 = math.log %2 : vector<8x1x24xf32>
    %c0_2 = arith.constant 0 : index
    %c0_3 = arith.constant 0 : index
    %c0_4 = arith.constant 0 : index
    %4 = vector.load %arg1[%c0_2, %c0_3, %c0_4] : memref<8x24x24xf32, #tpu.memory_space<vmem>>, vector<8x24x24xf32>
    %5 = vector.broadcast %3 : vector<8x1x24xf32> to vector<8x24x24xf32>
    %6 = arith.mulf %4, %5 : vector<8x24x24xf32>
    %c0_5 = arith.constant 0 : index
    %c0_6 = arith.constant 0 : index
    %c0_7 = arith.constant 0 : index
    %7 = vector.load %arg1[%c0_5, %c0_6, %c0_7] : memref<8x24x24xf32, #tpu.memory_space<vmem>>, vector<8x24x24xf32>
    "tpu.trace_start"() <{level = 10 : i32, message = "mik,mjk->mij"}> : () -> ()
    %cst_8 = arith.constant dense<0.000000e+00> : vector<8x24x24xf32>
    %8 = tpu.matmul %6, %7, %cst_8 {dimension_numbers = #tpu.dot_dimension_numbers<[2], [2], [1], [1], [0, 0, 0, 1, 1, 1], [0], [0]>, precision = #tpu.contract_precision<fp32>} : vector<8x24x24xf32>, vector<8x24x24xf32>, vector<8x24x24xf32> -> vector<8x24x24xf32>
    "tpu.trace_stop"() : () -> ()
    %c0_9 = arith.constant 0 : index
    %c0_10 = arith.constant 0 : index
    %c0_11 = arith.constant 0 : index
    %9 = vector.load %arg2[%c0_9, %c0_10, %c0_11] : memref<8x24x24xf32, #tpu.memory_space<vmem>>, vector<8x24x24xf32>
    tpu.vector_store %arg2[%c0_9, %c0_10, %c0_11], %8 {strides = array<i32>} : memref<8x24x24xf32, #tpu.memory_space<vmem>>, vector<8x24x24xf32>,
    return
  }
}

module attributes {stable_mosaic.version = 11 : i64} {
  func.func @classifier_kernel(%arg0: memref<2x2304xf32, #tpu.memory_space<vmem>>, %arg1: memref<4x2304xf32, #tpu.memory_space<vmem>>, %arg2: memref<1x4xf32, #tpu.memory_space<vmem>>, %arg3: memref<2x4xf32, #tpu.memory_space<vmem>>) attributes {dimension_semantics = [], scalar_prefetch = 0 : i64, scratch_operands = 0 : i64, tpu.core_type = #tpu.core_type<tc>} {
    %c0 = arith.constant 0 : index
    %c0_0 = arith.constant 0 : index
    %0 = vector.load %arg0[%c0, %c0_0] : memref<2x2304xf32, #tpu.memory_space<vmem>>, vector<2x2304xf32>
    %c0_1 = arith.constant 0 : index
    %c0_2 = arith.constant 0 : index
    %1 = vector.load %arg1[%c0_1, %c0_2] : memref<4x2304xf32, #tpu.memory_space<vmem>>, vector<4x2304xf32>
    %cst = arith.constant dense<0.000000e+00> : vector<2x4xf32>
    %2 = tpu.matmul %0, %1, %cst {dimension_numbers = #tpu.dot_dimension_numbers<[1], [1], [0], [0], [0, 0, 1, 0], [], []>} : vector<2x2304xf32>, vector<4x2304xf32>, vector<2x4xf32> -> vector<2x4xf32>
    %c0_3 = arith.constant 0 : index
    %c0_4 = arith.constant 0 : index
    %3 = vector.load %arg2[%c0_3, %c0_4] : memref<1x4xf32, #tpu.memory_space<vmem>>, vector<1x4xf32>
    %4 = vector.broadcast %3 : vector<1x4xf32> to vector<2x4xf32>
    %5 = arith.addf %2, %4 : vector<2x4xf32>
    %c0_5 = arith.constant 0 : index
    %c0_6 = arith.constant 0 : index
    %6 = vector.load %arg3[%c0_5, %c0_6] : memref<2x4xf32, #tpu.memory_space<vmem>>, vector<2x4xf32>
    tpu.vector_store %arg3[%c0_5, %c0_6], %5 {strides = array<i32>} : memref<2x4xf32, #tpu.memory_space<vmem>>, vector<2x4xf32>,
    return
  }
}

</mosaic_0001>

<llo_original>
// kernel: custom-call.2
$region0: #{custom-call.2}
  %s0 = inlined_call_operand.vmem [shape: f32[2,4,12,12], index: 0, kind: input, shape index: {}]
  %s1 = inlined_call_operand.vmem [shape: f32[2,4,12,12], index: 1, kind: input, shape index: {}]
  %s2 = inlined_call_operand.vmem [shape: f32[2,4,12,12], index: 2, kind: input, shape index: {}]
  %s3 = inlined_call_operand.vmem [shape: f32[2,4,12,12], index: 3, kind: input, shape index: {}]
  %s4 = inlined_call_operand.vmem [shape: f32[2,4,12], index: 4, kind: output, shape index: {0}]
  %s5 = inlined_call_operand.vmem [shape: f32[2,4,12], index: 5, kind: output, shape index: {1}]
  %s6 = inlined_call_operand.vmem [shape: f32[2,4,12,12], index: 6, kind: output, shape index: {2}]
  %s7 = inlined_call_operand.vmem [shape: f32[2,4,12,12], index: 7, kind: output, shape index: {3}]
  %s8 = inlined_call_operand.vmem [shape: f32[2,4,12,12], index: 8, kind: output, shape index: {4}]
  %s9 = inlined_call_operand.vmem [shape: f32[2,4,12,12], index: 9, kind: output, shape index: {5}]
  %10 = xla_tuple %s4, %s5, %s6, %s7, %s8, %s9
  $region1: #{custom-call.2} parent=0
    #allocation0 [shape = 'u8[16384]{0}', space=vmem, size = 0x4000, scoped, tag = 'operand span for operand 0']
    #allocation1 [shape = 'u8[16384]{0}', space=vmem, size = 0x4000, scoped, tag = 'operand span for operand 1']
    #allocation2 [shape = 'u8[16384]{0}', space=vmem, size = 0x4000, scoped, tag = 'operand span for operand 2']
    #allocation3 [shape = 'u8[16384]{0}', space=vmem, size = 0x4000, scoped, tag = 'operand span for operand 3']
    #allocation4 [shape = 'u8[4096]{0}', space=vmem, size = 0x1000, scoped, tag = 'operand span for operand 4']
    #allocation5 [shape = 'u8[4096]{0}', space=vmem, size = 0x1000, scoped, tag = 'packed  for operand 4']
    #allocation6 [shape = 'u8[4096]{0}', space=vmem, size = 0x1000, scoped, tag = 'operand span for operand 5']
    #allocation7 [shape = 'u8[4096]{0}', space=vmem, size = 0x1000, scoped, tag = 'packed  for operand 5']
    #allocation8 [shape = 'u8[16384]{0}', space=vmem, size = 0x4000, scoped, tag = 'operand span for operand 6']
    #allocation9 [shape = 'u8[16384]{0}', space=vmem, size = 0x4000, scoped, tag = 'operand span for operand 7']
    #allocation10 [shape = 'u8[16384]{0}', space=vmem, size = 0x4000, scoped, tag = 'operand span for operand 8']
    #allocation11 [shape = 'u8[16384]{0}', space=vmem, size = 0x4000, scoped, tag = 'operand span for operand 9']
    loop: start=0, step=1, limit=10
    $region2: #{custom-call.2} parent=1 // loop_pre_header
      _
    $region3: #{custom-call.2} parent=1 // loop_header
      %s12 = sphi 0, %s16
      %p13 = scmp.ge.s32.totalorder %s12, 10
      %s19 = sphi 0, %s31
      %s20 = sphi 0, %s27
      %s21 = sphi 0, %s19
      %s22 = sphi 0, %s20
      %s23 = sphi 0, %s21
      %s24 = sphi 0, %s22
      %s38 = sphi 0, %s40
      %s41 = sphi 0, %s38
      %s42 = sphi 0, %s41
      %s58 = sphi 0, %s42
      %s68 = sphi 0, %s70
      %s71 = sphi 0, %s68
      %s72 = sphi 0, %s71
      %s88 = sphi 0, %s72
    $region4: #{custom-call.2} parent=1 // loop_header_branch
      %15 = sbr.rel (%p13) target = $region8
    $region5: #{custom-call.2} parent=1 // loop_body
      %s17 = ssub.s32 %s12, 1
      %s18 = ssub.s32 %s12, 2
      %s25 = sadd.s32 1, %s20
      %p26 = scmp.ge.s32.totalorder %s25, 4
      %s27 = scalar_select %p26, 0, %s25
      %s28 = sadd.s32 1, %s19
      %s29 = scalar_select %p26, %s28, %s19
      %p30 = scmp.ge.s32.totalorder %s29, 2
      %s31 = scalar_select %p30, 0, %s29
      %s32 = sshrl.u32 %s20, 3
      %s33 = sshrl.u32 %s27, 3
      %s34 = ssub.s32 %s19, %s31
      %s35 = ssub.s32 %s32, %s33
      %s36 = sor.u32 %s34, %s35
      %p37 = scmp.eq.s32.totalorder %s36, 0
      %s39 = sadd.s32 %s38, 1
      %s40 = scalar_select %p37, %s38, %s39
      %p43 = pneg %p37
      %p44 = scmp.eq.s32.totalorder %s12, 7
      %p45 = por %p43, %p44
      %p46 = scmp.ne.s32.totalorder %s38, %s41
      %p47 = scmp.eq.s32.totalorder %s12, 0
      %p48 = por %p46, %p47
      %p49 = scmp.ne.s32.totalorder %s38, %s41
      %p50 = scmp.eq.s32.totalorder %s17, 7
      %p51 = por %p49, %p50
      %p52 = scmp.ne.s32.totalorder %s41, %s42
      %p53 = scmp.eq.s32.totalorder %s17, 0
      %p54 = por %p52, %p53
      %p55 = scmp.ne.s32.totalorder %s41, %s42
      %p56 = scmp.eq.s32.totalorder %s18, 7
      %p57 = por %p55, %p56
      %p59 = scmp.ne.s32.totalorder %s42, %s58
      %p60 = scmp.eq.s32.totalorder %s18, 0
      %p61 = por %p59, %p60
      %s62 = sshrl.u32 %s20, 3
      %s63 = sshrl.u32 %s27, 3
      %s64 = ssub.s32 %s19, %s31
      %s65 = ssub.s32 %s62, %s63
      %s66 = sor.u32 %s64, %s65
      %p67 = scmp.eq.s32.totalorder %s66, 0
      %s69 = sadd.s32 %s68, 1
      %s70 = scalar_select %p67, %s68, %s69
      %p73 = pneg %p67
      %p74 = scmp.eq.s32.totalorder %s12, 7
      %p75 = por %p73, %p74
      %p76 = scmp.ne.s32.totalorder %s68, %s71
      %p77 = scmp.eq.s32.totalorder %s12, 0
      %p78 = por %p76, %p77
      %p79 = scmp.ne.s32.totalorder %s68, %s71
      %p80 = scmp.eq.s32.totalorder %s17, 7
      %p81 = por %p79, %p80
      %p82 = scmp.ne.s32.totalorder %s71, %s72
      %p83 = scmp.eq.s32.totalorder %s17, 0
      %p84 = por %p82, %p83
      %p85 = scmp.ne.s32.totalorder %s71, %s72
      %p86 = scmp.eq.s32.totalorder %s18, 7
      %p87 = por %p85, %p86
      %p89 = scmp.ne.s32.totalorder %s72, %s88
      %p90 = scmp.eq.s32.totalorder %s18, 0
      %p91 = por %p89, %p90
      %p92 = scmp.le.s32.totalorder 1, %s12
      %p93 = scmp.lt.s32.totalorder %s12, 9
      %p94 = pnand %p92, %p93
      %p95 = pneg %p94
      // Predicated region
      $region9: #{custom-call.2} parent=5 // pred_check
        _
      $region10: #{custom-call.2} parent=5 // pred_check_branch
        %97 = sbr.rel (%p94) target = $region12
      $region11: #{custom-call.2} parent=5 // pred_region
        %s98 = ssub.s32 %s12, 1
      $region12: #{custom-call.2} parent=5 // pred_fallthru
        _
      %p99 = scmp.lt.s32.totalorder %s12, 8
      // Predicated region
      $region13: #{custom-call.2} parent=5 // pred_check
        %p100 = pneg %p99
      $region14: #{custom-call.2} parent=5 // pred_check_branch
        %102 = sbr.rel (%p100) target = $region16
      $region15: #{custom-call.2} parent=5 // pred_region
        %s103 = sand.u32 %s12, 1
        %s104 = sand.u32 %s12, 1
        %s105 = smul.addr %s104, 16
        %s106 = scalar_lea.vmem [#allocation0], %s105
        %s107 = smul.addr %s19, 4
        %s108 = sadd.s32 %s20, %s107
        %s109 = smul.addr %s108, 16
        %s110 = scalar_lea.vmem %s0, %s109
        // Predicated region
        $region17: #{custom-call.2} parent=15 // pred_check
          _
        $region18: #{custom-call.2} parent=15 // pred_check_branch
          %112 = sbr.rel (0) target = $region20
        $region19: #{custom-call.2} parent=15 // pred_region
          // Predicated region
          $region21: #{custom-call.2} parent=19 // pred_check
            _
          $region22: #{custom-call.2} parent=19 // pred_check_branch
            %114 = sbr.rel (0) target = $region24
          $region23: #{custom-call.2} parent=19 // pred_region
            loop: start=0, step=1, limit=1
            $region25: #{custom-call.2} parent=23 // loop_pre_header
              _
            $region26: #{custom-call.2} parent=23 // loop_header
              %s116 = sphi 0, %s120
              %p117 = scmp.ge.s32.totalorder %s116, 1
              %s121 = sphi %s110, %s110
              %s122 = sphi %s106, %s106
            $region27: #{custom-call.2} parent=23 // loop_header_branch
              %119 = sbr.rel (%p117) target = $region31
            $region28: #{custom-call.2} parent=23 // loop_body
              %v123 = vld [vmem:[%s121] sm:$0xff]
              %124 = vst [vmem:[%s122] sm:$0xff] %v123
              %v125 = vld [vmem:[%s121 + $0x8] sm:$0xff]
              %126 = vst [vmem:[%s122 + $0x8] sm:$0xff] %v125
            $region29: #{custom-call.2} parent=23 // loop_footer
              %s120 = sadd.s32 1, %s116
            $region30: #{custom-call.2} parent=23 // loop_footer_branch
              %115 = sbr.rel target = $region26
            $region31: #{custom-call.2} parent=23 // loop_exit
              _
          $region24: #{custom-call.2} parent=19 // pred_fallthru
            _
          // Predicated region
          $region32: #{custom-call.2} parent=19 // pred_check
            _
          $region33: #{custom-call.2} parent=19 // pred_check_branch
            %128 = sbr.rel target = $region35
          $region34: #{custom-call.2} parent=19 // pred_region
            _
          $region35: #{custom-call.2} parent=19 // pred_fallthru
            _
        $region20: #{custom-call.2} parent=15 // pred_fallthru
          _
        %129 = vnop
        %s130 = sand.u32 %s12, 1
        %s131 = sand.u32 %s12, 1
        %s132 = smul.addr %s131, 16
        %s133 = scalar_lea.vmem [#allocation1], %s132
        %s134 = smul.addr %s19, 4
        %s135 = sadd.s32 %s20, %s134
        %s136 = smul.addr %s135, 16
        %s137 = scalar_lea.vmem %s1, %s136
        // Predicated region
        $region36: #{custom-call.2} parent=15 // pred_check
          _
        $region37: #{custom-call.2} parent=15 // pred_check_branch
          %139 = sbr.rel (0) target = $region39
        $region38: #{custom-call.2} parent=15 // pred_region
          // Predicated region
          $region40: #{custom-call.2} parent=38 // pred_check
            _
          $region41: #{custom-call.2} parent=38 // pred_check_branch
            %141 = sbr.rel (0) target = $region43
          $region42: #{custom-call.2} parent=38 // pred_region
            loop: start=0, step=1, limit=1
            $region44: #{custom-call.2} parent=42 // loop_pre_header
              _
            $region45: #{custom-call.2} parent=42 // loop_header
              %s143 = sphi 0, %s147
              %p144 = scmp.ge.s32.totalorder %s143, 1
              %s148 = sphi %s137, %s137
              %s149 = sphi %s133, %s133
            $region46: #{custom-call.2} parent=42 // loop_header_branch
              %146 = sbr.rel (%p144) target = $region50
            $region47: #{custom-call.2} parent=42 // loop_body
              %v150 = vld [vmem:[%s148] sm:$0xff]
              %151 = vst [vmem:[%s149] sm:$0xff] %v150
              %v152 = vld [vmem:[%s148 + $0x8] sm:$0xff]
              %153 = vst [vmem:[%s149 + $0x8] sm:$0xff] %v152
            $region48: #{custom-call.2} parent=42 // loop_footer
              %s147 = sadd.s32 1, %s143
            $region49: #{custom-call.2} parent=42 // loop_footer_branch
              %142 = sbr.rel target = $region45
            $region50: #{custom-call.2} parent=42 // loop_exit
              _
          $region43: #{custom-call.2} parent=38 // pred_fallthru
            _
          // Predicated region
          $region51: #{custom-call.2} parent=38 // pred_check
            _
          $region52: #{custom-call.2} parent=38 // pred_check_branch
            %155 = sbr.rel target = $region54
          $region53: #{custom-call.2} parent=38 // pred_region
            _
          $region54: #{custom-call.2} parent=38 // pred_fallthru
            _
        $region39: #{custom-call.2} parent=15 // pred_fallthru
          _
        %156 = vnop
        %s157 = sand.u32 %s12, 1
        %s158 = sand.u32 %s12, 1
        %s159 = smul.addr %s158, 16
        %s160 = scalar_lea.vmem [#allocation2], %s159
        %s161 = smul.addr %s19, 4
        %s162 = sadd.s32 %s20, %s161
        %s163 = smul.addr %s162, 16
        %s164 = scalar_lea.vmem %s2, %s163
        // Predicated region
        $region55: #{custom-call.2} parent=15 // pred_check
          _
        $region56: #{custom-call.2} parent=15 // pred_check_branch
          %166 = sbr.rel (0) target = $region58
        $region57: #{custom-call.2} parent=15 // pred_region
          // Predicated region
          $region59: #{custom-call.2} parent=57 // pred_check
            _
          $region60: #{custom-call.2} parent=57 // pred_check_branch
            %168 = sbr.rel (0) target = $region62
          $region61: #{custom-call.2} parent=57 // pred_region
            loop: start=0, step=1, limit=1
            $region63: #{custom-call.2} parent=61 // loop_pre_header
              _
            $region64: #{custom-call.2} parent=61 // loop_header
              %s170 = sphi 0, %s174
              %p171 = scmp.ge.s32.totalorder %s170, 1
              %s175 = sphi %s164, %s164
              %s176 = sphi %s160, %s160
            $region65: #{custom-call.2} parent=61 // loop_header_branch
              %173 = sbr.rel (%p171) target = $region69
            $region66: #{custom-call.2} parent=61 // loop_body
              %v177 = vld [vmem:[%s175] sm:$0xff]
              %178 = vst [vmem:[%s176] sm:$0xff] %v177
              %v179 = vld [vmem:[%s175 + $0x8] sm:$0xff]
              %180 = vst [vmem:[%s176 + $0x8] sm:$0xff] %v179
            $region67: #{custom-call.2} parent=61 // loop_footer
              %s174 = sadd.s32 1, %s170
            $region68: #{custom-call.2} parent=61 // loop_footer_branch
              %169 = sbr.rel target = $region64
            $region69: #{custom-call.2} parent=61 // loop_exit
              _
          $region62: #{custom-call.2} parent=57 // pred_fallthru
            _
          // Predicated region
          $region70: #{custom-call.2} parent=57 // pred_check
            _
          $region71: #{custom-call.2} parent=57 // pred_check_branch
            %182 = sbr.rel target = $region73
          $region72: #{custom-call.2} parent=57 // pred_region
            _
          $region73: #{custom-call.2} parent=57 // pred_fallthru
            _
        $region58: #{custom-call.2} parent=15 // pred_fallthru
          _
        %183 = vnop
        %s184 = sand.u32 %s12, 1
        %s185 = sand.u32 %s12, 1
        %s186 = smul.addr %s185, 16
        %s187 = scalar_lea.vmem [#allocation3], %s186
        %s188 = smul.addr %s19, 4
        %s189 = sadd.s32 %s20, %s188
        %s190 = smul.addr %s189, 16
        %s191 = scalar_lea.vmem %s3, %s190
        // Predicated region
        $region74: #{custom-call.2} parent=15 // pred_check
          _
        $region75: #{custom-call.2} parent=15 // pred_check_branch
          %193 = sbr.rel (0) target = $region77
        $region76: #{custom-call.2} parent=15 // pred_region
          // Predicated region
          $region78: #{custom-call.2} parent=76 // pred_check
            _
          $region79: #{custom-call.2} parent=76 // pred_check_branch
            %195 = sbr.rel (0) target = $region81
          $region80: #{custom-call.2} parent=76 // pred_region
            loop: start=0, step=1, limit=1
            $region82: #{custom-call.2} parent=80 // loop_pre_header
              _
            $region83: #{custom-call.2} parent=80 // loop_header
              %s197 = sphi 0, %s201
              %p198 = scmp.ge.s32.totalorder %s197, 1
              %s202 = sphi %s191, %s191
              %s203 = sphi %s187, %s187
            $region84: #{custom-call.2} parent=80 // loop_header_branch
              %200 = sbr.rel (%p198) target = $region88
            $region85: #{custom-call.2} parent=80 // loop_body
              %v204 = vld [vmem:[%s202] sm:$0xff]
              %205 = vst [vmem:[%s203] sm:$0xff] %v204
              %v206 = vld [vmem:[%s202 + $0x8] sm:$0xff]
              %207 = vst [vmem:[%s203 + $0x8] sm:$0xff] %v206
            $region86: #{custom-call.2} parent=80 // loop_footer
              %s201 = sadd.s32 1, %s197
            $region87: #{custom-call.2} parent=80 // loop_footer_branch
              %196 = sbr.rel target = $region83
            $region88: #{custom-call.2} parent=80 // loop_exit
              _
          $region81: #{custom-call.2} parent=76 // pred_fallthru
            _
          // Predicated region
          $region89: #{custom-call.2} parent=76 // pred_check
            _
          $region90: #{custom-call.2} parent=76 // pred_check_branch
            %209 = sbr.rel target = $region92
          $region91: #{custom-call.2} parent=76 // pred_region
            _
          $region92: #{custom-call.2} parent=76 // pred_fallthru
            _
        $region77: #{custom-call.2} parent=15 // pred_fallthru
          _
        %210 = vnop
      $region16: #{custom-call.2} parent=5 // pred_fallthru
        _
      %p211 = scmp.le.s32.totalorder 1, %s12
      %p212 = scmp.lt.s32.totalorder %s12, 9
      %p213 = pnand %p211, %p212
      %p214 = pneg %p213
      // Predicated region
      $region93: #{custom-call.2} parent=5 // pred_check
        _
      $region94: #{custom-call.2} parent=5 // pred_check_branch
        %216 = sbr.rel (%p213) target = $region96
      $region95: #{custom-call.2} parent=5 // pred_region
        #allocation12 [shape = 'f32[12,12]{1,0}', space=vmem, size = 0x2000, scoped, tag = 'a top-left matrix']
        #allocation13 [shape = 'f32[12,12]{1,0}', space=vmem, size = 0x2000, scoped, tag = 'a top-right matrix']
        #allocation14 [shape = 'f32[12,12]{1,0}', space=vmem, size = 0x2000, scoped, tag = 'a bottom-left matrix']
        #allocation15 [shape = 'f32[12,12]{1,0}', space=vmem, size = 0x2000, scoped, tag = 'a bottom-right matrix']
        %s217 = ssub.s32 %s12, 1
        %s218 = sand.u32 %s17, 1
        %s219 = sand.u32 %s17, 1
        %s220 = smul.addr %s219, 16
        %s221 = scalar_lea.vmem [#allocation0], %s220
        %s222 = sand.u32 %s17, 1
        %s223 = sand.u32 %s17, 1
        %s224 = smul.addr %s223, 16
        %s225 = scalar_lea.vmem [#allocation1], %s224
        %s226 = sand.u32 %s17, 1
        %s227 = sand.u32 %s17, 1
        %s228 = smul.addr %s227, 16
        %s229 = scalar_lea.vmem [#allocation2], %s228
        %s230 = sand.u32 %s17, 1
        %s231 = sand.u32 %s17, 1
        %s232 = smul.addr %s231, 16
        %s233 = scalar_lea.vmem [#allocation3], %s232
        %s234 = sand.u32 %s17, 1
        %s235 = sand.u32 %s17, 1
        %s236 = smul.addr %s235, 16
        %s237 = scalar_lea.vmem [#allocation0], %s236
        %s238 = sand.u32 %s17, 1
        %s239 = sand.u32 %s17, 1
        %s240 = smul.addr %s239, 16
        %s241 = scalar_lea.vmem [#allocation1], %s240
        %s242 = sand.u32 %s17, 1
        %s243 = sand.u32 %s17, 1
        %s244 = smul.addr %s243, 16
        %s245 = scalar_lea.vmem [#allocation2], %s244
        %s246 = sand.u32 %s17, 1
        %s247 = sand.u32 %s17, 1
        %s248 = smul.addr %s247, 16
        %s249 = scalar_lea.vmem [#allocation3], %s248
        %p250 = pneg %p54
        %p251 = pneg %p51
        %s252 = sand.u32 %s41, 1
        %s253 = sand.u32 %s41, 1
        %s254 = smul.addr %s253, 4
        %s255 = scalar_lea.vmem [#allocation5], %s254
        %p256 = pneg %p84
        %p257 = pneg %p81
        %s258 = sand.u32 %s71, 1
        %s259 = sand.u32 %s71, 1
        %s260 = smul.addr %s259, 4
        %s261 = scalar_lea.vmem [#allocation7], %s260
        %s262 = sand.u32 %s17, 1
        %s263 = sand.u32 %s17, 1
        %s264 = smul.addr %s263, 16
        %s265 = scalar_lea.vmem [#allocation8], %s264
        %s266 = sand.u32 %s17, 1
        %s267 = sand.u32 %s17, 1
        %s268 = smul.addr %s267, 16
        %s269 = scalar_lea.vmem [#allocation9], %s268
        %s270 = sand.u32 %s17, 1
        %s271 = sand.u32 %s17, 1
        %s272 = smul.addr %s271, 16
        %s273 = scalar_lea.vmem [#allocation10], %s272
        %s274 = sand.u32 %s17, 1
        %s275 = sand.u32 %s17, 1
        %s276 = smul.addr %s275, 16
        %s277 = scalar_lea.vmem [#allocation11], %s276
        %s278 = sshrl.u32 %s22, 3
        %s279 = sshrl.u32 %s22, 3
        %s280 = smov [#allocation12]
        %v281 = vld [vmem:[%s221] sm:$0xff]
        %282 = vst [vmem:[%s280] sm:$0xff] %v281
        %s283 = scalar_lea.vmem %s280, 8
        %s284 = scalar_lea.vmem %s221, 8 [#allocation0]
        %v285 = vld [vmem:[%s284] sm:$0xff]
        %286 = vst [vmem:[%s283] sm:$0xff] %v285
        %s287 = smov [#allocation13]
        %v288 = vld [vmem:[%s225] sm:$0xff]
        %289 = vst [vmem:[%s287] sm:$0xff] %v288
        %s290 = scalar_lea.vmem %s287, 8
        %s291 = scalar_lea.vmem %s225, 8 [#allocation1]
        %v292 = vld [vmem:[%s291] sm:$0xff]
        %293 = vst [vmem:[%s290] sm:$0xff] %v292
        %s294 = smov [#allocation14]
        %v295 = vld [vmem:[%s229] sm:$0xff]
        %296 = vst [vmem:[%s294] sm:$0xff] %v295
        %s297 = scalar_lea.vmem %s294, 8
        %s298 = scalar_lea.vmem %s229, 8 [#allocation2]
        %v299 = vld [vmem:[%s298] sm:$0xff]
        %300 = vst [vmem:[%s297] sm:$0xff] %v299
        %s301 = smov [#allocation15]
        %v302 = vld [vmem:[%s233] sm:$0xff]
        %303 = vst [vmem:[%s301] sm:$0xff] %v302
        %s304 = scalar_lea.vmem %s301, 8
        %s305 = scalar_lea.vmem %s233, 8 [#allocation3]
        %v306 = vld [vmem:[%s305] sm:$0xff]
        %307 = vst [vmem:[%s304] sm:$0xff] %v306
        %308 = vst [vmem:[%s265] sm:$0xff] 0.0
        %s309 = scalar_lea.vmem %s265, 8 [#allocation8]
        %310 = vst [vmem:[%s309] sm:$0xff] 0.0
        %311 = vst [vmem:[%s269] sm:$0xff] 0.0
        %s312 = scalar_lea.vmem %s269, 8 [#allocation9]
        %313 = vst [vmem:[%s312] sm:$0xff] 0.0
        %314 = vst [vmem:[%s273] sm:$0xff] 0.0
        %s315 = scalar_lea.vmem %s273, 8 [#allocation10]
        %316 = vst [vmem:[%s315] sm:$0xff] 0.0
        %317 = vst [vmem:[%s277] sm:$0xff] 0.0
        %s318 = scalar_lea.vmem %s277, 8 [#allocation11]
        %319 = vst [vmem:[%s318] sm:$0xff] 0.0
        %s320 = smov %s265
        %v321 = vlaneseq
        %v322 = vand.u32 %v321, 127
        %v323 = vmov %v322
        %v324 = vlaneseq
        %v325 = vshrl.u32 %v324, 7
        %v326 = vmov %v325
        %v327 = vld [vmem:[%s320] sm:$0xff]
        %vm330 = vcmp.eq.s32.totalorder %v326, %v323
        %v331 = vsel %vm330, 1.0, %v327
        %332 = vst [vmem:[%s320] sm:$0xff] %v331
        %s333 = scalar_lea.vmem %s320, 8
        %v334 = vld [vmem:[%s333] sm:$0xf]
        %v336 = vadd.s32 %v326, 8
        %vm337 = vcmp.eq.s32.totalorder %v336, %v323
        %v338 = vsel %vm337, 1.0, %v334
        %339 = vst [vmem:[%s333] sm:$0xf] %v338
        %s340 = smov %s277
        %v341 = vlaneseq
        %v342 = vand.u32 %v341, 127
        %v343 = vmov %v342
        %v344 = vlaneseq
        %v345 = vshrl.u32 %v344, 7
        %v346 = vmov %v345
        %v347 = vld [vmem:[%s340] sm:$0xff]
        %vm350 = vcmp.eq.s32.totalorder %v346, %v343
        %v351 = vsel %vm350, 1.0, %v347
        %352 = vst [vmem:[%s340] sm:$0xff] %v351
        %s353 = scalar_lea.vmem %s340, 8
        %v354 = vld [vmem:[%s353] sm:$0xf]
        %v356 = vadd.s32 %v346, 8
        %vm357 = vcmp.eq.s32.totalorder %v356, %v343
        %v358 = vsel %vm357, 1.0, %v354
        %359 = vst [vmem:[%s353] sm:$0xf] %v358
        // While loop
        $region97: #{custom-call.2} parent=95 // loop_pre_header
          _
        $region98: #{custom-call.2} parent=95 // loop_header
          %s361 = sphi 0, %s1299
          %v362 = vlaneseq
          %v363 = vand.u32 %v362, 127
          %v364 = vmov %v363
          %v365 = vlaneseq
          %v366 = vshrl.u32 %v365, 7
          %v367 = vmov %v366
          %s368 = smov [#allocation12]
          %v369 = vlaneseq
          %v370 = vand.u32 %v369, 127
          %vm371 = vcmp.ge.s32.totalorder %v370, 0
          %vm372 = vcmp.lt.s32.totalorder %v370, 12
          %vm373 = vmand %vm371, %vm372
          %v374 = vld [vmem:[%s368] sm:$0xff]
          %v375 = vsel %vm373, %v374, 0.0
          %v376 = vmul.f32 %v375, %v375
          %vm379 = vcmp.eq.s32.totalorder %v367, %v364
          %v380 = vsel %vm379, 0.0, %v376
          %s381 = scalar_lea.vmem %s368, 8
          %v382 = vld [vmem:[%s381] sm:$0xf]
          %v383 = vsel %vm373, %v382, 0.0
          %v384 = vmul.f32 %v383, %v383
          %v386 = vadd.s32 %v367, 8
          %vm387 = vcmp.eq.s32.totalorder %v386, %v364
          %v388 = vsel %vm387, 0.0, %v384
          %v389 = vadd.f32 %v380, %v388
          %v390 = vadd.f32 %v376, %v384
          %v391 = vlaneseq
          %v392 = vand.u32 %v391, 127
          %v393 = vmov %v392
          %v394 = vlaneseq
          %v395 = vshrl.u32 %v394, 7
          %v396 = vmov %v395
          %s397 = smov [#allocation13]
          %v398 = vlaneseq
          %v399 = vand.u32 %v398, 127
          %vm400 = vcmp.ge.s32.totalorder %v399, 0
          %vm401 = vcmp.lt.s32.totalorder %v399, 12
          %vm402 = vmand %vm400, %vm401
          %v403 = vld [vmem:[%s397] sm:$0xff]
          %v404 = vsel %vm402, %v403, 0.0
          %v405 = vmul.f32 %v404, %v404
          %v406 = vadd.f32 %v389, %v405
          %v407 = vadd.f32 %v390, %v405
          %s408 = scalar_lea.vmem %s397, 8
          %v409 = vld [vmem:[%s408] sm:$0xf]
          %v410 = vsel %vm402, %v409, 0.0
          %v411 = vmul.f32 %v410, %v410
          %v412 = vadd.f32 %v406, %v411
          %v413 = vadd.f32 %v407, %v411
          %v414 = vlaneseq
          %v415 = vand.u32 %v414, 127
          %v416 = vmov %v415
          %v417 = vlaneseq
          %v418 = vshrl.u32 %v417, 7
          %v419 = vmov %v418
          %s420 = smov [#allocation14]
          %v421 = vlaneseq
          %v422 = vand.u32 %v421, 127
          %vm423 = vcmp.ge.s32.totalorder %v422, 0
          %vm424 = vcmp.lt.s32.totalorder %v422, 12
          %vm425 = vmand %vm423, %vm424
          %v426 = vld [vmem:[%s420] sm:$0xff]
          %v427 = vsel %vm425, %v426, 0.0
          %v428 = vmul.f32 %v427, %v427
          %v429 = vadd.f32 %v412, %v428
          %v430 = vadd.f32 %v413, %v428
          %s431 = scalar_lea.vmem %s420, 8
          %v432 = vld [vmem:[%s431] sm:$0xf]
          %v433 = vsel %vm425, %v432, 0.0
          %v434 = vmul.f32 %v433, %v433
          %v435 = vadd.f32 %v429, %v434
          %v436 = vadd.f32 %v430, %v434
          %v437 = vlaneseq
          %v438 = vand.u32 %v437, 127
          %v439 = vmov %v438
          %v440 = vlaneseq
          %v441 = vshrl.u32 %v440, 7
          %v442 = vmov %v441
          %s443 = smov [#allocation15]
          %v444 = vlaneseq
          %v445 = vand.u32 %v444, 127
          %vm446 = vcmp.ge.s32.totalorder %v445, 0
          %vm447 = vcmp.lt.s32.totalorder %v445, 12
          %vm448 = vmand %vm446, %vm447
          %v449 = vld [vmem:[%s443] sm:$0xff]
          %v450 = vsel %vm448, %v449, 0.0
          %v451 = vmul.f32 %v450, %v450
          %vm454 = vcmp.eq.s32.totalorder %v442, %v439
          %v455 = vsel %vm454, 0.0, %v451
          %v456 = vadd.f32 %v435, %v455
          %v457 = vadd.f32 %v436, %v451
          %s458 = scalar_lea.vmem %s443, 8
          %v459 = vld [vmem:[%s458] sm:$0xf]
          %v460 = vsel %vm448, %v459, 0.0
          %v461 = vmul.f32 %v460, %v460
          %v463 = vadd.s32 %v442, 8
          %vm464 = vcmp.eq.s32.totalorder %v463, %v439
          %v465 = vsel %vm464, 0.0, %v461
          %v466 = vadd.f32 %v456, %v465
          %v467 = vadd.f32 %v457, %v461
          %468 = vadd.xlane.f32.xlu0 %v467
          %v469 = vpop.xlane.xlu0 %468
          %v470 = vrot.slane %v469, 4
          %v471 = vadd.f32 %v469, %v470
          %v472 = vrot.slane %v471, 2
          %v473 = vadd.f32 %v471, %v472
          %v474 = vrot.slane %v473, 1
          %v475 = vadd.f32 %v473, %v474
          %476 = vadd.xlane.f32.xlu0 %v466
          %v477 = vpop.xlane.xlu0 %476
          %v478 = vrot.slane %v477, 4
          %v479 = vadd.f32 %v477, %v478
          %v480 = vrot.slane %v479, 2
          %v481 = vadd.f32 %v479, %v480
          %v482 = vrot.slane %v481, 1
          %v483 = vadd.f32 %v481, %v482
          %s484 = vtos %v483
          %s485 = vtos %v475
          %s486 = smul.f32 1e-10, %s485
          %p487 = scmp.le.f32.partialorder %s484, %s486
          %p488 = scmp.ge.s32.totalorder %s361, 15
          %p489 = por %p487, %p488
        $region99: #{custom-call.2} parent=95 // loop_header_branch
          %1301 = sbr.rel (%p489) target = $region103
        $region100: #{custom-call.2} parent=95 // loop_body
          loop: start=0, step=1, limit=23
          $region104: #{custom-call.2} parent=100 // loop_pre_header
            _
          $region105: #{custom-call.2} parent=100 // loop_header
            %s491 = sphi 0, %s495
            %p492 = scmp.ge.s32.totalorder %s491, 23
          $region106: #{custom-call.2} parent=100 // loop_header_branch
            %494 = sbr.rel (%p492) target = $region110
          $region107: #{custom-call.2} parent=100 // loop_body
            #allocation16 [shape = 'f32[1024]{0}', space=vmem, size = 0x1000, scoped, tag = 'a_tl_diag vmem']
            #allocation17 [shape = 'f32[1024]{0}', space=vmem, size = 0x1000, scoped, tag = 'a_tr_diag vmem']
            #allocation18 [shape = 'f32[1024]{0}', space=vmem, size = 0x1000, scoped, tag = 'a_br_diag vmem']
            #allocation19 [shape = 'f32[1024]{0}', space=vmem, size = 0x1000, scoped, tag = 'rt1 vmem']
            #allocation20 [shape = 'f32[1024]{0}', space=vmem, size = 0x1000, scoped, tag = 'rt2 vmem']
            #allocation21 [shape = 'f32[1024]{0}', space=vmem, size = 0x1000, scoped, tag = 'c vmem']
            #allocation22 [shape = 'f32[1024]{0}', space=vmem, size = 0x1000, scoped, tag = 's vmem']
            #allocation23 [shape = 'f32[8192]{0}', space=vmem, size = 0x8000, scoped, tag = 'c broadcast']
            #allocation24 [shape = 'f32[8192]{0}', space=vmem, size = 0x8000, scoped, tag = 's broadcast']
            %s496 = smov [#allocation12]
            %s497 = smov [#allocation16]
            %v498 = vlaneseq
            %v499 = vand.u32 %v498, 127
            %v500 = vmov %v499
            %v501 = vlaneseq
            %v502 = vshrl.u32 %v501, 7
            %v503 = vmov %v502
            %v504 = vld [vmem:[%s496] sm:$0xff]
            %vm507 = vcmp.eq.s32.totalorder %v503, %v500
            %v508 = vsel %vm507, %v504, 0.0
            %s509 = scalar_lea.vmem %s496, 8
            %v510 = vld [vmem:[%s509] sm:$0xf]
            %v512 = vadd.s32 %v503, 8
            %vm513 = vcmp.eq.s32.totalorder %v512, %v500
            %v514 = vsel %vm513, %v510, %v508
            %v515 = vrot.slane %v514, 4
            %v516 = vadd.f32 %v514, %v515
            %v517 = vrot.slane %v516, 2
            %v518 = vadd.f32 %v516, %v517
            %v519 = vrot.slane %v518, 1
            %v520 = vadd.f32 %v518, %v519
            %521 = vst [vmem:[%s497] sm:$0x1] %v520
            %s522 = smov [#allocation13]
            %s523 = smov [#allocation17]
            %v524 = vlaneseq
            %v525 = vand.u32 %v524, 127
            %v526 = vmov %v525
            %v527 = vlaneseq
            %v528 = vshrl.u32 %v527, 7
            %v529 = vmov %v528
            %v530 = vld [vmem:[%s522] sm:$0xff]
            %vm533 = vcmp.eq.s32.totalorder %v529, %v526
            %v534 = vsel %vm533, %v530, 0.0
            %s535 = scalar_lea.vmem %s522, 8
            %v536 = vld [vmem:[%s535] sm:$0xf]
            %v538 = vadd.s32 %v529, 8
            %vm539 = vcmp.eq.s32.totalorder %v538, %v526
            %v540 = vsel %vm539, %v536, %v534
            %v541 = vrot.slane %v540, 4
            %v542 = vadd.f32 %v540, %v541
            %v543 = vrot.slane %v542, 2
            %v544 = vadd.f32 %v542, %v543
            %v545 = vrot.slane %v544, 1
            %v546 = vadd.f32 %v544, %v545
            %547 = vst [vmem:[%s523] sm:$0x1] %v546
            %s548 = smov [#allocation15]
            %s549 = smov [#allocation18]
            %v550 = vlaneseq
            %v551 = vand.u32 %v550, 127
            %v552 = vmov %v551
            %v553 = vlaneseq
            %v554 = vshrl.u32 %v553, 7
            %v555 = vmov %v554
            %v556 = vld [vmem:[%s548] sm:$0xff]
            %vm559 = vcmp.eq.s32.totalorder %v555, %v552
            %v560 = vsel %vm559, %v556, 0.0
            %s561 = scalar_lea.vmem %s548, 8
            %v562 = vld [vmem:[%s561] sm:$0xf]
            %v564 = vadd.s32 %v555, 8
            %vm565 = vcmp.eq.s32.totalorder %v564, %v552
            %v566 = vsel %vm565, %v562, %v560
            %v567 = vrot.slane %v566, 4
            %v568 = vadd.f32 %v566, %v567
            %v569 = vrot.slane %v568, 2
            %v570 = vadd.f32 %v568, %v569
            %v571 = vrot.slane %v570, 1
            %v572 = vadd.f32 %v570, %v571
            %573 = vst [vmem:[%s549] sm:$0x1] %v572
            %s574 = smov [#allocation21]
            %s575 = smov [#allocation22]
            %s576 = smov [#allocation16]
            %v577 = vld [vmem:[%s576] sm:$0xff]
            %s578 = smov [#allocation17]
            %v579 = vld [vmem:[%s578] sm:$0xff]
            %s580 = smov [#allocation18]
            %v581 = vld [vmem:[%s580] sm:$0xff]
            %v582 = vsub.f32 %v581, %v577
            %v583 = vmul.f32 2.0, %v579
            %v584 = vrcp.pop %v583
            %v585 = vmul.f32 %v583, %v584
            %v586 = vsub.f32 1.0, %v585
            %v587 = vmul.f32 %v584, %v586
            %v588 = vadd.f32 %v584, %v587
            %vm589 = vweird.f32 %v583
            %vm590 = vweird.f32 %v584
            %vm591 = vmor %vm589, %vm590
            %v592 = vsel %vm591, %v584, %v588
            %v593 = vand.u32 2147483647, %v583
            %vm594 = vcmp.eq.f32.partialorder %v593, 8.507059e+37
            %v595 = vand.u32 %v583, 2147483648
            %v596 = vor.u32 1.1754944e-38, %v595
            %v597 = vsel %vm594, %v596, %v592
            %v598 = vmul.f32 %v582, %v597
            %vm599 = vcmp.ge.f32.partialorder %v598, 0.0
            %v600 = vmul.f32 %v598, %v598
            %v601 = vadd.f32 1.0, %v600
            %v602 = vrsqrt.pop %v601
            %v603 = vmul.f32 %v602, %v601
            %v604 = vmul.f32 %v603, %v602
            %v605 = vmul.f32 0.5, %v604
            %v606 = vsub.f32 1.5, %v605
            %v607 = vmul.f32 %v602, %v606
            %v608 = vmul.f32 %v601, %v607
            %vm609 = vcmp.eq.f32.partialorder %v601, inf
            %v610 = vsel %vm609, %v601, %v608
            %vm611 = vcmp.eq.f32.partialorder %v601, 0.0
            %v612 = vand.u32 %v601, 2147483648
            %v613 = vsel %vm611, %v612, %v610
            %v614 = vxor.u32 %v613, 2147483648
            %v615 = vsel %vm599, %v613, %v614
            %v616 = vadd.f32 %v598, %v615
            %v617 = vrcp.pop %v616
            %v618 = vmul.f32 %v616, %v617
            %v619 = vsub.f32 1.0, %v618
            %v620 = vmul.f32 %v617, %v619
            %v621 = vadd.f32 %v617, %v620
            %vm622 = vweird.f32 %v616
            %vm623 = vweird.f32 %v617
            %vm624 = vmor %vm622, %vm623
            %v625 = vsel %vm624, %v617, %v621
            %v626 = vand.u32 2147483647, %v616
            %vm627 = vcmp.eq.f32.partialorder %v626, 8.507059e+37
            %v628 = vand.u32 %v616, 2147483648
            %v629 = vor.u32 1.1754944e-38, %v628
            %v630 = vsel %vm627, %v629, %v625
            %v631 = vand.u32 2147483647, %v577
            %v632 = vand.u32 2147483647, %v579
            %v633 = vand.u32 2147483647, %v581
            %v634 = vmin.f32 %v631, %v633
            %v635 = vmul.f32 1.1920929e-08, %v634
            %vm636 = vcmp.le.f32.partialorder %v632, %v635
            %v637 = vsel %vm636, 0.0, %v630
            %v638 = vmul.f32 %v637, %v637
            %v639 = vadd.f32 1.0, %v638
            %v640 = vrsqrt.pop %v639
            %v641 = vmul.f32 %v640, %v639
            %v642 = vmul.f32 %v641, %v640
            %v643 = vmul.f32 0.5, %v642
            %v644 = vsub.f32 1.5, %v643
            %v645 = vmul.f32 %v640, %v644
            %vm646 = vweird.f32 %v639
            %vm647 = vweird.f32 %v640
            %vm648 = vmor %vm646, %vm647
            %v649 = vsel %vm648, %v640, %v645
            %v650 = vmul.f32 %v637, %v649
            %v651 = vmul.f32 %v637, %v579
            %v652 = vsub.f32 %v577, %v651
            %v653 = vmul.f32 %v637, %v579
            %v654 = vadd.f32 %v581, %v653
            %s655 = smov [#allocation19]
            %656 = vst [vmem:[%s655] sm:$0xff] %v652
            %s657 = smov [#allocation20]
            %658 = vst [vmem:[%s657] sm:$0xff] %v654
            %s659 = smov %s574
            %660 = vst [vmem:[%s659] sm:$0xff] %v649
            %s661 = smov %s575
            %662 = vst [vmem:[%s661] sm:$0xff] %v650
            %s663 = smov [#allocation21]
            %v664 = vld [vmem:[%s663] ss:$0 sm:$0xff]
            %v665 = vlaneseq
            %v666 = vand.u32 %v665, 127
            %v667 = vmov %v666
            %v668 = vlaneseq
            %v669 = vshrl.u32 %v668, 7
            %v670 = vmov %v669
            %vm672 = vcmp.eq.s32.totalorder %v670, %v667
            %v673 = vsel %vm672, %v664, 0.0
            %674 = vadd.xlane.f32.xlu0 %v673
            %v675 = vpop.xlane.xlu0 %674
            %s676 = smov [#allocation23]
            %677 = vst [vmem:[%s676] sm:$0xff] %v675
            %s678 = smov [#allocation21]
            %v679 = vld [vmem:[%s678] ss:$0 sm:$0xff]
            %v680 = vlaneseq
            %v681 = vand.u32 %v680, 127
            %v682 = vmov %v681
            %v683 = vlaneseq
            %v684 = vshrl.u32 %v683, 7
            %v685 = vmov %v684
            %v686 = vadd.s32 %v685, 8
            %vm687 = vcmp.eq.s32.totalorder %v686, %v682
            %v688 = vsel %vm687, %v679, 0.0
            %689 = vadd.xlane.f32.xlu0 %v688
            %v690 = vpop.xlane.xlu0 %689
            %s691 = smov [#allocation23]
            %s692 = scalar_lea.vmem %s691, 8
            %693 = vst [vmem:[%s692] sm:$0xff] %v690
            %s694 = smov [#allocation22]
            %v695 = vld [vmem:[%s694] ss:$0 sm:$0xff]
            %v696 = vlaneseq
            %v697 = vand.u32 %v696, 127
            %v698 = vmov %v697
            %v699 = vlaneseq
            %v700 = vshrl.u32 %v699, 7
            %v701 = vmov %v700
            %vm703 = vcmp.eq.s32.totalorder %v701, %v698
            %v704 = vsel %vm703, %v695, 0.0
            %705 = vadd.xlane.f32.xlu0 %v704
            %v706 = vpop.xlane.xlu0 %705
            %s707 = smov [#allocation24]
            %708 = vst [vmem:[%s707] sm:$0xff] %v706
            %s709 = smov [#allocation22]
            %v710 = vld [vmem:[%s709] ss:$0 sm:$0xff]
            %v711 = vlaneseq
            %v712 = vand.u32 %v711, 127
            %v713 = vmov %v712
            %v714 = vlaneseq
            %v715 = vshrl.u32 %v714, 7
            %v716 = vmov %v715
            %v717 = vadd.s32 %v716, 8
            %vm718 = vcmp.eq.s32.totalorder %v717, %v713
            %v719 = vsel %vm718, %v710, 0.0
            %720 = vadd.xlane.f32.xlu0 %v719
            %v721 = vpop.xlane.xlu0 %720
            %s722 = smov [#allocation24]
            %s723 = scalar_lea.vmem %s722, 8
            %724 = vst [vmem:[%s723] sm:$0xff] %v721
            %s725 = smov [#allocation23]
            %v726 = vld [vmem:[%s725] sm:$0xff]
            %s727 = smov [#allocation24]
            %v728 = vld [vmem:[%s727] sm:$0xff]
            %s729 = smov [#allocation12]
            %s730 = smov [#allocation13]
            %s731 = smov [#allocation14]
            %s732 = smov [#allocation15]
            %v733 = vld [vmem:[%s729] sm:$0xff]
            %v734 = vld [vmem:[%s730] sm:$0xff]
            %v735 = vld [vmem:[%s731] sm:$0xff]
            %v736 = vld [vmem:[%s732] sm:$0xff]
            %v737 = vmul.f32 %v726, %v733
            %v738 = vmul.f32 %v728, %v735
            %v739 = vsub.f32 %v737, %v738
            %v740 = vmul.f32 %v726, %v734
            %v741 = vmul.f32 %v728, %v736
            %v742 = vsub.f32 %v740, %v741
            %v743 = vmul.f32 %v728, %v733
            %v744 = vmul.f32 %v726, %v735
            %v745 = vadd.f32 %v743, %v744
            %v746 = vmul.f32 %v728, %v734
            %v747 = vmul.f32 %v726, %v736
            %v748 = vadd.f32 %v746, %v747
            %749 = vst [vmem:[%s729] sm:$0xff] %v739
            %750 = vst [vmem:[%s730] sm:$0xff] %v742
            %751 = vst [vmem:[%s731] sm:$0xff] %v745
            %752 = vst [vmem:[%s732] sm:$0xff] %v748
            %s753 = smov [#allocation23]
            %s754 = scalar_lea.vmem %s753, 8
            %v755 = vld [vmem:[%s754] sm:$0xff]
            %s756 = smov [#allocation24]
            %s757 = scalar_lea.vmem %s756, 8
            %v758 = vld [vmem:[%s757] sm:$0xff]
            %s759 = smov [#allocation12]
            %s760 = scalar_lea.vmem %s759, 8
            %s761 = smov [#allocation13]
            %s762 = scalar_lea.vmem %s761, 8
            %s763 = smov [#allocation14]
            %s764 = scalar_lea.vmem %s763, 8
            %s765 = smov [#allocation15]
            %s766 = scalar_lea.vmem %s765, 8
            %v767 = vld [vmem:[%s760] sm:$0xf]
            %v768 = vld [vmem:[%s762] sm:$0xf]
            %v769 = vld [vmem:[%s764] sm:$0xf]
            %v770 = vld [vmem:[%s766] sm:$0xf]
            %v771 = vmul.f32 %v755, %v767
            %v772 = vmul.f32 %v758, %v769
            %v773 = vsub.f32 %v771, %v772
            %v774 = vmul.f32 %v755, %v768
            %v775 = vmul.f32 %v758, %v770
            %v776 = vsub.f32 %v774, %v775
            %v777 = vmul.f32 %v758, %v767
            %v778 = vmul.f32 %v755, %v769
            %v779 = vadd.f32 %v777, %v778
            %v780 = vmul.f32 %v758, %v768
            %v781 = vmul.f32 %v755, %v770
            %v782 = vadd.f32 %v780, %v781
            %783 = vst [vmem:[%s760] sm:$0xf] %v773
            %784 = vst [vmem:[%s762] sm:$0xf] %v776
            %785 = vst [vmem:[%s764] sm:$0xf] %v779
            %786 = vst [vmem:[%s766] sm:$0xf] %v782
            %s787 = smov [#allocation21]
            %v788 = vld [vmem:[%s787] ss:$0 sm:$0xff]
            %s789 = smov [#allocation22]
            %v790 = vld [vmem:[%s789] ss:$0 sm:$0xff]
            %s791 = smov [#allocation12]
            %s792 = smov [#allocation13]
            %s793 = smov [#allocation14]
            %s794 = smov [#allocation15]
            %v795 = vld [vmem:[%s791] sm:$0xff]
            %v796 = vld [vmem:[%s792] sm:$0xff]
            %v797 = vld [vmem:[%s793] sm:$0xff]
            %v798 = vld [vmem:[%s794] sm:$0xff]
            %v799 = vmul.f32 %v788, %v795
            %v800 = vmul.f32 %v790, %v796
            %v801 = vsub.f32 %v799, %v800
            %v802 = vmul.f32 %v790, %v795
            %v803 = vmul.f32 %v788, %v796
            %v804 = vadd.f32 %v802, %v803
            %v805 = vmul.f32 %v788, %v797
            %v806 = vmul.f32 %v790, %v798
            %v807 = vsub.f32 %v805, %v806
            %v808 = vmul.f32 %v790, %v797
            %v809 = vmul.f32 %v788, %v798
            %v810 = vadd.f32 %v808, %v809
            %811 = vst [vmem:[%s791] sm:$0xff] %v801
            %812 = vst [vmem:[%s792] sm:$0xff] %v804
            %813 = vst [vmem:[%s793] sm:$0xff] %v807
            %814 = vst [vmem:[%s794] sm:$0xff] %v810
            %s815 = smov [#allocation12]
            %s816 = scalar_lea.vmem %s815, 8
            %s817 = smov [#allocation13]
            %s818 = scalar_lea.vmem %s817, 8
            %s819 = smov [#allocation14]
            %s820 = scalar_lea.vmem %s819, 8
            %s821 = smov [#allocation15]
            %s822 = scalar_lea.vmem %s821, 8
            %v823 = vld [vmem:[%s816] sm:$0xf]
            %v824 = vld [vmem:[%s818] sm:$0xf]
            %v825 = vld [vmem:[%s820] sm:$0xf]
            %v826 = vld [vmem:[%s822] sm:$0xf]
            %v827 = vmul.f32 %v788, %v823
            %v828 = vmul.f32 %v790, %v824
            %v829 = vsub.f32 %v827, %v828
            %v830 = vmul.f32 %v790, %v823
            %v831 = vmul.f32 %v788, %v824
            %v832 = vadd.f32 %v830, %v831
            %v833 = vmul.f32 %v788, %v825
            %v834 = vmul.f32 %v790, %v826
            %v835 = vsub.f32 %v833, %v834
            %v836 = vmul.f32 %v790, %v825
            %v837 = vmul.f32 %v788, %v826
            %v838 = vadd.f32 %v836, %v837
            %839 = vst [vmem:[%s816] sm:$0xf] %v829
            %840 = vst [vmem:[%s818] sm:$0xf] %v832
            %841 = vst [vmem:[%s820] sm:$0xf] %v835
            %842 = vst [vmem:[%s822] sm:$0xf] %v838
            %s843 = smov [#allocation12]
            %s844 = smov [#allocation19]
            %v845 = vlaneseq
            %v846 = vand.u32 %v845, 127
            %v847 = vmov %v846
            %v848 = vlaneseq
            %v849 = vshrl.u32 %v848, 7
            %v850 = vmov %v849
            %v851 = vld [vmem:[%s844] ss:$0 sm:$0xff]
            %v852 = vld [vmem:[%s843] sm:$0xff]
            %vm855 = vcmp.eq.s32.totalorder %v850, %v847
            %v856 = vsel %vm855, %v851, %v852
            %857 = vst [vmem:[%s843] sm:$0xff] %v856
            %v858 = vld [vmem:[%s844] ss:$0 sm:$0xff]
            %s859 = scalar_lea.vmem %s843, 8
            %v860 = vld [vmem:[%s859] sm:$0xf]
            %v862 = vadd.s32 %v850, 8
            %vm863 = vcmp.eq.s32.totalorder %v862, %v847
            %v864 = vsel %vm863, %v858, %v860
            %865 = vst [vmem:[%s859] sm:$0xf] %v864
            %s866 = smov [#allocation13]
            %v867 = vlaneseq
            %v868 = vand.u32 %v867, 127
            %v869 = vmov %v868
            %v870 = vlaneseq
            %v871 = vshrl.u32 %v870, 7
            %v872 = vmov %v871
            %v873 = vld [vmem:[%s866] sm:$0xff]
            %vm876 = vcmp.eq.s32.totalorder %v872, %v869
            %v877 = vsel %vm876, 0.0, %v873
            %878 = vst [vmem:[%s866] sm:$0xff] %v877
            %s879 = scalar_lea.vmem %s866, 8
            %v880 = vld [vmem:[%s879] sm:$0xf]
            %v882 = vadd.s32 %v872, 8
            %vm883 = vcmp.eq.s32.totalorder %v882, %v869
            %v884 = vsel %vm883, 0.0, %v880
            %885 = vst [vmem:[%s879] sm:$0xf] %v884
            %s886 = smov [#allocation14]
            %v887 = vlaneseq
            %v888 = vand.u32 %v887, 127
            %v889 = vmov %v888
            %v890 = vlaneseq
            %v891 = vshrl.u32 %v890, 7
            %v892 = vmov %v891
            %v893 = vld [vmem:[%s886] sm:$0xff]
            %vm896 = vcmp.eq.s32.totalorder %v892, %v889
            %v897 = vsel %vm896, 0.0, %v893
            %898 = vst [vmem:[%s886] sm:$0xff] %v897
            %s899 = scalar_lea.vmem %s886, 8
            %v900 = vld [vmem:[%s899] sm:$0xf]
            %v902 = vadd.s32 %v892, 8
            %vm903 = vcmp.eq.s32.totalorder %v902, %v889
            %v904 = vsel %vm903, 0.0, %v900
            %905 = vst [vmem:[%s899] sm:$0xf] %v904
            %s906 = smov [#allocation15]
            %s907 = smov [#allocation20]
            %v908 = vlaneseq
            %v909 = vand.u32 %v908, 127
            %v910 = vmov %v909
            %v911 = vlaneseq
            %v912 = vshrl.u32 %v911, 7
            %v913 = vmov %v912
            %v914 = vld [vmem:[%s907] ss:$0 sm:$0xff]
            %v915 = vld [vmem:[%s906] sm:$0xff]
            %vm918 = vcmp.eq.s32.totalorder %v913, %v910
            %v919 = vsel %vm918, %v914, %v915
            %920 = vst [vmem:[%s906] sm:$0xff] %v919
            %v921 = vld [vmem:[%s907] ss:$0 sm:$0xff]
            %s922 = scalar_lea.vmem %s906, 8
            %v923 = vld [vmem:[%s922] sm:$0xf]
            %v925 = vadd.s32 %v913, 8
            %vm926 = vcmp.eq.s32.totalorder %v925, %v910
            %v927 = vsel %vm926, %v921, %v923
            %928 = vst [vmem:[%s922] sm:$0xf] %v927
            %s929 = smov [#allocation12]
            %s930 = smov [#allocation13]
            %v931 = vld [vmem:[%s930] sm:$0xff]
            %932 = vrot.lane.b32.xlu0 %v931, 1
            %v933 = vpop.permute.xlu0 %932
            %v934 = vld [vmem:[%s929] sm:$0xff]
            %v935 = vld [vmem:[%s929] sm:$0xff]
            %936 = vrot.lane.b32.xlu0 %v935, 1
            %v937 = vpop.permute.xlu0 %936
            %v938 = vlaneseq
            %v939 = vand.u32 %v938, 127
            %vm940 = vcmp.eq.s32.totalorder %v939, 0
            %v941 = vsel %vm940, %v935, %v937
            %v942 = vlaneseq
            %v943 = vand.u32 %v942, 127
            %vm944 = vcmp.eq.s32.totalorder %v943, 1
            %v945 = vsel %vm944, %v933, %v941
            %v946 = vlaneseq
            %v947 = vand.u32 %v946, 127
            %vm948 = vcmp.ge.s32.totalorder %v947, 0
            %vm949 = vcmp.lt.s32.totalorder %v947, 12
            %vm950 = vmand %vm948, %vm949
            %v951 = vsel %vm950, %v945, 0.0
            %v952 = vld [vmem:[%s930] sm:$0xff]
            %953 = vrot.lane.b32.xlu0 %v952, 127
            %v954 = vpop.permute.xlu0 %953
            %v955 = vlaneseq
            %v956 = vand.u32 %v955, 127
            %vm957 = vcmp.eq.s32.totalorder %v956, 11
            %v958 = vsel %vm957, %v934, %v954
            %s959 = smov [#allocation12]
            %s960 = scalar_lea.vmem %s959, 8
            %s961 = smov [#allocation13]
            %s962 = scalar_lea.vmem %s961, 8
            %v963 = vld [vmem:[%s962] sm:$0xf]
            %964 = vrot.lane.b32.xlu0 %v963, 1
            %v965 = vpop.permute.xlu0 %964
            %v966 = vld [vmem:[%s960] sm:$0xf]
            %v967 = vld [vmem:[%s960] sm:$0xf]
            %968 = vrot.lane.b32.xlu0 %v967, 1
            %v969 = vpop.permute.xlu0 %968
            %v970 = vlaneseq
            %v971 = vand.u32 %v970, 127
            %vm972 = vcmp.eq.s32.totalorder %v971, 0
            %v973 = vsel %vm972, %v967, %v969
            %v974 = vlaneseq
            %v975 = vand.u32 %v974, 127
            %vm976 = vcmp.eq.s32.totalorder %v975, 1
            %v977 = vsel %vm976, %v965, %v973
            %v978 = vlaneseq
            %v979 = vand.u32 %v978, 127
            %vm980 = vcmp.ge.s32.totalorder %v979, 0
            %vm981 = vcmp.lt.s32.totalorder %v979, 12
            %vm982 = vmand %vm980, %vm981
            %v983 = vsel %vm982, %v977, 0.0
            %v984 = vld [vmem:[%s962] sm:$0xf]
            %985 = vrot.lane.b32.xlu0 %v984, 127
            %v986 = vpop.permute.xlu0 %985
            %v987 = vlaneseq
            %v988 = vand.u32 %v987, 127
            %vm989 = vcmp.eq.s32.totalorder %v988, 11
            %v990 = vsel %vm989, %v966, %v986
            %991 = vst [vmem:[%s929] sm:$0xff] %v951
            %992 = vst [vmem:[%s930] sm:$0xff] %v958
            %993 = vst [vmem:[%s960] sm:$0xf] %v983
            %994 = vst [vmem:[%s962] sm:$0xf] %v990
            %s995 = smov [#allocation14]
            %s996 = smov [#allocation15]
            %v997 = vld [vmem:[%s996] sm:$0xff]
            %998 = vrot.lane.b32.xlu0 %v997, 1
            %v999 = vpop.permute.xlu0 %998
            %v1000 = vld [vmem:[%s995] sm:$0xff]
            %v1001 = vld [vmem:[%s995] sm:$0xff]
            %1002 = vrot.lane.b32.xlu0 %v1001, 1
            %v1003 = vpop.permute.xlu0 %1002
            %v1004 = vlaneseq
            %v1005 = vand.u32 %v1004, 127
            %vm1006 = vcmp.eq.s32.totalorder %v1005, 0
            %v1007 = vsel %vm1006, %v1001, %v1003
            %v1008 = vlaneseq
            %v1009 = vand.u32 %v1008, 127
            %vm1010 = vcmp.eq.s32.totalorder %v1009, 1
            %v1011 = vsel %vm1010, %v999, %v1007
            %v1012 = vlaneseq
            %v1013 = vand.u32 %v1012, 127
            %vm1014 = vcmp.ge.s32.totalorder %v1013, 0
            %vm1015 = vcmp.lt.s32.totalorder %v1013, 12
            %vm1016 = vmand %vm1014, %vm1015
            %v1017 = vsel %vm1016, %v1011, 0.0
            %v1018 = vld [vmem:[%s996] sm:$0xff]
            %1019 = vrot.lane.b32.xlu0 %v1018, 127
            %v1020 = vpop.permute.xlu0 %1019
            %v1021 = vlaneseq
            %v1022 = vand.u32 %v1021, 127
            %vm1023 = vcmp.eq.s32.totalorder %v1022, 11
            %v1024 = vsel %vm1023, %v1000, %v1020
            %s1025 = smov [#allocation14]
            %s1026 = scalar_lea.vmem %s1025, 8
            %s1027 = smov [#allocation15]
            %s1028 = scalar_lea.vmem %s1027, 8
            %v1029 = vld [vmem:[%s1028] sm:$0xf]
            %1030 = vrot.lane.b32.xlu0 %v1029, 1
            %v1031 = vpop.permute.xlu0 %1030
            %v1032 = vld [vmem:[%s1026] sm:$0xf]
            %v1033 = vld [vmem:[%s1026] sm:$0xf]
            %1034 = vrot.lane.b32.xlu0 %v1033, 1
            %v1035 = vpop.permute.xlu0 %1034
            %v1036 = vlaneseq
            %v1037 = vand.u32 %v1036, 127
            %vm1038 = vcmp.eq.s32.totalorder %v1037, 0
            %v1039 = vsel %vm1038, %v1033, %v1035
            %v1040 = vlaneseq
            %v1041 = vand.u32 %v1040, 127
            %vm1042 = vcmp.eq.s32.totalorder %v1041, 1
            %v1043 = vsel %vm1042, %v1031, %v1039
            %v1044 = vlaneseq
            %v1045 = vand.u32 %v1044, 127
            %vm1046 = vcmp.ge.s32.totalorder %v1045, 0
            %vm1047 = vcmp.lt.s32.totalorder %v1045, 12
            %vm1048 = vmand %vm1046, %vm1047
            %v1049 = vsel %vm1048, %v1043, 0.0
            %v1050 = vld [vmem:[%s1028] sm:$0xf]
            %1051 = vrot.lane.b32.xlu0 %v1050, 127
            %v1052 = vpop.permute.xlu0 %1051
            %v1053 = vlaneseq
            %v1054 = vand.u32 %v1053, 127
            %vm1055 = vcmp.eq.s32.totalorder %v1054, 11
            %v1056 = vsel %vm1055, %v1032, %v1052
            %1057 = vst [vmem:[%s995] sm:$0xff] %v1017
            %1058 = vst [vmem:[%s996] sm:$0xff] %v1024
            %1059 = vst [vmem:[%s1026] sm:$0xf] %v1049
            %1060 = vst [vmem:[%s1028] sm:$0xf] %v1056
            %s1061 = smov [#allocation12]
            %s1062 = smov [#allocation14]
            %v1063 = vld [vmem:[%s1061] ss:$0 sm:$0xff]
            %s1065 = scalar_lea.vmem %s1061, 4294967295
            %v1066 = vld [vmem:[%s1065] sm:$0xfe]
            %v1067 = vlaneseq
            %v1068 = vshrl.u32 %v1067, 7
            %vm1069 = vcmp.eq.s32.totalorder %v1068, 0
            %v1070 = vsel %vm1069, %v1063, %v1066
            %s1071 = scalar_lea.vmem %s1061, 7
            %v1072 = vld [vmem:[%s1071] ss:$0 sm:$0xff]
            %1073 = vst [vmem:[%s1061] sm:$0xff] %v1070
            %s1074 = scalar_lea.vmem %s1061, 8
            %s1076 = scalar_lea.vmem %s1074, 4294967295
            %v1077 = vld [vmem:[%s1076] sm:$0xe]
            %v1078 = vlaneseq
            %v1079 = vshrl.u32 %v1078, 7
            %vm1080 = vcmp.eq.s32.totalorder %v1079, 0
            %v1081 = vsel %vm1080, %v1072, %v1077
            %s1082 = scalar_lea.vmem %s1074, 3
            %v1083 = vld [vmem:[%s1082] ss:$0 sm:$0xff]
            %1084 = vst [vmem:[%s1074] sm:$0xf] %v1081
            %v1085 = vld [vmem:[%s1062] ss:$0 sm:$0xff]
            %s1086 = scalar_lea.vmem %s1061, 1
            %1087 = vst [vmem:[%s1086] sm:$0x1] %v1085
            %s1088 = scalar_lea.vmem %s1062, 8
            %s1089 = scalar_lea.vmem %s1088, 1
            %v1090 = vld [vmem:[%s1089] sm:$0x7]
            %v1091 = vlaneseq
            %v1092 = vshrl.u32 %v1091, 7
            %vm1093 = vcmp.eq.s32.totalorder %v1092, 3
            %v1094 = vsel %vm1093, %v1083, %v1090
            %v1095 = vld [vmem:[%s1088] ss:$0 sm:$0xff]
            %1096 = vst [vmem:[%s1088] sm:$0xf] %v1094
            %s1097 = scalar_lea.vmem %s1062, 1
            %v1098 = vld [vmem:[%s1097] sm:$0x7f]
            %v1099 = vlaneseq
            %v1100 = vshrl.u32 %v1099, 7
            %vm1101 = vcmp.eq.s32.totalorder %v1100, 7
            %v1102 = vsel %vm1101, %v1095, %v1098
            %v1103 = vld [vmem:[%s1062] ss:$0 sm:$0xff]
            %1104 = vst [vmem:[%s1062] sm:$0xff] %v1102
            %s1105 = smov [#allocation13]
            %s1106 = smov [#allocation15]
            %v1107 = vld [vmem:[%s1105] ss:$0 sm:$0xff]
            %s1109 = scalar_lea.vmem %s1105, 4294967295
            %v1110 = vld [vmem:[%s1109] sm:$0xfe]
            %v1111 = vlaneseq
            %v1112 = vshrl.u32 %v1111, 7
            %vm1113 = vcmp.eq.s32.totalorder %v1112, 0
            %v1114 = vsel %vm1113, %v1107, %v1110
            %s1115 = scalar_lea.vmem %s1105, 7
            %v1116 = vld [vmem:[%s1115] ss:$0 sm:$0xff]
            %1117 = vst [vmem:[%s1105] sm:$0xff] %v1114
            %s1118 = scalar_lea.vmem %s1105, 8
            %s1120 = scalar_lea.vmem %s1118, 4294967295
            %v1121 = vld [vmem:[%s1120] sm:$0xe]
            %v1122 = vlaneseq
            %v1123 = vshrl.u32 %v1122, 7
            %vm1124 = vcmp.eq.s32.totalorder %v1123, 0
            %v1125 = vsel %vm1124, %v1116, %v1121
            %s1126 = scalar_lea.vmem %s1118, 3
            %v1127 = vld [vmem:[%s1126] ss:$0 sm:$0xff]
            %1128 = vst [vmem:[%s1118] sm:$0xf] %v1125
            %v1129 = vld [vmem:[%s1106] ss:$0 sm:$0xff]
            %s1130 = scalar_lea.vmem %s1105, 1
            %1131 = vst [vmem:[%s1130] sm:$0x1] %v1129
            %s1132 = scalar_lea.vmem %s1106, 8
            %s1133 = scalar_lea.vmem %s1132, 1
            %v1134 = vld [vmem:[%s1133] sm:$0x7]
            %v1135 = vlaneseq
            %v1136 = vshrl.u32 %v1135, 7
            %vm1137 = vcmp.eq.s32.totalorder %v1136, 3
            %v1138 = vsel %vm1137, %v1127, %v1134
            %v1139 = vld [vmem:[%s1132] ss:$0 sm:$0xff]
            %1140 = vst [vmem:[%s1132] sm:$0xf] %v1138
            %s1141 = scalar_lea.vmem %s1106, 1
            %v1142 = vld [vmem:[%s1141] sm:$0x7f]
            %v1143 = vlaneseq
            %v1144 = vshrl.u32 %v1143, 7
            %vm1145 = vcmp.eq.s32.totalorder %v1144, 7
            %v1146 = vsel %vm1145, %v1139, %v1142
            %v1147 = vld [vmem:[%s1106] ss:$0 sm:$0xff]
            %1148 = vst [vmem:[%s1106] sm:$0xff] %v1146
            %s1149 = smov [#allocation23]
            %v1150 = vld [vmem:[%s1149] sm:$0xff]
            %s1151 = smov [#allocation24]
            %v1152 = vld [vmem:[%s1151] sm:$0xff]
            %s1153 = smov %s265
            %s1154 = smov %s269
            %s1155 = smov %s273
            %s1156 = smov %s277
            %v1157 = vld [vmem:[%s1153] sm:$0xff]
            %v1158 = vld [vmem:[%s1154] sm:$0xff]
            %v1159 = vld [vmem:[%s1155] sm:$0xff]
            %v1160 = vld [vmem:[%s1156] sm:$0xff]
            %v1161 = vmul.f32 %v1150, %v1157
            %v1162 = vmul.f32 %v1152, %v1159
            %v1163 = vsub.f32 %v1161, %v1162
            %v1164 = vmul.f32 %v1150, %v1158
            %v1165 = vmul.f32 %v1152, %v1160
            %v1166 = vsub.f32 %v1164, %v1165
            %v1167 = vmul.f32 %v1152, %v1157
            %v1168 = vmul.f32 %v1150, %v1159
            %v1169 = vadd.f32 %v1167, %v1168
            %v1170 = vmul.f32 %v1152, %v1158
            %v1171 = vmul.f32 %v1150, %v1160
            %v1172 = vadd.f32 %v1170, %v1171
            %1173 = vst [vmem:[%s1153] sm:$0xff] %v1163
            %1174 = vst [vmem:[%s1154] sm:$0xff] %v1166
            %1175 = vst [vmem:[%s1155] sm:$0xff] %v1169
            %1176 = vst [vmem:[%s1156] sm:$0xff] %v1172
            %s1177 = smov [#allocation23]
            %s1178 = scalar_lea.vmem %s1177, 8
            %v1179 = vld [vmem:[%s1178] sm:$0xff]
            %s1180 = smov [#allocation24]
            %s1181 = scalar_lea.vmem %s1180, 8
            %v1182 = vld [vmem:[%s1181] sm:$0xff]
            %s1183 = smov %s265
            %s1184 = scalar_lea.vmem %s1183, 8
            %s1185 = smov %s269
            %s1186 = scalar_lea.vmem %s1185, 8
            %s1187 = smov %s273
            %s1188 = scalar_lea.vmem %s1187, 8
            %s1189 = smov %s277
            %s1190 = scalar_lea.vmem %s1189, 8
            %v1191 = vld [vmem:[%s1184] sm:$0xf]
            %v1192 = vld [vmem:[%s1186] sm:$0xf]
            %v1193 = vld [vmem:[%s1188] sm:$0xf]
            %v1194 = vld [vmem:[%s1190] sm:$0xf]
            %v1195 = vmul.f32 %v1179, %v1191
            %v1196 = vmul.f32 %v1182, %v1193
            %v1197 = vsub.f32 %v1195, %v1196
            %v1198 = vmul.f32 %v1179, %v1192
            %v1199 = vmul.f32 %v1182, %v1194
            %v1200 = vsub.f32 %v1198, %v1199
            %v1201 = vmul.f32 %v1182, %v1191
            %v1202 = vmul.f32 %v1179, %v1193
            %v1203 = vadd.f32 %v1201, %v1202
            %v1204 = vmul.f32 %v1182, %v1192
            %v1205 = vmul.f32 %v1179, %v1194
            %v1206 = vadd.f32 %v1204, %v1205
            %1207 = vst [vmem:[%s1184] sm:$0xf] %v1197
            %1208 = vst [vmem:[%s1186] sm:$0xf] %v1200
            %1209 = vst [vmem:[%s1188] sm:$0xf] %v1203
            %1210 = vst [vmem:[%s1190] sm:$0xf] %v1206
            %s1211 = smov %s265
            %s1212 = smov %s273
            %v1213 = vld [vmem:[%s1211] ss:$0 sm:$0xff]
            %s1215 = scalar_lea.vmem %s1211, 4294967295
            %v1216 = vld [vmem:[%s1215] sm:$0xfe]
            %v1217 = vlaneseq
            %v1218 = vshrl.u32 %v1217, 7
            %vm1219 = vcmp.eq.s32.totalorder %v1218, 0
            %v1220 = vsel %vm1219, %v1213, %v1216
            %s1221 = scalar_lea.vmem %s1211, 7
            %v1222 = vld [vmem:[%s1221] ss:$0 sm:$0xff]
            %1223 = vst [vmem:[%s1211] sm:$0xff] %v1220
            %s1224 = scalar_lea.vmem %s1211, 8
            %s1226 = scalar_lea.vmem %s1224, 4294967295
            %v1227 = vld [vmem:[%s1226] sm:$0xe]
            %v1228 = vlaneseq
            %v1229 = vshrl.u32 %v1228, 7
            %vm1230 = vcmp.eq.s32.totalorder %v1229, 0
            %v1231 = vsel %vm1230, %v1222, %v1227
            %s1232 = scalar_lea.vmem %s1224, 3
            %v1233 = vld [vmem:[%s1232] ss:$0 sm:$0xff]
            %1234 = vst [vmem:[%s1224] sm:$0xf] %v1231
            %v1235 = vld [vmem:[%s1212] ss:$0 sm:$0xff]
            %s1236 = scalar_lea.vmem %s1211, 1
            %1237 = vst [vmem:[%s1236] sm:$0x1] %v1235
            %s1238 = scalar_lea.vmem %s1212, 8
            %s1239 = scalar_lea.vmem %s1238, 1
            %v1240 = vld [vmem:[%s1239] sm:$0x7]
            %v1241 = vlaneseq
            %v1242 = vshrl.u32 %v1241, 7
            %vm1243 = vcmp.eq.s32.totalorder %v1242, 3
            %v1244 = vsel %vm1243, %v1233, %v1240
            %v1245 = vld [vmem:[%s1238] ss:$0 sm:$0xff]
            %1246 = vst [vmem:[%s1238] sm:$0xf] %v1244
            %s1247 = scalar_lea.vmem %s1212, 1
            %v1248 = vld [vmem:[%s1247] sm:$0x7f]
            %v1249 = vlaneseq
            %v1250 = vshrl.u32 %v1249, 7
            %vm1251 = vcmp.eq.s32.totalorder %v1250, 7
            %v1252 = vsel %vm1251, %v1245, %v1248
            %v1253 = vld [vmem:[%s1212] ss:$0 sm:$0xff]
            %1254 = vst [vmem:[%s1212] sm:$0xff] %v1252
            %s1255 = smov %s269
            %s1256 = smov %s277
            %v1257 = vld [vmem:[%s1255] ss:$0 sm:$0xff]
            %s1259 = scalar_lea.vmem %s1255, 4294967295
            %v1260 = vld [vmem:[%s1259] sm:$0xfe]
            %v1261 = vlaneseq
            %v1262 = vshrl.u32 %v1261, 7
            %vm1263 = vcmp.eq.s32.totalorder %v1262, 0
            %v1264 = vsel %vm1263, %v1257, %v1260
            %s1265 = scalar_lea.vmem %s1255, 7
            %v1266 = vld [vmem:[%s1265] ss:$0 sm:$0xff]
            %1267 = vst [vmem:[%s1255] sm:$0xff] %v1264
            %s1268 = scalar_lea.vmem %s1255, 8
            %s1270 = scalar_lea.vmem %s1268, 4294967295
            %v1271 = vld [vmem:[%s1270] sm:$0xe]
            %v1272 = vlaneseq
            %v1273 = vshrl.u32 %v1272, 7
            %vm1274 = vcmp.eq.s32.totalorder %v1273, 0
            %v1275 = vsel %vm1274, %v1266, %v1271
            %s1276 = scalar_lea.vmem %s1268, 3
            %v1277 = vld [vmem:[%s1276] ss:$0 sm:$0xff]
            %1278 = vst [vmem:[%s1268] sm:$0xf] %v1275
            %v1279 = vld [vmem:[%s1256] ss:$0 sm:$0xff]
            %s1280 = scalar_lea.vmem %s1255, 1
            %1281 = vst [vmem:[%s1280] sm:$0x1] %v1279
            %s1282 = scalar_lea.vmem %s1256, 8
            %s1283 = scalar_lea.vmem %s1282, 1
            %v1284 = vld [vmem:[%s1283] sm:$0x7]
            %v1285 = vlaneseq
            %v1286 = vshrl.u32 %v1285, 7
            %vm1287 = vcmp.eq.s32.totalorder %v1286, 3
            %v1288 = vsel %vm1287, %v1277, %v1284
            %v1289 = vld [vmem:[%s1282] ss:$0 sm:$0xff]
            %1290 = vst [vmem:[%s1282] sm:$0xf] %v1288
            %s1291 = scalar_lea.vmem %s1256, 1
            %v1292 = vld [vmem:[%s1291] sm:$0x7f]
            %v1293 = vlaneseq
            %v1294 = vshrl.u32 %v1293, 7
            %vm1295 = vcmp.eq.s32.totalorder %v1294, 7
            %v1296 = vsel %vm1295, %v1289, %v1292
            %v1297 = vld [vmem:[%s1256] ss:$0 sm:$0xff]
            %1298 = vst [vmem:[%s1256] sm:$0xff] %v1296
          $region108: #{custom-call.2} parent=100 // loop_footer
            %s495 = sadd.s32 1, %s491
          $region109: #{custom-call.2} parent=100 // loop_footer_branch
            %490 = sbr.rel target = $region105
          $region110: #{custom-call.2} parent=100 // loop_exit
            _
          %s1299 = sadd.s32 %s361, 1
        $region101: #{custom-call.2} parent=95 // loop_footer
          _
        $region102: #{custom-call.2} parent=95 // loop_footer_branch
          %360 = sbr.rel target = $region98
        $region103: #{custom-call.2} parent=95 // loop_exit
          _
        %s1302 = sand.u32 %s22, 7
        %s1303 = scalar_lea.vmem [#allocation4], %s1302
        %s1304 = sand.u32 %s22, 7
        %s1305 = scalar_lea.vmem [#allocation6], %s1304
        %s1306 = smov [#allocation12]
        %s1307 = smov %s1303
        %v1308 = vlaneseq
        %v1309 = vand.u32 %v1308, 127
        %v1310 = vmov %v1309
        %v1311 = vlaneseq
        %v1312 = vshrl.u32 %v1311, 7
        %v1313 = vmov %v1312
        %v1314 = vld [vmem:[%s1306] sm:$0xff]
        %vm1317 = vcmp.eq.s32.totalorder %v1313, %v1310
        %v1318 = vsel %vm1317, %v1314, 0.0
        %s1319 = scalar_lea.vmem %s1306, 8
        %v1320 = vld [vmem:[%s1319] sm:$0xf]
        %v1322 = vadd.s32 %v1313, 8
        %vm1323 = vcmp.eq.s32.totalorder %v1322, %v1310
        %v1324 = vsel %vm1323, %v1320, %v1318
        %v1325 = vrot.slane %v1324, 4
        %v1326 = vadd.f32 %v1324, %v1325
        %v1327 = vrot.slane %v1326, 2
        %v1328 = vadd.f32 %v1326, %v1327
        %v1329 = vrot.slane %v1328, 1
        %v1330 = vadd.f32 %v1328, %v1329
        %1331 = vst [vmem:[%s1307] sm:$0x1] %v1330
        %s1332 = smov [#allocation15]
        %s1333 = smov %s1305
        %v1334 = vlaneseq
        %v1335 = vand.u32 %v1334, 127
        %v1336 = vmov %v1335
        %v1337 = vlaneseq
        %v1338 = vshrl.u32 %v1337, 7
        %v1339 = vmov %v1338
        %v1340 = vld [vmem:[%s1332] sm:$0xff]
        %vm1343 = vcmp.eq.s32.totalorder %v1339, %v1336
        %v1344 = vsel %vm1343, %v1340, 0.0
        %s1345 = scalar_lea.vmem %s1332, 8
        %v1346 = vld [vmem:[%s1345] sm:$0xf]
        %v1348 = vadd.s32 %v1339, 8
        %vm1349 = vcmp.eq.s32.totalorder %v1348, %v1336
        %v1350 = vsel %vm1349, %v1346, %v1344
        %v1351 = vrot.slane %v1350, 4
        %v1352 = vadd.f32 %v1350, %v1351
        %v1353 = vrot.slane %v1352, 2
        %v1354 = vadd.f32 %v1352, %v1353
        %v1355 = vrot.slane %v1354, 1
        %v1356 = vadd.f32 %v1354, %v1355
        %1357 = vst [vmem:[%s1333] sm:$0x1] %v1356
        %s1359 = ssub.s32 16, 1
        %v1360 = vld [vmem:[#allocation4] sm:%s1359]
        %s1362 = ssub.s32 16, 1
        %1363 = vst [vmem:[%s255] sm:%s1362] %v1360
        %s1365 = ssub.s32 16, 1
        %v1366 = vld [vmem:[#allocation6] sm:%s1365]
        %s1368 = ssub.s32 16, 1
        %1369 = vst [vmem:[%s261] sm:%s1368] %v1366
        %s1370 = sand.u32 %s41, 1
        %s1371 = sand.u32 %s41, 1
        %s1372 = smul.addr %s1371, 4
        %s1373 = scalar_lea.vmem [#allocation5], %s1372
        %s1374 = sand.u32 %s71, 1
        %s1375 = sand.u32 %s71, 1
        %s1376 = smul.addr %s1375, 4
        %s1377 = scalar_lea.vmem [#allocation7], %s1376
        %s1378 = sand.u32 %s17, 1
        %s1379 = sand.u32 %s17, 1
        %s1380 = smul.addr %s1379, 16
        %s1381 = scalar_lea.vmem [#allocation8], %s1380
        %s1382 = sand.u32 %s17, 1
        %s1383 = sand.u32 %s17, 1
        %s1384 = smul.addr %s1383, 16
        %s1385 = scalar_lea.vmem [#allocation9], %s1384
        %s1386 = sand.u32 %s17, 1
        %s1387 = sand.u32 %s17, 1
        %s1388 = smul.addr %s1387, 16
        %s1389 = scalar_lea.vmem [#allocation10], %s1388
        %s1390 = sand.u32 %s17, 1
        %s1391 = sand.u32 %s17, 1
        %s1392 = smul.addr %s1391, 16
        %s1393 = scalar_lea.vmem [#allocation11], %s1392
        // Predicated region
        $region111: #{custom-call.2} parent=95 // pred_check
          %p1394 = pneg %p51
        $region112: #{custom-call.2} parent=95 // pred_check_branch
          %1396 = sbr.rel (%p1394) target = $region114
        $region113: #{custom-call.2} parent=95 // pred_region
          %s1397 = sshrl.u32 %s22, 3
          %s1398 = sadd.s32 %s1397, %s21
          %s1399 = smul.addr %s1398, 4
          %s1400 = scalar_lea.vmem %s4, %s1399
          // Predicated region
          $region115: #{custom-call.2} parent=113 // pred_check
            _
          $region116: #{custom-call.2} parent=113 // pred_check_branch
            %1402 = sbr.rel (0) target = $region118
          $region117: #{custom-call.2} parent=113 // pred_region
            // Predicated region
            $region119: #{custom-call.2} parent=117 // pred_check
              _
            $region120: #{custom-call.2} parent=117 // pred_check_branch
              %1404 = sbr.rel target = $region122
            $region121: #{custom-call.2} parent=117 // pred_region
              // Predicated region
              $region134: #{custom-call.2} parent=121 // pred_check
                _
              $region135: #{custom-call.2} parent=121 // pred_check_branch
                %1420 = sbr.rel (0) target = $region137
              $region136: #{custom-call.2} parent=121 // pred_region
                %s1422 = ssub.s32 16, 1
                loop: start=0, step=1, limit=1
                $region138: #{custom-call.2} parent=136 // loop_pre_header
                  _
                $region139: #{custom-call.2} parent=136 // loop_header
                  %s1424 = sphi 0, %s1428
                  %p1425 = scmp.ge.s32.totalorder %s1424, 1
                  %s1429 = sphi %s1373, %s1373
                  %s1430 = sphi %s1400, %s1400
                $region140: #{custom-call.2} parent=136 // loop_header_branch
                  %1427 = sbr.rel (%p1425) target = $region144
                $region141: #{custom-call.2} parent=136 // loop_body
                  %v1431 = vld [vmem:[%s1429] sm:%s1422]
                  %1432 = vst [vmem:[%s1430] sm:%s1422] %v1431
                $region142: #{custom-call.2} parent=136 // loop_footer
                  %s1428 = sadd.s32 1, %s1424
                $region143: #{custom-call.2} parent=136 // loop_footer_branch
                  %1423 = sbr.rel target = $region139
                $region144: #{custom-call.2} parent=136 // loop_exit
                  _
              $region137: #{custom-call.2} parent=121 // pred_fallthru
                _
            $region122: #{custom-call.2} parent=117 // pred_fallthru
              _
            // Predicated region
            $region123: #{custom-call.2} parent=117 // pred_check
              _
            $region124: #{custom-call.2} parent=117 // pred_check_branch
              %1406 = sbr.rel (0) target = $region126
            $region125: #{custom-call.2} parent=117 // pred_region
              %s1408 = ssub.s32 16, 1
              loop: start=0, step=1, limit=1
              $region127: #{custom-call.2} parent=125 // loop_pre_header
                _
              $region128: #{custom-call.2} parent=125 // loop_header
                %s1410 = sphi 0, %s1414
                %p1411 = scmp.ge.s32.totalorder %s1410, 1
                %s1415 = sphi %s1373, %s1373
                %s1416 = sphi %s1400, %s1400
              $region129: #{custom-call.2} parent=125 // loop_header_branch
                %1413 = sbr.rel (%p1411) target = $region133
              $region130: #{custom-call.2} parent=125 // loop_body
                %v1417 = vld [vmem:[%s1415] sm:%s1408]
                %1418 = vst [vmem:[%s1416] sm:%s1408] %v1417
              $region131: #{custom-call.2} parent=125 // loop_footer
                %s1414 = sadd.s32 1, %s1410
              $region132: #{custom-call.2} parent=125 // loop_footer_branch
                %1409 = sbr.rel target = $region128
              $region133: #{custom-call.2} parent=125 // loop_exit
                _
            $region126: #{custom-call.2} parent=117 // pred_fallthru
              _
          $region118: #{custom-call.2} parent=113 // pred_fallthru
            _
          %1433 = vnop
        $region114: #{custom-call.2} parent=95 // pred_fallthru
          _
        // Predicated region
        $region145: #{custom-call.2} parent=95 // pred_check
          %p1434 = pneg %p81
        $region146: #{custom-call.2} parent=95 // pred_check_branch
          %1436 = sbr.rel (%p1434) target = $region148
        $region147: #{custom-call.2} parent=95 // pred_region
          %s1437 = sshrl.u32 %s22, 3
          %s1438 = sadd.s32 %s1437, %s21
          %s1439 = smul.addr %s1438, 4
          %s1440 = scalar_lea.vmem %s5, %s1439
          // Predicated region
          $region149: #{custom-call.2} parent=147 // pred_check
            _
          $region150: #{custom-call.2} parent=147 // pred_check_branch
            %1442 = sbr.rel (0) target = $region152
          $region151: #{custom-call.2} parent=147 // pred_region
            // Predicated region
            $region153: #{custom-call.2} parent=151 // pred_check
              _
            $region154: #{custom-call.2} parent=151 // pred_check_branch
              %1444 = sbr.rel target = $region156
            $region155: #{custom-call.2} parent=151 // pred_region
              // Predicated region
              $region168: #{custom-call.2} parent=155 // pred_check
                _
              $region169: #{custom-call.2} parent=155 // pred_check_branch
                %1460 = sbr.rel (0) target = $region171
              $region170: #{custom-call.2} parent=155 // pred_region
                %s1462 = ssub.s32 16, 1
                loop: start=0, step=1, limit=1
                $region172: #{custom-call.2} parent=170 // loop_pre_header
                  _
                $region173: #{custom-call.2} parent=170 // loop_header
                  %s1464 = sphi 0, %s1468
                  %p1465 = scmp.ge.s32.totalorder %s1464, 1
                  %s1469 = sphi %s1377, %s1377
                  %s1470 = sphi %s1440, %s1440
                $region174: #{custom-call.2} parent=170 // loop_header_branch
                  %1467 = sbr.rel (%p1465) target = $region178
                $region175: #{custom-call.2} parent=170 // loop_body
                  %v1471 = vld [vmem:[%s1469] sm:%s1462]
                  %1472 = vst [vmem:[%s1470] sm:%s1462] %v1471
                $region176: #{custom-call.2} parent=170 // loop_footer
                  %s1468 = sadd.s32 1, %s1464
                $region177: #{custom-call.2} parent=170 // loop_footer_branch
                  %1463 = sbr.rel target = $region173
                $region178: #{custom-call.2} parent=170 // loop_exit
                  _
              $region171: #{custom-call.2} parent=155 // pred_fallthru
                _
            $region156: #{custom-call.2} parent=151 // pred_fallthru
              _
            // Predicated region
            $region157: #{custom-call.2} parent=151 // pred_check
              _
            $region158: #{custom-call.2} parent=151 // pred_check_branch
              %1446 = sbr.rel (0) target = $region160
            $region159: #{custom-call.2} parent=151 // pred_region
              %s1448 = ssub.s32 16, 1
              loop: start=0, step=1, limit=1
              $region161: #{custom-call.2} parent=159 // loop_pre_header
                _
              $region162: #{custom-call.2} parent=159 // loop_header
                %s1450 = sphi 0, %s1454
                %p1451 = scmp.ge.s32.totalorder %s1450, 1
                %s1455 = sphi %s1377, %s1377
                %s1456 = sphi %s1440, %s1440
              $region163: #{custom-call.2} parent=159 // loop_header_branch
                %1453 = sbr.rel (%p1451) target = $region167
              $region164: #{custom-call.2} parent=159 // loop_body
                %v1457 = vld [vmem:[%s1455] sm:%s1448]
                %1458 = vst [vmem:[%s1456] sm:%s1448] %v1457
              $region165: #{custom-call.2} parent=159 // loop_footer
                %s1454 = sadd.s32 1, %s1450
              $region166: #{custom-call.2} parent=159 // loop_footer_branch
                %1449 = sbr.rel target = $region162
              $region167: #{custom-call.2} parent=159 // loop_exit
                _
            $region160: #{custom-call.2} parent=151 // pred_fallthru
              _
          $region152: #{custom-call.2} parent=147 // pred_fallthru
            _
          %1473 = vnop
        $region148: #{custom-call.2} parent=95 // pred_fallthru
          _
        %s1474 = smul.addr %s21, 4
        %s1475 = sadd.s32 %s22, %s1474
        %s1476 = smul.addr %s1475, 16
        %s1477 = scalar_lea.vmem %s6, %s1476
        // Predicated region
        $region179: #{custom-call.2} parent=95 // pred_check
          _
        $region180: #{custom-call.2} parent=95 // pred_check_branch
          %1479 = sbr.rel (0) target = $region182
        $region181: #{custom-call.2} parent=95 // pred_region
          // Predicated region
          $region183: #{custom-call.2} parent=181 // pred_check
            _
          $region184: #{custom-call.2} parent=181 // pred_check_branch
            %1481 = sbr.rel (0) target = $region186
          $region185: #{custom-call.2} parent=181 // pred_region
            loop: start=0, step=1, limit=1
            $region187: #{custom-call.2} parent=185 // loop_pre_header
              _
            $region188: #{custom-call.2} parent=185 // loop_header
              %s1483 = sphi 0, %s1487
              %p1484 = scmp.ge.s32.totalorder %s1483, 1
              %s1488 = sphi %s1381, %s1381
              %s1489 = sphi %s1477, %s1477
            $region189: #{custom-call.2} parent=185 // loop_header_branch
              %1486 = sbr.rel (%p1484) target = $region193
            $region190: #{custom-call.2} parent=185 // loop_body
              %v1490 = vld [vmem:[%s1488] sm:$0xff]
              %1491 = vst [vmem:[%s1489] sm:$0xff] %v1490
              %v1492 = vld [vmem:[%s1488 + $0x8] sm:$0xff]
              %1493 = vst [vmem:[%s1489 + $0x8] sm:$0xff] %v1492
            $region191: #{custom-call.2} parent=185 // loop_footer
              %s1487 = sadd.s32 1, %s1483
            $region192: #{custom-call.2} parent=185 // loop_footer_branch
              %1482 = sbr.rel target = $region188
            $region193: #{custom-call.2} parent=185 // loop_exit
              _
          $region186: #{custom-call.2} parent=181 // pred_fallthru
            _
          // Predicated region
          $region194: #{custom-call.2} parent=181 // pred_check
            _
          $region195: #{custom-call.2} parent=181 // pred_check_branch
            %1495 = sbr.rel target = $region197
          $region196: #{custom-call.2} parent=181 // pred_region
            _
          $region197: #{custom-call.2} parent=181 // pred_fallthru
            _
        $region182: #{custom-call.2} parent=95 // pred_fallthru
          _
        %1496 = vnop
        %s1497 = smul.addr %s21, 4
        %s1498 = sadd.s32 %s22, %s1497
        %s1499 = smul.addr %s1498, 16
        %s1500 = scalar_lea.vmem %s7, %s1499
        // Predicated region
        $region198: #{custom-call.2} parent=95 // pred_check
          _
        $region199: #{custom-call.2} parent=95 // pred_check_branch
          %1502 = sbr.rel (0) target = $region201
        $region200: #{custom-call.2} parent=95 // pred_region
          // Predicated region
          $region202: #{custom-call.2} parent=200 // pred_check
            _
          $region203: #{custom-call.2} parent=200 // pred_check_branch
            %1504 = sbr.rel (0) target = $region205
          $region204: #{custom-call.2} parent=200 // pred_region
            loop: start=0, step=1, limit=1
            $region206: #{custom-call.2} parent=204 // loop_pre_header
              _
            $region207: #{custom-call.2} parent=204 // loop_header
              %s1506 = sphi 0, %s1510
              %p1507 = scmp.ge.s32.totalorder %s1506, 1
              %s1511 = sphi %s1385, %s1385
              %s1512 = sphi %s1500, %s1500
            $region208: #{custom-call.2} parent=204 // loop_header_branch
              %1509 = sbr.rel (%p1507) target = $region212
            $region209: #{custom-call.2} parent=204 // loop_body
              %v1513 = vld [vmem:[%s1511] sm:$0xff]
              %1514 = vst [vmem:[%s1512] sm:$0xff] %v1513
              %v1515 = vld [vmem:[%s1511 + $0x8] sm:$0xff]
              %1516 = vst [vmem:[%s1512 + $0x8] sm:$0xff] %v1515
            $region210: #{custom-call.2} parent=204 // loop_footer
              %s1510 = sadd.s32 1, %s1506
            $region211: #{custom-call.2} parent=204 // loop_footer_branch
              %1505 = sbr.rel target = $region207
            $region212: #{custom-call.2} parent=204 // loop_exit
              _
          $region205: #{custom-call.2} parent=200 // pred_fallthru
            _
          // Predicated region
          $region213: #{custom-call.2} parent=200 // pred_check
            _
          $region214: #{custom-call.2} parent=200 // pred_check_branch
            %1518 = sbr.rel target = $region216
          $region215: #{custom-call.2} parent=200 // pred_region
            _
          $region216: #{custom-call.2} parent=200 // pred_fallthru
            _
        $region201: #{custom-call.2} parent=95 // pred_fallthru
          _
        %1519 = vnop
        %s1520 = smul.addr %s21, 4
        %s1521 = sadd.s32 %s22, %s1520
        %s1522 = smul.addr %s1521, 16
        %s1523 = scalar_lea.vmem %s8, %s1522
        // Predicated region
        $region217: #{custom-call.2} parent=95 // pred_check
          _
        $region218: #{custom-call.2} parent=95 // pred_check_branch
          %1525 = sbr.rel (0) target = $region220
        $region219: #{custom-call.2} parent=95 // pred_region
          // Predicated region
          $region221: #{custom-call.2} parent=219 // pred_check
            _
          $region222: #{custom-call.2} parent=219 // pred_check_branch
            %1527 = sbr.rel (0) target = $region224
          $region223: #{custom-call.2} parent=219 // pred_region
            loop: start=0, step=1, limit=1
            $region225: #{custom-call.2} parent=223 // loop_pre_header
              _
            $region226: #{custom-call.2} parent=223 // loop_header
              %s1529 = sphi 0, %s1533
              %p1530 = scmp.ge.s32.totalorder %s1529, 1
              %s1534 = sphi %s1389, %s1389
              %s1535 = sphi %s1523, %s1523
            $region227: #{custom-call.2} parent=223 // loop_header_branch
              %1532 = sbr.rel (%p1530) target = $region231
            $region228: #{custom-call.2} parent=223 // loop_body
              %v1536 = vld [vmem:[%s1534] sm:$0xff]
              %1537 = vst [vmem:[%s1535] sm:$0xff] %v1536
              %v1538 = vld [vmem:[%s1534 + $0x8] sm:$0xff]
              %1539 = vst [vmem:[%s1535 + $0x8] sm:$0xff] %v1538
            $region229: #{custom-call.2} parent=223 // loop_footer
              %s1533 = sadd.s32 1, %s1529
            $region230: #{custom-call.2} parent=223 // loop_footer_branch
              %1528 = sbr.rel target = $region226
            $region231: #{custom-call.2} parent=223 // loop_exit
              _
          $region224: #{custom-call.2} parent=219 // pred_fallthru
            _
          // Predicated region
          $region232: #{custom-call.2} parent=219 // pred_check
            _
          $region233: #{custom-call.2} parent=219 // pred_check_branch
            %1541 = sbr.rel target = $region235
          $region234: #{custom-call.2} parent=219 // pred_region
            _
          $region235: #{custom-call.2} parent=219 // pred_fallthru
            _
        $region220: #{custom-call.2} parent=95 // pred_fallthru
          _
        %1542 = vnop
        %s1543 = smul.addr %s21, 4
        %s1544 = sadd.s32 %s22, %s1543
        %s1545 = smul.addr %s1544, 16
        %s1546 = scalar_lea.vmem %s9, %s1545
        // Predicated region
        $region236: #{custom-call.2} parent=95 // pred_check
          _
        $region237: #{custom-call.2} parent=95 // pred_check_branch
          %1548 = sbr.rel (0) target = $region239
        $region238: #{custom-call.2} parent=95 // pred_region
          // Predicated region
          $region240: #{custom-call.2} parent=238 // pred_check
            _
          $region241: #{custom-call.2} parent=238 // pred_check_branch
            %1550 = sbr.rel (0) target = $region243
          $region242: #{custom-call.2} parent=238 // pred_region
            loop: start=0, step=1, limit=1
            $region244: #{custom-call.2} parent=242 // loop_pre_header
              _
            $region245: #{custom-call.2} parent=242 // loop_header
              %s1552 = sphi 0, %s1556
              %p1553 = scmp.ge.s32.totalorder %s1552, 1
              %s1557 = sphi %s1393, %s1393
              %s1558 = sphi %s1546, %s1546
            $region246: #{custom-call.2} parent=242 // loop_header_branch
              %1555 = sbr.rel (%p1553) target = $region250
            $region247: #{custom-call.2} parent=242 // loop_body
              %v1559 = vld [vmem:[%s1557] sm:$0xff]
              %1560 = vst [vmem:[%s1558] sm:$0xff] %v1559
              %v1561 = vld [vmem:[%s1557 + $0x8] sm:$0xff]
              %1562 = vst [vmem:[%s1558 + $0x8] sm:$0xff] %v1561
            $region248: #{custom-call.2} parent=242 // loop_footer
              %s1556 = sadd.s32 1, %s1552
            $region249: #{custom-call.2} parent=242 // loop_footer_branch
              %1551 = sbr.rel target = $region245
            $region250: #{custom-call.2} parent=242 // loop_exit
              _
          $region243: #{custom-call.2} parent=238 // pred_fallthru
            _
          // Predicated region
          $region251: #{custom-call.2} parent=238 // pred_check
            _
          $region252: #{custom-call.2} parent=238 // pred_check_branch
            %1564 = sbr.rel target = $region254
          $region253: #{custom-call.2} parent=238 // pred_region
            _
          $region254: #{custom-call.2} parent=238 // pred_fallthru
            _
        $region239: #{custom-call.2} parent=95 // pred_fallthru
          _
        %1565 = vnop
      $region96: #{custom-call.2} parent=5 // pred_fallthru
        _
      %p1566 = scmp.le.s32.totalorder 2, %s12
      // Predicated region
      $region255: #{custom-call.2} parent=5 // pred_check
        %p1567 = pneg %p1566
      $region256: #{custom-call.2} parent=5 // pred_check_branch
        %1569 = sbr.rel (%p1567) target = $region258
      $region257: #{custom-call.2} parent=5 // pred_region
        %s1570 = ssub.s32 %s12, 2
        // Predicated region
        $region259: #{custom-call.2} parent=257 // pred_check
          %p1571 = pneg %p57
        $region260: #{custom-call.2} parent=257 // pred_check_branch
          %1573 = sbr.rel (%p1571) target = $region262
        $region261: #{custom-call.2} parent=257 // pred_region
          %s1574 = sand.u32 %s42, 1
          %s1575 = sand.u32 %s42, 1
          %s1576 = smul.addr %s1575, 4
          %s1577 = scalar_lea.vmem [#allocation5], %s1576
        $region262: #{custom-call.2} parent=257 // pred_fallthru
          _
        // Predicated region
        $region263: #{custom-call.2} parent=257 // pred_check
          %p1578 = pneg %p87
        $region264: #{custom-call.2} parent=257 // pred_check_branch
          %1580 = sbr.rel (%p1578) target = $region266
        $region265: #{custom-call.2} parent=257 // pred_region
          %s1581 = sand.u32 %s72, 1
          %s1582 = sand.u32 %s72, 1
          %s1583 = smul.addr %s1582, 4
          %s1584 = scalar_lea.vmem [#allocation7], %s1583
        $region266: #{custom-call.2} parent=257 // pred_fallthru
          _
        %s1585 = sand.u32 %s18, 1
        %s1586 = sand.u32 %s18, 1
        %s1587 = smul.addr %s1586, 16
        %s1588 = scalar_lea.vmem [#allocation8], %s1587
        %s1589 = sand.u32 %s18, 1
        %s1590 = sand.u32 %s18, 1
        %s1591 = smul.addr %s1590, 16
        %s1592 = scalar_lea.vmem [#allocation9], %s1591
        %s1593 = sand.u32 %s18, 1
        %s1594 = sand.u32 %s18, 1
        %s1595 = smul.addr %s1594, 16
        %s1596 = scalar_lea.vmem [#allocation10], %s1595
        %s1597 = sand.u32 %s18, 1
        %s1598 = sand.u32 %s18, 1
        %s1599 = smul.addr %s1598, 16
        %s1600 = scalar_lea.vmem [#allocation11], %s1599
      $region258: #{custom-call.2} parent=5 // pred_fallthru
        _
    $region6: #{custom-call.2} parent=1 // loop_footer
      %s16 = sadd.s32 1, %s12
    $region7: #{custom-call.2} parent=1 // loop_footer_branch
      %11 = sbr.rel target = $region3
    $region8: #{custom-call.2} parent=1 // loop_exit
      _

// kernel: graph_cspnet_forward.3
$region0: #{graph_cspnet_forward.3}
  #allocation0 [shape = 'u32[]', space=smem, size = 0x4, offset = 0x4, fixed_abs, tag = 'smem constant byte address 0x4 - core index']
  #allocation1 [shape = 'u32[72,128]{1,0:T(1,128)}', space=vmem, size = 0x9000, scoped, tag = 'internal scratch']
  #allocation2 [shape = 'f32[96,96]{1,0:T(8,128)}', space=vmem, size = 0xc000, scoped, tag = 'scratch operand']
  %s0 = inlined_call_operand.vmem [shape: f32[96,48], index: 0, kind: input, shape index: {}]
  %s1 = inlined_call_operand.vmem [shape: f32[96,96], index: 1, kind: input, shape index: {}]
  %s2 = inlined_call_operand.vmem [shape: f32[96,96], index: 2, kind: input, shape index: {}]
  %s3 = inlined_call_operand.vmem [shape: f32[2,4,24,24], index: 3, kind: output, shape index: {}]
  %s4 = sld [smem:[#allocation0]]
  $region22: #{graph_cspnet_forward.3} parent=0
    _
  %s6 = ssub.s32 1, %s4
  %s7 = scalar_select 0, %s6, %s4
  // Predicated region
  $region2: #{graph_cspnet_forward.3} parent=0 // pred_check
    _
  $region3: #{graph_cspnet_forward.3} parent=0 // pred_check_branch
    %9 = sbr.rel (0) target = $region5
  $region4: #{graph_cspnet_forward.3} parent=0 // pred_region
    _
  $region5: #{graph_cspnet_forward.3} parent=0 // pred_fallthru
    _
  // Predicated region
  $region6: #{graph_cspnet_forward.3} parent=0 // pred_check
    _
  $region7: #{graph_cspnet_forward.3} parent=0 // pred_check_branch
    %11 = sbr.rel (0) target = $region9
  $region8: #{graph_cspnet_forward.3} parent=0 // pred_region
    _
  $region9: #{graph_cspnet_forward.3} parent=0 // pred_fallthru
    _
  // Predicated region
  $region10: #{graph_cspnet_forward.3} parent=0 // pred_check
    _
  $region11: #{graph_cspnet_forward.3} parent=0 // pred_check_branch
    %13 = sbr.rel (0) target = $region13
  $region12: #{graph_cspnet_forward.3} parent=0 // pred_region
    _
  $region13: #{graph_cspnet_forward.3} parent=0 // pred_fallthru
    _
  %v14 = vld [vmem:[%s1] sm:$0xff]
  %v15 = vld [vmem:[%s1 + $0x8] sm:$0xff]
  %v16 = vld [vmem:[%s1 + $0x10] sm:$0xff]
  %v17 = vld [vmem:[%s1 + $0x18] sm:$0xff]
  %v18 = vld [vmem:[%s1 + $0x20] sm:$0xff]
  %v19 = vld [vmem:[%s1 + $0x28] sm:$0xff]
  %v20 = vld [vmem:[%s1 + $0x30] sm:$0xff]
  %v21 = vld [vmem:[%s1 + $0x38] sm:$0xff]
  %v22 = vld [vmem:[%s1 + $0x40] sm:$0xff]
  %v23 = vld [vmem:[%s1 + $0x48] sm:$0xff]
  %v24 = vld [vmem:[%s1 + $0x50] sm:$0xff]
  %v25 = vld [vmem:[%s1 + $0x58] sm:$0xff]
  %v26 = vld [vmem:[%s0] sm:$0xff]
  %v27 = vld [vmem:[%s0 + $0x8] sm:$0xff]
  %v28 = vld [vmem:[%s0 + $0x10] sm:$0xff]
  %v29 = vld [vmem:[%s0 + $0x18] sm:$0xff]
  %v30 = vld [vmem:[%s0 + $0x20] sm:$0xff]
  %v31 = vld [vmem:[%s0 + $0x28] sm:$0xff]
  %v32 = vld [vmem:[%s0 + $0x30] sm:$0xff]
  %v33 = vld [vmem:[%s0 + $0x38] sm:$0xff]
  %v34 = vld [vmem:[%s0 + $0x40] sm:$0xff]
  %v35 = vld [vmem:[%s0 + $0x48] sm:$0xff]
  %v36 = vld [vmem:[%s0 + $0x50] sm:$0xff]
  %v37 = vld [vmem:[%s0 + $0x58] sm:$0xff]
  %vm38 = vcmask 785408
  %v40 = vsel %vm38, %v14, 0
  %v43 = vsel %vm38, %v15, 0
  %v46 = vsel %vm38, %v16, 0
  %v49 = vsel %vm38, %v17, 0
  %v52 = vsel %vm38, %v18, 0
  %v55 = vsel %vm38, %v19, 0
  %v58 = vsel %vm38, %v20, 0
  %v61 = vsel %vm38, %v21, 0
  %v64 = vsel %vm38, %v22, 0
  %v67 = vsel %vm38, %v23, 0
  %v70 = vsel %vm38, %v24, 0
  %v73 = vsel %vm38, %v25, 0
  %75 = vmatpush.msra.mxu0 0.0
  %76 = vmatpush.msra.mxu0 0.0
  %77 = vmatpush.msra.mxu0 0.0
  %78 = vmatpush.msra.mxu0 0.0
  %v79 = vand.u32 %v37, 4294901760
  %80 = vmatpush.msra.mxu0 %v79
  %v81 = vand.u32 %v36, 4294901760
  %82 = vmatpush.msra.mxu0 %v81
  %v83 = vand.u32 %v35, 4294901760
  %84 = vmatpush.msra.mxu0 %v83
  %v85 = vand.u32 %v34, 4294901760
  %86 = vmatpush.msra.mxu0 %v85
  %v87 = vand.u32 %v33, 4294901760
  %88 = vmatpush.msra.mxu0 %v87
  %v89 = vand.u32 %v32, 4294901760
  %90 = vmatpush.msra.mxu0 %v89
  %v91 = vand.u32 %v31, 4294901760
  %92 = vmatpush.msra.mxu0 %v91
  %v93 = vand.u32 %v30, 4294901760
  %94 = vmatpush.msra.mxu0 %v93
  %v95 = vand.u32 %v29, 4294901760
  %96 = vmatpush.msra.mxu0 %v95
  %v97 = vand.u32 %v28, 4294901760
  %98 = vmatpush.msra.mxu0 %v97
  %v99 = vand.u32 %v27, 4294901760
  %100 = vmatpush.msra.mxu0 %v99
  %v101 = vand.u32 %v26, 4294901760
  %102 = vmatpush.msra.mxu0 %v101
  %v103 = vand.u32 %v40, 4294901760
  %v104 = vsub.f32 %v40, %v103
  %v105 = vand.u32 %v104, 4294901760
  %v106 = vsub.f32 %v104, %v105
  %v107 = vand.u32 %v106, 4294901760
  %108 = vmatmul.f32.gmra.mxu0 %v107
  %v109 = vpop.f32.mrf.mxu0
  %v110 = vadd.f32 0.0, %v109
  %v111 = vand.u32 %v43, 4294901760
  %v112 = vsub.f32 %v43, %v111
  %v113 = vand.u32 %v112, 4294901760
  %v114 = vsub.f32 %v112, %v113
  %v115 = vand.u32 %v114, 4294901760
  %116 = vmatmul.f32.gmra.mxu0 %v115
  %v117 = vpop.f32.mrf.mxu0
  %v118 = vadd.f32 0.0, %v117
  %v119 = vand.u32 %v46, 4294901760
  %v120 = vsub.f32 %v46, %v119
  %v121 = vand.u32 %v120, 4294901760
  %v122 = vsub.f32 %v120, %v121
  %v123 = vand.u32 %v122, 4294901760
  %124 = vmatmul.f32.gmra.mxu0 %v123
  %v125 = vpop.f32.mrf.mxu0
  %v126 = vadd.f32 0.0, %v125
  %v127 = vand.u32 %v49, 4294901760
  %v128 = vsub.f32 %v49, %v127
  %v129 = vand.u32 %v128, 4294901760
  %v130 = vsub.f32 %v128, %v129
  %v131 = vand.u32 %v130, 4294901760
  %132 = vmatmul.f32.gmra.mxu0 %v131
  %v133 = vpop.f32.mrf.mxu0
  %v134 = vadd.f32 0.0, %v133
  %v135 = vand.u32 %v52, 4294901760
  %v136 = vsub.f32 %v52, %v135
  %v137 = vand.u32 %v136, 4294901760
  %v138 = vsub.f32 %v136, %v137
  %v139 = vand.u32 %v138, 4294901760
  %140 = vmatmul.f32.gmra.mxu0 %v139
  %v141 = vpop.f32.mrf.mxu0
  %v142 = vadd.f32 0.0, %v141
  %v143 = vand.u32 %v55, 4294901760
  %v144 = vsub.f32 %v55, %v143
  %v145 = vand.u32 %v144, 4294901760
  %v146 = vsub.f32 %v144, %v145
  %v147 = vand.u32 %v146, 4294901760
  %148 = vmatmul.f32.gmra.mxu0 %v147
  %v149 = vpop.f32.mrf.mxu0
  %v150 = vadd.f32 0.0, %v149
  %v151 = vand.u32 %v58, 4294901760
  %v152 = vsub.f32 %v58, %v151
  %v153 = vand.u32 %v152, 4294901760
  %v154 = vsub.f32 %v152, %v153
  %v155 = vand.u32 %v154, 4294901760
  %156 = vmatmul.f32.gmra.mxu0 %v155
  %v157 = vpop.f32.mrf.mxu0
  %v158 = vadd.f32 0.0, %v157
  %v159 = vand.u32 %v61, 4294901760
  %v160 = vsub.f32 %v61, %v159
  %v161 = vand.u32 %v160, 4294901760
  %v162 = vsub.f32 %v160, %v161
  %v163 = vand.u32 %v162, 4294901760
  %164 = vmatmul.f32.gmra.mxu0 %v163
  %v165 = vpop.f32.mrf.mxu0
  %v166 = vadd.f32 0.0, %v165
  %v167 = vand.u32 %v64, 4294901760
  %v168 = vsub.f32 %v64, %v167
  %v169 = vand.u32 %v168, 4294901760
  %v170 = vsub.f32 %v168, %v169
  %v171 = vand.u32 %v170, 4294901760
  %172 = vmatmul.f32.gmra.mxu0 %v171
  %v173 = vpop.f32.mrf.mxu0
  %v174 = vadd.f32 0.0, %v173
  %v175 = vand.u32 %v67, 4294901760
  %v176 = vsub.f32 %v67, %v175
  %v177 = vand.u32 %v176, 4294901760
  %v178 = vsub.f32 %v176, %v177
  %v179 = vand.u32 %v178, 4294901760
  %180 = vmatmul.f32.gmra.mxu0 %v179
  %v181 = vpop.f32.mrf.mxu0
  %v182 = vadd.f32 0.0, %v181
  %v183 = vand.u32 %v70, 4294901760
  %v184 = vsub.f32 %v70, %v183
  %v185 = vand.u32 %v184, 4294901760
  %v186 = vsub.f32 %v184, %v185
  %v187 = vand.u32 %v186, 4294901760
  %188 = vmatmul.f32.gmra.mxu0 %v187
  %v189 = vpop.f32.mrf.mxu0
  %v190 = vadd.f32 0.0, %v189
  %v191 = vand.u32 %v73, 4294901760
  %v192 = vsub.f32 %v73, %v191
  %v193 = vand.u32 %v192, 4294901760
  %v194 = vsub.f32 %v192, %v193
  %v195 = vand.u32 %v194, 4294901760
  %196 = vmatmul.f32.gmra.mxu0 %v195
  %v197 = vpop.f32.mrf.mxu0
  %v198 = vadd.f32 0.0, %v197
  %199 = vdwg.mxu0
  %200 = vmatpush.msra.mxu0 0.0
  %201 = vmatpush.msra.mxu0 0.0
  %202 = vmatpush.msra.mxu0 0.0
  %203 = vmatpush.msra.mxu0 0.0
  %v204 = vand.u32 %v37, 4294901760
  %v205 = vsub.f32 %v37, %v204
  %v206 = vand.u32 %v205, 4294901760
  %v207 = vsub.f32 %v205, %v206
  %v208 = vand.u32 %v207, 4294901760
  %209 = vmatpush.msra.mxu0 %v208
  %v210 = vand.u32 %v36, 4294901760
  %v211 = vsub.f32 %v36, %v210
  %v212 = vand.u32 %v211, 4294901760
  %v213 = vsub.f32 %v211, %v212
  %v214 = vand.u32 %v213, 4294901760
  %215 = vmatpush.msra.mxu0 %v214
  %v216 = vand.u32 %v35, 4294901760
  %v217 = vsub.f32 %v35, %v216
  %v218 = vand.u32 %v217, 4294901760
  %v219 = vsub.f32 %v217, %v218
  %v220 = vand.u32 %v219, 4294901760
  %221 = vmatpush.msra.mxu0 %v220
  %v222 = vand.u32 %v34, 4294901760
  %v223 = vsub.f32 %v34, %v222
  %v224 = vand.u32 %v223, 4294901760
  %v225 = vsub.f32 %v223, %v224
  %v226 = vand.u32 %v225, 4294901760
  %227 = vmatpush.msra.mxu0 %v226
  %v228 = vand.u32 %v33, 4294901760
  %v229 = vsub.f32 %v33, %v228
  %v230 = vand.u32 %v229, 4294901760
  %v231 = vsub.f32 %v229, %v230
  %v232 = vand.u32 %v231, 4294901760
  %233 = vmatpush.msra.mxu0 %v232
  %v234 = vand.u32 %v32, 4294901760
  %v235 = vsub.f32 %v32, %v234
  %v236 = vand.u32 %v235, 4294901760
  %v237 = vsub.f32 %v235, %v236
  %v238 = vand.u32 %v237, 4294901760
  %239 = vmatpush.msra.mxu0 %v238
  %v240 = vand.u32 %v31, 4294901760
  %v241 = vsub.f32 %v31, %v240
  %v242 = vand.u32 %v241, 4294901760
  %v243 = vsub.f32 %v241, %v242
  %v244 = vand.u32 %v243, 4294901760
  %245 = vmatpush.msra.mxu0 %v244
  %v246 = vand.u32 %v30, 4294901760
  %v247 = vsub.f32 %v30, %v246
  %v248 = vand.u32 %v247, 4294901760
  %v249 = vsub.f32 %v247, %v248
  %v250 = vand.u32 %v249, 4294901760
  %251 = vmatpush.msra.mxu0 %v250
  %v252 = vand.u32 %v29, 4294901760
  %v253 = vsub.f32 %v29, %v252
  %v254 = vand.u32 %v253, 4294901760
  %v255 = vsub.f32 %v253, %v254
  %v256 = vand.u32 %v255, 4294901760
  %257 = vmatpush.msra.mxu0 %v256
  %v258 = vand.u32 %v28, 4294901760
  %v259 = vsub.f32 %v28, %v258
  %v260 = vand.u32 %v259, 4294901760
  %v261 = vsub.f32 %v259, %v260
  %v262 = vand.u32 %v261, 4294901760
  %263 = vmatpush.msra.mxu0 %v262
  %v264 = vand.u32 %v27, 4294901760
  %v265 = vsub.f32 %v27, %v264
  %v266 = vand.u32 %v265, 4294901760
  %v267 = vsub.f32 %v265, %v266
  %v268 = vand.u32 %v267, 4294901760
  %269 = vmatpush.msra.mxu0 %v268
  %v270 = vand.u32 %v26, 4294901760
  %v271 = vsub.f32 %v26, %v270
  %v272 = vand.u32 %v271, 4294901760
  %v273 = vsub.f32 %v271, %v272
  %v274 = vand.u32 %v273, 4294901760
  %275 = vmatpush.msra.mxu0 %v274
  %v276 = vand.u32 %v40, 4294901760
  %277 = vmatmul.f32.gmra.mxu0 %v276
  %v278 = vpop.f32.mrf.mxu0
  %v279 = vadd.f32 %v110, %v278
  %v280 = vand.u32 %v43, 4294901760
  %281 = vmatmul.f32.gmra.mxu0 %v280
  %v282 = vpop.f32.mrf.mxu0
  %v283 = vadd.f32 %v118, %v282
  %v284 = vand.u32 %v46, 4294901760
  %285 = vmatmul.f32.gmra.mxu0 %v284
  %v286 = vpop.f32.mrf.mxu0
  %v287 = vadd.f32 %v126, %v286
  %v288 = vand.u32 %v49, 4294901760
  %289 = vmatmul.f32.gmra.mxu0 %v288
  %v290 = vpop.f32.mrf.mxu0
  %v291 = vadd.f32 %v134, %v290
  %v292 = vand.u32 %v52, 4294901760
  %293 = vmatmul.f32.gmra.mxu0 %v292
  %v294 = vpop.f32.mrf.mxu0
  %v295 = vadd.f32 %v142, %v294
  %v296 = vand.u32 %v55, 4294901760
  %297 = vmatmul.f32.gmra.mxu0 %v296
  %v298 = vpop.f32.mrf.mxu0
  %v299 = vadd.f32 %v150, %v298
  %v300 = vand.u32 %v58, 4294901760
  %301 = vmatmul.f32.gmra.mxu0 %v300
  %v302 = vpop.f32.mrf.mxu0
  %v303 = vadd.f32 %v158, %v302
  %v304 = vand.u32 %v61, 4294901760
  %305 = vmatmul.f32.gmra.mxu0 %v304
  %v306 = vpop.f32.mrf.mxu0
  %v307 = vadd.f32 %v166, %v306
  %v308 = vand.u32 %v64, 4294901760
  %309 = vmatmul.f32.gmra.mxu0 %v308
  %v310 = vpop.f32.mrf.mxu0
  %v311 = vadd.f32 %v174, %v310
  %v312 = vand.u32 %v67, 4294901760
  %313 = vmatmul.f32.gmra.mxu0 %v312
  %v314 = vpop.f32.mrf.mxu0
  %v315 = vadd.f32 %v182, %v314
  %v316 = vand.u32 %v70, 4294901760
  %317 = vmatmul.f32.gmra.mxu0 %v316
  %v318 = vpop.f32.mrf.mxu0
  %v319 = vadd.f32 %v190, %v318
  %v320 = vand.u32 %v73, 4294901760
  %321 = vmatmul.f32.gmra.mxu0 %v320
  %v322 = vpop.f32.mrf.mxu0
  %v323 = vadd.f32 %v198, %v322
  %324 = vdwg.mxu0
  %325 = vmatpush.msra.mxu0 0.0
  %326 = vmatpush.msra.mxu0 0.0
  %327 = vmatpush.msra.mxu0 0.0
  %328 = vmatpush.msra.mxu0 0.0
  %v329 = vand.u32 %v37, 4294901760
  %v330 = vsub.f32 %v37, %v329
  %331 = vmatpush.msra.mxu0 %v330
  %v332 = vand.u32 %v36, 4294901760
  %v333 = vsub.f32 %v36, %v332
  %334 = vmatpush.msra.mxu0 %v333
  %v335 = vand.u32 %v35, 4294901760
  %v336 = vsub.f32 %v35, %v335
  %337 = vmatpush.msra.mxu0 %v336
  %v338 = vand.u32 %v34, 4294901760
  %v339 = vsub.f32 %v34, %v338
  %340 = vmatpush.msra.mxu0 %v339
  %v341 = vand.u32 %v33, 4294901760
  %v342 = vsub.f32 %v33, %v341
  %343 = vmatpush.msra.mxu0 %v342
  %v344 = vand.u32 %v32, 4294901760
  %v345 = vsub.f32 %v32, %v344
  %346 = vmatpush.msra.mxu0 %v345
  %v347 = vand.u32 %v31, 4294901760
  %v348 = vsub.f32 %v31, %v347
  %349 = vmatpush.msra.mxu0 %v348
  %v350 = vand.u32 %v30, 4294901760
  %v351 = vsub.f32 %v30, %v350
  %352 = vmatpush.msra.mxu0 %v351
  %v353 = vand.u32 %v29, 4294901760
  %v354 = vsub.f32 %v29, %v353
  %355 = vmatpush.msra.mxu0 %v354
  %v356 = vand.u32 %v28, 4294901760
  %v357 = vsub.f32 %v28, %v356
  %358 = vmatpush.msra.mxu0 %v357
  %v359 = vand.u32 %v27, 4294901760
  %v360 = vsub.f32 %v27, %v359
  %361 = vmatpush.msra.mxu0 %v360
  %v362 = vand.u32 %v26, 4294901760
  %v363 = vsub.f32 %v26, %v362
  %364 = vmatpush.msra.mxu0 %v363
  %v365 = vand.u32 %v40, 4294901760
  %v366 = vsub.f32 %v40, %v365
  %367 = vmatmul.f32.gmra.mxu0 %v366
  %v368 = vpop.f32.mrf.mxu0
  %v369 = vadd.f32 %v279, %v368
  %v370 = vand.u32 %v43, 4294901760
  %v371 = vsub.f32 %v43, %v370
  %372 = vmatmul.f32.gmra.mxu0 %v371
  %v373 = vpop.f32.mrf.mxu0
  %v374 = vadd.f32 %v283, %v373
  %v375 = vand.u32 %v46, 4294901760
  %v376 = vsub.f32 %v46, %v375
  %377 = vmatmul.f32.gmra.mxu0 %v376
  %v378 = vpop.f32.mrf.mxu0
  %v379 = vadd.f32 %v287, %v378
  %v380 = vand.u32 %v49, 4294901760
  %v381 = vsub.f32 %v49, %v380
  %382 = vmatmul.f32.gmra.mxu0 %v381
  %v383 = vpop.f32.mrf.mxu0
  %v384 = vadd.f32 %v291, %v383
  %v385 = vand.u32 %v52, 4294901760
  %v386 = vsub.f32 %v52, %v385
  %387 = vmatmul.f32.gmra.mxu0 %v386
  %v388 = vpop.f32.mrf.mxu0
  %v389 = vadd.f32 %v295, %v388
  %v390 = vand.u32 %v55, 4294901760
  %v391 = vsub.f32 %v55, %v390
  %392 = vmatmul.f32.gmra.mxu0 %v391
  %v393 = vpop.f32.mrf.mxu0
  %v394 = vadd.f32 %v299, %v393
  %v395 = vand.u32 %v58, 4294901760
  %v396 = vsub.f32 %v58, %v395
  %397 = vmatmul.f32.gmra.mxu0 %v396
  %v398 = vpop.f32.mrf.mxu0
  %v399 = vadd.f32 %v303, %v398
  %v400 = vand.u32 %v61, 4294901760
  %v401 = vsub.f32 %v61, %v400
  %402 = vmatmul.f32.gmra.mxu0 %v401
  %v403 = vpop.f32.mrf.mxu0
  %v404 = vadd.f32 %v307, %v403
  %v405 = vand.u32 %v64, 4294901760
  %v406 = vsub.f32 %v64, %v405
  %407 = vmatmul.f32.gmra.mxu0 %v406
  %v408 = vpop.f32.mrf.mxu0
  %v409 = vadd.f32 %v311, %v408
  %v410 = vand.u32 %v67, 4294901760
  %v411 = vsub.f32 %v67, %v410
  %412 = vmatmul.f32.gmra.mxu0 %v411
  %v413 = vpop.f32.mrf.mxu0
  %v414 = vadd.f32 %v315, %v413
  %v415 = vand.u32 %v70, 4294901760
  %v416 = vsub.f32 %v70, %v415
  %417 = vmatmul.f32.gmra.mxu0 %v416
  %v418 = vpop.f32.mrf.mxu0
  %v419 = vadd.f32 %v319, %v418
  %v420 = vand.u32 %v73, 4294901760
  %v421 = vsub.f32 %v73, %v420
  %422 = vmatmul.f32.gmra.mxu0 %v421
  %v423 = vpop.f32.mrf.mxu0
  %v424 = vadd.f32 %v323, %v423
  %425 = vdwg.mxu0
  %426 = vmatpush.msra.mxu0 0.0
  %427 = vmatpush.msra.mxu0 0.0
  %428 = vmatpush.msra.mxu0 0.0
  %429 = vmatpush.msra.mxu0 0.0
  %v430 = vand.u32 %v37, 4294901760
  %431 = vmatpush.msra.mxu0 %v430
  %v432 = vand.u32 %v36, 4294901760
  %433 = vmatpush.msra.mxu0 %v432
  %v434 = vand.u32 %v35, 4294901760
  %435 = vmatpush.msra.mxu0 %v434
  %v436 = vand.u32 %v34, 4294901760
  %437 = vmatpush.msra.mxu0 %v436
  %v438 = vand.u32 %v33, 4294901760
  %439 = vmatpush.msra.mxu0 %v438
  %v440 = vand.u32 %v32, 4294901760
  %441 = vmatpush.msra.mxu0 %v440
  %v442 = vand.u32 %v31, 4294901760
  %443 = vmatpush.msra.mxu0 %v442
  %v444 = vand.u32 %v30, 4294901760
  %445 = vmatpush.msra.mxu0 %v444
  %v446 = vand.u32 %v29, 4294901760
  %447 = vmatpush.msra.mxu0 %v446
  %v448 = vand.u32 %v28, 4294901760
  %449 = vmatpush.msra.mxu0 %v448
  %v450 = vand.u32 %v27, 4294901760
  %451 = vmatpush.msra.mxu0 %v450
  %v452 = vand.u32 %v26, 4294901760
  %453 = vmatpush.msra.mxu0 %v452
  %v454 = vand.u32 %v40, 4294901760
  %v455 = vsub.f32 %v40, %v454
  %v456 = vand.u32 %v455, 4294901760
  %457 = vmatmul.f32.gmra.mxu0 %v456
  %v458 = vpop.f32.mrf.mxu0
  %v459 = vadd.f32 %v369, %v458
  %v460 = vand.u32 %v43, 4294901760
  %v461 = vsub.f32 %v43, %v460
  %v462 = vand.u32 %v461, 4294901760
  %463 = vmatmul.f32.gmra.mxu0 %v462
  %v464 = vpop.f32.mrf.mxu0
  %v465 = vadd.f32 %v374, %v464
  %v466 = vand.u32 %v46, 4294901760
  %v467 = vsub.f32 %v46, %v466
  %v468 = vand.u32 %v467, 4294901760
  %469 = vmatmul.f32.gmra.mxu0 %v468
  %v470 = vpop.f32.mrf.mxu0
  %v471 = vadd.f32 %v379, %v470
  %v472 = vand.u32 %v49, 4294901760
  %v473 = vsub.f32 %v49, %v472
  %v474 = vand.u32 %v473, 4294901760
  %475 = vmatmul.f32.gmra.mxu0 %v474
  %v476 = vpop.f32.mrf.mxu0
  %v477 = vadd.f32 %v384, %v476
  %v478 = vand.u32 %v52, 4294901760
  %v479 = vsub.f32 %v52, %v478
  %v480 = vand.u32 %v479, 4294901760
  %481 = vmatmul.f32.gmra.mxu0 %v480
  %v482 = vpop.f32.mrf.mxu0
  %v483 = vadd.f32 %v389, %v482
  %v484 = vand.u32 %v55, 4294901760
  %v485 = vsub.f32 %v55, %v484
  %v486 = vand.u32 %v485, 4294901760
  %487 = vmatmul.f32.gmra.mxu0 %v486
  %v488 = vpop.f32.mrf.mxu0
  %v489 = vadd.f32 %v394, %v488
  %v490 = vand.u32 %v58, 4294901760
  %v491 = vsub.f32 %v58, %v490
  %v492 = vand.u32 %v491, 4294901760
  %493 = vmatmul.f32.gmra.mxu0 %v492
  %v494 = vpop.f32.mrf.mxu0
  %v495 = vadd.f32 %v399, %v494
  %v496 = vand.u32 %v61, 4294901760
  %v497 = vsub.f32 %v61, %v496
  %v498 = vand.u32 %v497, 4294901760
  %499 = vmatmul.f32.gmra.mxu0 %v498
  %v500 = vpop.f32.mrf.mxu0
  %v501 = vadd.f32 %v404, %v500
  %v502 = vand.u32 %v64, 4294901760
  %v503 = vsub.f32 %v64, %v502
  %v504 = vand.u32 %v503, 4294901760
  %505 = vmatmul.f32.gmra.mxu0 %v504
  %v506 = vpop.f32.mrf.mxu0
  %v507 = vadd.f32 %v409, %v506
  %v508 = vand.u32 %v67, 4294901760
  %v509 = vsub.f32 %v67, %v508
  %v510 = vand.u32 %v509, 4294901760
  %511 = vmatmul.f32.gmra.mxu0 %v510
  %v512 = vpop.f32.mrf.mxu0
  %v513 = vadd.f32 %v414, %v512
  %v514 = vand.u32 %v70, 4294901760
  %v515 = vsub.f32 %v70, %v514
  %v516 = vand.u32 %v515, 4294901760
  %517 = vmatmul.f32.gmra.mxu0 %v516
  %v518 = vpop.f32.mrf.mxu0
  %v519 = vadd.f32 %v419, %v518
  %v520 = vand.u32 %v73, 4294901760
  %v521 = vsub.f32 %v73, %v520
  %v522 = vand.u32 %v521, 4294901760
  %523 = vmatmul.f32.gmra.mxu0 %v522
  %v524 = vpop.f32.mrf.mxu0
  %v525 = vadd.f32 %v424, %v524
  %526 = vdwg.mxu0
  %527 = vmatpush.msra.mxu0 0.0
  %528 = vmatpush.msra.mxu0 0.0
  %529 = vmatpush.msra.mxu0 0.0
  %530 = vmatpush.msra.mxu0 0.0
  %v531 = vand.u32 %v37, 4294901760
  %v532 = vsub.f32 %v37, %v531
  %v533 = vand.u32 %v532, 4294901760
  %534 = vmatpush.msra.mxu0 %v533
  %v535 = vand.u32 %v36, 4294901760
  %v536 = vsub.f32 %v36, %v535
  %v537 = vand.u32 %v536, 4294901760
  %538 = vmatpush.msra.mxu0 %v537
  %v539 = vand.u32 %v35, 4294901760
  %v540 = vsub.f32 %v35, %v539
  %v541 = vand.u32 %v540, 4294901760
  %542 = vmatpush.msra.mxu0 %v541
  %v543 = vand.u32 %v34, 4294901760
  %v544 = vsub.f32 %v34, %v543
  %v545 = vand.u32 %v544, 4294901760
  %546 = vmatpush.msra.mxu0 %v545
  %v547 = vand.u32 %v33, 4294901760
  %v548 = vsub.f32 %v33, %v547
  %v549 = vand.u32 %v548, 4294901760
  %550 = vmatpush.msra.mxu0 %v549
  %v551 = vand.u32 %v32, 4294901760
  %v552 = vsub.f32 %v32, %v551
  %v553 = vand.u32 %v552, 4294901760
  %554 = vmatpush.msra.mxu0 %v553
  %v555 = vand.u32 %v31, 4294901760
  %v556 = vsub.f32 %v31, %v555
  %v557 = vand.u32 %v556, 4294901760
  %558 = vmatpush.msra.mxu0 %v557
  %v559 = vand.u32 %v30, 4294901760
  %v560 = vsub.f32 %v30, %v559
  %v561 = vand.u32 %v560, 4294901760
  %562 = vmatpush.msra.mxu0 %v561
  %v563 = vand.u32 %v29, 4294901760
  %v564 = vsub.f32 %v29, %v563
  %v565 = vand.u32 %v564, 4294901760
  %566 = vmatpush.msra.mxu0 %v565
  %v567 = vand.u32 %v28, 4294901760
  %v568 = vsub.f32 %v28, %v567
  %v569 = vand.u32 %v568, 4294901760
  %570 = vmatpush.msra.mxu0 %v569
  %v571 = vand.u32 %v27, 4294901760
  %v572 = vsub.f32 %v27, %v571
  %v573 = vand.u32 %v572, 4294901760
  %574 = vmatpush.msra.mxu0 %v573
  %v575 = vand.u32 %v26, 4294901760
  %v576 = vsub.f32 %v26, %v575
  %v577 = vand.u32 %v576, 4294901760
  %578 = vmatpush.msra.mxu0 %v577
  %v579 = vand.u32 %v40, 4294901760
  %580 = vmatmul.f32.gmra.mxu0 %v579
  %v581 = vpop.f32.mrf.mxu0
  %v582 = vadd.f32 %v459, %v581
  %v583 = vand.u32 %v43, 4294901760
  %584 = vmatmul.f32.gmra.mxu0 %v583
  %v585 = vpop.f32.mrf.mxu0
  %v586 = vadd.f32 %v465, %v585
  %v587 = vand.u32 %v46, 4294901760
  %588 = vmatmul.f32.gmra.mxu0 %v587
  %v589 = vpop.f32.mrf.mxu0
  %v590 = vadd.f32 %v471, %v589
  %v591 = vand.u32 %v49, 4294901760
  %592 = vmatmul.f32.gmra.mxu0 %v591
  %v593 = vpop.f32.mrf.mxu0
  %v594 = vadd.f32 %v477, %v593
  %v595 = vand.u32 %v52, 4294901760
  %596 = vmatmul.f32.gmra.mxu0 %v595
  %v597 = vpop.f32.mrf.mxu0
  %v598 = vadd.f32 %v483, %v597
  %v599 = vand.u32 %v55, 4294901760
  %600 = vmatmul.f32.gmra.mxu0 %v599
  %v601 = vpop.f32.mrf.mxu0
  %v602 = vadd.f32 %v489, %v601
  %v603 = vand.u32 %v58, 4294901760
  %604 = vmatmul.f32.gmra.mxu0 %v603
  %v605 = vpop.f32.mrf.mxu0
  %v606 = vadd.f32 %v495, %v605
  %v607 = vand.u32 %v61, 4294901760
  %608 = vmatmul.f32.gmra.mxu0 %v607
  %v609 = vpop.f32.mrf.mxu0
  %v610 = vadd.f32 %v501, %v609
  %v611 = vand.u32 %v64, 4294901760
  %612 = vmatmul.f32.gmra.mxu0 %v611
  %v613 = vpop.f32.mrf.mxu0
  %v614 = vadd.f32 %v507, %v613
  %v615 = vand.u32 %v67, 4294901760
  %616 = vmatmul.f32.gmra.mxu0 %v615
  %v617 = vpop.f32.mrf.mxu0
  %v618 = vadd.f32 %v513, %v617
  %v619 = vand.u32 %v70, 4294901760
  %620 = vmatmul.f32.gmra.mxu0 %v619
  %v621 = vpop.f32.mrf.mxu0
  %v622 = vadd.f32 %v519, %v621
  %v623 = vand.u32 %v73, 4294901760
  %624 = vmatmul.f32.gmra.mxu0 %v623
  %v625 = vpop.f32.mrf.mxu0
  %v626 = vadd.f32 %v525, %v625
  %627 = vdwg.mxu0
  %628 = vmatpush.msra.mxu0 0.0
  %629 = vmatpush.msra.mxu0 0.0
  %630 = vmatpush.msra.mxu0 0.0
  %631 = vmatpush.msra.mxu0 0.0
  %v632 = vand.u32 %v37, 4294901760
  %633 = vmatpush.msra.mxu0 %v632
  %v634 = vand.u32 %v36, 4294901760
  %635 = vmatpush.msra.mxu0 %v634
  %v636 = vand.u32 %v35, 4294901760
  %637 = vmatpush.msra.mxu0 %v636
  %v638 = vand.u32 %v34, 4294901760
  %639 = vmatpush.msra.mxu0 %v638
  %v640 = vand.u32 %v33, 4294901760
  %641 = vmatpush.msra.mxu0 %v640
  %v642 = vand.u32 %v32, 4294901760
  %643 = vmatpush.msra.mxu0 %v642
  %v644 = vand.u32 %v31, 4294901760
  %645 = vmatpush.msra.mxu0 %v644
  %v646 = vand.u32 %v30, 4294901760
  %647 = vmatpush.msra.mxu0 %v646
  %v648 = vand.u32 %v29, 4294901760
  %649 = vmatpush.msra.mxu0 %v648
  %v650 = vand.u32 %v28, 4294901760
  %651 = vmatpush.msra.mxu0 %v650
  %v652 = vand.u32 %v27, 4294901760
  %653 = vmatpush.msra.mxu0 %v652
  %v654 = vand.u32 %v26, 4294901760
  %655 = vmatpush.msra.mxu0 %v654
  %v656 = vand.u32 %v40, 4294901760
  %657 = vmatmul.f32.gmra.mxu0 %v656
  %v658 = vpop.f32.mrf.mxu0
  %v659 = vadd.f32 %v582, %v658
  %v660 = vand.u32 %v43, 4294901760
  %661 = vmatmul.f32.gmra.mxu0 %v660
  %v662 = vpop.f32.mrf.mxu0
  %v663 = vadd.f32 %v586, %v662
  %v664 = vand.u32 %v46, 4294901760
  %665 = vmatmul.f32.gmra.mxu0 %v664
  %v666 = vpop.f32.mrf.mxu0
  %v667 = vadd.f32 %v590, %v666
  %v668 = vand.u32 %v49, 4294901760
  %669 = vmatmul.f32.gmra.mxu0 %v668
  %v670 = vpop.f32.mrf.mxu0
  %v671 = vadd.f32 %v594, %v670
  %v672 = vand.u32 %v52, 4294901760
  %673 = vmatmul.f32.gmra.mxu0 %v672
  %v674 = vpop.f32.mrf.mxu0
  %v675 = vadd.f32 %v598, %v674
  %v676 = vand.u32 %v55, 4294901760
  %677 = vmatmul.f32.gmra.mxu0 %v676
  %v678 = vpop.f32.mrf.mxu0
  %v679 = vadd.f32 %v602, %v678
  %v680 = vand.u32 %v58, 4294901760
  %681 = vmatmul.f32.gmra.mxu0 %v680
  %v682 = vpop.f32.mrf.mxu0
  %v683 = vadd.f32 %v606, %v682
  %v684 = vand.u32 %v61, 4294901760
  %685 = vmatmul.f32.gmra.mxu0 %v684
  %v686 = vpop.f32.mrf.mxu0
  %v687 = vadd.f32 %v610, %v686
  %v688 = vand.u32 %v64, 4294901760
  %689 = vmatmul.f32.gmra.mxu0 %v688
  %v690 = vpop.f32.mrf.mxu0
  %v691 = vadd.f32 %v614, %v690
  %v692 = vand.u32 %v67, 4294901760
  %693 = vmatmul.f32.gmra.mxu0 %v692
  %v694 = vpop.f32.mrf.mxu0
  %v695 = vadd.f32 %v618, %v694
  %v696 = vand.u32 %v70, 4294901760
  %697 = vmatmul.f32.gmra.mxu0 %v696
  %v698 = vpop.f32.mrf.mxu0
  %v699 = vadd.f32 %v622, %v698
  %v700 = vand.u32 %v73, 4294901760
  %701 = vmatmul.f32.gmra.mxu0 %v700
  %v702 = vpop.f32.mrf.mxu0
  %v703 = vadd.f32 %v626, %v702
  %704 = vdwg.mxu0
  %705 = vst.msk [vmem:[#allocation2] sm:$0xff] %vm38, 0.0
  %706 = vst.msk [vmem:[#allocation2 + $0x8] sm:$0xff] %vm38, 0.0
  %707 = vst.msk [vmem:[#allocation2 + $0x10] sm:$0xff] %vm38, 0.0
  %708 = vst.msk [vmem:[#allocation2 + $0x18] sm:$0xff] %vm38, 0.0
  %709 = vst.msk [vmem:[#allocation2 + $0x20] sm:$0xff] %vm38, 0.0
  %710 = vst.msk [vmem:[#allocation2 + $0x28] sm:$0xff] %vm38, 0.0
  %711 = vst.msk [vmem:[#allocation2 + $0x30] sm:$0xff] %vm38, 0.0
  %712 = vst.msk [vmem:[#allocation2 + $0x38] sm:$0xff] %vm38, 0.0
  %713 = vst.msk [vmem:[#allocation2 + $0x40] sm:$0xff] %vm38, 0.0
  %714 = vst.msk [vmem:[#allocation2 + $0x48] sm:$0xff] %vm38, 0.0
  %715 = vst.msk [vmem:[#allocation2 + $0x50] sm:$0xff] %vm38, 0.0
  %716 = vst.msk [vmem:[#allocation2 + $0x58] sm:$0xff] %vm38, 0.0
  %vm717 = vcmask 195584
  %718 = vst.msk [vmem:[#allocation2] sm:$0xff] %vm717, %v659
  %719 = vst.msk [vmem:[#allocation2 + $0x8] sm:$0xff] %vm717, %v663
  %720 = vst.msk [vmem:[#allocation2 + $0x10] sm:$0xff] %vm717, %v667
  %724 = vrot.lane.b32.xlu0 %v671, 24
  %v725 = vpop.permute.xlu0 %724
  %726 = vrot.lane.b32.xlu0 %v675, 24
  %v727 = vpop.permute.xlu0 %726
  %728 = vrot.lane.b32.xlu0 %v679, 24
  %v729 = vpop.permute.xlu0 %728
  %vm733 = vcmask 392384
  %734 = vst.msk [vmem:[#allocation2 + $0x18] sm:$0xff] %vm733, %v725
  %735 = vst.msk [vmem:[#allocation2 + $0x20] sm:$0xff] %vm733, %v727
  %736 = vst.msk [vmem:[#allocation2 + $0x28] sm:$0xff] %vm733, %v729
  %740 = vrot.lane.b32.xlu0 %v683, 48
  %v741 = vpop.permute.xlu0 %740
  %742 = vrot.lane.b32.xlu0 %v687, 48
  %v743 = vpop.permute.xlu0 %742
  %744 = vrot.lane.b32.xlu0 %v691, 48
  %v745 = vpop.permute.xlu0 %744
  %vm749 = vcmask 589184
  %750 = vst.msk [vmem:[#allocation2 + $0x30] sm:$0xff] %vm749, %v741
  %751 = vst.msk [vmem:[#allocation2 + $0x38] sm:$0xff] %vm749, %v743
  %752 = vst.msk [vmem:[#allocation2 + $0x40] sm:$0xff] %vm749, %v745
  %756 = vrot.lane.b32.xlu0 %v695, 72
  %v757 = vpop.permute.xlu0 %756
  %758 = vrot.lane.b32.xlu0 %v699, 72
  %v759 = vpop.permute.xlu0 %758
  %760 = vrot.lane.b32.xlu0 %v703, 72
  %v761 = vpop.permute.xlu0 %760
  %vm765 = vcmask 785984
  %766 = vst.msk [vmem:[#allocation2 + $0x48] sm:$0xff] %vm765, %v757
  %767 = vst.msk [vmem:[#allocation2 + $0x50] sm:$0xff] %vm765, %v759
  %768 = vst.msk [vmem:[#allocation2 + $0x58] sm:$0xff] %vm765, %v761
  %v769 = vld [vmem:[#allocation2] sm:$0xff]
  %v770 = vld [vmem:[#allocation2 + $0x8] sm:$0xff]
  %v771 = vld [vmem:[#allocation2 + $0x10] sm:$0xff]
  %v772 = vld [vmem:[#allocation2 + $0x18] sm:$0xff]
  %v773 = vld [vmem:[#allocation2 + $0x20] sm:$0xff]
  %v774 = vld [vmem:[#allocation2 + $0x28] sm:$0xff]
  %v775 = vld [vmem:[#allocation2 + $0x30] sm:$0xff]
  %v776 = vld [vmem:[#allocation2 + $0x38] sm:$0xff]
  %v777 = vld [vmem:[#allocation2 + $0x40] sm:$0xff]
  %v778 = vld [vmem:[#allocation2 + $0x48] sm:$0xff]
  %v779 = vld [vmem:[#allocation2 + $0x50] sm:$0xff]
  %v780 = vld [vmem:[#allocation2 + $0x58] sm:$0xff]
  %v781 = vld [vmem:[%s2] sm:$0xff]
  %v782 = vld [vmem:[%s2 + $0x8] sm:$0xff]
  %v783 = vld [vmem:[%s2 + $0x10] sm:$0xff]
  %v784 = vld [vmem:[%s2 + $0x18] sm:$0xff]
  %v785 = vld [vmem:[%s2 + $0x20] sm:$0xff]
  %v786 = vld [vmem:[%s2 + $0x28] sm:$0xff]
  %v787 = vld [vmem:[%s2 + $0x30] sm:$0xff]
  %v788 = vld [vmem:[%s2 + $0x38] sm:$0xff]
  %v789 = vld [vmem:[%s2 + $0x40] sm:$0xff]
  %v790 = vld [vmem:[%s2 + $0x48] sm:$0xff]
  %v791 = vld [vmem:[%s2 + $0x50] sm:$0xff]
  %v792 = vld [vmem:[%s2 + $0x58] sm:$0xff]
  %v794 = vsel %vm38, %v769, 0
  %v797 = vsel %vm38, %v770, 0
  %v800 = vsel %vm38, %v771, 0
  %v803 = vsel %vm38, %v772, 0
  %v806 = vsel %vm38, %v773, 0
  %v809 = vsel %vm38, %v774, 0
  %v812 = vsel %vm38, %v775, 0
  %v815 = vsel %vm38, %v776, 0
  %v818 = vsel %vm38, %v777, 0
  %v821 = vsel %vm38, %v778, 0
  %v824 = vsel %vm38, %v779, 0
  %v827 = vsel %vm38, %v780, 0
  %v830 = vsel %vm38, %v781, 0
  %v833 = vsel %vm38, %v782, 0
  %v836 = vsel %vm38, %v783, 0
  %v839 = vsel %vm38, %v784, 0
  %v842 = vsel %vm38, %v785, 0
  %v845 = vsel %vm38, %v786, 0
  %v848 = vsel %vm38, %v787, 0
  %v851 = vsel %vm38, %v788, 0
  %v854 = vsel %vm38, %v789, 0
  %v857 = vsel %vm38, %v790, 0
  %v860 = vsel %vm38, %v791, 0
  %v863 = vsel %vm38, %v792, 0
  %865 = vmatpush.xpose.msra.mxu0 0.0
  %866 = vmatpush.xpose.msra.mxu0 0.0
  %867 = vmatpush.xpose.msra.mxu0 0.0
  %868 = vmatpush.xpose.msra.mxu0 0.0
  %v869 = vand.u32 %v863, 4294901760
  %870 = vmatpush.xpose.msra.mxu0 %v869
  %v871 = vand.u32 %v860, 4294901760
  %872 = vmatpush.xpose.msra.mxu0 %v871
  %v873 = vand.u32 %v857, 4294901760
  %874 = vmatpush.xpose.msra.mxu0 %v873
  %v875 = vand.u32 %v854, 4294901760
  %876 = vmatpush.xpose.msra.mxu0 %v875
  %v877 = vand.u32 %v851, 4294901760
  %878 = vmatpush.xpose.msra.mxu0 %v877
  %v879 = vand.u32 %v848, 4294901760
  %880 = vmatpush.xpose.msra.mxu0 %v879
  %v881 = vand.u32 %v845, 4294901760
  %882 = vmatpush.xpose.msra.mxu0 %v881
  %v883 = vand.u32 %v842, 4294901760
  %884 = vmatpush.xpose.msra.mxu0 %v883
  %v885 = vand.u32 %v839, 4294901760
  %886 = vmatpush.xpose.msra.mxu0 %v885
  %v887 = vand.u32 %v836, 4294901760
  %888 = vmatpush.xpose.msra.mxu0 %v887
  %v889 = vand.u32 %v833, 4294901760
  %890 = vmatpush.xpose.msra.mxu0 %v889
  %v891 = vand.u32 %v830, 4294901760
  %892 = vmatpush.xpose.msra.mxu0 %v891
  %v893 = vand.u32 %v794, 4294901760
  %v894 = vsub.f32 %v794, %v893
  %v895 = vand.u32 %v894, 4294901760
  %v896 = vsub.f32 %v894, %v895
  %v897 = vand.u32 %v896, 4294901760
  %898 = vmatmul.f32.gmra.mxu0 %v897
  %v899 = vpop.f32.mrf.mxu0
  %v900 = vadd.f32 0.0, %v899
  %v901 = vand.u32 %v797, 4294901760
  %v902 = vsub.f32 %v797, %v901
  %v903 = vand.u32 %v902, 4294901760
  %v904 = vsub.f32 %v902, %v903
  %v905 = vand.u32 %v904, 4294901760
  %906 = vmatmul.f32.gmra.mxu0 %v905
  %v907 = vpop.f32.mrf.mxu0
  %v908 = vadd.f32 0.0, %v907
  %v909 = vand.u32 %v800, 4294901760
  %v910 = vsub.f32 %v800, %v909
  %v911 = vand.u32 %v910, 4294901760
  %v912 = vsub.f32 %v910, %v911
  %v913 = vand.u32 %v912, 4294901760
  %914 = vmatmul.f32.gmra.mxu0 %v913
  %v915 = vpop.f32.mrf.mxu0
  %v916 = vadd.f32 0.0, %v915
  %v917 = vand.u32 %v803, 4294901760
  %v918 = vsub.f32 %v803, %v917
  %v919 = vand.u32 %v918, 4294901760
  %v920 = vsub.f32 %v918, %v919
  %v921 = vand.u32 %v920, 4294901760
  %922 = vmatmul.f32.gmra.mxu0 %v921
  %v923 = vpop.f32.mrf.mxu0
  %v924 = vadd.f32 0.0, %v923
  %v925 = vand.u32 %v806, 4294901760
  %v926 = vsub.f32 %v806, %v925
  %v927 = vand.u32 %v926, 4294901760
  %v928 = vsub.f32 %v926, %v927
  %v929 = vand.u32 %v928, 4294901760
  %930 = vmatmul.f32.gmra.mxu0 %v929
  %v931 = vpop.f32.mrf.mxu0
  %v932 = vadd.f32 0.0, %v931
  %v933 = vand.u32 %v809, 4294901760
  %v934 = vsub.f32 %v809, %v933
  %v935 = vand.u32 %v934, 4294901760
  %v936 = vsub.f32 %v934, %v935
  %v937 = vand.u32 %v936, 4294901760
  %938 = vmatmul.f32.gmra.mxu0 %v937
  %v939 = vpop.f32.mrf.mxu0
  %v940 = vadd.f32 0.0, %v939
  %v941 = vand.u32 %v812, 4294901760
  %v942 = vsub.f32 %v812, %v941
  %v943 = vand.u32 %v942, 4294901760
  %v944 = vsub.f32 %v942, %v943
  %v945 = vand.u32 %v944, 4294901760
  %946 = vmatmul.f32.gmra.mxu0 %v945
  %v947 = vpop.f32.mrf.mxu0
  %v948 = vadd.f32 0.0, %v947
  %v949 = vand.u32 %v815, 4294901760
  %v950 = vsub.f32 %v815, %v949
  %v951 = vand.u32 %v950, 4294901760
  %v952 = vsub.f32 %v950, %v951
  %v953 = vand.u32 %v952, 4294901760
  %954 = vmatmul.f32.gmra.mxu0 %v953
  %v955 = vpop.f32.mrf.mxu0
  %v956 = vadd.f32 0.0, %v955
  %v957 = vand.u32 %v818, 4294901760
  %v958 = vsub.f32 %v818, %v957
  %v959 = vand.u32 %v958, 4294901760
  %v960 = vsub.f32 %v958, %v959
  %v961 = vand.u32 %v960, 4294901760
  %962 = vmatmul.f32.gmra.mxu0 %v961
  %v963 = vpop.f32.mrf.mxu0
  %v964 = vadd.f32 0.0, %v963
  %v965 = vand.u32 %v821, 4294901760
  %v966 = vsub.f32 %v821, %v965
  %v967 = vand.u32 %v966, 4294901760
  %v968 = vsub.f32 %v966, %v967
  %v969 = vand.u32 %v968, 4294901760
  %970 = vmatmul.f32.gmra.mxu0 %v969
  %v971 = vpop.f32.mrf.mxu0
  %v972 = vadd.f32 0.0, %v971
  %v973 = vand.u32 %v824, 4294901760
  %v974 = vsub.f32 %v824, %v973
  %v975 = vand.u32 %v974, 4294901760
  %v976 = vsub.f32 %v974, %v975
  %v977 = vand.u32 %v976, 4294901760
  %978 = vmatmul.f32.gmra.mxu0 %v977
  %v979 = vpop.f32.mrf.mxu0
  %v980 = vadd.f32 0.0, %v979
  %v981 = vand.u32 %v827, 4294901760
  %v982 = vsub.f32 %v827, %v981
  %v983 = vand.u32 %v982, 4294901760
  %v984 = vsub.f32 %v982, %v983
  %v985 = vand.u32 %v984, 4294901760
  %986 = vmatmul.f32.gmra.mxu0 %v985
  %v987 = vpop.f32.mrf.mxu0
  %v988 = vadd.f32 0.0, %v987
  %989 = vdwg.mxu0
  %990 = vmatpush.xpose.msra.mxu0 0.0
  %991 = vmatpush.xpose.msra.mxu0 0.0
  %992 = vmatpush.xpose.msra.mxu0 0.0
  %993 = vmatpush.xpose.msra.mxu0 0.0
  %v994 = vand.u32 %v863, 4294901760
  %v995 = vsub.f32 %v863, %v994
  %v996 = vand.u32 %v995, 4294901760
  %v997 = vsub.f32 %v995, %v996
  %v998 = vand.u32 %v997, 4294901760
  %999 = vmatpush.xpose.msra.mxu0 %v998
  %v1000 = vand.u32 %v860, 4294901760
  %v1001 = vsub.f32 %v860, %v1000
  %v1002 = vand.u32 %v1001, 4294901760
  %v1003 = vsub.f32 %v1001, %v1002
  %v1004 = vand.u32 %v1003, 4294901760
  %1005 = vmatpush.xpose.msra.mxu0 %v1004
  %v1006 = vand.u32 %v857, 4294901760
  %v1007 = vsub.f32 %v857, %v1006
  %v1008 = vand.u32 %v1007, 4294901760
  %v1009 = vsub.f32 %v1007, %v1008
  %v1010 = vand.u32 %v1009, 4294901760
  %1011 = vmatpush.xpose.msra.mxu0 %v1010
  %v1012 = vand.u32 %v854, 4294901760
  %v1013 = vsub.f32 %v854, %v1012
  %v1014 = vand.u32 %v1013, 4294901760
  %v1015 = vsub.f32 %v1013, %v1014
  %v1016 = vand.u32 %v1015, 4294901760
  %1017 = vmatpush.xpose.msra.mxu0 %v1016
  %v1018 = vand.u32 %v851, 4294901760
  %v1019 = vsub.f32 %v851, %v1018
  %v1020 = vand.u32 %v1019, 4294901760
  %v1021 = vsub.f32 %v1019, %v1020
  %v1022 = vand.u32 %v1021, 4294901760
  %1023 = vmatpush.xpose.msra.mxu0 %v1022
  %v1024 = vand.u32 %v848, 4294901760
  %v1025 = vsub.f32 %v848, %v1024
  %v1026 = vand.u32 %v1025, 4294901760
  %v1027 = vsub.f32 %v1025, %v1026
  %v1028 = vand.u32 %v1027, 4294901760
  %1029 = vmatpush.xpose.msra.mxu0 %v1028
  %v1030 = vand.u32 %v845, 4294901760
  %v1031 = vsub.f32 %v845, %v1030
  %v1032 = vand.u32 %v1031, 4294901760
  %v1033 = vsub.f32 %v1031, %v1032
  %v1034 = vand.u32 %v1033, 4294901760
  %1035 = vmatpush.xpose.msra.mxu0 %v1034
  %v1036 = vand.u32 %v842, 4294901760
  %v1037 = vsub.f32 %v842, %v1036
  %v1038 = vand.u32 %v1037, 4294901760
  %v1039 = vsub.f32 %v1037, %v1038
  %v1040 = vand.u32 %v1039, 4294901760
  %1041 = vmatpush.xpose.msra.mxu0 %v1040
  %v1042 = vand.u32 %v839, 4294901760
  %v1043 = vsub.f32 %v839, %v1042
  %v1044 = vand.u32 %v1043, 4294901760
  %v1045 = vsub.f32 %v1043, %v1044
  %v1046 = vand.u32 %v1045, 4294901760
  %1047 = vmatpush.xpose.msra.mxu0 %v1046
  %v1048 = vand.u32 %v836, 4294901760
  %v1049 = vsub.f32 %v836, %v1048
  %v1050 = vand.u32 %v1049, 4294901760
  %v1051 = vsub.f32 %v1049, %v1050
  %v1052 = vand.u32 %v1051, 4294901760
  %1053 = vmatpush.xpose.msra.mxu0 %v1052
  %v1054 = vand.u32 %v833, 4294901760
  %v1055 = vsub.f32 %v833, %v1054
  %v1056 = vand.u32 %v1055, 4294901760
  %v1057 = vsub.f32 %v1055, %v1056
  %v1058 = vand.u32 %v1057, 4294901760
  %1059 = vmatpush.xpose.msra.mxu0 %v1058
  %v1060 = vand.u32 %v830, 4294901760
  %v1061 = vsub.f32 %v830, %v1060
  %v1062 = vand.u32 %v1061, 4294901760
  %v1063 = vsub.f32 %v1061, %v1062
  %v1064 = vand.u32 %v1063, 4294901760
  %1065 = vmatpush.xpose.msra.mxu0 %v1064
  %v1066 = vand.u32 %v794, 4294901760
  %1067 = vmatmul.f32.gmra.mxu0 %v1066
  %v1068 = vpop.f32.mrf.mxu0
  %v1069 = vadd.f32 %v900, %v1068
  %v1070 = vand.u32 %v797, 4294901760
  %1071 = vmatmul.f32.gmra.mxu0 %v1070
  %v1072 = vpop.f32.mrf.mxu0
  %v1073 = vadd.f32 %v908, %v1072
  %v1074 = vand.u32 %v800, 4294901760
  %1075 = vmatmul.f32.gmra.mxu0 %v1074
  %v1076 = vpop.f32.mrf.mxu0
  %v1077 = vadd.f32 %v916, %v1076
  %v1078 = vand.u32 %v803, 4294901760
  %1079 = vmatmul.f32.gmra.mxu0 %v1078
  %v1080 = vpop.f32.mrf.mxu0
  %v1081 = vadd.f32 %v924, %v1080
  %v1082 = vand.u32 %v806, 4294901760
  %1083 = vmatmul.f32.gmra.mxu0 %v1082
  %v1084 = vpop.f32.mrf.mxu0
  %v1085 = vadd.f32 %v932, %v1084
  %v1086 = vand.u32 %v809, 4294901760
  %1087 = vmatmul.f32.gmra.mxu0 %v1086
  %v1088 = vpop.f32.mrf.mxu0
  %v1089 = vadd.f32 %v940, %v1088
  %v1090 = vand.u32 %v812, 4294901760
  %1091 = vmatmul.f32.gmra.mxu0 %v1090
  %v1092 = vpop.f32.mrf.mxu0
  %v1093 = vadd.f32 %v948, %v1092
  %v1094 = vand.u32 %v815, 4294901760
  %1095 = vmatmul.f32.gmra.mxu0 %v1094
  %v1096 = vpop.f32.mrf.mxu0
  %v1097 = vadd.f32 %v956, %v1096
  %v1098 = vand.u32 %v818, 4294901760
  %1099 = vmatmul.f32.gmra.mxu0 %v1098
  %v1100 = vpop.f32.mrf.mxu0
  %v1101 = vadd.f32 %v964, %v1100
  %v1102 = vand.u32 %v821, 4294901760
  %1103 = vmatmul.f32.gmra.mxu0 %v1102
  %v1104 = vpop.f32.mrf.mxu0
  %v1105 = vadd.f32 %v972, %v1104
  %v1106 = vand.u32 %v824, 4294901760
  %1107 = vmatmul.f32.gmra.mxu0 %v1106
  %v1108 = vpop.f32.mrf.mxu0
  %v1109 = vadd.f32 %v980, %v1108
  %v1110 = vand.u32 %v827, 4294901760
  %1111 = vmatmul.f32.gmra.mxu0 %v1110
  %v1112 = vpop.f32.mrf.mxu0
  %v1113 = vadd.f32 %v988, %v1112
  %1114 = vdwg.mxu0
  %1115 = vmatpush.xpose.msra.mxu0 0.0
  %1116 = vmatpush.xpose.msra.mxu0 0.0
  %1117 = vmatpush.xpose.msra.mxu0 0.0
  %1118 = vmatpush.xpose.msra.mxu0 0.0
  %v1119 = vand.u32 %v863, 4294901760
  %v1120 = vsub.f32 %v863, %v1119
  %1121 = vmatpush.xpose.msra.mxu0 %v1120
  %v1122 = vand.u32 %v860, 4294901760
  %v1123 = vsub.f32 %v860, %v1122
  %1124 = vmatpush.xpose.msra.mxu0 %v1123
  %v1125 = vand.u32 %v857, 4294901760
  %v1126 = vsub.f32 %v857, %v1125
  %1127 = vmatpush.xpose.msra.mxu0 %v1126
  %v1128 = vand.u32 %v854, 4294901760
  %v1129 = vsub.f32 %v854, %v1128
  %1130 = vmatpush.xpose.msra.mxu0 %v1129
  %v1131 = vand.u32 %v851, 4294901760
  %v1132 = vsub.f32 %v851, %v1131
  %1133 = vmatpush.xpose.msra.mxu0 %v1132
  %v1134 = vand.u32 %v848, 4294901760
  %v1135 = vsub.f32 %v848, %v1134
  %1136 = vmatpush.xpose.msra.mxu0 %v1135
  %v1137 = vand.u32 %v845, 4294901760
  %v1138 = vsub.f32 %v845, %v1137
  %1139 = vmatpush.xpose.msra.mxu0 %v1138
  %v1140 = vand.u32 %v842, 4294901760
  %v1141 = vsub.f32 %v842, %v1140
  %1142 = vmatpush.xpose.msra.mxu0 %v1141
  %v1143 = vand.u32 %v839, 4294901760
  %v1144 = vsub.f32 %v839, %v1143
  %1145 = vmatpush.xpose.msra.mxu0 %v1144
  %v1146 = vand.u32 %v836, 4294901760
  %v1147 = vsub.f32 %v836, %v1146
  %1148 = vmatpush.xpose.msra.mxu0 %v1147
  %v1149 = vand.u32 %v833, 4294901760
  %v1150 = vsub.f32 %v833, %v1149
  %1151 = vmatpush.xpose.msra.mxu0 %v1150
  %v1152 = vand.u32 %v830, 4294901760
  %v1153 = vsub.f32 %v830, %v1152
  %1154 = vmatpush.xpose.msra.mxu0 %v1153
  %v1155 = vand.u32 %v794, 4294901760
  %v1156 = vsub.f32 %v794, %v1155
  %1157 = vmatmul.f32.gmra.mxu0 %v1156
  %v1158 = vpop.f32.mrf.mxu0
  %v1159 = vadd.f32 %v1069, %v1158
  %v1160 = vand.u32 %v797, 4294901760
  %v1161 = vsub.f32 %v797, %v1160
  %1162 = vmatmul.f32.gmra.mxu0 %v1161
  %v1163 = vpop.f32.mrf.mxu0
  %v1164 = vadd.f32 %v1073, %v1163
  %v1165 = vand.u32 %v800, 4294901760
  %v1166 = vsub.f32 %v800, %v1165
  %1167 = vmatmul.f32.gmra.mxu0 %v1166
  %v1168 = vpop.f32.mrf.mxu0
  %v1169 = vadd.f32 %v1077, %v1168
  %v1170 = vand.u32 %v803, 4294901760
  %v1171 = vsub.f32 %v803, %v1170
  %1172 = vmatmul.f32.gmra.mxu0 %v1171
  %v1173 = vpop.f32.mrf.mxu0
  %v1174 = vadd.f32 %v1081, %v1173
  %v1175 = vand.u32 %v806, 4294901760
  %v1176 = vsub.f32 %v806, %v1175
  %1177 = vmatmul.f32.gmra.mxu0 %v1176
  %v1178 = vpop.f32.mrf.mxu0
  %v1179 = vadd.f32 %v1085, %v1178
  %v1180 = vand.u32 %v809, 4294901760
  %v1181 = vsub.f32 %v809, %v1180
  %1182 = vmatmul.f32.gmra.mxu0 %v1181
  %v1183 = vpop.f32.mrf.mxu0
  %v1184 = vadd.f32 %v1089, %v1183
  %v1185 = vand.u32 %v812, 4294901760
  %v1186 = vsub.f32 %v812, %v1185
  %1187 = vmatmul.f32.gmra.mxu0 %v1186
  %v1188 = vpop.f32.mrf.mxu0
  %v1189 = vadd.f32 %v1093, %v1188
  %v1190 = vand.u32 %v815, 4294901760
  %v1191 = vsub.f32 %v815, %v1190
  %1192 = vmatmul.f32.gmra.mxu0 %v1191
  %v1193 = vpop.f32.mrf.mxu0
  %v1194 = vadd.f32 %v1097, %v1193
  %v1195 = vand.u32 %v818, 4294901760
  %v1196 = vsub.f32 %v818, %v1195
  %1197 = vmatmul.f32.gmra.mxu0 %v1196
  %v1198 = vpop.f32.mrf.mxu0
  %v1199 = vadd.f32 %v1101, %v1198
  %v1200 = vand.u32 %v821, 4294901760
  %v1201 = vsub.f32 %v821, %v1200
  %1202 = vmatmul.f32.gmra.mxu0 %v1201
  %v1203 = vpop.f32.mrf.mxu0
  %v1204 = vadd.f32 %v1105, %v1203
  %v1205 = vand.u32 %v824, 4294901760
  %v1206 = vsub.f32 %v824, %v1205
  %1207 = vmatmul.f32.gmra.mxu0 %v1206
  %v1208 = vpop.f32.mrf.mxu0
  %v1209 = vadd.f32 %v1109, %v1208
  %v1210 = vand.u32 %v827, 4294901760
  %v1211 = vsub.f32 %v827, %v1210
  %1212 = vmatmul.f32.gmra.mxu0 %v1211
  %v1213 = vpop.f32.mrf.mxu0
  %v1214 = vadd.f32 %v1113, %v1213
  %1215 = vdwg.mxu0
  %1216 = vmatpush.xpose.msra.mxu0 0.0
  %1217 = vmatpush.xpose.msra.mxu0 0.0
  %1218 = vmatpush.xpose.msra.mxu0 0.0
  %1219 = vmatpush.xpose.msra.mxu0 0.0
  %v1220 = vand.u32 %v863, 4294901760
  %1221 = vmatpush.xpose.msra.mxu0 %v1220
  %v1222 = vand.u32 %v860, 4294901760
  %1223 = vmatpush.xpose.msra.mxu0 %v1222
  %v1224 = vand.u32 %v857, 4294901760
  %1225 = vmatpush.xpose.msra.mxu0 %v1224
  %v1226 = vand.u32 %v854, 4294901760
  %1227 = vmatpush.xpose.msra.mxu0 %v1226
  %v1228 = vand.u32 %v851, 4294901760
  %1229 = vmatpush.xpose.msra.mxu0 %v1228
  %v1230 = vand.u32 %v848, 4294901760
  %1231 = vmatpush.xpose.msra.mxu0 %v1230
  %v1232 = vand.u32 %v845, 4294901760
  %1233 = vmatpush.xpose.msra.mxu0 %v1232
  %v1234 = vand.u32 %v842, 4294901760
  %1235 = vmatpush.xpose.msra.mxu0 %v1234
  %v1236 = vand.u32 %v839, 4294901760
  %1237 = vmatpush.xpose.msra.mxu0 %v1236
  %v1238 = vand.u32 %v836, 4294901760
  %1239 = vmatpush.xpose.msra.mxu0 %v1238
  %v1240 = vand.u32 %v833, 4294901760
  %1241 = vmatpush.xpose.msra.mxu0 %v1240
  %v1242 = vand.u32 %v830, 4294901760
  %1243 = vmatpush.xpose.msra.mxu0 %v1242
  %v1244 = vand.u32 %v794, 4294901760
  %v1245 = vsub.f32 %v794, %v1244
  %v1246 = vand.u32 %v1245, 4294901760
  %1247 = vmatmul.f32.gmra.mxu0 %v1246
  %v1248 = vpop.f32.mrf.mxu0
  %v1249 = vadd.f32 %v1159, %v1248
  %v1250 = vand.u32 %v797, 4294901760
  %v1251 = vsub.f32 %v797, %v1250
  %v1252 = vand.u32 %v1251, 4294901760
  %1253 = vmatmul.f32.gmra.mxu0 %v1252
  %v1254 = vpop.f32.mrf.mxu0
  %v1255 = vadd.f32 %v1164, %v1254
  %v1256 = vand.u32 %v800, 4294901760
  %v1257 = vsub.f32 %v800, %v1256
  %v1258 = vand.u32 %v1257, 4294901760
  %1259 = vmatmul.f32.gmra.mxu0 %v1258
  %v1260 = vpop.f32.mrf.mxu0
  %v1261 = vadd.f32 %v1169, %v1260
  %v1262 = vand.u32 %v803, 4294901760
  %v1263 = vsub.f32 %v803, %v1262
  %v1264 = vand.u32 %v1263, 4294901760
  %1265 = vmatmul.f32.gmra.mxu0 %v1264
  %v1266 = vpop.f32.mrf.mxu0
  %v1267 = vadd.f32 %v1174, %v1266
  %v1268 = vand.u32 %v806, 4294901760
  %v1269 = vsub.f32 %v806, %v1268
  %v1270 = vand.u32 %v1269, 4294901760
  %1271 = vmatmul.f32.gmra.mxu0 %v1270
  %v1272 = vpop.f32.mrf.mxu0
  %v1273 = vadd.f32 %v1179, %v1272
  %v1274 = vand.u32 %v809, 4294901760
  %v1275 = vsub.f32 %v809, %v1274
  %v1276 = vand.u32 %v1275, 4294901760
  %1277 = vmatmul.f32.gmra.mxu0 %v1276
  %v1278 = vpop.f32.mrf.mxu0
  %v1279 = vadd.f32 %v1184, %v1278
  %v1280 = vand.u32 %v812, 4294901760
  %v1281 = vsub.f32 %v812, %v1280
  %v1282 = vand.u32 %v1281, 4294901760
  %1283 = vmatmul.f32.gmra.mxu0 %v1282
  %v1284 = vpop.f32.mrf.mxu0
  %v1285 = vadd.f32 %v1189, %v1284
  %v1286 = vand.u32 %v815, 4294901760
  %v1287 = vsub.f32 %v815, %v1286
  %v1288 = vand.u32 %v1287, 4294901760
  %1289 = vmatmul.f32.gmra.mxu0 %v1288
  %v1290 = vpop.f32.mrf.mxu0
  %v1291 = vadd.f32 %v1194, %v1290
  %v1292 = vand.u32 %v818, 4294901760
  %v1293 = vsub.f32 %v818, %v1292
  %v1294 = vand.u32 %v1293, 4294901760
  %1295 = vmatmul.f32.gmra.mxu0 %v1294
  %v1296 = vpop.f32.mrf.mxu0
  %v1297 = vadd.f32 %v1199, %v1296
  %v1298 = vand.u32 %v821, 4294901760
  %v1299 = vsub.f32 %v821, %v1298
  %v1300 = vand.u32 %v1299, 4294901760
  %1301 = vmatmul.f32.gmra.mxu0 %v1300
  %v1302 = vpop.f32.mrf.mxu0
  %v1303 = vadd.f32 %v1204, %v1302
  %v1304 = vand.u32 %v824, 4294901760
  %v1305 = vsub.f32 %v824, %v1304
  %v1306 = vand.u32 %v1305, 4294901760
  %1307 = vmatmul.f32.gmra.mxu0 %v1306
  %v1308 = vpop.f32.mrf.mxu0
  %v1309 = vadd.f32 %v1209, %v1308
  %v1310 = vand.u32 %v827, 4294901760
  %v1311 = vsub.f32 %v827, %v1310
  %v1312 = vand.u32 %v1311, 4294901760
  %1313 = vmatmul.f32.gmra.mxu0 %v1312
  %v1314 = vpop.f32.mrf.mxu0
  %v1315 = vadd.f32 %v1214, %v1314
  %1316 = vdwg.mxu0
  %1317 = vmatpush.xpose.msra.mxu0 0.0
  %1318 = vmatpush.xpose.msra.mxu0 0.0
  %1319 = vmatpush.xpose.msra.mxu0 0.0
  %1320 = vmatpush.xpose.msra.mxu0 0.0
  %v1321 = vand.u32 %v863, 4294901760
  %v1322 = vsub.f32 %v863, %v1321
  %v1323 = vand.u32 %v1322, 4294901760
  %1324 = vmatpush.xpose.msra.mxu0 %v1323
  %v1325 = vand.u32 %v860, 4294901760
  %v1326 = vsub.f32 %v860, %v1325
  %v1327 = vand.u32 %v1326, 4294901760
  %1328 = vmatpush.xpose.msra.mxu0 %v1327
  %v1329 = vand.u32 %v857, 4294901760
  %v1330 = vsub.f32 %v857, %v1329
  %v1331 = vand.u32 %v1330, 4294901760
  %1332 = vmatpush.xpose.msra.mxu0 %v1331
  %v1333 = vand.u32 %v854, 4294901760
  %v1334 = vsub.f32 %v854, %v1333
  %v1335 = vand.u32 %v1334, 4294901760
  %1336 = vmatpush.xpose.msra.mxu0 %v1335
  %v1337 = vand.u32 %v851, 4294901760
  %v1338 = vsub.f32 %v851, %v1337
  %v1339 = vand.u32 %v1338, 4294901760
  %1340 = vmatpush.xpose.msra.mxu0 %v1339
  %v1341 = vand.u32 %v848, 4294901760
  %v1342 = vsub.f32 %v848, %v1341
  %v1343 = vand.u32 %v1342, 4294901760
  %1344 = vmatpush.xpose.msra.mxu0 %v1343
  %v1345 = vand.u32 %v845, 4294901760
  %v1346 = vsub.f32 %v845, %v1345
  %v1347 = vand.u32 %v1346, 4294901760
  %1348 = vmatpush.xpose.msra.mxu0 %v1347
  %v1349 = vand.u32 %v842, 4294901760
  %v1350 = vsub.f32 %v842, %v1349
  %v1351 = vand.u32 %v1350, 4294901760
  %1352 = vmatpush.xpose.msra.mxu0 %v1351
  %v1353 = vand.u32 %v839, 4294901760
  %v1354 = vsub.f32 %v839, %v1353
  %v1355 = vand.u32 %v1354, 4294901760
  %1356 = vmatpush.xpose.msra.mxu0 %v1355
  %v1357 = vand.u32 %v836, 4294901760
  %v1358 = vsub.f32 %v836, %v1357
  %v1359 = vand.u32 %v1358, 4294901760
  %1360 = vmatpush.xpose.msra.mxu0 %v1359
  %v1361 = vand.u32 %v833, 4294901760
  %v1362 = vsub.f32 %v833, %v1361
  %v1363 = vand.u32 %v1362, 4294901760
  %1364 = vmatpush.xpose.msra.mxu0 %v1363
  %v1365 = vand.u32 %v830, 4294901760
  %v1366 = vsub.f32 %v830, %v1365
  %v1367 = vand.u32 %v1366, 4294901760
  %1368 = vmatpush.xpose.msra.mxu0 %v1367
  %v1369 = vand.u32 %v794, 4294901760
  %1370 = vmatmul.f32.gmra.mxu0 %v1369
  %v1371 = vpop.f32.mrf.mxu0
  %v1372 = vadd.f32 %v1249, %v1371
  %v1373 = vand.u32 %v797, 4294901760
  %1374 = vmatmul.f32.gmra.mxu0 %v1373
  %v1375 = vpop.f32.mrf.mxu0
  %v1376 = vadd.f32 %v1255, %v1375
  %v1377 = vand.u32 %v800, 4294901760
  %1378 = vmatmul.f32.gmra.mxu0 %v1377
  %v1379 = vpop.f32.mrf.mxu0
  %v1380 = vadd.f32 %v1261, %v1379
  %v1381 = vand.u32 %v803, 4294901760
  %1382 = vmatmul.f32.gmra.mxu0 %v1381
  %v1383 = vpop.f32.mrf.mxu0
  %v1384 = vadd.f32 %v1267, %v1383
  %v1385 = vand.u32 %v806, 4294901760
  %1386 = vmatmul.f32.gmra.mxu0 %v1385
  %v1387 = vpop.f32.mrf.mxu0
  %v1388 = vadd.f32 %v1273, %v1387
  %v1389 = vand.u32 %v809, 4294901760
  %1390 = vmatmul.f32.gmra.mxu0 %v1389
  %v1391 = vpop.f32.mrf.mxu0
  %v1392 = vadd.f32 %v1279, %v1391
  %v1393 = vand.u32 %v812, 4294901760
  %1394 = vmatmul.f32.gmra.mxu0 %v1393
  %v1395 = vpop.f32.mrf.mxu0
  %v1396 = vadd.f32 %v1285, %v1395
  %v1397 = vand.u32 %v815, 4294901760
  %1398 = vmatmul.f32.gmra.mxu0 %v1397
  %v1399 = vpop.f32.mrf.mxu0
  %v1400 = vadd.f32 %v1291, %v1399
  %v1401 = vand.u32 %v818, 4294901760
  %1402 = vmatmul.f32.gmra.mxu0 %v1401
  %v1403 = vpop.f32.mrf.mxu0
  %v1404 = vadd.f32 %v1297, %v1403
  %v1405 = vand.u32 %v821, 4294901760
  %1406 = vmatmul.f32.gmra.mxu0 %v1405
  %v1407 = vpop.f32.mrf.mxu0
  %v1408 = vadd.f32 %v1303, %v1407
  %v1409 = vand.u32 %v824, 4294901760
  %1410 = vmatmul.f32.gmra.mxu0 %v1409
  %v1411 = vpop.f32.mrf.mxu0
  %v1412 = vadd.f32 %v1309, %v1411
  %v1413 = vand.u32 %v827, 4294901760
  %1414 = vmatmul.f32.gmra.mxu0 %v1413
  %v1415 = vpop.f32.mrf.mxu0
  %v1416 = vadd.f32 %v1315, %v1415
  %1417 = vdwg.mxu0
  %1418 = vmatpush.xpose.msra.mxu0 0.0
  %1419 = vmatpush.xpose.msra.mxu0 0.0
  %1420 = vmatpush.xpose.msra.mxu0 0.0
  %1421 = vmatpush.xpose.msra.mxu0 0.0
  %v1422 = vand.u32 %v863, 4294901760
  %1423 = vmatpush.xpose.msra.mxu0 %v1422
  %v1424 = vand.u32 %v860, 4294901760
  %1425 = vmatpush.xpose.msra.mxu0 %v1424
  %v1426 = vand.u32 %v857, 4294901760
  %1427 = vmatpush.xpose.msra.mxu0 %v1426
  %v1428 = vand.u32 %v854, 4294901760
  %1429 = vmatpush.xpose.msra.mxu0 %v1428
  %v1430 = vand.u32 %v851, 4294901760
  %1431 = vmatpush.xpose.msra.mxu0 %v1430
  %v1432 = vand.u32 %v848, 4294901760
  %1433 = vmatpush.xpose.msra.mxu0 %v1432
  %v1434 = vand.u32 %v845, 4294901760
  %1435 = vmatpush.xpose.msra.mxu0 %v1434
  %v1436 = vand.u32 %v842, 4294901760
  %1437 = vmatpush.xpose.msra.mxu0 %v1436
  %v1438 = vand.u32 %v839, 4294901760
  %1439 = vmatpush.xpose.msra.mxu0 %v1438
  %v1440 = vand.u32 %v836, 4294901760
  %1441 = vmatpush.xpose.msra.mxu0 %v1440
  %v1442 = vand.u32 %v833, 4294901760
  %1443 = vmatpush.xpose.msra.mxu0 %v1442
  %v1444 = vand.u32 %v830, 4294901760
  %1445 = vmatpush.xpose.msra.mxu0 %v1444
  %v1446 = vand.u32 %v794, 4294901760
  %1447 = vmatmul.f32.gmra.mxu0 %v1446
  %v1448 = vpop.f32.mrf.mxu0
  %v1449 = vadd.f32 %v1372, %v1448
  %v1450 = vand.u32 %v797, 4294901760
  %1451 = vmatmul.f32.gmra.mxu0 %v1450
  %v1452 = vpop.f32.mrf.mxu0
  %v1453 = vadd.f32 %v1376, %v1452
  %v1454 = vand.u32 %v800, 4294901760
  %1455 = vmatmul.f32.gmra.mxu0 %v1454
  %v1456 = vpop.f32.mrf.mxu0
  %v1457 = vadd.f32 %v1380, %v1456
  %v1458 = vand.u32 %v803, 4294901760
  %1459 = vmatmul.f32.gmra.mxu0 %v1458
  %v1460 = vpop.f32.mrf.mxu0
  %v1461 = vadd.f32 %v1384, %v1460
  %v1462 = vand.u32 %v806, 4294901760
  %1463 = vmatmul.f32.gmra.mxu0 %v1462
  %v1464 = vpop.f32.mrf.mxu0
  %v1465 = vadd.f32 %v1388, %v1464
  %v1466 = vand.u32 %v809, 4294901760
  %1467 = vmatmul.f32.gmra.mxu0 %v1466
  %v1468 = vpop.f32.mrf.mxu0
  %v1469 = vadd.f32 %v1392, %v1468
  %v1470 = vand.u32 %v812, 4294901760
  %1471 = vmatmul.f32.gmra.mxu0 %v1470
  %v1472 = vpop.f32.mrf.mxu0
  %v1473 = vadd.f32 %v1396, %v1472
  %v1474 = vand.u32 %v815, 4294901760
  %1475 = vmatmul.f32.gmra.mxu0 %v1474
  %v1476 = vpop.f32.mrf.mxu0
  %v1477 = vadd.f32 %v1400, %v1476
  %v1478 = vand.u32 %v818, 4294901760
  %1479 = vmatmul.f32.gmra.mxu0 %v1478
  %v1480 = vpop.f32.mrf.mxu0
  %v1481 = vadd.f32 %v1404, %v1480
  %v1482 = vand.u32 %v821, 4294901760
  %1483 = vmatmul.f32.gmra.mxu0 %v1482
  %v1484 = vpop.f32.mrf.mxu0
  %v1485 = vadd.f32 %v1408, %v1484
  %v1486 = vand.u32 %v824, 4294901760
  %1487 = vmatmul.f32.gmra.mxu0 %v1486
  %v1488 = vpop.f32.mrf.mxu0
  %v1489 = vadd.f32 %v1412, %v1488
  %v1490 = vand.u32 %v827, 4294901760
  %1491 = vmatmul.f32.gmra.mxu0 %v1490
  %v1492 = vpop.f32.mrf.mxu0
  %v1493 = vadd.f32 %v1416, %v1492
  %1494 = vdwg.mxu0
  %1495 = vst.msk [vmem:[%s3] sm:$0xff] %vm717, %v1449
  %1496 = vst.msk [vmem:[%s3 + $0x8] sm:$0xff] %vm717, %v1453
  %1497 = vst.msk [vmem:[%s3 + $0x10] sm:$0xff] %vm717, %v1457
  %1501 = vrot.lane.b32.xlu0 %v1461, 104
  %v1502 = vpop.permute.xlu0 %1501
  %1503 = vrot.lane.b32.xlu0 %v1465, 104
  %v1504 = vpop.permute.xlu0 %1503
  %1505 = vrot.lane.b32.xlu0 %v1469, 104
  %v1506 = vpop.permute.xlu0 %1505
  %s1510 = scalar_lea.vmem %s3, 24
  %1511 = vst.msk [vmem:[%s1510] sm:$0xff] %vm717, %v1502
  %1512 = vst.msk [vmem:[%s1510 + $0x8] sm:$0xff] %vm717, %v1504
  %1513 = vst.msk [vmem:[%s1510 + $0x10] sm:$0xff] %vm717, %v1506
  %1517 = vrot.lane.b32.xlu0 %v1473, 80
  %v1518 = vpop.permute.xlu0 %1517
  %1519 = vrot.lane.b32.xlu0 %v1477, 80
  %v1520 = vpop.permute.xlu0 %1519
  %1521 = vrot.lane.b32.xlu0 %v1481, 80
  %v1522 = vpop.permute.xlu0 %1521
  %s1526 = scalar_lea.vmem %s3, 48
  %1527 = vst.msk [vmem:[%s1526] sm:$0xff] %vm717, %v1518
  %1528 = vst.msk [vmem:[%s1526 + $0x8] sm:$0xff] %vm717, %v1520
  %1529 = vst.msk [vmem:[%s1526 + $0x10] sm:$0xff] %vm717, %v1522
  %1533 = vrot.lane.b32.xlu0 %v1485, 56
  %v1534 = vpop.permute.xlu0 %1533
  %1535 = vrot.lane.b32.xlu0 %v1489, 56
  %v1536 = vpop.permute.xlu0 %1535
  %1537 = vrot.lane.b32.xlu0 %v1493, 56
  %v1538 = vpop.permute.xlu0 %1537
  %s1542 = scalar_lea.vmem %s3, 72
  %1543 = vst.msk [vmem:[%s1542] sm:$0xff] %vm717, %v1534
  %1544 = vst.msk [vmem:[%s1542 + $0x8] sm:$0xff] %vm717, %v1536
  %1545 = vst.msk [vmem:[%s1542 + $0x10] sm:$0xff] %vm717, %v1538
  %1549 = vrot.lane.b32.xlu0 %v659, 104
  %v1550 = vpop.permute.xlu0 %1549
  %1551 = vrot.lane.b32.xlu0 %v663, 104
  %v1552 = vpop.permute.xlu0 %1551
  %1553 = vrot.lane.b32.xlu0 %v667, 104
  %v1554 = vpop.permute.xlu0 %1553
  %1558 = vst.msk [vmem:[#allocation2] sm:$0xff] %vm717, %v1550
  %1559 = vst.msk [vmem:[#allocation2 + $0x8] sm:$0xff] %vm717, %v1552
  %1560 = vst.msk [vmem:[#allocation2 + $0x10] sm:$0xff] %vm717, %v1554
  %1561 = vst.msk [vmem:[#allocation2 + $0x18] sm:$0xff] %vm733, %v671
  %1562 = vst.msk [vmem:[#allocation2 + $0x20] sm:$0xff] %vm733, %v675
  %1563 = vst.msk [vmem:[#allocation2 + $0x28] sm:$0xff] %vm733, %v679
  %1564 = vrot.lane.b32.xlu0 %v683, 24
  %v1565 = vpop.permute.xlu0 %1564
  %1566 = vrot.lane.b32.xlu0 %v687, 24
  %v1567 = vpop.permute.xlu0 %1566
  %1568 = vrot.lane.b32.xlu0 %v691, 24
  %v1569 = vpop.permute.xlu0 %1568
  %1573 = vst.msk [vmem:[#allocation2 + $0x30] sm:$0xff] %vm749, %v1565
  %1574 = vst.msk [vmem:[#allocation2 + $0x38] sm:$0xff] %vm749, %v1567
  %1575 = vst.msk [vmem:[#allocation2 + $0x40] sm:$0xff] %vm749, %v1569
  %1576 = vrot.lane.b32.xlu0 %v695, 48
  %v1577 = vpop.permute.xlu0 %1576
  %1578 = vrot.lane.b32.xlu0 %v699, 48
  %v1579 = vpop.permute.xlu0 %1578
  %1580 = vrot.lane.b32.xlu0 %v703, 48
  %v1581 = vpop.permute.xlu0 %1580
  %1585 = vst.msk [vmem:[#allocation2 + $0x48] sm:$0xff] %vm765, %v1577
  %1586 = vst.msk [vmem:[#allocation2 + $0x50] sm:$0xff] %vm765, %v1579
  %1587 = vst.msk [vmem:[#allocation2 + $0x58] sm:$0xff] %vm765, %v1581
  %v1588 = vld [vmem:[#allocation2] sm:$0xff]
  %v1589 = vld [vmem:[#allocation2 + $0x8] sm:$0xff]
  %v1590 = vld [vmem:[#allocation2 + $0x10] sm:$0xff]
  %v1591 = vld [vmem:[#allocation2 + $0x18] sm:$0xff]
  %v1592 = vld [vmem:[#allocation2 + $0x20] sm:$0xff]
  %v1593 = vld [vmem:[#allocation2 + $0x28] sm:$0xff]
  %v1594 = vld [vmem:[#allocation2 + $0x30] sm:$0xff]
  %v1595 = vld [vmem:[#allocation2 + $0x38] sm:$0xff]
  %v1596 = vld [vmem:[#allocation2 + $0x40] sm:$0xff]
  %v1597 = vld [vmem:[#allocation2 + $0x48] sm:$0xff]
  %v1598 = vld [vmem:[#allocation2 + $0x50] sm:$0xff]
  %v1599 = vld [vmem:[#allocation2 + $0x58] sm:$0xff]
  %v1600 = vld [vmem:[%s2] sm:$0xff]
  %v1601 = vld [vmem:[%s2 + $0x8] sm:$0xff]
  %v1602 = vld [vmem:[%s2 + $0x10] sm:$0xff]
  %v1603 = vld [vmem:[%s2 + $0x18] sm:$0xff]
  %v1604 = vld [vmem:[%s2 + $0x20] sm:$0xff]
  %v1605 = vld [vmem:[%s2 + $0x28] sm:$0xff]
  %v1606 = vld [vmem:[%s2 + $0x30] sm:$0xff]
  %v1607 = vld [vmem:[%s2 + $0x38] sm:$0xff]
  %v1608 = vld [vmem:[%s2 + $0x40] sm:$0xff]
  %v1609 = vld [vmem:[%s2 + $0x48] sm:$0xff]
  %v1610 = vld [vmem:[%s2 + $0x50] sm:$0xff]
  %v1611 = vld [vmem:[%s2 + $0x58] sm:$0xff]
  %v1613 = vsel %vm38, %v1588, 0
  %v1616 = vsel %vm38, %v1589, 0
  %v1619 = vsel %vm38, %v1590, 0
  %v1622 = vsel %vm38, %v1591, 0
  %v1625 = vsel %vm38, %v1592, 0
  %v1628 = vsel %vm38, %v1593, 0
  %v1631 = vsel %vm38, %v1594, 0
  %v1634 = vsel %vm38, %v1595, 0
  %v1637 = vsel %vm38, %v1596, 0
  %v1640 = vsel %vm38, %v1597, 0
  %v1643 = vsel %vm38, %v1598, 0
  %v1646 = vsel %vm38, %v1599, 0
  %v1649 = vsel %vm38, %v1600, 0
  %v1652 = vsel %vm38, %v1601, 0
  %v1655 = vsel %vm38, %v1602, 0
  %v1658 = vsel %vm38, %v1603, 0
  %v1661 = vsel %vm38, %v1604, 0
  %v1664 = vsel %vm38, %v1605, 0
  %v1667 = vsel %vm38, %v1606, 0
  %v1670 = vsel %vm38, %v1607, 0
  %v1673 = vsel %vm38, %v1608, 0
  %v1676 = vsel %vm38, %v1609, 0
  %v1679 = vsel %vm38, %v1610, 0
  %v1682 = vsel %vm38, %v1611, 0
  %1684 = vmatpush.xpose.msra.mxu0 0.0
  %1685 = vmatpush.xpose.msra.mxu0 0.0
  %1686 = vmatpush.xpose.msra.mxu0 0.0
  %1687 = vmatpush.xpose.msra.mxu0 0.0
  %v1688 = vand.u32 %v1682, 4294901760
  %1689 = vmatpush.xpose.msra.mxu0 %v1688
  %v1690 = vand.u32 %v1679, 4294901760
  %1691 = vmatpush.xpose.msra.mxu0 %v1690
  %v1692 = vand.u32 %v1676, 4294901760
  %1693 = vmatpush.xpose.msra.mxu0 %v1692
  %v1694 = vand.u32 %v1673, 4294901760
  %1695 = vmatpush.xpose.msra.mxu0 %v1694
  %v1696 = vand.u32 %v1670, 4294901760
  %1697 = vmatpush.xpose.msra.mxu0 %v1696
  %v1698 = vand.u32 %v1667, 4294901760
  %1699 = vmatpush.xpose.msra.mxu0 %v1698
  %v1700 = vand.u32 %v1664, 4294901760
  %1701 = vmatpush.xpose.msra.mxu0 %v1700
  %v1702 = vand.u32 %v1661, 4294901760
  %1703 = vmatpush.xpose.msra.mxu0 %v1702
  %v1704 = vand.u32 %v1658, 4294901760
  %1705 = vmatpush.xpose.msra.mxu0 %v1704
  %v1706 = vand.u32 %v1655, 4294901760
  %1707 = vmatpush.xpose.msra.mxu0 %v1706
  %v1708 = vand.u32 %v1652, 4294901760
  %1709 = vmatpush.xpose.msra.mxu0 %v1708
  %v1710 = vand.u32 %v1649, 4294901760
  %1711 = vmatpush.xpose.msra.mxu0 %v1710
  %v1712 = vand.u32 %v1613, 4294901760
  %v1713 = vsub.f32 %v1613, %v1712
  %v1714 = vand.u32 %v1713, 4294901760
  %v1715 = vsub.f32 %v1713, %v1714
  %v1716 = vand.u32 %v1715, 4294901760
  %1717 = vmatmul.f32.gmra.mxu0 %v1716
  %v1718 = vpop.f32.mrf.mxu0
  %v1719 = vadd.f32 0.0, %v1718
  %v1720 = vand.u32 %v1616, 4294901760
  %v1721 = vsub.f32 %v1616, %v1720
  %v1722 = vand.u32 %v1721, 4294901760
  %v1723 = vsub.f32 %v1721, %v1722
  %v1724 = vand.u32 %v1723, 4294901760
  %1725 = vmatmul.f32.gmra.mxu0 %v1724
  %v1726 = vpop.f32.mrf.mxu0
  %v1727 = vadd.f32 0.0, %v1726
  %v1728 = vand.u32 %v1619, 4294901760
  %v1729 = vsub.f32 %v1619, %v1728
  %v1730 = vand.u32 %v1729, 4294901760
  %v1731 = vsub.f32 %v1729, %v1730
  %v1732 = vand.u32 %v1731, 4294901760
  %1733 = vmatmul.f32.gmra.mxu0 %v1732
  %v1734 = vpop.f32.mrf.mxu0
  %v1735 = vadd.f32 0.0, %v1734
  %v1736 = vand.u32 %v1622, 4294901760
  %v1737 = vsub.f32 %v1622, %v1736
  %v1738 = vand.u32 %v1737, 4294901760
  %v1739 = vsub.f32 %v1737, %v1738
  %v1740 = vand.u32 %v1739, 4294901760
  %1741 = vmatmul.f32.gmra.mxu0 %v1740
  %v1742 = vpop.f32.mrf.mxu0
  %v1743 = vadd.f32 0.0, %v1742
  %v1744 = vand.u32 %v1625, 4294901760
  %v1745 = vsub.f32 %v1625, %v1744
  %v1746 = vand.u32 %v1745, 4294901760
  %v1747 = vsub.f32 %v1745, %v1746
  %v1748 = vand.u32 %v1747, 4294901760
  %1749 = vmatmul.f32.gmra.mxu0 %v1748
  %v1750 = vpop.f32.mrf.mxu0
  %v1751 = vadd.f32 0.0, %v1750
  %v1752 = vand.u32 %v1628, 4294901760
  %v1753 = vsub.f32 %v1628, %v1752
  %v1754 = vand.u32 %v1753, 4294901760
  %v1755 = vsub.f32 %v1753, %v1754
  %v1756 = vand.u32 %v1755, 4294901760
  %1757 = vmatmul.f32.gmra.mxu0 %v1756
  %v1758 = vpop.f32.mrf.mxu0
  %v1759 = vadd.f32 0.0, %v1758
  %v1760 = vand.u32 %v1631, 4294901760
  %v1761 = vsub.f32 %v1631, %v1760
  %v1762 = vand.u32 %v1761, 4294901760
  %v1763 = vsub.f32 %v1761, %v1762
  %v1764 = vand.u32 %v1763, 4294901760
  %1765 = vmatmul.f32.gmra.mxu0 %v1764
  %v1766 = vpop.f32.mrf.mxu0
  %v1767 = vadd.f32 0.0, %v1766
  %v1768 = vand.u32 %v1634, 4294901760
  %v1769 = vsub.f32 %v1634, %v1768
  %v1770 = vand.u32 %v1769, 4294901760
  %v1771 = vsub.f32 %v1769, %v1770
  %v1772 = vand.u32 %v1771, 4294901760
  %1773 = vmatmul.f32.gmra.mxu0 %v1772
  %v1774 = vpop.f32.mrf.mxu0
  %v1775 = vadd.f32 0.0, %v1774
  %v1776 = vand.u32 %v1637, 4294901760
  %v1777 = vsub.f32 %v1637, %v1776
  %v1778 = vand.u32 %v1777, 4294901760
  %v1779 = vsub.f32 %v1777, %v1778
  %v1780 = vand.u32 %v1779, 4294901760
  %1781 = vmatmul.f32.gmra.mxu0 %v1780
  %v1782 = vpop.f32.mrf.mxu0
  %v1783 = vadd.f32 0.0, %v1782
  %v1784 = vand.u32 %v1640, 4294901760
  %v1785 = vsub.f32 %v1640, %v1784
  %v1786 = vand.u32 %v1785, 4294901760
  %v1787 = vsub.f32 %v1785, %v1786
  %v1788 = vand.u32 %v1787, 4294901760
  %1789 = vmatmul.f32.gmra.mxu0 %v1788
  %v1790 = vpop.f32.mrf.mxu0
  %v1791 = vadd.f32 0.0, %v1790
  %v1792 = vand.u32 %v1643, 4294901760
  %v1793 = vsub.f32 %v1643, %v1792
  %v1794 = vand.u32 %v1793, 4294901760
  %v1795 = vsub.f32 %v1793, %v1794
  %v1796 = vand.u32 %v1795, 4294901760
  %1797 = vmatmul.f32.gmra.mxu0 %v1796
  %v1798 = vpop.f32.mrf.mxu0
  %v1799 = vadd.f32 0.0, %v1798
  %v1800 = vand.u32 %v1646, 4294901760
  %v1801 = vsub.f32 %v1646, %v1800
  %v1802 = vand.u32 %v1801, 4294901760
  %v1803 = vsub.f32 %v1801, %v1802
  %v1804 = vand.u32 %v1803, 4294901760
  %1805 = vmatmul.f32.gmra.mxu0 %v1804
  %v1806 = vpop.f32.mrf.mxu0
  %v1807 = vadd.f32 0.0, %v1806
  %1808 = vdwg.mxu0
  %1809 = vmatpush.xpose.msra.mxu0 0.0
  %1810 = vmatpush.xpose.msra.mxu0 0.0
  %1811 = vmatpush.xpose.msra.mxu0 0.0
  %1812 = vmatpush.xpose.msra.mxu0 0.0
  %v1813 = vand.u32 %v1682, 4294901760
  %v1814 = vsub.f32 %v1682, %v1813
  %v1815 = vand.u32 %v1814, 4294901760
  %v1816 = vsub.f32 %v1814, %v1815
  %v1817 = vand.u32 %v1816, 4294901760
  %1818 = vmatpush.xpose.msra.mxu0 %v1817
  %v1819 = vand.u32 %v1679, 4294901760
  %v1820 = vsub.f32 %v1679, %v1819
  %v1821 = vand.u32 %v1820, 4294901760
  %v1822 = vsub.f32 %v1820, %v1821
  %v1823 = vand.u32 %v1822, 4294901760
  %1824 = vmatpush.xpose.msra.mxu0 %v1823
  %v1825 = vand.u32 %v1676, 4294901760
  %v1826 = vsub.f32 %v1676, %v1825
  %v1827 = vand.u32 %v1826, 4294901760
  %v1828 = vsub.f32 %v1826, %v1827
  %v1829 = vand.u32 %v1828, 4294901760
  %1830 = vmatpush.xpose.msra.mxu0 %v1829
  %v1831 = vand.u32 %v1673, 4294901760
  %v1832 = vsub.f32 %v1673, %v1831
  %v1833 = vand.u32 %v1832, 4294901760
  %v1834 = vsub.f32 %v1832, %v1833
  %v1835 = vand.u32 %v1834, 4294901760
  %1836 = vmatpush.xpose.msra.mxu0 %v1835
  %v1837 = vand.u32 %v1670, 4294901760
  %v1838 = vsub.f32 %v1670, %v1837
  %v1839 = vand.u32 %v1838, 4294901760
  %v1840 = vsub.f32 %v1838, %v1839
  %v1841 = vand.u32 %v1840, 4294901760
  %1842 = vmatpush.xpose.msra.mxu0 %v1841
  %v1843 = vand.u32 %v1667, 4294901760
  %v1844 = vsub.f32 %v1667, %v1843
  %v1845 = vand.u32 %v1844, 4294901760
  %v1846 = vsub.f32 %v1844, %v1845
  %v1847 = vand.u32 %v1846, 4294901760
  %1848 = vmatpush.xpose.msra.mxu0 %v1847
  %v1849 = vand.u32 %v1664, 4294901760
  %v1850 = vsub.f32 %v1664, %v1849
  %v1851 = vand.u32 %v1850, 4294901760
  %v1852 = vsub.f32 %v1850, %v1851
  %v1853 = vand.u32 %v1852, 4294901760
  %1854 = vmatpush.xpose.msra.mxu0 %v1853
  %v1855 = vand.u32 %v1661, 4294901760
  %v1856 = vsub.f32 %v1661, %v1855
  %v1857 = vand.u32 %v1856, 4294901760
  %v1858 = vsub.f32 %v1856, %v1857
  %v1859 = vand.u32 %v1858, 4294901760
  %1860 = vmatpush.xpose.msra.mxu0 %v1859
  %v1861 = vand.u32 %v1658, 4294901760
  %v1862 = vsub.f32 %v1658, %v1861
  %v1863 = vand.u32 %v1862, 4294901760
  %v1864 = vsub.f32 %v1862, %v1863
  %v1865 = vand.u32 %v1864, 4294901760
  %1866 = vmatpush.xpose.msra.mxu0 %v1865
  %v1867 = vand.u32 %v1655, 4294901760
  %v1868 = vsub.f32 %v1655, %v1867
  %v1869 = vand.u32 %v1868, 4294901760
  %v1870 = vsub.f32 %v1868, %v1869
  %v1871 = vand.u32 %v1870, 4294901760
  %1872 = vmatpush.xpose.msra.mxu0 %v1871
  %v1873 = vand.u32 %v1652, 4294901760
  %v1874 = vsub.f32 %v1652, %v1873
  %v1875 = vand.u32 %v1874, 4294901760
  %v1876 = vsub.f32 %v1874, %v1875
  %v1877 = vand.u32 %v1876, 4294901760
  %1878 = vmatpush.xpose.msra.mxu0 %v1877
  %v1879 = vand.u32 %v1649, 4294901760
  %v1880 = vsub.f32 %v1649, %v1879
  %v1881 = vand.u32 %v1880, 4294901760
  %v1882 = vsub.f32 %v1880, %v1881
  %v1883 = vand.u32 %v1882, 4294901760
  %1884 = vmatpush.xpose.msra.mxu0 %v1883
  %v1885 = vand.u32 %v1613, 4294901760
  %1886 = vmatmul.f32.gmra.mxu0 %v1885
  %v1887 = vpop.f32.mrf.mxu0
  %v1888 = vadd.f32 %v1719, %v1887
  %v1889 = vand.u32 %v1616, 4294901760
  %1890 = vmatmul.f32.gmra.mxu0 %v1889
  %v1891 = vpop.f32.mrf.mxu0
  %v1892 = vadd.f32 %v1727, %v1891
  %v1893 = vand.u32 %v1619, 4294901760
  %1894 = vmatmul.f32.gmra.mxu0 %v1893
  %v1895 = vpop.f32.mrf.mxu0
  %v1896 = vadd.f32 %v1735, %v1895
  %v1897 = vand.u32 %v1622, 4294901760
  %1898 = vmatmul.f32.gmra.mxu0 %v1897
  %v1899 = vpop.f32.mrf.mxu0
  %v1900 = vadd.f32 %v1743, %v1899
  %v1901 = vand.u32 %v1625, 4294901760
  %1902 = vmatmul.f32.gmra.mxu0 %v1901
  %v1903 = vpop.f32.mrf.mxu0
  %v1904 = vadd.f32 %v1751, %v1903
  %v1905 = vand.u32 %v1628, 4294901760
  %1906 = vmatmul.f32.gmra.mxu0 %v1905
  %v1907 = vpop.f32.mrf.mxu0
  %v1908 = vadd.f32 %v1759, %v1907
  %v1909 = vand.u32 %v1631, 4294901760
  %1910 = vmatmul.f32.gmra.mxu0 %v1909
  %v1911 = vpop.f32.mrf.mxu0
  %v1912 = vadd.f32 %v1767, %v1911
  %v1913 = vand.u32 %v1634, 4294901760
  %1914 = vmatmul.f32.gmra.mxu0 %v1913
  %v1915 = vpop.f32.mrf.mxu0
  %v1916 = vadd.f32 %v1775, %v1915
  %v1917 = vand.u32 %v1637, 4294901760
  %1918 = vmatmul.f32.gmra.mxu0 %v1917
  %v1919 = vpop.f32.mrf.mxu0
  %v1920 = vadd.f32 %v1783, %v1919
  %v1921 = vand.u32 %v1640, 4294901760
  %1922 = vmatmul.f32.gmra.mxu0 %v1921
  %v1923 = vpop.f32.mrf.mxu0
  %v1924 = vadd.f32 %v1791, %v1923
  %v1925 = vand.u32 %v1643, 4294901760
  %1926 = vmatmul.f32.gmra.mxu0 %v1925
  %v1927 = vpop.f32.mrf.mxu0
  %v1928 = vadd.f32 %v1799, %v1927
  %v1929 = vand.u32 %v1646, 4294901760
  %1930 = vmatmul.f32.gmra.mxu0 %v1929
  %v1931 = vpop.f32.mrf.mxu0
  %v1932 = vadd.f32 %v1807, %v1931
  %1933 = vdwg.mxu0
  %1934 = vmatpush.xpose.msra.mxu0 0.0
  %1935 = vmatpush.xpose.msra.mxu0 0.0
  %1936 = vmatpush.xpose.msra.mxu0 0.0
  %1937 = vmatpush.xpose.msra.mxu0 0.0
  %v1938 = vand.u32 %v1682, 4294901760
  %v1939 = vsub.f32 %v1682, %v1938
  %1940 = vmatpush.xpose.msra.mxu0 %v1939
  %v1941 = vand.u32 %v1679, 4294901760
  %v1942 = vsub.f32 %v1679, %v1941
  %1943 = vmatpush.xpose.msra.mxu0 %v1942
  %v1944 = vand.u32 %v1676, 4294901760
  %v1945 = vsub.f32 %v1676, %v1944
  %1946 = vmatpush.xpose.msra.mxu0 %v1945
  %v1947 = vand.u32 %v1673, 4294901760
  %v1948 = vsub.f32 %v1673, %v1947
  %1949 = vmatpush.xpose.msra.mxu0 %v1948
  %v1950 = vand.u32 %v1670, 4294901760
  %v1951 = vsub.f32 %v1670, %v1950
  %1952 = vmatpush.xpose.msra.mxu0 %v1951
  %v1953 = vand.u32 %v1667, 4294901760
  %v1954 = vsub.f32 %v1667, %v1953
  %1955 = vmatpush.xpose.msra.mxu0 %v1954
  %v1956 = vand.u32 %v1664, 4294901760
  %v1957 = vsub.f32 %v1664, %v1956
  %1958 = vmatpush.xpose.msra.mxu0 %v1957
  %v1959 = vand.u32 %v1661, 4294901760
  %v1960 = vsub.f32 %v1661, %v1959
  %1961 = vmatpush.xpose.msra.mxu0 %v1960
  %v1962 = vand.u32 %v1658, 4294901760
  %v1963 = vsub.f32 %v1658, %v1962
  %1964 = vmatpush.xpose.msra.mxu0 %v1963
  %v1965 = vand.u32 %v1655, 4294901760
  %v1966 = vsub.f32 %v1655, %v1965
  %1967 = vmatpush.xpose.msra.mxu0 %v1966
  %v1968 = vand.u32 %v1652, 4294901760
  %v1969 = vsub.f32 %v1652, %v1968
  %1970 = vmatpush.xpose.msra.mxu0 %v1969
  %v1971 = vand.u32 %v1649, 4294901760
  %v1972 = vsub.f32 %v1649, %v1971
  %1973 = vmatpush.xpose.msra.mxu0 %v1972
  %v1974 = vand.u32 %v1613, 4294901760
  %v1975 = vsub.f32 %v1613, %v1974
  %1976 = vmatmul.f32.gmra.mxu0 %v1975
  %v1977 = vpop.f32.mrf.mxu0
  %v1978 = vadd.f32 %v1888, %v1977
  %v1979 = vand.u32 %v1616, 4294901760
  %v1980 = vsub.f32 %v1616, %v1979
  %1981 = vmatmul.f32.gmra.mxu0 %v1980
  %v1982 = vpop.f32.mrf.mxu0
  %v1983 = vadd.f32 %v1892, %v1982
  %v1984 = vand.u32 %v1619, 4294901760
  %v1985 = vsub.f32 %v1619, %v1984
  %1986 = vmatmul.f32.gmra.mxu0 %v1985
  %v1987 = vpop.f32.mrf.mxu0
  %v1988 = vadd.f32 %v1896, %v1987
  %v1989 = vand.u32 %v1622, 4294901760
  %v1990 = vsub.f32 %v1622, %v1989
  %1991 = vmatmul.f32.gmra.mxu0 %v1990
  %v1992 = vpop.f32.mrf.mxu0
  %v1993 = vadd.f32 %v1900, %v1992
  %v1994 = vand.u32 %v1625, 4294901760
  %v1995 = vsub.f32 %v1625, %v1994
  %1996 = vmatmul.f32.gmra.mxu0 %v1995
  %v1997 = vpop.f32.mrf.mxu0
  %v1998 = vadd.f32 %v1904, %v1997
  %v1999 = vand.u32 %v1628, 4294901760
  %v2000 = vsub.f32 %v1628, %v1999
  %2001 = vmatmul.f32.gmra.mxu0 %v2000
  %v2002 = vpop.f32.mrf.mxu0
  %v2003 = vadd.f32 %v1908, %v2002
  %v2004 = vand.u32 %v1631, 4294901760
  %v2005 = vsub.f32 %v1631, %v2004
  %2006 = vmatmul.f32.gmra.mxu0 %v2005
  %v2007 = vpop.f32.mrf.mxu0
  %v2008 = vadd.f32 %v1912, %v2007
  %v2009 = vand.u32 %v1634, 4294901760
  %v2010 = vsub.f32 %v1634, %v2009
  %2011 = vmatmul.f32.gmra.mxu0 %v2010
  %v2012 = vpop.f32.mrf.mxu0
  %v2013 = vadd.f32 %v1916, %v2012
  %v2014 = vand.u32 %v1637, 4294901760
  %v2015 = vsub.f32 %v1637, %v2014
  %2016 = vmatmul.f32.gmra.mxu0 %v2015
  %v2017 = vpop.f32.mrf.mxu0
  %v2018 = vadd.f32 %v1920, %v2017
  %v2019 = vand.u32 %v1640, 4294901760
  %v2020 = vsub.f32 %v1640, %v2019
  %2021 = vmatmul.f32.gmra.mxu0 %v2020
  %v2022 = vpop.f32.mrf.mxu0
  %v2023 = vadd.f32 %v1924, %v2022
  %v2024 = vand.u32 %v1643, 4294901760
  %v2025 = vsub.f32 %v1643, %v2024
  %2026 = vmatmul.f32.gmra.mxu0 %v2025
  %v2027 = vpop.f32.mrf.mxu0
  %v2028 = vadd.f32 %v1928, %v2027
  %v2029 = vand.u32 %v1646, 4294901760
  %v2030 = vsub.f32 %v1646, %v2029
  %2031 = vmatmul.f32.gmra.mxu0 %v2030
  %v2032 = vpop.f32.mrf.mxu0
  %v2033 = vadd.f32 %v1932, %v2032
  %2034 = vdwg.mxu0
  %2035 = vmatpush.xpose.msra.mxu0 0.0
  %2036 = vmatpush.xpose.msra.mxu0 0.0
  %2037 = vmatpush.xpose.msra.mxu0 0.0
  %2038 = vmatpush.xpose.msra.mxu0 0.0
  %v2039 = vand.u32 %v1682, 4294901760
  %2040 = vmatpush.xpose.msra.mxu0 %v2039
  %v2041 = vand.u32 %v1679, 4294901760
  %2042 = vmatpush.xpose.msra.mxu0 %v2041
  %v2043 = vand.u32 %v1676, 4294901760
  %2044 = vmatpush.xpose.msra.mxu0 %v2043
  %v2045 = vand.u32 %v1673, 4294901760
  %2046 = vmatpush.xpose.msra.mxu0 %v2045
  %v2047 = vand.u32 %v1670, 4294901760
  %2048 = vmatpush.xpose.msra.mxu0 %v2047
  %v2049 = vand.u32 %v1667, 4294901760
  %2050 = vmatpush.xpose.msra.mxu0 %v2049
  %v2051 = vand.u32 %v1664, 4294901760
  %2052 = vmatpush.xpose.msra.mxu0 %v2051
  %v2053 = vand.u32 %v1661, 4294901760
  %2054 = vmatpush.xpose.msra.mxu0 %v2053
  %v2055 = vand.u32 %v1658, 4294901760
  %2056 = vmatpush.xpose.msra.mxu0 %v2055
  %v2057 = vand.u32 %v1655, 4294901760
  %2058 = vmatpush.xpose.msra.mxu0 %v2057
  %v2059 = vand.u32 %v1652, 4294901760
  %2060 = vmatpush.xpose.msra.mxu0 %v2059
  %v2061 = vand.u32 %v1649, 4294901760
  %2062 = vmatpush.xpose.msra.mxu0 %v2061
  %v2063 = vand.u32 %v1613, 4294901760
  %v2064 = vsub.f32 %v1613, %v2063
  %v2065 = vand.u32 %v2064, 4294901760
  %2066 = vmatmul.f32.gmra.mxu0 %v2065
  %v2067 = vpop.f32.mrf.mxu0
  %v2068 = vadd.f32 %v1978, %v2067
  %v2069 = vand.u32 %v1616, 4294901760
  %v2070 = vsub.f32 %v1616, %v2069
  %v2071 = vand.u32 %v2070, 4294901760
  %2072 = vmatmul.f32.gmra.mxu0 %v2071
  %v2073 = vpop.f32.mrf.mxu0
  %v2074 = vadd.f32 %v1983, %v2073
  %v2075 = vand.u32 %v1619, 4294901760
  %v2076 = vsub.f32 %v1619, %v2075
  %v2077 = vand.u32 %v2076, 4294901760
  %2078 = vmatmul.f32.gmra.mxu0 %v2077
  %v2079 = vpop.f32.mrf.mxu0
  %v2080 = vadd.f32 %v1988, %v2079
  %v2081 = vand.u32 %v1622, 4294901760
  %v2082 = vsub.f32 %v1622, %v2081
  %v2083 = vand.u32 %v2082, 4294901760
  %2084 = vmatmul.f32.gmra.mxu0 %v2083
  %v2085 = vpop.f32.mrf.mxu0
  %v2086 = vadd.f32 %v1993, %v2085
  %v2087 = vand.u32 %v1625, 4294901760
  %v2088 = vsub.f32 %v1625, %v2087
  %v2089 = vand.u32 %v2088, 4294901760
  %2090 = vmatmul.f32.gmra.mxu0 %v2089
  %v2091 = vpop.f32.mrf.mxu0
  %v2092 = vadd.f32 %v1998, %v2091
  %v2093 = vand.u32 %v1628, 4294901760
  %v2094 = vsub.f32 %v1628, %v2093
  %v2095 = vand.u32 %v2094, 4294901760
  %2096 = vmatmul.f32.gmra.mxu0 %v2095
  %v2097 = vpop.f32.mrf.mxu0
  %v2098 = vadd.f32 %v2003, %v2097
  %v2099 = vand.u32 %v1631, 4294901760
  %v2100 = vsub.f32 %v1631, %v2099
  %v2101 = vand.u32 %v2100, 4294901760
  %2102 = vmatmul.f32.gmra.mxu0 %v2101
  %v2103 = vpop.f32.mrf.mxu0
  %v2104 = vadd.f32 %v2008, %v2103
  %v2105 = vand.u32 %v1634, 4294901760
  %v2106 = vsub.f32 %v1634, %v2105
  %v2107 = vand.u32 %v2106, 4294901760
  %2108 = vmatmul.f32.gmra.mxu0 %v2107
  %v2109 = vpop.f32.mrf.mxu0
  %v2110 = vadd.f32 %v2013, %v2109
  %v2111 = vand.u32 %v1637, 4294901760
  %v2112 = vsub.f32 %v1637, %v2111
  %v2113 = vand.u32 %v2112, 4294901760
  %2114 = vmatmul.f32.gmra.mxu0 %v2113
  %v2115 = vpop.f32.mrf.mxu0
  %v2116 = vadd.f32 %v2018, %v2115
  %v2117 = vand.u32 %v1640, 4294901760
  %v2118 = vsub.f32 %v1640, %v2117
  %v2119 = vand.u32 %v2118, 4294901760
  %2120 = vmatmul.f32.gmra.mxu0 %v2119
  %v2121 = vpop.f32.mrf.mxu0
  %v2122 = vadd.f32 %v2023, %v2121
  %v2123 = vand.u32 %v1643, 4294901760
  %v2124 = vsub.f32 %v1643, %v2123
  %v2125 = vand.u32 %v2124, 4294901760
  %2126 = vmatmul.f32.gmra.mxu0 %v2125
  %v2127 = vpop.f32.mrf.mxu0
  %v2128 = vadd.f32 %v2028, %v2127
  %v2129 = vand.u32 %v1646, 4294901760
  %v2130 = vsub.f32 %v1646, %v2129
  %v2131 = vand.u32 %v2130, 4294901760
  %2132 = vmatmul.f32.gmra.mxu0 %v2131
  %v2133 = vpop.f32.mrf.mxu0
  %v2134 = vadd.f32 %v2033, %v2133
  %2135 = vdwg.mxu0
  %2136 = vmatpush.xpose.msra.mxu0 0.0
  %2137 = vmatpush.xpose.msra.mxu0 0.0
  %2138 = vmatpush.xpose.msra.mxu0 0.0
  %2139 = vmatpush.xpose.msra.mxu0 0.0
  %v2140 = vand.u32 %v1682, 4294901760
  %v2141 = vsub.f32 %v1682, %v2140
  %v2142 = vand.u32 %v2141, 4294901760
  %2143 = vmatpush.xpose.msra.mxu0 %v2142
  %v2144 = vand.u32 %v1679, 4294901760
  %v2145 = vsub.f32 %v1679, %v2144
  %v2146 = vand.u32 %v2145, 4294901760
  %2147 = vmatpush.xpose.msra.mxu0 %v2146
  %v2148 = vand.u32 %v1676, 4294901760
  %v2149 = vsub.f32 %v1676, %v2148
  %v2150 = vand.u32 %v2149, 4294901760
  %2151 = vmatpush.xpose.msra.mxu0 %v2150
  %v2152 = vand.u32 %v1673, 4294901760
  %v2153 = vsub.f32 %v1673, %v2152
  %v2154 = vand.u32 %v2153, 4294901760
  %2155 = vmatpush.xpose.msra.mxu0 %v2154
  %v2156 = vand.u32 %v1670, 4294901760
  %v2157 = vsub.f32 %v1670, %v2156
  %v2158 = vand.u32 %v2157, 4294901760
  %2159 = vmatpush.xpose.msra.mxu0 %v2158
  %v2160 = vand.u32 %v1667, 4294901760
  %v2161 = vsub.f32 %v1667, %v2160
  %v2162 = vand.u32 %v2161, 4294901760
  %2163 = vmatpush.xpose.msra.mxu0 %v2162
  %v2164 = vand.u32 %v1664, 4294901760
  %v2165 = vsub.f32 %v1664, %v2164
  %v2166 = vand.u32 %v2165, 4294901760
  %2167 = vmatpush.xpose.msra.mxu0 %v2166
  %v2168 = vand.u32 %v1661, 4294901760
  %v2169 = vsub.f32 %v1661, %v2168
  %v2170 = vand.u32 %v2169, 4294901760
  %2171 = vmatpush.xpose.msra.mxu0 %v2170
  %v2172 = vand.u32 %v1658, 4294901760
  %v2173 = vsub.f32 %v1658, %v2172
  %v2174 = vand.u32 %v2173, 4294901760
  %2175 = vmatpush.xpose.msra.mxu0 %v2174
  %v2176 = vand.u32 %v1655, 4294901760
  %v2177 = vsub.f32 %v1655, %v2176
  %v2178 = vand.u32 %v2177, 4294901760
  %2179 = vmatpush.xpose.msra.mxu0 %v2178
  %v2180 = vand.u32 %v1652, 4294901760
  %v2181 = vsub.f32 %v1652, %v2180
  %v2182 = vand.u32 %v2181, 4294901760
  %2183 = vmatpush.xpose.msra.mxu0 %v2182
  %v2184 = vand.u32 %v1649, 4294901760
  %v2185 = vsub.f32 %v1649, %v2184
  %v2186 = vand.u32 %v2185, 4294901760
  %2187 = vmatpush.xpose.msra.mxu0 %v2186
  %v2188 = vand.u32 %v1613, 4294901760
  %2189 = vmatmul.f32.gmra.mxu0 %v2188
  %v2190 = vpop.f32.mrf.mxu0
  %v2191 = vadd.f32 %v2068, %v2190
  %v2192 = vand.u32 %v1616, 4294901760
  %2193 = vmatmul.f32.gmra.mxu0 %v2192
  %v2194 = vpop.f32.mrf.mxu0
  %v2195 = vadd.f32 %v2074, %v2194
  %v2196 = vand.u32 %v1619, 4294901760
  %2197 = vmatmul.f32.gmra.mxu0 %v2196
  %v2198 = vpop.f32.mrf.mxu0
  %v2199 = vadd.f32 %v2080, %v2198
  %v2200 = vand.u32 %v1622, 4294901760
  %2201 = vmatmul.f32.gmra.mxu0 %v2200
  %v2202 = vpop.f32.mrf.mxu0
  %v2203 = vadd.f32 %v2086, %v2202
  %v2204 = vand.u32 %v1625, 4294901760
  %2205 = vmatmul.f32.gmra.mxu0 %v2204
  %v2206 = vpop.f32.mrf.mxu0
  %v2207 = vadd.f32 %v2092, %v2206
  %v2208 = vand.u32 %v1628, 4294901760
  %2209 = vmatmul.f32.gmra.mxu0 %v2208
  %v2210 = vpop.f32.mrf.mxu0
  %v2211 = vadd.f32 %v2098, %v2210
  %v2212 = vand.u32 %v1631, 4294901760
  %2213 = vmatmul.f32.gmra.mxu0 %v2212
  %v2214 = vpop.f32.mrf.mxu0
  %v2215 = vadd.f32 %v2104, %v2214
  %v2216 = vand.u32 %v1634, 4294901760
  %2217 = vmatmul.f32.gmra.mxu0 %v2216
  %v2218 = vpop.f32.mrf.mxu0
  %v2219 = vadd.f32 %v2110, %v2218
  %v2220 = vand.u32 %v1637, 4294901760
  %2221 = vmatmul.f32.gmra.mxu0 %v2220
  %v2222 = vpop.f32.mrf.mxu0
  %v2223 = vadd.f32 %v2116, %v2222
  %v2224 = vand.u32 %v1640, 4294901760
  %2225 = vmatmul.f32.gmra.mxu0 %v2224
  %v2226 = vpop.f32.mrf.mxu0
  %v2227 = vadd.f32 %v2122, %v2226
  %v2228 = vand.u32 %v1643, 4294901760
  %2229 = vmatmul.f32.gmra.mxu0 %v2228
  %v2230 = vpop.f32.mrf.mxu0
  %v2231 = vadd.f32 %v2128, %v2230
  %v2232 = vand.u32 %v1646, 4294901760
  %2233 = vmatmul.f32.gmra.mxu0 %v2232
  %v2234 = vpop.f32.mrf.mxu0
  %v2235 = vadd.f32 %v2134, %v2234
  %2236 = vdwg.mxu0
  %2237 = vmatpush.xpose.msra.mxu0 0.0
  %2238 = vmatpush.xpose.msra.mxu0 0.0
  %2239 = vmatpush.xpose.msra.mxu0 0.0
  %2240 = vmatpush.xpose.msra.mxu0 0.0
  %v2241 = vand.u32 %v1682, 4294901760
  %2242 = vmatpush.xpose.msra.mxu0 %v2241
  %v2243 = vand.u32 %v1679, 4294901760
  %2244 = vmatpush.xpose.msra.mxu0 %v2243
  %v2245 = vand.u32 %v1676, 4294901760
  %2246 = vmatpush.xpose.msra.mxu0 %v2245
  %v2247 = vand.u32 %v1673, 4294901760
  %2248 = vmatpush.xpose.msra.mxu0 %v2247
  %v2249 = vand.u32 %v1670, 4294901760
  %2250 = vmatpush.xpose.msra.mxu0 %v2249
  %v2251 = vand.u32 %v1667, 4294901760
  %2252 = vmatpush.xpose.msra.mxu0 %v2251
  %v2253 = vand.u32 %v1664, 4294901760
  %2254 = vmatpush.xpose.msra.mxu0 %v2253
  %v2255 = vand.u32 %v1661, 4294901760
  %2256 = vmatpush.xpose.msra.mxu0 %v2255
  %v2257 = vand.u32 %v1658, 4294901760
  %2258 = vmatpush.xpose.msra.mxu0 %v2257
  %v2259 = vand.u32 %v1655, 4294901760
  %2260 = vmatpush.xpose.msra.mxu0 %v2259
  %v2261 = vand.u32 %v1652, 4294901760
  %2262 = vmatpush.xpose.msra.mxu0 %v2261
  %v2263 = vand.u32 %v1649, 4294901760
  %2264 = vmatpush.xpose.msra.mxu0 %v2263
  %v2265 = vand.u32 %v1613, 4294901760
  %2266 = vmatmul.f32.gmra.mxu0 %v2265
  %v2267 = vpop.f32.mrf.mxu0
  %v2268 = vadd.f32 %v2191, %v2267
  %v2269 = vand.u32 %v1616, 4294901760
  %2270 = vmatmul.f32.gmra.mxu0 %v2269
  %v2271 = vpop.f32.mrf.mxu0
  %v2272 = vadd.f32 %v2195, %v2271
  %v2273 = vand.u32 %v1619, 4294901760
  %2274 = vmatmul.f32.gmra.mxu0 %v2273
  %v2275 = vpop.f32.mrf.mxu0
  %v2276 = vadd.f32 %v2199, %v2275
  %v2277 = vand.u32 %v1622, 4294901760
  %2278 = vmatmul.f32.gmra.mxu0 %v2277
  %v2279 = vpop.f32.mrf.mxu0
  %v2280 = vadd.f32 %v2203, %v2279
  %v2281 = vand.u32 %v1625, 4294901760
  %2282 = vmatmul.f32.gmra.mxu0 %v2281
  %v2283 = vpop.f32.mrf.mxu0
  %v2284 = vadd.f32 %v2207, %v2283
  %v2285 = vand.u32 %v1628, 4294901760
  %2286 = vmatmul.f32.gmra.mxu0 %v2285
  %v2287 = vpop.f32.mrf.mxu0
  %v2288 = vadd.f32 %v2211, %v2287
  %v2289 = vand.u32 %v1631, 4294901760
  %2290 = vmatmul.f32.gmra.mxu0 %v2289
  %v2291 = vpop.f32.mrf.mxu0
  %v2292 = vadd.f32 %v2215, %v2291
  %v2293 = vand.u32 %v1634, 4294901760
  %2294 = vmatmul.f32.gmra.mxu0 %v2293
  %v2295 = vpop.f32.mrf.mxu0
  %v2296 = vadd.f32 %v2219, %v2295
  %v2297 = vand.u32 %v1637, 4294901760
  %2298 = vmatmul.f32.gmra.mxu0 %v2297
  %v2299 = vpop.f32.mrf.mxu0
  %v2300 = vadd.f32 %v2223, %v2299
  %v2301 = vand.u32 %v1640, 4294901760
  %2302 = vmatmul.f32.gmra.mxu0 %v2301
  %v2303 = vpop.f32.mrf.mxu0
  %v2304 = vadd.f32 %v2227, %v2303
  %v2305 = vand.u32 %v1643, 4294901760
  %2306 = vmatmul.f32.gmra.mxu0 %v2305
  %v2307 = vpop.f32.mrf.mxu0
  %v2308 = vadd.f32 %v2231, %v2307
  %v2309 = vand.u32 %v1646, 4294901760
  %2310 = vmatmul.f32.gmra.mxu0 %v2309
  %v2311 = vpop.f32.mrf.mxu0
  %v2312 = vadd.f32 %v2235, %v2311
  %2313 = vdwg.mxu0
  %s2314 = scalar_lea.vmem %s3, 96
  %2315 = vst.msk [vmem:[%s2314] sm:$0xff] %vm717, %v2268
  %2316 = vst.msk [vmem:[%s2314 + $0x8] sm:$0xff] %vm717, %v2272
  %2317 = vst.msk [vmem:[%s2314 + $0x10] sm:$0xff] %vm717, %v2276
  %2321 = vrot.lane.b32.xlu0 %v2280, 104
  %v2322 = vpop.permute.xlu0 %2321
  %2323 = vrot.lane.b32.xlu0 %v2284, 104
  %v2324 = vpop.permute.xlu0 %2323
  %2325 = vrot.lane.b32.xlu0 %v2288, 104
  %v2326 = vpop.permute.xlu0 %2325
  %s2330 = scalar_lea.vmem %s3, 120
  %2331 = vst.msk [vmem:[%s2330] sm:$0xff] %vm717, %v2322
  %2332 = vst.msk [vmem:[%s2330 + $0x8] sm:$0xff] %vm717, %v2324
  %2333 = vst.msk [vmem:[%s2330 + $0x10] sm:$0xff] %vm717, %v2326
  %2337 = vrot.lane.b32.xlu0 %v2292, 80
  %v2338 = vpop.permute.xlu0 %2337
  %2339 = vrot.lane.b32.xlu0 %v2296, 80
  %v2340 = vpop.permute.xlu0 %2339
  %2341 = vrot.lane.b32.xlu0 %v2300, 80
  %v2342 = vpop.permute.xlu0 %2341
  %s2346 = scalar_lea.vmem %s3, 144
  %2347 = vst.msk [vmem:[%s2346] sm:$0xff] %vm717, %v2338
  %2348 = vst.msk [vmem:[%s2346 + $0x8] sm:$0xff] %vm717, %v2340
  %2349 = vst.msk [vmem:[%s2346 + $0x10] sm:$0xff] %vm717, %v2342
  %2353 = vrot.lane.b32.xlu0 %v2304, 56
  %v2354 = vpop.permute.xlu0 %2353
  %2355 = vrot.lane.b32.xlu0 %v2308, 56
  %v2356 = vpop.permute.xlu0 %2355
  %2357 = vrot.lane.b32.xlu0 %v2312, 56
  %v2358 = vpop.permute.xlu0 %2357
  %s2362 = scalar_lea.vmem %s3, 168
  %2363 = vst.msk [vmem:[%s2362] sm:$0xff] %vm717, %v2354
  %2364 = vst.msk [vmem:[%s2362 + $0x8] sm:$0xff] %vm717, %v2356
  %2365 = vst.msk [vmem:[%s2362 + $0x10] sm:$0xff] %vm717, %v2358
  // Predicated region
  $region14: #{graph_cspnet_forward.3} parent=0 // pred_check
    _
  $region15: #{graph_cspnet_forward.3} parent=0 // pred_check_branch
    %2367 = sbr.rel (0) target = $region17
  $region16: #{graph_cspnet_forward.3} parent=0 // pred_region
    _
  $region17: #{graph_cspnet_forward.3} parent=0 // pred_fallthru
    _
  // Predicated region
  $region18: #{graph_cspnet_forward.3} parent=0 // pred_check
    _
  $region19: #{graph_cspnet_forward.3} parent=0 // pred_check_branch
    %2369 = sbr.rel (0) target = $region21
  $region20: #{graph_cspnet_forward.3} parent=0 // pred_region
    _
  $region21: #{graph_cspnet_forward.3} parent=0 // pred_fallthru
    _

// kernel: graph_cspnet_forward.4
$region0: #{graph_cspnet_forward.4}
  #allocation0 [shape = 'u32[]', space=smem, size = 0x4, offset = 0x4, fixed_abs, tag = 'smem constant byte address 0x4 - core index']
  #allocation1 [shape = 'u32[72,128]{1,0:T(1,128)}', space=vmem, size = 0x9000, scoped, tag = 'internal scratch']
  %s0 = inlined_call_operand.vmem [shape: f32[8,1,24], index: 0, kind: input, shape index: {}]
  %s1 = inlined_call_operand.vmem [shape: f32[8,24,24], index: 1, kind: input, shape index: {}]
  %s2 = inlined_call_operand.vmem [shape: f32[8,24,24], index: 2, kind: output, shape index: {}]
  %s3 = sld [smem:[#allocation0]]
  $region18: #{graph_cspnet_forward.4} parent=0
    _
  %s5 = ssub.s32 1, %s3
  %s6 = scalar_select 0, %s5, %s3
  // Predicated region
  $region2: #{graph_cspnet_forward.4} parent=0 // pred_check
    _
  $region3: #{graph_cspnet_forward.4} parent=0 // pred_check_branch
    %8 = sbr.rel (0) target = $region5
  $region4: #{graph_cspnet_forward.4} parent=0 // pred_region
    _
  $region5: #{graph_cspnet_forward.4} parent=0 // pred_fallthru
    _
  // Predicated region
  $region6: #{graph_cspnet_forward.4} parent=0 // pred_check
    _
  $region7: #{graph_cspnet_forward.4} parent=0 // pred_check_branch
    %10 = sbr.rel (0) target = $region9
  $region8: #{graph_cspnet_forward.4} parent=0 // pred_region
    _
  $region9: #{graph_cspnet_forward.4} parent=0 // pred_fallthru
    _
  %v11 = vld [vmem:[%s0] sm:$0x1]
  %v12 = vld [vmem:[%s0 + $0x1] sm:$0x1]
  %v13 = vld [vmem:[%s0 + $0x2] sm:$0x1]
  %v14 = vld [vmem:[%s0 + $0x3] sm:$0x1]
  %v15 = vld [vmem:[%s0 + $0x4] sm:$0x1]
  %v16 = vld [vmem:[%s0 + $0x5] sm:$0x1]
  %v17 = vld [vmem:[%s0 + $0x6] sm:$0x1]
  %v18 = vld [vmem:[%s0 + $0x7] sm:$0x1]
  %v19 = vmax.f32 %v11, 0.0001
  %v20 = vmax.f32 %v12, 0.0001
  %v21 = vmax.f32 %v13, 0.0001
  %v22 = vmax.f32 %v14, 0.0001
  %v23 = vmax.f32 %v15, 0.0001
  %v24 = vmax.f32 %v16, 0.0001
  %v25 = vmax.f32 %v17, 0.0001
  %v26 = vmax.f32 %v18, 0.0001
  %v27 = vlog2.pop %v19
  %v28 = vmul.f32 %v27, 0.6931472
  %v29 = vlog2.pop %v20
  %v30 = vmul.f32 %v29, 0.6931472
  %v31 = vlog2.pop %v21
  %v32 = vmul.f32 %v31, 0.6931472
  %v33 = vlog2.pop %v22
  %v34 = vmul.f32 %v33, 0.6931472
  %v35 = vlog2.pop %v23
  %v36 = vmul.f32 %v35, 0.6931472
  %v37 = vlog2.pop %v24
  %v38 = vmul.f32 %v37, 0.6931472
  %v39 = vlog2.pop %v25
  %v40 = vmul.f32 %v39, 0.6931472
  %v41 = vlog2.pop %v26
  %v42 = vmul.f32 %v41, 0.6931472
  %v43 = vld [vmem:[%s1] sm:$0xff]
  %v44 = vld [vmem:[%s1 + $0x8] sm:$0xff]
  %v45 = vld [vmem:[%s1 + $0x10] sm:$0xff]
  %v46 = vld [vmem:[%s1 + $0x18] sm:$0xff]
  %v47 = vld [vmem:[%s1 + $0x20] sm:$0xff]
  %v48 = vld [vmem:[%s1 + $0x28] sm:$0xff]
  %v49 = vld [vmem:[%s1 + $0x30] sm:$0xff]
  %v50 = vld [vmem:[%s1 + $0x38] sm:$0xff]
  %v51 = vld [vmem:[%s1 + $0x40] sm:$0xff]
  %v52 = vld [vmem:[%s1 + $0x48] sm:$0xff]
  %v53 = vld [vmem:[%s1 + $0x50] sm:$0xff]
  %v54 = vld [vmem:[%s1 + $0x58] sm:$0xff]
  %v55 = vld [vmem:[%s1 + $0x60] sm:$0xff]
  %v56 = vld [vmem:[%s1 + $0x68] sm:$0xff]
  %v57 = vld [vmem:[%s1 + $0x70] sm:$0xff]
  %v58 = vld [vmem:[%s1 + $0x78] sm:$0xff]
  %v59 = vld [vmem:[%s1 + $0x80] sm:$0xff]
  %v60 = vld [vmem:[%s1 + $0x88] sm:$0xff]
  %v61 = vld [vmem:[%s1 + $0x90] sm:$0xff]
  %v62 = vld [vmem:[%s1 + $0x98] sm:$0xff]
  %v63 = vld [vmem:[%s1 + $0xa0] sm:$0xff]
  %v64 = vld [vmem:[%s1 + $0xa8] sm:$0xff]
  %v65 = vld [vmem:[%s1 + $0xb0] sm:$0xff]
  %v66 = vld [vmem:[%s1 + $0xb8] sm:$0xff]
  %v75 = vperm.slane %v28, 0
  %v76 = vperm.slane %v30, 0
  %v77 = vperm.slane %v32, 0
  %v78 = vperm.slane %v34, 0
  %v79 = vperm.slane %v36, 0
  %v80 = vperm.slane %v38, 0
  %v81 = vperm.slane %v40, 0
  %v82 = vperm.slane %v42, 0
  %v91 = vmul.f32 %v43, %v75
  %v92 = vmul.f32 %v44, %v75
  %v93 = vmul.f32 %v45, %v75
  %v94 = vmul.f32 %v46, %v76
  %v95 = vmul.f32 %v47, %v76
  %v96 = vmul.f32 %v48, %v76
  %v97 = vmul.f32 %v49, %v77
  %v98 = vmul.f32 %v50, %v77
  %v99 = vmul.f32 %v51, %v77
  %v100 = vmul.f32 %v52, %v78
  %v101 = vmul.f32 %v53, %v78
  %v102 = vmul.f32 %v54, %v78
  %v103 = vmul.f32 %v55, %v79
  %v104 = vmul.f32 %v56, %v79
  %v105 = vmul.f32 %v57, %v79
  %v106 = vmul.f32 %v58, %v80
  %v107 = vmul.f32 %v59, %v80
  %v108 = vmul.f32 %v60, %v80
  %v109 = vmul.f32 %v61, %v81
  %v110 = vmul.f32 %v62, %v81
  %v111 = vmul.f32 %v63, %v81
  %v112 = vmul.f32 %v64, %v82
  %v113 = vmul.f32 %v65, %v82
  %v114 = vmul.f32 %v66, %v82
  %vm115 = vcmask 195584
  %v117 = vsel %vm115, %v91, 0
  %v120 = vsel %vm115, %v92, 0
  %v123 = vsel %vm115, %v93, 0
  %v126 = vsel %vm115, %v43, 0
  %v129 = vsel %vm115, %v44, 0
  %v132 = vsel %vm115, %v45, 0
  %134 = vmatpush.xpose.msra.mxu0 0.0
  %135 = vmatpush.xpose.msra.mxu0 0.0
  %136 = vmatpush.xpose.msra.mxu0 0.0
  %137 = vmatpush.xpose.msra.mxu0 0.0
  %138 = vmatpush.xpose.msra.mxu0 0.0
  %139 = vmatpush.xpose.msra.mxu0 0.0
  %140 = vmatpush.xpose.msra.mxu0 0.0
  %141 = vmatpush.xpose.msra.mxu0 0.0
  %142 = vmatpush.xpose.msra.mxu0 0.0
  %143 = vmatpush.xpose.msra.mxu0 0.0
  %144 = vmatpush.xpose.msra.mxu0 0.0
  %145 = vmatpush.xpose.msra.mxu0 0.0
  %146 = vmatpush.xpose.msra.mxu0 0.0
  %v147 = vand.u32 %v132, 4294901760
  %148 = vmatpush.xpose.msra.mxu0 %v147
  %v149 = vand.u32 %v129, 4294901760
  %150 = vmatpush.xpose.msra.mxu0 %v149
  %v151 = vand.u32 %v126, 4294901760
  %152 = vmatpush.xpose.msra.mxu0 %v151
  %v153 = vand.u32 %v117, 4294901760
  %v154 = vsub.f32 %v117, %v153
  %v155 = vand.u32 %v154, 4294901760
  %v156 = vsub.f32 %v154, %v155
  %v157 = vand.u32 %v156, 4294901760
  %158 = vmatmul.f32.gmra.mxu0 %v157
  %v159 = vpop.f32.mrf.mxu0
  %v160 = vadd.f32 0.0, %v159
  %v161 = vand.u32 %v120, 4294901760
  %v162 = vsub.f32 %v120, %v161
  %v163 = vand.u32 %v162, 4294901760
  %v164 = vsub.f32 %v162, %v163
  %v165 = vand.u32 %v164, 4294901760
  %166 = vmatmul.f32.gmra.mxu0 %v165
  %v167 = vpop.f32.mrf.mxu0
  %v168 = vadd.f32 0.0, %v167
  %v169 = vand.u32 %v123, 4294901760
  %v170 = vsub.f32 %v123, %v169
  %v171 = vand.u32 %v170, 4294901760
  %v172 = vsub.f32 %v170, %v171
  %v173 = vand.u32 %v172, 4294901760
  %174 = vmatmul.f32.gmra.mxu0 %v173
  %v175 = vpop.f32.mrf.mxu0
  %v176 = vadd.f32 0.0, %v175
  %177 = vdwg.mxu0
  %178 = vmatpush.xpose.msra.mxu0 0.0
  %179 = vmatpush.xpose.msra.mxu0 0.0
  %180 = vmatpush.xpose.msra.mxu0 0.0
  %181 = vmatpush.xpose.msra.mxu0 0.0
  %182 = vmatpush.xpose.msra.mxu0 0.0
  %183 = vmatpush.xpose.msra.mxu0 0.0
  %184 = vmatpush.xpose.msra.mxu0 0.0
  %185 = vmatpush.xpose.msra.mxu0 0.0
  %186 = vmatpush.xpose.msra.mxu0 0.0
  %187 = vmatpush.xpose.msra.mxu0 0.0
  %188 = vmatpush.xpose.msra.mxu0 0.0
  %189 = vmatpush.xpose.msra.mxu0 0.0
  %190 = vmatpush.xpose.msra.mxu0 0.0
  %v191 = vand.u32 %v132, 4294901760
  %v192 = vsub.f32 %v132, %v191
  %v193 = vand.u32 %v192, 4294901760
  %v194 = vsub.f32 %v192, %v193
  %v195 = vand.u32 %v194, 4294901760
  %196 = vmatpush.xpose.msra.mxu0 %v195
  %v197 = vand.u32 %v129, 4294901760
  %v198 = vsub.f32 %v129, %v197
  %v199 = vand.u32 %v198, 4294901760
  %v200 = vsub.f32 %v198, %v199
  %v201 = vand.u32 %v200, 4294901760
  %202 = vmatpush.xpose.msra.mxu0 %v201
  %v203 = vand.u32 %v126, 4294901760
  %v204 = vsub.f32 %v126, %v203
  %v205 = vand.u32 %v204, 4294901760
  %v206 = vsub.f32 %v204, %v205
  %v207 = vand.u32 %v206, 4294901760
  %208 = vmatpush.xpose.msra.mxu0 %v207
  %v209 = vand.u32 %v117, 4294901760
  %210 = vmatmul.f32.gmra.mxu0 %v209
  %v211 = vpop.f32.mrf.mxu0
  %v212 = vadd.f32 %v160, %v211
  %v213 = vand.u32 %v120, 4294901760
  %214 = vmatmul.f32.gmra.mxu0 %v213
  %v215 = vpop.f32.mrf.mxu0
  %v216 = vadd.f32 %v168, %v215
  %v217 = vand.u32 %v123, 4294901760
  %218 = vmatmul.f32.gmra.mxu0 %v217
  %v219 = vpop.f32.mrf.mxu0
  %v220 = vadd.f32 %v176, %v219
  %221 = vdwg.mxu0
  %222 = vmatpush.xpose.msra.mxu0 0.0
  %223 = vmatpush.xpose.msra.mxu0 0.0
  %224 = vmatpush.xpose.msra.mxu0 0.0
  %225 = vmatpush.xpose.msra.mxu0 0.0
  %226 = vmatpush.xpose.msra.mxu0 0.0
  %227 = vmatpush.xpose.msra.mxu0 0.0
  %228 = vmatpush.xpose.msra.mxu0 0.0
  %229 = vmatpush.xpose.msra.mxu0 0.0
  %230 = vmatpush.xpose.msra.mxu0 0.0
  %231 = vmatpush.xpose.msra.mxu0 0.0
  %232 = vmatpush.xpose.msra.mxu0 0.0
  %233 = vmatpush.xpose.msra.mxu0 0.0
  %234 = vmatpush.xpose.msra.mxu0 0.0
  %v235 = vand.u32 %v132, 4294901760
  %v236 = vsub.f32 %v132, %v235
  %237 = vmatpush.xpose.msra.mxu0 %v236
  %v238 = vand.u32 %v129, 4294901760
  %v239 = vsub.f32 %v129, %v238
  %240 = vmatpush.xpose.msra.mxu0 %v239
  %v241 = vand.u32 %v126, 4294901760
  %v242 = vsub.f32 %v126, %v241
  %243 = vmatpush.xpose.msra.mxu0 %v242
  %v244 = vand.u32 %v117, 4294901760
  %v245 = vsub.f32 %v117, %v244
  %246 = vmatmul.f32.gmra.mxu0 %v245
  %v247 = vpop.f32.mrf.mxu0
  %v248 = vadd.f32 %v212, %v247
  %v249 = vand.u32 %v120, 4294901760
  %v250 = vsub.f32 %v120, %v249
  %251 = vmatmul.f32.gmra.mxu0 %v250
  %v252 = vpop.f32.mrf.mxu0
  %v253 = vadd.f32 %v216, %v252
  %v254 = vand.u32 %v123, 4294901760
  %v255 = vsub.f32 %v123, %v254
  %256 = vmatmul.f32.gmra.mxu0 %v255
  %v257 = vpop.f32.mrf.mxu0
  %v258 = vadd.f32 %v220, %v257
  %259 = vdwg.mxu0
  %260 = vmatpush.xpose.msra.mxu0 0.0
  %261 = vmatpush.xpose.msra.mxu0 0.0
  %262 = vmatpush.xpose.msra.mxu0 0.0
  %263 = vmatpush.xpose.msra.mxu0 0.0
  %264 = vmatpush.xpose.msra.mxu0 0.0
  %265 = vmatpush.xpose.msra.mxu0 0.0
  %266 = vmatpush.xpose.msra.mxu0 0.0
  %267 = vmatpush.xpose.msra.mxu0 0.0
  %268 = vmatpush.xpose.msra.mxu0 0.0
  %269 = vmatpush.xpose.msra.mxu0 0.0
  %270 = vmatpush.xpose.msra.mxu0 0.0
  %271 = vmatpush.xpose.msra.mxu0 0.0
  %272 = vmatpush.xpose.msra.mxu0 0.0
  %v273 = vand.u32 %v132, 4294901760
  %274 = vmatpush.xpose.msra.mxu0 %v273
  %v275 = vand.u32 %v129, 4294901760
  %276 = vmatpush.xpose.msra.mxu0 %v275
  %v277 = vand.u32 %v126, 4294901760
  %278 = vmatpush.xpose.msra.mxu0 %v277
  %v279 = vand.u32 %v117, 4294901760
  %v280 = vsub.f32 %v117, %v279
  %v281 = vand.u32 %v280, 4294901760
  %282 = vmatmul.f32.gmra.mxu0 %v281
  %v283 = vpop.f32.mrf.mxu0
  %v284 = vadd.f32 %v248, %v283
  %v285 = vand.u32 %v120, 4294901760
  %v286 = vsub.f32 %v120, %v285
  %v287 = vand.u32 %v286, 4294901760
  %288 = vmatmul.f32.gmra.mxu0 %v287
  %v289 = vpop.f32.mrf.mxu0
  %v290 = vadd.f32 %v253, %v289
  %v291 = vand.u32 %v123, 4294901760
  %v292 = vsub.f32 %v123, %v291
  %v293 = vand.u32 %v292, 4294901760
  %294 = vmatmul.f32.gmra.mxu0 %v293
  %v295 = vpop.f32.mrf.mxu0
  %v296 = vadd.f32 %v258, %v295
  %297 = vdwg.mxu0
  %298 = vmatpush.xpose.msra.mxu0 0.0
  %299 = vmatpush.xpose.msra.mxu0 0.0
  %300 = vmatpush.xpose.msra.mxu0 0.0
  %301 = vmatpush.xpose.msra.mxu0 0.0
  %302 = vmatpush.xpose.msra.mxu0 0.0
  %303 = vmatpush.xpose.msra.mxu0 0.0
  %304 = vmatpush.xpose.msra.mxu0 0.0
  %305 = vmatpush.xpose.msra.mxu0 0.0
  %306 = vmatpush.xpose.msra.mxu0 0.0
  %307 = vmatpush.xpose.msra.mxu0 0.0
  %308 = vmatpush.xpose.msra.mxu0 0.0
  %309 = vmatpush.xpose.msra.mxu0 0.0
  %310 = vmatpush.xpose.msra.mxu0 0.0
  %v311 = vand.u32 %v132, 4294901760
  %v312 = vsub.f32 %v132, %v311
  %v313 = vand.u32 %v312, 4294901760
  %314 = vmatpush.xpose.msra.mxu0 %v313
  %v315 = vand.u32 %v129, 4294901760
  %v316 = vsub.f32 %v129, %v315
  %v317 = vand.u32 %v316, 4294901760
  %318 = vmatpush.xpose.msra.mxu0 %v317
  %v319 = vand.u32 %v126, 4294901760
  %v320 = vsub.f32 %v126, %v319
  %v321 = vand.u32 %v320, 4294901760
  %322 = vmatpush.xpose.msra.mxu0 %v321
  %v323 = vand.u32 %v117, 4294901760
  %324 = vmatmul.f32.gmra.mxu0 %v323
  %v325 = vpop.f32.mrf.mxu0
  %v326 = vadd.f32 %v284, %v325
  %v327 = vand.u32 %v120, 4294901760
  %328 = vmatmul.f32.gmra.mxu0 %v327
  %v329 = vpop.f32.mrf.mxu0
  %v330 = vadd.f32 %v290, %v329
  %v331 = vand.u32 %v123, 4294901760
  %332 = vmatmul.f32.gmra.mxu0 %v331
  %v333 = vpop.f32.mrf.mxu0
  %v334 = vadd.f32 %v296, %v333
  %335 = vdwg.mxu0
  %336 = vmatpush.xpose.msra.mxu0 0.0
  %337 = vmatpush.xpose.msra.mxu0 0.0
  %338 = vmatpush.xpose.msra.mxu0 0.0
  %339 = vmatpush.xpose.msra.mxu0 0.0
  %340 = vmatpush.xpose.msra.mxu0 0.0
  %341 = vmatpush.xpose.msra.mxu0 0.0
  %342 = vmatpush.xpose.msra.mxu0 0.0
  %343 = vmatpush.xpose.msra.mxu0 0.0
  %344 = vmatpush.xpose.msra.mxu0 0.0
  %345 = vmatpush.xpose.msra.mxu0 0.0
  %346 = vmatpush.xpose.msra.mxu0 0.0
  %347 = vmatpush.xpose.msra.mxu0 0.0
  %348 = vmatpush.xpose.msra.mxu0 0.0
  %v349 = vand.u32 %v132, 4294901760
  %350 = vmatpush.xpose.msra.mxu0 %v349
  %v351 = vand.u32 %v129, 4294901760
  %352 = vmatpush.xpose.msra.mxu0 %v351
  %v353 = vand.u32 %v126, 4294901760
  %354 = vmatpush.xpose.msra.mxu0 %v353
  %v355 = vand.u32 %v117, 4294901760
  %356 = vmatmul.f32.gmra.mxu0 %v355
  %v357 = vpop.f32.mrf.mxu0
  %v358 = vadd.f32 %v326, %v357
  %v359 = vand.u32 %v120, 4294901760
  %360 = vmatmul.f32.gmra.mxu0 %v359
  %v361 = vpop.f32.mrf.mxu0
  %v362 = vadd.f32 %v330, %v361
  %v363 = vand.u32 %v123, 4294901760
  %364 = vmatmul.f32.gmra.mxu0 %v363
  %v365 = vpop.f32.mrf.mxu0
  %v366 = vadd.f32 %v334, %v365
  %367 = vdwg.mxu0
  %v369 = vsel %vm115, %v94, 0
  %v372 = vsel %vm115, %v95, 0
  %v375 = vsel %vm115, %v96, 0
  %v378 = vsel %vm115, %v46, 0
  %v381 = vsel %vm115, %v47, 0
  %v384 = vsel %vm115, %v48, 0
  %386 = vmatpush.xpose.msra.mxu0 0.0
  %387 = vmatpush.xpose.msra.mxu0 0.0
  %388 = vmatpush.xpose.msra.mxu0 0.0
  %389 = vmatpush.xpose.msra.mxu0 0.0
  %390 = vmatpush.xpose.msra.mxu0 0.0
  %391 = vmatpush.xpose.msra.mxu0 0.0
  %392 = vmatpush.xpose.msra.mxu0 0.0
  %393 = vmatpush.xpose.msra.mxu0 0.0
  %394 = vmatpush.xpose.msra.mxu0 0.0
  %395 = vmatpush.xpose.msra.mxu0 0.0
  %396 = vmatpush.xpose.msra.mxu0 0.0
  %397 = vmatpush.xpose.msra.mxu0 0.0
  %398 = vmatpush.xpose.msra.mxu0 0.0
  %v399 = vand.u32 %v384, 4294901760
  %400 = vmatpush.xpose.msra.mxu0 %v399
  %v401 = vand.u32 %v381, 4294901760
  %402 = vmatpush.xpose.msra.mxu0 %v401
  %v403 = vand.u32 %v378, 4294901760
  %404 = vmatpush.xpose.msra.mxu0 %v403
  %v405 = vand.u32 %v369, 4294901760
  %v406 = vsub.f32 %v369, %v405
  %v407 = vand.u32 %v406, 4294901760
  %v408 = vsub.f32 %v406, %v407
  %v409 = vand.u32 %v408, 4294901760
  %410 = vmatmul.f32.gmra.mxu0 %v409
  %v411 = vpop.f32.mrf.mxu0
  %v412 = vadd.f32 0.0, %v411
  %v413 = vand.u32 %v372, 4294901760
  %v414 = vsub.f32 %v372, %v413
  %v415 = vand.u32 %v414, 4294901760
  %v416 = vsub.f32 %v414, %v415
  %v417 = vand.u32 %v416, 4294901760
  %418 = vmatmul.f32.gmra.mxu0 %v417
  %v419 = vpop.f32.mrf.mxu0
  %v420 = vadd.f32 0.0, %v419
  %v421 = vand.u32 %v375, 4294901760
  %v422 = vsub.f32 %v375, %v421
  %v423 = vand.u32 %v422, 4294901760
  %v424 = vsub.f32 %v422, %v423
  %v425 = vand.u32 %v424, 4294901760
  %426 = vmatmul.f32.gmra.mxu0 %v425
  %v427 = vpop.f32.mrf.mxu0
  %v428 = vadd.f32 0.0, %v427
  %429 = vdwg.mxu0
  %430 = vmatpush.xpose.msra.mxu0 0.0
  %431 = vmatpush.xpose.msra.mxu0 0.0
  %432 = vmatpush.xpose.msra.mxu0 0.0
  %433 = vmatpush.xpose.msra.mxu0 0.0
  %434 = vmatpush.xpose.msra.mxu0 0.0
  %435 = vmatpush.xpose.msra.mxu0 0.0
  %436 = vmatpush.xpose.msra.mxu0 0.0
  %437 = vmatpush.xpose.msra.mxu0 0.0
  %438 = vmatpush.xpose.msra.mxu0 0.0
  %439 = vmatpush.xpose.msra.mxu0 0.0
  %440 = vmatpush.xpose.msra.mxu0 0.0
  %441 = vmatpush.xpose.msra.mxu0 0.0
  %442 = vmatpush.xpose.msra.mxu0 0.0
  %v443 = vand.u32 %v384, 4294901760
  %v444 = vsub.f32 %v384, %v443
  %v445 = vand.u32 %v444, 4294901760
  %v446 = vsub.f32 %v444, %v445
  %v447 = vand.u32 %v446, 4294901760
  %448 = vmatpush.xpose.msra.mxu0 %v447
  %v449 = vand.u32 %v381, 4294901760
  %v450 = vsub.f32 %v381, %v449
  %v451 = vand.u32 %v450, 4294901760
  %v452 = vsub.f32 %v450, %v451
  %v453 = vand.u32 %v452, 4294901760
  %454 = vmatpush.xpose.msra.mxu0 %v453
  %v455 = vand.u32 %v378, 4294901760
  %v456 = vsub.f32 %v378, %v455
  %v457 = vand.u32 %v456, 4294901760
  %v458 = vsub.f32 %v456, %v457
  %v459 = vand.u32 %v458, 4294901760
  %460 = vmatpush.xpose.msra.mxu0 %v459
  %v461 = vand.u32 %v369, 4294901760
  %462 = vmatmul.f32.gmra.mxu0 %v461
  %v463 = vpop.f32.mrf.mxu0
  %v464 = vadd.f32 %v412, %v463
  %v465 = vand.u32 %v372, 4294901760
  %466 = vmatmul.f32.gmra.mxu0 %v465
  %v467 = vpop.f32.mrf.mxu0
  %v468 = vadd.f32 %v420, %v467
  %v469 = vand.u32 %v375, 4294901760
  %470 = vmatmul.f32.gmra.mxu0 %v469
  %v471 = vpop.f32.mrf.mxu0
  %v472 = vadd.f32 %v428, %v471
  %473 = vdwg.mxu0
  %474 = vmatpush.xpose.msra.mxu0 0.0
  %475 = vmatpush.xpose.msra.mxu0 0.0
  %476 = vmatpush.xpose.msra.mxu0 0.0
  %477 = vmatpush.xpose.msra.mxu0 0.0
  %478 = vmatpush.xpose.msra.mxu0 0.0
  %479 = vmatpush.xpose.msra.mxu0 0.0
  %480 = vmatpush.xpose.msra.mxu0 0.0
  %481 = vmatpush.xpose.msra.mxu0 0.0
  %482 = vmatpush.xpose.msra.mxu0 0.0
  %483 = vmatpush.xpose.msra.mxu0 0.0
  %484 = vmatpush.xpose.msra.mxu0 0.0
  %485 = vmatpush.xpose.msra.mxu0 0.0
  %486 = vmatpush.xpose.msra.mxu0 0.0
  %v487 = vand.u32 %v384, 4294901760
  %v488 = vsub.f32 %v384, %v487
  %489 = vmatpush.xpose.msra.mxu0 %v488
  %v490 = vand.u32 %v381, 4294901760
  %v491 = vsub.f32 %v381, %v490
  %492 = vmatpush.xpose.msra.mxu0 %v491
  %v493 = vand.u32 %v378, 4294901760
  %v494 = vsub.f32 %v378, %v493
  %495 = vmatpush.xpose.msra.mxu0 %v494
  %v496 = vand.u32 %v369, 4294901760
  %v497 = vsub.f32 %v369, %v496
  %498 = vmatmul.f32.gmra.mxu0 %v497
  %v499 = vpop.f32.mrf.mxu0
  %v500 = vadd.f32 %v464, %v499
  %v501 = vand.u32 %v372, 4294901760
  %v502 = vsub.f32 %v372, %v501
  %503 = vmatmul.f32.gmra.mxu0 %v502
  %v504 = vpop.f32.mrf.mxu0
  %v505 = vadd.f32 %v468, %v504
  %v506 = vand.u32 %v375, 4294901760
  %v507 = vsub.f32 %v375, %v506
  %508 = vmatmul.f32.gmra.mxu0 %v507
  %v509 = vpop.f32.mrf.mxu0
  %v510 = vadd.f32 %v472, %v509
  %511 = vdwg.mxu0
  %512 = vmatpush.xpose.msra.mxu0 0.0
  %513 = vmatpush.xpose.msra.mxu0 0.0
  %514 = vmatpush.xpose.msra.mxu0 0.0
  %515 = vmatpush.xpose.msra.mxu0 0.0
  %516 = vmatpush.xpose.msra.mxu0 0.0
  %517 = vmatpush.xpose.msra.mxu0 0.0
  %518 = vmatpush.xpose.msra.mxu0 0.0
  %519 = vmatpush.xpose.msra.mxu0 0.0
  %520 = vmatpush.xpose.msra.mxu0 0.0
  %521 = vmatpush.xpose.msra.mxu0 0.0
  %522 = vmatpush.xpose.msra.mxu0 0.0
  %523 = vmatpush.xpose.msra.mxu0 0.0
  %524 = vmatpush.xpose.msra.mxu0 0.0
  %v525 = vand.u32 %v384, 4294901760
  %526 = vmatpush.xpose.msra.mxu0 %v525
  %v527 = vand.u32 %v381, 4294901760
  %528 = vmatpush.xpose.msra.mxu0 %v527
  %v529 = vand.u32 %v378, 4294901760
  %530 = vmatpush.xpose.msra.mxu0 %v529
  %v531 = vand.u32 %v369, 4294901760
  %v532 = vsub.f32 %v369, %v531
  %v533 = vand.u32 %v532, 4294901760
  %534 = vmatmul.f32.gmra.mxu0 %v533
  %v535 = vpop.f32.mrf.mxu0
  %v536 = vadd.f32 %v500, %v535
  %v537 = vand.u32 %v372, 4294901760
  %v538 = vsub.f32 %v372, %v537
  %v539 = vand.u32 %v538, 4294901760
  %540 = vmatmul.f32.gmra.mxu0 %v539
  %v541 = vpop.f32.mrf.mxu0
  %v542 = vadd.f32 %v505, %v541
  %v543 = vand.u32 %v375, 4294901760
  %v544 = vsub.f32 %v375, %v543
  %v545 = vand.u32 %v544, 4294901760
  %546 = vmatmul.f32.gmra.mxu0 %v545
  %v547 = vpop.f32.mrf.mxu0
  %v548 = vadd.f32 %v510, %v547
  %549 = vdwg.mxu0
  %550 = vmatpush.xpose.msra.mxu0 0.0
  %551 = vmatpush.xpose.msra.mxu0 0.0
  %552 = vmatpush.xpose.msra.mxu0 0.0
  %553 = vmatpush.xpose.msra.mxu0 0.0
  %554 = vmatpush.xpose.msra.mxu0 0.0
  %555 = vmatpush.xpose.msra.mxu0 0.0
  %556 = vmatpush.xpose.msra.mxu0 0.0
  %557 = vmatpush.xpose.msra.mxu0 0.0
  %558 = vmatpush.xpose.msra.mxu0 0.0
  %559 = vmatpush.xpose.msra.mxu0 0.0
  %560 = vmatpush.xpose.msra.mxu0 0.0
  %561 = vmatpush.xpose.msra.mxu0 0.0
  %562 = vmatpush.xpose.msra.mxu0 0.0
  %v563 = vand.u32 %v384, 4294901760
  %v564 = vsub.f32 %v384, %v563
  %v565 = vand.u32 %v564, 4294901760
  %566 = vmatpush.xpose.msra.mxu0 %v565
  %v567 = vand.u32 %v381, 4294901760
  %v568 = vsub.f32 %v381, %v567
  %v569 = vand.u32 %v568, 4294901760
  %570 = vmatpush.xpose.msra.mxu0 %v569
  %v571 = vand.u32 %v378, 4294901760
  %v572 = vsub.f32 %v378, %v571
  %v573 = vand.u32 %v572, 4294901760
  %574 = vmatpush.xpose.msra.mxu0 %v573
  %v575 = vand.u32 %v369, 4294901760
  %576 = vmatmul.f32.gmra.mxu0 %v575
  %v577 = vpop.f32.mrf.mxu0
  %v578 = vadd.f32 %v536, %v577
  %v579 = vand.u32 %v372, 4294901760
  %580 = vmatmul.f32.gmra.mxu0 %v579
  %v581 = vpop.f32.mrf.mxu0
  %v582 = vadd.f32 %v542, %v581
  %v583 = vand.u32 %v375, 4294901760
  %584 = vmatmul.f32.gmra.mxu0 %v583
  %v585 = vpop.f32.mrf.mxu0
  %v586 = vadd.f32 %v548, %v585
  %587 = vdwg.mxu0
  %588 = vmatpush.xpose.msra.mxu0 0.0
  %589 = vmatpush.xpose.msra.mxu0 0.0
  %590 = vmatpush.xpose.msra.mxu0 0.0
  %591 = vmatpush.xpose.msra.mxu0 0.0
  %592 = vmatpush.xpose.msra.mxu0 0.0
  %593 = vmatpush.xpose.msra.mxu0 0.0
  %594 = vmatpush.xpose.msra.mxu0 0.0
  %595 = vmatpush.xpose.msra.mxu0 0.0
  %596 = vmatpush.xpose.msra.mxu0 0.0
  %597 = vmatpush.xpose.msra.mxu0 0.0
  %598 = vmatpush.xpose.msra.mxu0 0.0
  %599 = vmatpush.xpose.msra.mxu0 0.0
  %600 = vmatpush.xpose.msra.mxu0 0.0
  %v601 = vand.u32 %v384, 4294901760
  %602 = vmatpush.xpose.msra.mxu0 %v601
  %v603 = vand.u32 %v381, 4294901760
  %604 = vmatpush.xpose.msra.mxu0 %v603
  %v605 = vand.u32 %v378, 4294901760
  %606 = vmatpush.xpose.msra.mxu0 %v605
  %v607 = vand.u32 %v369, 4294901760
  %608 = vmatmul.f32.gmra.mxu0 %v607
  %v609 = vpop.f32.mrf.mxu0
  %v610 = vadd.f32 %v578, %v609
  %v611 = vand.u32 %v372, 4294901760
  %612 = vmatmul.f32.gmra.mxu0 %v611
  %v613 = vpop.f32.mrf.mxu0
  %v614 = vadd.f32 %v582, %v613
  %v615 = vand.u32 %v375, 4294901760
  %616 = vmatmul.f32.gmra.mxu0 %v615
  %v617 = vpop.f32.mrf.mxu0
  %v618 = vadd.f32 %v586, %v617
  %619 = vdwg.mxu0
  %v621 = vsel %vm115, %v97, 0
  %v624 = vsel %vm115, %v98, 0
  %v627 = vsel %vm115, %v99, 0
  %v630 = vsel %vm115, %v49, 0
  %v633 = vsel %vm115, %v50, 0
  %v636 = vsel %vm115, %v51, 0
  %638 = vmatpush.xpose.msra.mxu0 0.0
  %639 = vmatpush.xpose.msra.mxu0 0.0
  %640 = vmatpush.xpose.msra.mxu0 0.0
  %641 = vmatpush.xpose.msra.mxu0 0.0
  %642 = vmatpush.xpose.msra.mxu0 0.0
  %643 = vmatpush.xpose.msra.mxu0 0.0
  %644 = vmatpush.xpose.msra.mxu0 0.0
  %645 = vmatpush.xpose.msra.mxu0 0.0
  %646 = vmatpush.xpose.msra.mxu0 0.0
  %647 = vmatpush.xpose.msra.mxu0 0.0
  %648 = vmatpush.xpose.msra.mxu0 0.0
  %649 = vmatpush.xpose.msra.mxu0 0.0
  %650 = vmatpush.xpose.msra.mxu0 0.0
  %v651 = vand.u32 %v636, 4294901760
  %652 = vmatpush.xpose.msra.mxu0 %v651
  %v653 = vand.u32 %v633, 4294901760
  %654 = vmatpush.xpose.msra.mxu0 %v653
  %v655 = vand.u32 %v630, 4294901760
  %656 = vmatpush.xpose.msra.mxu0 %v655
  %v657 = vand.u32 %v621, 4294901760
  %v658 = vsub.f32 %v621, %v657
  %v659 = vand.u32 %v658, 4294901760
  %v660 = vsub.f32 %v658, %v659
  %v661 = vand.u32 %v660, 4294901760
  %662 = vmatmul.f32.gmra.mxu0 %v661
  %v663 = vpop.f32.mrf.mxu0
  %v664 = vadd.f32 0.0, %v663
  %v665 = vand.u32 %v624, 4294901760
  %v666 = vsub.f32 %v624, %v665
  %v667 = vand.u32 %v666, 4294901760
  %v668 = vsub.f32 %v666, %v667
  %v669 = vand.u32 %v668, 4294901760
  %670 = vmatmul.f32.gmra.mxu0 %v669
  %v671 = vpop.f32.mrf.mxu0
  %v672 = vadd.f32 0.0, %v671
  %v673 = vand.u32 %v627, 4294901760
  %v674 = vsub.f32 %v627, %v673
  %v675 = vand.u32 %v674, 4294901760
  %v676 = vsub.f32 %v674, %v675
  %v677 = vand.u32 %v676, 4294901760
  %678 = vmatmul.f32.gmra.mxu0 %v677
  %v679 = vpop.f32.mrf.mxu0
  %v680 = vadd.f32 0.0, %v679
  %681 = vdwg.mxu0
  %682 = vmatpush.xpose.msra.mxu0 0.0
  %683 = vmatpush.xpose.msra.mxu0 0.0
  %684 = vmatpush.xpose.msra.mxu0 0.0
  %685 = vmatpush.xpose.msra.mxu0 0.0
  %686 = vmatpush.xpose.msra.mxu0 0.0
  %687 = vmatpush.xpose.msra.mxu0 0.0
  %688 = vmatpush.xpose.msra.mxu0 0.0
  %689 = vmatpush.xpose.msra.mxu0 0.0
  %690 = vmatpush.xpose.msra.mxu0 0.0
  %691 = vmatpush.xpose.msra.mxu0 0.0
  %692 = vmatpush.xpose.msra.mxu0 0.0
  %693 = vmatpush.xpose.msra.mxu0 0.0
  %694 = vmatpush.xpose.msra.mxu0 0.0
  %v695 = vand.u32 %v636, 4294901760
  %v696 = vsub.f32 %v636, %v695
  %v697 = vand.u32 %v696, 4294901760
  %v698 = vsub.f32 %v696, %v697
  %v699 = vand.u32 %v698, 4294901760
  %700 = vmatpush.xpose.msra.mxu0 %v699
  %v701 = vand.u32 %v633, 4294901760
  %v702 = vsub.f32 %v633, %v701
  %v703 = vand.u32 %v702, 4294901760
  %v704 = vsub.f32 %v702, %v703
  %v705 = vand.u32 %v704, 4294901760
  %706 = vmatpush.xpose.msra.mxu0 %v705
  %v707 = vand.u32 %v630, 4294901760
  %v708 = vsub.f32 %v630, %v707
  %v709 = vand.u32 %v708, 4294901760
  %v710 = vsub.f32 %v708, %v709
  %v711 = vand.u32 %v710, 4294901760
  %712 = vmatpush.xpose.msra.mxu0 %v711
  %v713 = vand.u32 %v621, 4294901760
  %714 = vmatmul.f32.gmra.mxu0 %v713
  %v715 = vpop.f32.mrf.mxu0
  %v716 = vadd.f32 %v664, %v715
  %v717 = vand.u32 %v624, 4294901760
  %718 = vmatmul.f32.gmra.mxu0 %v717
  %v719 = vpop.f32.mrf.mxu0
  %v720 = vadd.f32 %v672, %v719
  %v721 = vand.u32 %v627, 4294901760
  %722 = vmatmul.f32.gmra.mxu0 %v721
  %v723 = vpop.f32.mrf.mxu0
  %v724 = vadd.f32 %v680, %v723
  %725 = vdwg.mxu0
  %726 = vmatpush.xpose.msra.mxu0 0.0
  %727 = vmatpush.xpose.msra.mxu0 0.0
  %728 = vmatpush.xpose.msra.mxu0 0.0
  %729 = vmatpush.xpose.msra.mxu0 0.0
  %730 = vmatpush.xpose.msra.mxu0 0.0
  %731 = vmatpush.xpose.msra.mxu0 0.0
  %732 = vmatpush.xpose.msra.mxu0 0.0
  %733 = vmatpush.xpose.msra.mxu0 0.0
  %734 = vmatpush.xpose.msra.mxu0 0.0
  %735 = vmatpush.xpose.msra.mxu0 0.0
  %736 = vmatpush.xpose.msra.mxu0 0.0
  %737 = vmatpush.xpose.msra.mxu0 0.0
  %738 = vmatpush.xpose.msra.mxu0 0.0
  %v739 = vand.u32 %v636, 4294901760
  %v740 = vsub.f32 %v636, %v739
  %741 = vmatpush.xpose.msra.mxu0 %v740
  %v742 = vand.u32 %v633, 4294901760
  %v743 = vsub.f32 %v633, %v742
  %744 = vmatpush.xpose.msra.mxu0 %v743
  %v745 = vand.u32 %v630, 4294901760
  %v746 = vsub.f32 %v630, %v745
  %747 = vmatpush.xpose.msra.mxu0 %v746
  %v748 = vand.u32 %v621, 4294901760
  %v749 = vsub.f32 %v621, %v748
  %750 = vmatmul.f32.gmra.mxu0 %v749
  %v751 = vpop.f32.mrf.mxu0
  %v752 = vadd.f32 %v716, %v751
  %v753 = vand.u32 %v624, 4294901760
  %v754 = vsub.f32 %v624, %v753
  %755 = vmatmul.f32.gmra.mxu0 %v754
  %v756 = vpop.f32.mrf.mxu0
  %v757 = vadd.f32 %v720, %v756
  %v758 = vand.u32 %v627, 4294901760
  %v759 = vsub.f32 %v627, %v758
  %760 = vmatmul.f32.gmra.mxu0 %v759
  %v761 = vpop.f32.mrf.mxu0
  %v762 = vadd.f32 %v724, %v761
  %763 = vdwg.mxu0
  %764 = vmatpush.xpose.msra.mxu0 0.0
  %765 = vmatpush.xpose.msra.mxu0 0.0
  %766 = vmatpush.xpose.msra.mxu0 0.0
  %767 = vmatpush.xpose.msra.mxu0 0.0
  %768 = vmatpush.xpose.msra.mxu0 0.0
  %769 = vmatpush.xpose.msra.mxu0 0.0
  %770 = vmatpush.xpose.msra.mxu0 0.0
  %771 = vmatpush.xpose.msra.mxu0 0.0
  %772 = vmatpush.xpose.msra.mxu0 0.0
  %773 = vmatpush.xpose.msra.mxu0 0.0
  %774 = vmatpush.xpose.msra.mxu0 0.0
  %775 = vmatpush.xpose.msra.mxu0 0.0
  %776 = vmatpush.xpose.msra.mxu0 0.0
  %v777 = vand.u32 %v636, 4294901760
  %778 = vmatpush.xpose.msra.mxu0 %v777
  %v779 = vand.u32 %v633, 4294901760
  %780 = vmatpush.xpose.msra.mxu0 %v779
  %v781 = vand.u32 %v630, 4294901760
  %782 = vmatpush.xpose.msra.mxu0 %v781
  %v783 = vand.u32 %v621, 4294901760
  %v784 = vsub.f32 %v621, %v783
  %v785 = vand.u32 %v784, 4294901760
  %786 = vmatmul.f32.gmra.mxu0 %v785
  %v787 = vpop.f32.mrf.mxu0
  %v788 = vadd.f32 %v752, %v787
  %v789 = vand.u32 %v624, 4294901760
  %v790 = vsub.f32 %v624, %v789
  %v791 = vand.u32 %v790, 4294901760
  %792 = vmatmul.f32.gmra.mxu0 %v791
  %v793 = vpop.f32.mrf.mxu0
  %v794 = vadd.f32 %v757, %v793
  %v795 = vand.u32 %v627, 4294901760
  %v796 = vsub.f32 %v627, %v795
  %v797 = vand.u32 %v796, 4294901760
  %798 = vmatmul.f32.gmra.mxu0 %v797
  %v799 = vpop.f32.mrf.mxu0
  %v800 = vadd.f32 %v762, %v799
  %801 = vdwg.mxu0
  %802 = vmatpush.xpose.msra.mxu0 0.0
  %803 = vmatpush.xpose.msra.mxu0 0.0
  %804 = vmatpush.xpose.msra.mxu0 0.0
  %805 = vmatpush.xpose.msra.mxu0 0.0
  %806 = vmatpush.xpose.msra.mxu0 0.0
  %807 = vmatpush.xpose.msra.mxu0 0.0
  %808 = vmatpush.xpose.msra.mxu0 0.0
  %809 = vmatpush.xpose.msra.mxu0 0.0
  %810 = vmatpush.xpose.msra.mxu0 0.0
  %811 = vmatpush.xpose.msra.mxu0 0.0
  %812 = vmatpush.xpose.msra.mxu0 0.0
  %813 = vmatpush.xpose.msra.mxu0 0.0
  %814 = vmatpush.xpose.msra.mxu0 0.0
  %v815 = vand.u32 %v636, 4294901760
  %v816 = vsub.f32 %v636, %v815
  %v817 = vand.u32 %v816, 4294901760
  %818 = vmatpush.xpose.msra.mxu0 %v817
  %v819 = vand.u32 %v633, 4294901760
  %v820 = vsub.f32 %v633, %v819
  %v821 = vand.u32 %v820, 4294901760
  %822 = vmatpush.xpose.msra.mxu0 %v821
  %v823 = vand.u32 %v630, 4294901760
  %v824 = vsub.f32 %v630, %v823
  %v825 = vand.u32 %v824, 4294901760
  %826 = vmatpush.xpose.msra.mxu0 %v825
  %v827 = vand.u32 %v621, 4294901760
  %828 = vmatmul.f32.gmra.mxu0 %v827
  %v829 = vpop.f32.mrf.mxu0
  %v830 = vadd.f32 %v788, %v829
  %v831 = vand.u32 %v624, 4294901760
  %832 = vmatmul.f32.gmra.mxu0 %v831
  %v833 = vpop.f32.mrf.mxu0
  %v834 = vadd.f32 %v794, %v833
  %v835 = vand.u32 %v627, 4294901760
  %836 = vmatmul.f32.gmra.mxu0 %v835
  %v837 = vpop.f32.mrf.mxu0
  %v838 = vadd.f32 %v800, %v837
  %839 = vdwg.mxu0
  %840 = vmatpush.xpose.msra.mxu0 0.0
  %841 = vmatpush.xpose.msra.mxu0 0.0
  %842 = vmatpush.xpose.msra.mxu0 0.0
  %843 = vmatpush.xpose.msra.mxu0 0.0
  %844 = vmatpush.xpose.msra.mxu0 0.0
  %845 = vmatpush.xpose.msra.mxu0 0.0
  %846 = vmatpush.xpose.msra.mxu0 0.0
  %847 = vmatpush.xpose.msra.mxu0 0.0
  %848 = vmatpush.xpose.msra.mxu0 0.0
  %849 = vmatpush.xpose.msra.mxu0 0.0
  %850 = vmatpush.xpose.msra.mxu0 0.0
  %851 = vmatpush.xpose.msra.mxu0 0.0
  %852 = vmatpush.xpose.msra.mxu0 0.0
  %v853 = vand.u32 %v636, 4294901760
  %854 = vmatpush.xpose.msra.mxu0 %v853
  %v855 = vand.u32 %v633, 4294901760
  %856 = vmatpush.xpose.msra.mxu0 %v855
  %v857 = vand.u32 %v630, 4294901760
  %858 = vmatpush.xpose.msra.mxu0 %v857
  %v859 = vand.u32 %v621, 4294901760
  %860 = vmatmul.f32.gmra.mxu0 %v859
  %v861 = vpop.f32.mrf.mxu0
  %v862 = vadd.f32 %v830, %v861
  %v863 = vand.u32 %v624, 4294901760
  %864 = vmatmul.f32.gmra.mxu0 %v863
  %v865 = vpop.f32.mrf.mxu0
  %v866 = vadd.f32 %v834, %v865
  %v867 = vand.u32 %v627, 4294901760
  %868 = vmatmul.f32.gmra.mxu0 %v867
  %v869 = vpop.f32.mrf.mxu0
  %v870 = vadd.f32 %v838, %v869
  %871 = vdwg.mxu0
  %v873 = vsel %vm115, %v100, 0
  %v876 = vsel %vm115, %v101, 0
  %v879 = vsel %vm115, %v102, 0
  %v882 = vsel %vm115, %v52, 0
  %v885 = vsel %vm115, %v53, 0
  %v888 = vsel %vm115, %v54, 0
  %890 = vmatpush.xpose.msra.mxu0 0.0
  %891 = vmatpush.xpose.msra.mxu0 0.0
  %892 = vmatpush.xpose.msra.mxu0 0.0
  %893 = vmatpush.xpose.msra.mxu0 0.0
  %894 = vmatpush.xpose.msra.mxu0 0.0
  %895 = vmatpush.xpose.msra.mxu0 0.0
  %896 = vmatpush.xpose.msra.mxu0 0.0
  %897 = vmatpush.xpose.msra.mxu0 0.0
  %898 = vmatpush.xpose.msra.mxu0 0.0
  %899 = vmatpush.xpose.msra.mxu0 0.0
  %900 = vmatpush.xpose.msra.mxu0 0.0
  %901 = vmatpush.xpose.msra.mxu0 0.0
  %902 = vmatpush.xpose.msra.mxu0 0.0
  %v903 = vand.u32 %v888, 4294901760
  %904 = vmatpush.xpose.msra.mxu0 %v903
  %v905 = vand.u32 %v885, 4294901760
  %906 = vmatpush.xpose.msra.mxu0 %v905
  %v907 = vand.u32 %v882, 4294901760
  %908 = vmatpush.xpose.msra.mxu0 %v907
  %v909 = vand.u32 %v873, 4294901760
  %v910 = vsub.f32 %v873, %v909
  %v911 = vand.u32 %v910, 4294901760
  %v912 = vsub.f32 %v910, %v911
  %v913 = vand.u32 %v912, 4294901760
  %914 = vmatmul.f32.gmra.mxu0 %v913
  %v915 = vpop.f32.mrf.mxu0
  %v916 = vadd.f32 0.0, %v915
  %v917 = vand.u32 %v876, 4294901760
  %v918 = vsub.f32 %v876, %v917
  %v919 = vand.u32 %v918, 4294901760
  %v920 = vsub.f32 %v918, %v919
  %v921 = vand.u32 %v920, 4294901760
  %922 = vmatmul.f32.gmra.mxu0 %v921
  %v923 = vpop.f32.mrf.mxu0
  %v924 = vadd.f32 0.0, %v923
  %v925 = vand.u32 %v879, 4294901760
  %v926 = vsub.f32 %v879, %v925
  %v927 = vand.u32 %v926, 4294901760
  %v928 = vsub.f32 %v926, %v927
  %v929 = vand.u32 %v928, 4294901760
  %930 = vmatmul.f32.gmra.mxu0 %v929
  %v931 = vpop.f32.mrf.mxu0
  %v932 = vadd.f32 0.0, %v931
  %933 = vdwg.mxu0
  %934 = vmatpush.xpose.msra.mxu0 0.0
  %935 = vmatpush.xpose.msra.mxu0 0.0
  %936 = vmatpush.xpose.msra.mxu0 0.0
  %937 = vmatpush.xpose.msra.mxu0 0.0
  %938 = vmatpush.xpose.msra.mxu0 0.0
  %939 = vmatpush.xpose.msra.mxu0 0.0
  %940 = vmatpush.xpose.msra.mxu0 0.0
  %941 = vmatpush.xpose.msra.mxu0 0.0
  %942 = vmatpush.xpose.msra.mxu0 0.0
  %943 = vmatpush.xpose.msra.mxu0 0.0
  %944 = vmatpush.xpose.msra.mxu0 0.0
  %945 = vmatpush.xpose.msra.mxu0 0.0
  %946 = vmatpush.xpose.msra.mxu0 0.0
  %v947 = vand.u32 %v888, 4294901760
  %v948 = vsub.f32 %v888, %v947
  %v949 = vand.u32 %v948, 4294901760
  %v950 = vsub.f32 %v948, %v949
  %v951 = vand.u32 %v950, 4294901760
  %952 = vmatpush.xpose.msra.mxu0 %v951
  %v953 = vand.u32 %v885, 4294901760
  %v954 = vsub.f32 %v885, %v953
  %v955 = vand.u32 %v954, 4294901760
  %v956 = vsub.f32 %v954, %v955
  %v957 = vand.u32 %v956, 4294901760
  %958 = vmatpush.xpose.msra.mxu0 %v957
  %v959 = vand.u32 %v882, 4294901760
  %v960 = vsub.f32 %v882, %v959
  %v961 = vand.u32 %v960, 4294901760
  %v962 = vsub.f32 %v960, %v961
  %v963 = vand.u32 %v962, 4294901760
  %964 = vmatpush.xpose.msra.mxu0 %v963
  %v965 = vand.u32 %v873, 4294901760
  %966 = vmatmul.f32.gmra.mxu0 %v965
  %v967 = vpop.f32.mrf.mxu0
  %v968 = vadd.f32 %v916, %v967
  %v969 = vand.u32 %v876, 4294901760
  %970 = vmatmul.f32.gmra.mxu0 %v969
  %v971 = vpop.f32.mrf.mxu0
  %v972 = vadd.f32 %v924, %v971
  %v973 = vand.u32 %v879, 4294901760
  %974 = vmatmul.f32.gmra.mxu0 %v973
  %v975 = vpop.f32.mrf.mxu0
  %v976 = vadd.f32 %v932, %v975
  %977 = vdwg.mxu0
  %978 = vmatpush.xpose.msra.mxu0 0.0
  %979 = vmatpush.xpose.msra.mxu0 0.0
  %980 = vmatpush.xpose.msra.mxu0 0.0
  %981 = vmatpush.xpose.msra.mxu0 0.0
  %982 = vmatpush.xpose.msra.mxu0 0.0
  %983 = vmatpush.xpose.msra.mxu0 0.0
  %984 = vmatpush.xpose.msra.mxu0 0.0
  %985 = vmatpush.xpose.msra.mxu0 0.0
  %986 = vmatpush.xpose.msra.mxu0 0.0
  %987 = vmatpush.xpose.msra.mxu0 0.0
  %988 = vmatpush.xpose.msra.mxu0 0.0
  %989 = vmatpush.xpose.msra.mxu0 0.0
  %990 = vmatpush.xpose.msra.mxu0 0.0
  %v991 = vand.u32 %v888, 4294901760
  %v992 = vsub.f32 %v888, %v991
  %993 = vmatpush.xpose.msra.mxu0 %v992
  %v994 = vand.u32 %v885, 4294901760
  %v995 = vsub.f32 %v885, %v994
  %996 = vmatpush.xpose.msra.mxu0 %v995
  %v997 = vand.u32 %v882, 4294901760
  %v998 = vsub.f32 %v882, %v997
  %999 = vmatpush.xpose.msra.mxu0 %v998
  %v1000 = vand.u32 %v873, 4294901760
  %v1001 = vsub.f32 %v873, %v1000
  %1002 = vmatmul.f32.gmra.mxu0 %v1001
  %v1003 = vpop.f32.mrf.mxu0
  %v1004 = vadd.f32 %v968, %v1003
  %v1005 = vand.u32 %v876, 4294901760
  %v1006 = vsub.f32 %v876, %v1005
  %1007 = vmatmul.f32.gmra.mxu0 %v1006
  %v1008 = vpop.f32.mrf.mxu0
  %v1009 = vadd.f32 %v972, %v1008
  %v1010 = vand.u32 %v879, 4294901760
  %v1011 = vsub.f32 %v879, %v1010
  %1012 = vmatmul.f32.gmra.mxu0 %v1011
  %v1013 = vpop.f32.mrf.mxu0
  %v1014 = vadd.f32 %v976, %v1013
  %1015 = vdwg.mxu0
  %1016 = vmatpush.xpose.msra.mxu0 0.0
  %1017 = vmatpush.xpose.msra.mxu0 0.0
  %1018 = vmatpush.xpose.msra.mxu0 0.0
  %1019 = vmatpush.xpose.msra.mxu0 0.0
  %1020 = vmatpush.xpose.msra.mxu0 0.0
  %1021 = vmatpush.xpose.msra.mxu0 0.0
  %1022 = vmatpush.xpose.msra.mxu0 0.0
  %1023 = vmatpush.xpose.msra.mxu0 0.0
  %1024 = vmatpush.xpose.msra.mxu0 0.0
  %1025 = vmatpush.xpose.msra.mxu0 0.0
  %1026 = vmatpush.xpose.msra.mxu0 0.0
  %1027 = vmatpush.xpose.msra.mxu0 0.0
  %1028 = vmatpush.xpose.msra.mxu0 0.0
  %v1029 = vand.u32 %v888, 4294901760
  %1030 = vmatpush.xpose.msra.mxu0 %v1029
  %v1031 = vand.u32 %v885, 4294901760
  %1032 = vmatpush.xpose.msra.mxu0 %v1031
  %v1033 = vand.u32 %v882, 4294901760
  %1034 = vmatpush.xpose.msra.mxu0 %v1033
  %v1035 = vand.u32 %v873, 4294901760
  %v1036 = vsub.f32 %v873, %v1035
  %v1037 = vand.u32 %v1036, 4294901760
  %1038 = vmatmul.f32.gmra.mxu0 %v1037
  %v1039 = vpop.f32.mrf.mxu0
  %v1040 = vadd.f32 %v1004, %v1039
  %v1041 = vand.u32 %v876, 4294901760
  %v1042 = vsub.f32 %v876, %v1041
  %v1043 = vand.u32 %v1042, 4294901760
  %1044 = vmatmul.f32.gmra.mxu0 %v1043
  %v1045 = vpop.f32.mrf.mxu0
  %v1046 = vadd.f32 %v1009, %v1045
  %v1047 = vand.u32 %v879, 4294901760
  %v1048 = vsub.f32 %v879, %v1047
  %v1049 = vand.u32 %v1048, 4294901760
  %1050 = vmatmul.f32.gmra.mxu0 %v1049
  %v1051 = vpop.f32.mrf.mxu0
  %v1052 = vadd.f32 %v1014, %v1051
  %1053 = vdwg.mxu0
  %1054 = vmatpush.xpose.msra.mxu0 0.0
  %1055 = vmatpush.xpose.msra.mxu0 0.0
  %1056 = vmatpush.xpose.msra.mxu0 0.0
  %1057 = vmatpush.xpose.msra.mxu0 0.0
  %1058 = vmatpush.xpose.msra.mxu0 0.0
  %1059 = vmatpush.xpose.msra.mxu0 0.0
  %1060 = vmatpush.xpose.msra.mxu0 0.0
  %1061 = vmatpush.xpose.msra.mxu0 0.0
  %1062 = vmatpush.xpose.msra.mxu0 0.0
  %1063 = vmatpush.xpose.msra.mxu0 0.0
  %1064 = vmatpush.xpose.msra.mxu0 0.0
  %1065 = vmatpush.xpose.msra.mxu0 0.0
  %1066 = vmatpush.xpose.msra.mxu0 0.0
  %v1067 = vand.u32 %v888, 4294901760
  %v1068 = vsub.f32 %v888, %v1067
  %v1069 = vand.u32 %v1068, 4294901760
  %1070 = vmatpush.xpose.msra.mxu0 %v1069
  %v1071 = vand.u32 %v885, 4294901760
  %v1072 = vsub.f32 %v885, %v1071
  %v1073 = vand.u32 %v1072, 4294901760
  %1074 = vmatpush.xpose.msra.mxu0 %v1073
  %v1075 = vand.u32 %v882, 4294901760
  %v1076 = vsub.f32 %v882, %v1075
  %v1077 = vand.u32 %v1076, 4294901760
  %1078 = vmatpush.xpose.msra.mxu0 %v1077
  %v1079 = vand.u32 %v873, 4294901760
  %1080 = vmatmul.f32.gmra.mxu0 %v1079
  %v1081 = vpop.f32.mrf.mxu0
  %v1082 = vadd.f32 %v1040, %v1081
  %v1083 = vand.u32 %v876, 4294901760
  %1084 = vmatmul.f32.gmra.mxu0 %v1083
  %v1085 = vpop.f32.mrf.mxu0
  %v1086 = vadd.f32 %v1046, %v1085
  %v1087 = vand.u32 %v879, 4294901760
  %1088 = vmatmul.f32.gmra.mxu0 %v1087
  %v1089 = vpop.f32.mrf.mxu0
  %v1090 = vadd.f32 %v1052, %v1089
  %1091 = vdwg.mxu0
  %1092 = vmatpush.xpose.msra.mxu0 0.0
  %1093 = vmatpush.xpose.msra.mxu0 0.0
  %1094 = vmatpush.xpose.msra.mxu0 0.0
  %1095 = vmatpush.xpose.msra.mxu0 0.0
  %1096 = vmatpush.xpose.msra.mxu0 0.0
  %1097 = vmatpush.xpose.msra.mxu0 0.0
  %1098 = vmatpush.xpose.msra.mxu0 0.0
  %1099 = vmatpush.xpose.msra.mxu0 0.0
  %1100 = vmatpush.xpose.msra.mxu0 0.0
  %1101 = vmatpush.xpose.msra.mxu0 0.0
  %1102 = vmatpush.xpose.msra.mxu0 0.0
  %1103 = vmatpush.xpose.msra.mxu0 0.0
  %1104 = vmatpush.xpose.msra.mxu0 0.0
  %v1105 = vand.u32 %v888, 4294901760
  %1106 = vmatpush.xpose.msra.mxu0 %v1105
  %v1107 = vand.u32 %v885, 4294901760
  %1108 = vmatpush.xpose.msra.mxu0 %v1107
  %v1109 = vand.u32 %v882, 4294901760
  %1110 = vmatpush.xpose.msra.mxu0 %v1109
  %v1111 = vand.u32 %v873, 4294901760
  %1112 = vmatmul.f32.gmra.mxu0 %v1111
  %v1113 = vpop.f32.mrf.mxu0
  %v1114 = vadd.f32 %v1082, %v1113
  %v1115 = vand.u32 %v876, 4294901760
  %1116 = vmatmul.f32.gmra.mxu0 %v1115
  %v1117 = vpop.f32.mrf.mxu0
  %v1118 = vadd.f32 %v1086, %v1117
  %v1119 = vand.u32 %v879, 4294901760
  %1120 = vmatmul.f32.gmra.mxu0 %v1119
  %v1121 = vpop.f32.mrf.mxu0
  %v1122 = vadd.f32 %v1090, %v1121
  %1123 = vdwg.mxu0
  %v1125 = vsel %vm115, %v103, 0
  %v1128 = vsel %vm115, %v104, 0
  %v1131 = vsel %vm115, %v105, 0
  %v1134 = vsel %vm115, %v55, 0
  %v1137 = vsel %vm115, %v56, 0
  %v1140 = vsel %vm115, %v57, 0
  %1142 = vmatpush.xpose.msra.mxu0 0.0
  %1143 = vmatpush.xpose.msra.mxu0 0.0
  %1144 = vmatpush.xpose.msra.mxu0 0.0
  %1145 = vmatpush.xpose.msra.mxu0 0.0
  %1146 = vmatpush.xpose.msra.mxu0 0.0
  %1147 = vmatpush.xpose.msra.mxu0 0.0
  %1148 = vmatpush.xpose.msra.mxu0 0.0
  %1149 = vmatpush.xpose.msra.mxu0 0.0
  %1150 = vmatpush.xpose.msra.mxu0 0.0
  %1151 = vmatpush.xpose.msra.mxu0 0.0
  %1152 = vmatpush.xpose.msra.mxu0 0.0
  %1153 = vmatpush.xpose.msra.mxu0 0.0
  %1154 = vmatpush.xpose.msra.mxu0 0.0
  %v1155 = vand.u32 %v1140, 4294901760
  %1156 = vmatpush.xpose.msra.mxu0 %v1155
  %v1157 = vand.u32 %v1137, 4294901760
  %1158 = vmatpush.xpose.msra.mxu0 %v1157
  %v1159 = vand.u32 %v1134, 4294901760
  %1160 = vmatpush.xpose.msra.mxu0 %v1159
  %v1161 = vand.u32 %v1125, 4294901760
  %v1162 = vsub.f32 %v1125, %v1161
  %v1163 = vand.u32 %v1162, 4294901760
  %v1164 = vsub.f32 %v1162, %v1163
  %v1165 = vand.u32 %v1164, 4294901760
  %1166 = vmatmul.f32.gmra.mxu0 %v1165
  %v1167 = vpop.f32.mrf.mxu0
  %v1168 = vadd.f32 0.0, %v1167
  %v1169 = vand.u32 %v1128, 4294901760
  %v1170 = vsub.f32 %v1128, %v1169
  %v1171 = vand.u32 %v1170, 4294901760
  %v1172 = vsub.f32 %v1170, %v1171
  %v1173 = vand.u32 %v1172, 4294901760
  %1174 = vmatmul.f32.gmra.mxu0 %v1173
  %v1175 = vpop.f32.mrf.mxu0
  %v1176 = vadd.f32 0.0, %v1175
  %v1177 = vand.u32 %v1131, 4294901760
  %v1178 = vsub.f32 %v1131, %v1177
  %v1179 = vand.u32 %v1178, 4294901760
  %v1180 = vsub.f32 %v1178, %v1179
  %v1181 = vand.u32 %v1180, 4294901760
  %1182 = vmatmul.f32.gmra.mxu0 %v1181
  %v1183 = vpop.f32.mrf.mxu0
  %v1184 = vadd.f32 0.0, %v1183
  %1185 = vdwg.mxu0
  %1186 = vmatpush.xpose.msra.mxu0 0.0
  %1187 = vmatpush.xpose.msra.mxu0 0.0
  %1188 = vmatpush.xpose.msra.mxu0 0.0
  %1189 = vmatpush.xpose.msra.mxu0 0.0
  %1190 = vmatpush.xpose.msra.mxu0 0.0
  %1191 = vmatpush.xpose.msra.mxu0 0.0
  %1192 = vmatpush.xpose.msra.mxu0 0.0
  %1193 = vmatpush.xpose.msra.mxu0 0.0
  %1194 = vmatpush.xpose.msra.mxu0 0.0
  %1195 = vmatpush.xpose.msra.mxu0 0.0
  %1196 = vmatpush.xpose.msra.mxu0 0.0
  %1197 = vmatpush.xpose.msra.mxu0 0.0
  %1198 = vmatpush.xpose.msra.mxu0 0.0
  %v1199 = vand.u32 %v1140, 4294901760
  %v1200 = vsub.f32 %v1140, %v1199
  %v1201 = vand.u32 %v1200, 4294901760
  %v1202 = vsub.f32 %v1200, %v1201
  %v1203 = vand.u32 %v1202, 4294901760
  %1204 = vmatpush.xpose.msra.mxu0 %v1203
  %v1205 = vand.u32 %v1137, 4294901760
  %v1206 = vsub.f32 %v1137, %v1205
  %v1207 = vand.u32 %v1206, 4294901760
  %v1208 = vsub.f32 %v1206, %v1207
  %v1209 = vand.u32 %v1208, 4294901760
  %1210 = vmatpush.xpose.msra.mxu0 %v1209
  %v1211 = vand.u32 %v1134, 4294901760
  %v1212 = vsub.f32 %v1134, %v1211
  %v1213 = vand.u32 %v1212, 4294901760
  %v1214 = vsub.f32 %v1212, %v1213
  %v1215 = vand.u32 %v1214, 4294901760
  %1216 = vmatpush.xpose.msra.mxu0 %v1215
  %v1217 = vand.u32 %v1125, 4294901760
  %1218 = vmatmul.f32.gmra.mxu0 %v1217
  %v1219 = vpop.f32.mrf.mxu0
  %v1220 = vadd.f32 %v1168, %v1219
  %v1221 = vand.u32 %v1128, 4294901760
  %1222 = vmatmul.f32.gmra.mxu0 %v1221
  %v1223 = vpop.f32.mrf.mxu0
  %v1224 = vadd.f32 %v1176, %v1223
  %v1225 = vand.u32 %v1131, 4294901760
  %1226 = vmatmul.f32.gmra.mxu0 %v1225
  %v1227 = vpop.f32.mrf.mxu0
  %v1228 = vadd.f32 %v1184, %v1227
  %1229 = vdwg.mxu0
  %1230 = vmatpush.xpose.msra.mxu0 0.0
  %1231 = vmatpush.xpose.msra.mxu0 0.0
  %1232 = vmatpush.xpose.msra.mxu0 0.0
  %1233 = vmatpush.xpose.msra.mxu0 0.0
  %1234 = vmatpush.xpose.msra.mxu0 0.0
  %1235 = vmatpush.xpose.msra.mxu0 0.0
  %1236 = vmatpush.xpose.msra.mxu0 0.0
  %1237 = vmatpush.xpose.msra.mxu0 0.0
  %1238 = vmatpush.xpose.msra.mxu0 0.0
  %1239 = vmatpush.xpose.msra.mxu0 0.0
  %1240 = vmatpush.xpose.msra.mxu0 0.0
  %1241 = vmatpush.xpose.msra.mxu0 0.0
  %1242 = vmatpush.xpose.msra.mxu0 0.0
  %v1243 = vand.u32 %v1140, 4294901760
  %v1244 = vsub.f32 %v1140, %v1243
  %1245 = vmatpush.xpose.msra.mxu0 %v1244
  %v1246 = vand.u32 %v1137, 4294901760
  %v1247 = vsub.f32 %v1137, %v1246
  %1248 = vmatpush.xpose.msra.mxu0 %v1247
  %v1249 = vand.u32 %v1134, 4294901760
  %v1250 = vsub.f32 %v1134, %v1249
  %1251 = vmatpush.xpose.msra.mxu0 %v1250
  %v1252 = vand.u32 %v1125, 4294901760
  %v1253 = vsub.f32 %v1125, %v1252
  %1254 = vmatmul.f32.gmra.mxu0 %v1253
  %v1255 = vpop.f32.mrf.mxu0
  %v1256 = vadd.f32 %v1220, %v1255
  %v1257 = vand.u32 %v1128, 4294901760
  %v1258 = vsub.f32 %v1128, %v1257
  %1259 = vmatmul.f32.gmra.mxu0 %v1258
  %v1260 = vpop.f32.mrf.mxu0
  %v1261 = vadd.f32 %v1224, %v1260
  %v1262 = vand.u32 %v1131, 4294901760
  %v1263 = vsub.f32 %v1131, %v1262
  %1264 = vmatmul.f32.gmra.mxu0 %v1263
  %v1265 = vpop.f32.mrf.mxu0
  %v1266 = vadd.f32 %v1228, %v1265
  %1267 = vdwg.mxu0
  %1268 = vmatpush.xpose.msra.mxu0 0.0
  %1269 = vmatpush.xpose.msra.mxu0 0.0
  %1270 = vmatpush.xpose.msra.mxu0 0.0
  %1271 = vmatpush.xpose.msra.mxu0 0.0
  %1272 = vmatpush.xpose.msra.mxu0 0.0
  %1273 = vmatpush.xpose.msra.mxu0 0.0
  %1274 = vmatpush.xpose.msra.mxu0 0.0
  %1275 = vmatpush.xpose.msra.mxu0 0.0
  %1276 = vmatpush.xpose.msra.mxu0 0.0
  %1277 = vmatpush.xpose.msra.mxu0 0.0
  %1278 = vmatpush.xpose.msra.mxu0 0.0
  %1279 = vmatpush.xpose.msra.mxu0 0.0
  %1280 = vmatpush.xpose.msra.mxu0 0.0
  %v1281 = vand.u32 %v1140, 4294901760
  %1282 = vmatpush.xpose.msra.mxu0 %v1281
  %v1283 = vand.u32 %v1137, 4294901760
  %1284 = vmatpush.xpose.msra.mxu0 %v1283
  %v1285 = vand.u32 %v1134, 4294901760
  %1286 = vmatpush.xpose.msra.mxu0 %v1285
  %v1287 = vand.u32 %v1125, 4294901760
  %v1288 = vsub.f32 %v1125, %v1287
  %v1289 = vand.u32 %v1288, 4294901760
  %1290 = vmatmul.f32.gmra.mxu0 %v1289
  %v1291 = vpop.f32.mrf.mxu0
  %v1292 = vadd.f32 %v1256, %v1291
  %v1293 = vand.u32 %v1128, 4294901760
  %v1294 = vsub.f32 %v1128, %v1293
  %v1295 = vand.u32 %v1294, 4294901760
  %1296 = vmatmul.f32.gmra.mxu0 %v1295
  %v1297 = vpop.f32.mrf.mxu0
  %v1298 = vadd.f32 %v1261, %v1297
  %v1299 = vand.u32 %v1131, 4294901760
  %v1300 = vsub.f32 %v1131, %v1299
  %v1301 = vand.u32 %v1300, 4294901760
  %1302 = vmatmul.f32.gmra.mxu0 %v1301
  %v1303 = vpop.f32.mrf.mxu0
  %v1304 = vadd.f32 %v1266, %v1303
  %1305 = vdwg.mxu0
  %1306 = vmatpush.xpose.msra.mxu0 0.0
  %1307 = vmatpush.xpose.msra.mxu0 0.0
  %1308 = vmatpush.xpose.msra.mxu0 0.0
  %1309 = vmatpush.xpose.msra.mxu0 0.0
  %1310 = vmatpush.xpose.msra.mxu0 0.0
  %1311 = vmatpush.xpose.msra.mxu0 0.0
  %1312 = vmatpush.xpose.msra.mxu0 0.0
  %1313 = vmatpush.xpose.msra.mxu0 0.0
  %1314 = vmatpush.xpose.msra.mxu0 0.0
  %1315 = vmatpush.xpose.msra.mxu0 0.0
  %1316 = vmatpush.xpose.msra.mxu0 0.0
  %1317 = vmatpush.xpose.msra.mxu0 0.0
  %1318 = vmatpush.xpose.msra.mxu0 0.0
  %v1319 = vand.u32 %v1140, 4294901760
  %v1320 = vsub.f32 %v1140, %v1319
  %v1321 = vand.u32 %v1320, 4294901760
  %1322 = vmatpush.xpose.msra.mxu0 %v1321
  %v1323 = vand.u32 %v1137, 4294901760
  %v1324 = vsub.f32 %v1137, %v1323
  %v1325 = vand.u32 %v1324, 4294901760
  %1326 = vmatpush.xpose.msra.mxu0 %v1325
  %v1327 = vand.u32 %v1134, 4294901760
  %v1328 = vsub.f32 %v1134, %v1327
  %v1329 = vand.u32 %v1328, 4294901760
  %1330 = vmatpush.xpose.msra.mxu0 %v1329
  %v1331 = vand.u32 %v1125, 4294901760
  %1332 = vmatmul.f32.gmra.mxu0 %v1331
  %v1333 = vpop.f32.mrf.mxu0
  %v1334 = vadd.f32 %v1292, %v1333
  %v1335 = vand.u32 %v1128, 4294901760
  %1336 = vmatmul.f32.gmra.mxu0 %v1335
  %v1337 = vpop.f32.mrf.mxu0
  %v1338 = vadd.f32 %v1298, %v1337
  %v1339 = vand.u32 %v1131, 4294901760
  %1340 = vmatmul.f32.gmra.mxu0 %v1339
  %v1341 = vpop.f32.mrf.mxu0
  %v1342 = vadd.f32 %v1304, %v1341
  %1343 = vdwg.mxu0
  %1344 = vmatpush.xpose.msra.mxu0 0.0
  %1345 = vmatpush.xpose.msra.mxu0 0.0
  %1346 = vmatpush.xpose.msra.mxu0 0.0
  %1347 = vmatpush.xpose.msra.mxu0 0.0
  %1348 = vmatpush.xpose.msra.mxu0 0.0
  %1349 = vmatpush.xpose.msra.mxu0 0.0
  %1350 = vmatpush.xpose.msra.mxu0 0.0
  %1351 = vmatpush.xpose.msra.mxu0 0.0
  %1352 = vmatpush.xpose.msra.mxu0 0.0
  %1353 = vmatpush.xpose.msra.mxu0 0.0
  %1354 = vmatpush.xpose.msra.mxu0 0.0
  %1355 = vmatpush.xpose.msra.mxu0 0.0
  %1356 = vmatpush.xpose.msra.mxu0 0.0
  %v1357 = vand.u32 %v1140, 4294901760
  %1358 = vmatpush.xpose.msra.mxu0 %v1357
  %v1359 = vand.u32 %v1137, 4294901760
  %1360 = vmatpush.xpose.msra.mxu0 %v1359
  %v1361 = vand.u32 %v1134, 4294901760
  %1362 = vmatpush.xpose.msra.mxu0 %v1361
  %v1363 = vand.u32 %v1125, 4294901760
  %1364 = vmatmul.f32.gmra.mxu0 %v1363
  %v1365 = vpop.f32.mrf.mxu0
  %v1366 = vadd.f32 %v1334, %v1365
  %v1367 = vand.u32 %v1128, 4294901760
  %1368 = vmatmul.f32.gmra.mxu0 %v1367
  %v1369 = vpop.f32.mrf.mxu0
  %v1370 = vadd.f32 %v1338, %v1369
  %v1371 = vand.u32 %v1131, 4294901760
  %1372 = vmatmul.f32.gmra.mxu0 %v1371
  %v1373 = vpop.f32.mrf.mxu0
  %v1374 = vadd.f32 %v1342, %v1373
  %1375 = vdwg.mxu0
  %v1377 = vsel %vm115, %v106, 0
  %v1380 = vsel %vm115, %v107, 0
  %v1383 = vsel %vm115, %v108, 0
  %v1386 = vsel %vm115, %v58, 0
  %v1389 = vsel %vm115, %v59, 0
  %v1392 = vsel %vm115, %v60, 0
  %1394 = vmatpush.xpose.msra.mxu0 0.0
  %1395 = vmatpush.xpose.msra.mxu0 0.0
  %1396 = vmatpush.xpose.msra.mxu0 0.0
  %1397 = vmatpush.xpose.msra.mxu0 0.0
  %1398 = vmatpush.xpose.msra.mxu0 0.0
  %1399 = vmatpush.xpose.msra.mxu0 0.0
  %1400 = vmatpush.xpose.msra.mxu0 0.0
  %1401 = vmatpush.xpose.msra.mxu0 0.0
  %1402 = vmatpush.xpose.msra.mxu0 0.0
  %1403 = vmatpush.xpose.msra.mxu0 0.0
  %1404 = vmatpush.xpose.msra.mxu0 0.0
  %1405 = vmatpush.xpose.msra.mxu0 0.0
  %1406 = vmatpush.xpose.msra.mxu0 0.0
  %v1407 = vand.u32 %v1392, 4294901760
  %1408 = vmatpush.xpose.msra.mxu0 %v1407
  %v1409 = vand.u32 %v1389, 4294901760
  %1410 = vmatpush.xpose.msra.mxu0 %v1409
  %v1411 = vand.u32 %v1386, 4294901760
  %1412 = vmatpush.xpose.msra.mxu0 %v1411
  %v1413 = vand.u32 %v1377, 4294901760
  %v1414 = vsub.f32 %v1377, %v1413
  %v1415 = vand.u32 %v1414, 4294901760
  %v1416 = vsub.f32 %v1414, %v1415
  %v1417 = vand.u32 %v1416, 4294901760
  %1418 = vmatmul.f32.gmra.mxu0 %v1417
  %v1419 = vpop.f32.mrf.mxu0
  %v1420 = vadd.f32 0.0, %v1419
  %v1421 = vand.u32 %v1380, 4294901760
  %v1422 = vsub.f32 %v1380, %v1421
  %v1423 = vand.u32 %v1422, 4294901760
  %v1424 = vsub.f32 %v1422, %v1423
  %v1425 = vand.u32 %v1424, 4294901760
  %1426 = vmatmul.f32.gmra.mxu0 %v1425
  %v1427 = vpop.f32.mrf.mxu0
  %v1428 = vadd.f32 0.0, %v1427
  %v1429 = vand.u32 %v1383, 4294901760
  %v1430 = vsub.f32 %v1383, %v1429
  %v1431 = vand.u32 %v1430, 4294901760
  %v1432 = vsub.f32 %v1430, %v1431
  %v1433 = vand.u32 %v1432, 4294901760
  %1434 = vmatmul.f32.gmra.mxu0 %v1433
  %v1435 = vpop.f32.mrf.mxu0
  %v1436 = vadd.f32 0.0, %v1435
  %1437 = vdwg.mxu0
  %1438 = vmatpush.xpose.msra.mxu0 0.0
  %1439 = vmatpush.xpose.msra.mxu0 0.0
  %1440 = vmatpush.xpose.msra.mxu0 0.0
  %1441 = vmatpush.xpose.msra.mxu0 0.0
  %1442 = vmatpush.xpose.msra.mxu0 0.0
  %1443 = vmatpush.xpose.msra.mxu0 0.0
  %1444 = vmatpush.xpose.msra.mxu0 0.0
  %1445 = vmatpush.xpose.msra.mxu0 0.0
  %1446 = vmatpush.xpose.msra.mxu0 0.0
  %1447 = vmatpush.xpose.msra.mxu0 0.0
  %1448 = vmatpush.xpose.msra.mxu0 0.0
  %1449 = vmatpush.xpose.msra.mxu0 0.0
  %1450 = vmatpush.xpose.msra.mxu0 0.0
  %v1451 = vand.u32 %v1392, 4294901760
  %v1452 = vsub.f32 %v1392, %v1451
  %v1453 = vand.u32 %v1452, 4294901760
  %v1454 = vsub.f32 %v1452, %v1453
  %v1455 = vand.u32 %v1454, 4294901760
  %1456 = vmatpush.xpose.msra.mxu0 %v1455
  %v1457 = vand.u32 %v1389, 4294901760
  %v1458 = vsub.f32 %v1389, %v1457
  %v1459 = vand.u32 %v1458, 4294901760
  %v1460 = vsub.f32 %v1458, %v1459
  %v1461 = vand.u32 %v1460, 4294901760
  %1462 = vmatpush.xpose.msra.mxu0 %v1461
  %v1463 = vand.u32 %v1386, 4294901760
  %v1464 = vsub.f32 %v1386, %v1463
  %v1465 = vand.u32 %v1464, 4294901760
  %v1466 = vsub.f32 %v1464, %v1465
  %v1467 = vand.u32 %v1466, 4294901760
  %1468 = vmatpush.xpose.msra.mxu0 %v1467
  %v1469 = vand.u32 %v1377, 4294901760
  %1470 = vmatmul.f32.gmra.mxu0 %v1469
  %v1471 = vpop.f32.mrf.mxu0
  %v1472 = vadd.f32 %v1420, %v1471
  %v1473 = vand.u32 %v1380, 4294901760
  %1474 = vmatmul.f32.gmra.mxu0 %v1473
  %v1475 = vpop.f32.mrf.mxu0
  %v1476 = vadd.f32 %v1428, %v1475
  %v1477 = vand.u32 %v1383, 4294901760
  %1478 = vmatmul.f32.gmra.mxu0 %v1477
  %v1479 = vpop.f32.mrf.mxu0
  %v1480 = vadd.f32 %v1436, %v1479
  %1481 = vdwg.mxu0
  %1482 = vmatpush.xpose.msra.mxu0 0.0
  %1483 = vmatpush.xpose.msra.mxu0 0.0
  %1484 = vmatpush.xpose.msra.mxu0 0.0
  %1485 = vmatpush.xpose.msra.mxu0 0.0
  %1486 = vmatpush.xpose.msra.mxu0 0.0
  %1487 = vmatpush.xpose.msra.mxu0 0.0
  %1488 = vmatpush.xpose.msra.mxu0 0.0
  %1489 = vmatpush.xpose.msra.mxu0 0.0
  %1490 = vmatpush.xpose.msra.mxu0 0.0
  %1491 = vmatpush.xpose.msra.mxu0 0.0
  %1492 = vmatpush.xpose.msra.mxu0 0.0
  %1493 = vmatpush.xpose.msra.mxu0 0.0
  %1494 = vmatpush.xpose.msra.mxu0 0.0
  %v1495 = vand.u32 %v1392, 4294901760
  %v1496 = vsub.f32 %v1392, %v1495
  %1497 = vmatpush.xpose.msra.mxu0 %v1496
  %v1498 = vand.u32 %v1389, 4294901760
  %v1499 = vsub.f32 %v1389, %v1498
  %1500 = vmatpush.xpose.msra.mxu0 %v1499
  %v1501 = vand.u32 %v1386, 4294901760
  %v1502 = vsub.f32 %v1386, %v1501
  %1503 = vmatpush.xpose.msra.mxu0 %v1502
  %v1504 = vand.u32 %v1377, 4294901760
  %v1505 = vsub.f32 %v1377, %v1504
  %1506 = vmatmul.f32.gmra.mxu0 %v1505
  %v1507 = vpop.f32.mrf.mxu0
  %v1508 = vadd.f32 %v1472, %v1507
  %v1509 = vand.u32 %v1380, 4294901760
  %v1510 = vsub.f32 %v1380, %v1509
  %1511 = vmatmul.f32.gmra.mxu0 %v1510
  %v1512 = vpop.f32.mrf.mxu0
  %v1513 = vadd.f32 %v1476, %v1512
  %v1514 = vand.u32 %v1383, 4294901760
  %v1515 = vsub.f32 %v1383, %v1514
  %1516 = vmatmul.f32.gmra.mxu0 %v1515
  %v1517 = vpop.f32.mrf.mxu0
  %v1518 = vadd.f32 %v1480, %v1517
  %1519 = vdwg.mxu0
  %1520 = vmatpush.xpose.msra.mxu0 0.0
  %1521 = vmatpush.xpose.msra.mxu0 0.0
  %1522 = vmatpush.xpose.msra.mxu0 0.0
  %1523 = vmatpush.xpose.msra.mxu0 0.0
  %1524 = vmatpush.xpose.msra.mxu0 0.0
  %1525 = vmatpush.xpose.msra.mxu0 0.0
  %1526 = vmatpush.xpose.msra.mxu0 0.0
  %1527 = vmatpush.xpose.msra.mxu0 0.0
  %1528 = vmatpush.xpose.msra.mxu0 0.0
  %1529 = vmatpush.xpose.msra.mxu0 0.0
  %1530 = vmatpush.xpose.msra.mxu0 0.0
  %1531 = vmatpush.xpose.msra.mxu0 0.0
  %1532 = vmatpush.xpose.msra.mxu0 0.0
  %v1533 = vand.u32 %v1392, 4294901760
  %1534 = vmatpush.xpose.msra.mxu0 %v1533
  %v1535 = vand.u32 %v1389, 4294901760
  %1536 = vmatpush.xpose.msra.mxu0 %v1535
  %v1537 = vand.u32 %v1386, 4294901760
  %1538 = vmatpush.xpose.msra.mxu0 %v1537
  %v1539 = vand.u32 %v1377, 4294901760
  %v1540 = vsub.f32 %v1377, %v1539
  %v1541 = vand.u32 %v1540, 4294901760
  %1542 = vmatmul.f32.gmra.mxu0 %v1541
  %v1543 = vpop.f32.mrf.mxu0
  %v1544 = vadd.f32 %v1508, %v1543
  %v1545 = vand.u32 %v1380, 4294901760
  %v1546 = vsub.f32 %v1380, %v1545
  %v1547 = vand.u32 %v1546, 4294901760
  %1548 = vmatmul.f32.gmra.mxu0 %v1547
  %v1549 = vpop.f32.mrf.mxu0
  %v1550 = vadd.f32 %v1513, %v1549
  %v1551 = vand.u32 %v1383, 4294901760
  %v1552 = vsub.f32 %v1383, %v1551
  %v1553 = vand.u32 %v1552, 4294901760
  %1554 = vmatmul.f32.gmra.mxu0 %v1553
  %v1555 = vpop.f32.mrf.mxu0
  %v1556 = vadd.f32 %v1518, %v1555
  %1557 = vdwg.mxu0
  %1558 = vmatpush.xpose.msra.mxu0 0.0
  %1559 = vmatpush.xpose.msra.mxu0 0.0
  %1560 = vmatpush.xpose.msra.mxu0 0.0
  %1561 = vmatpush.xpose.msra.mxu0 0.0
  %1562 = vmatpush.xpose.msra.mxu0 0.0
  %1563 = vmatpush.xpose.msra.mxu0 0.0
  %1564 = vmatpush.xpose.msra.mxu0 0.0
  %1565 = vmatpush.xpose.msra.mxu0 0.0
  %1566 = vmatpush.xpose.msra.mxu0 0.0
  %1567 = vmatpush.xpose.msra.mxu0 0.0
  %1568 = vmatpush.xpose.msra.mxu0 0.0
  %1569 = vmatpush.xpose.msra.mxu0 0.0
  %1570 = vmatpush.xpose.msra.mxu0 0.0
  %v1571 = vand.u32 %v1392, 4294901760
  %v1572 = vsub.f32 %v1392, %v1571
  %v1573 = vand.u32 %v1572, 4294901760
  %1574 = vmatpush.xpose.msra.mxu0 %v1573
  %v1575 = vand.u32 %v1389, 4294901760
  %v1576 = vsub.f32 %v1389, %v1575
  %v1577 = vand.u32 %v1576, 4294901760
  %1578 = vmatpush.xpose.msra.mxu0 %v1577
  %v1579 = vand.u32 %v1386, 4294901760
  %v1580 = vsub.f32 %v1386, %v1579
  %v1581 = vand.u32 %v1580, 4294901760
  %1582 = vmatpush.xpose.msra.mxu0 %v1581
  %v1583 = vand.u32 %v1377, 4294901760
  %1584 = vmatmul.f32.gmra.mxu0 %v1583
  %v1585 = vpop.f32.mrf.mxu0
  %v1586 = vadd.f32 %v1544, %v1585
  %v1587 = vand.u32 %v1380, 4294901760
  %1588 = vmatmul.f32.gmra.mxu0 %v1587
  %v1589 = vpop.f32.mrf.mxu0
  %v1590 = vadd.f32 %v1550, %v1589
  %v1591 = vand.u32 %v1383, 4294901760
  %1592 = vmatmul.f32.gmra.mxu0 %v1591
  %v1593 = vpop.f32.mrf.mxu0
  %v1594 = vadd.f32 %v1556, %v1593
  %1595 = vdwg.mxu0
  %1596 = vmatpush.xpose.msra.mxu0 0.0
  %1597 = vmatpush.xpose.msra.mxu0 0.0
  %1598 = vmatpush.xpose.msra.mxu0 0.0
  %1599 = vmatpush.xpose.msra.mxu0 0.0
  %1600 = vmatpush.xpose.msra.mxu0 0.0
  %1601 = vmatpush.xpose.msra.mxu0 0.0
  %1602 = vmatpush.xpose.msra.mxu0 0.0
  %1603 = vmatpush.xpose.msra.mxu0 0.0
  %1604 = vmatpush.xpose.msra.mxu0 0.0
  %1605 = vmatpush.xpose.msra.mxu0 0.0
  %1606 = vmatpush.xpose.msra.mxu0 0.0
  %1607 = vmatpush.xpose.msra.mxu0 0.0
  %1608 = vmatpush.xpose.msra.mxu0 0.0
  %v1609 = vand.u32 %v1392, 4294901760
  %1610 = vmatpush.xpose.msra.mxu0 %v1609
  %v1611 = vand.u32 %v1389, 4294901760
  %1612 = vmatpush.xpose.msra.mxu0 %v1611
  %v1613 = vand.u32 %v1386, 4294901760
  %1614 = vmatpush.xpose.msra.mxu0 %v1613
  %v1615 = vand.u32 %v1377, 4294901760
  %1616 = vmatmul.f32.gmra.mxu0 %v1615
  %v1617 = vpop.f32.mrf.mxu0
  %v1618 = vadd.f32 %v1586, %v1617
  %v1619 = vand.u32 %v1380, 4294901760
  %1620 = vmatmul.f32.gmra.mxu0 %v1619
  %v1621 = vpop.f32.mrf.mxu0
  %v1622 = vadd.f32 %v1590, %v1621
  %v1623 = vand.u32 %v1383, 4294901760
  %1624 = vmatmul.f32.gmra.mxu0 %v1623
  %v1625 = vpop.f32.mrf.mxu0
  %v1626 = vadd.f32 %v1594, %v1625
  %1627 = vdwg.mxu0
  %v1629 = vsel %vm115, %v109, 0
  %v1632 = vsel %vm115, %v110, 0
  %v1635 = vsel %vm115, %v111, 0
  %v1638 = vsel %vm115, %v61, 0
  %v1641 = vsel %vm115, %v62, 0
  %v1644 = vsel %vm115, %v63, 0
  %1646 = vmatpush.xpose.msra.mxu0 0.0
  %1647 = vmatpush.xpose.msra.mxu0 0.0
  %1648 = vmatpush.xpose.msra.mxu0 0.0
  %1649 = vmatpush.xpose.msra.mxu0 0.0
  %1650 = vmatpush.xpose.msra.mxu0 0.0
  %1651 = vmatpush.xpose.msra.mxu0 0.0
  %1652 = vmatpush.xpose.msra.mxu0 0.0
  %1653 = vmatpush.xpose.msra.mxu0 0.0
  %1654 = vmatpush.xpose.msra.mxu0 0.0
  %1655 = vmatpush.xpose.msra.mxu0 0.0
  %1656 = vmatpush.xpose.msra.mxu0 0.0
  %1657 = vmatpush.xpose.msra.mxu0 0.0
  %1658 = vmatpush.xpose.msra.mxu0 0.0
  %v1659 = vand.u32 %v1644, 4294901760
  %1660 = vmatpush.xpose.msra.mxu0 %v1659
  %v1661 = vand.u32 %v1641, 4294901760
  %1662 = vmatpush.xpose.msra.mxu0 %v1661
  %v1663 = vand.u32 %v1638, 4294901760
  %1664 = vmatpush.xpose.msra.mxu0 %v1663
  %v1665 = vand.u32 %v1629, 4294901760
  %v1666 = vsub.f32 %v1629, %v1665
  %v1667 = vand.u32 %v1666, 4294901760
  %v1668 = vsub.f32 %v1666, %v1667
  %v1669 = vand.u32 %v1668, 4294901760
  %1670 = vmatmul.f32.gmra.mxu0 %v1669
  %v1671 = vpop.f32.mrf.mxu0
  %v1672 = vadd.f32 0.0, %v1671
  %v1673 = vand.u32 %v1632, 4294901760
  %v1674 = vsub.f32 %v1632, %v1673
  %v1675 = vand.u32 %v1674, 4294901760
  %v1676 = vsub.f32 %v1674, %v1675
  %v1677 = vand.u32 %v1676, 4294901760
  %1678 = vmatmul.f32.gmra.mxu0 %v1677
  %v1679 = vpop.f32.mrf.mxu0
  %v1680 = vadd.f32 0.0, %v1679
  %v1681 = vand.u32 %v1635, 4294901760
  %v1682 = vsub.f32 %v1635, %v1681
  %v1683 = vand.u32 %v1682, 4294901760
  %v1684 = vsub.f32 %v1682, %v1683
  %v1685 = vand.u32 %v1684, 4294901760
  %1686 = vmatmul.f32.gmra.mxu0 %v1685
  %v1687 = vpop.f32.mrf.mxu0
  %v1688 = vadd.f32 0.0, %v1687
  %1689 = vdwg.mxu0
  %1690 = vmatpush.xpose.msra.mxu0 0.0
  %1691 = vmatpush.xpose.msra.mxu0 0.0
  %1692 = vmatpush.xpose.msra.mxu0 0.0
  %1693 = vmatpush.xpose.msra.mxu0 0.0
  %1694 = vmatpush.xpose.msra.mxu0 0.0
  %1695 = vmatpush.xpose.msra.mxu0 0.0
  %1696 = vmatpush.xpose.msra.mxu0 0.0
  %1697 = vmatpush.xpose.msra.mxu0 0.0
  %1698 = vmatpush.xpose.msra.mxu0 0.0
  %1699 = vmatpush.xpose.msra.mxu0 0.0
  %1700 = vmatpush.xpose.msra.mxu0 0.0
  %1701 = vmatpush.xpose.msra.mxu0 0.0
  %1702 = vmatpush.xpose.msra.mxu0 0.0
  %v1703 = vand.u32 %v1644, 4294901760
  %v1704 = vsub.f32 %v1644, %v1703
  %v1705 = vand.u32 %v1704, 4294901760
  %v1706 = vsub.f32 %v1704, %v1705
  %v1707 = vand.u32 %v1706, 4294901760
  %1708 = vmatpush.xpose.msra.mxu0 %v1707
  %v1709 = vand.u32 %v1641, 4294901760
  %v1710 = vsub.f32 %v1641, %v1709
  %v1711 = vand.u32 %v1710, 4294901760
  %v1712 = vsub.f32 %v1710, %v1711
  %v1713 = vand.u32 %v1712, 4294901760
  %1714 = vmatpush.xpose.msra.mxu0 %v1713
  %v1715 = vand.u32 %v1638, 4294901760
  %v1716 = vsub.f32 %v1638, %v1715
  %v1717 = vand.u32 %v1716, 4294901760
  %v1718 = vsub.f32 %v1716, %v1717
  %v1719 = vand.u32 %v1718, 4294901760
  %1720 = vmatpush.xpose.msra.mxu0 %v1719
  %v1721 = vand.u32 %v1629, 4294901760
  %1722 = vmatmul.f32.gmra.mxu0 %v1721
  %v1723 = vpop.f32.mrf.mxu0
  %v1724 = vadd.f32 %v1672, %v1723
  %v1725 = vand.u32 %v1632, 4294901760
  %1726 = vmatmul.f32.gmra.mxu0 %v1725
  %v1727 = vpop.f32.mrf.mxu0
  %v1728 = vadd.f32 %v1680, %v1727
  %v1729 = vand.u32 %v1635, 4294901760
  %1730 = vmatmul.f32.gmra.mxu0 %v1729
  %v1731 = vpop.f32.mrf.mxu0
  %v1732 = vadd.f32 %v1688, %v1731
  %1733 = vdwg.mxu0
  %1734 = vmatpush.xpose.msra.mxu0 0.0
  %1735 = vmatpush.xpose.msra.mxu0 0.0
  %1736 = vmatpush.xpose.msra.mxu0 0.0
  %1737 = vmatpush.xpose.msra.mxu0 0.0
  %1738 = vmatpush.xpose.msra.mxu0 0.0
  %1739 = vmatpush.xpose.msra.mxu0 0.0
  %1740 = vmatpush.xpose.msra.mxu0 0.0
  %1741 = vmatpush.xpose.msra.mxu0 0.0
  %1742 = vmatpush.xpose.msra.mxu0 0.0
  %1743 = vmatpush.xpose.msra.mxu0 0.0
  %1744 = vmatpush.xpose.msra.mxu0 0.0
  %1745 = vmatpush.xpose.msra.mxu0 0.0
  %1746 = vmatpush.xpose.msra.mxu0 0.0
  %v1747 = vand.u32 %v1644, 4294901760
  %v1748 = vsub.f32 %v1644, %v1747
  %1749 = vmatpush.xpose.msra.mxu0 %v1748
  %v1750 = vand.u32 %v1641, 4294901760
  %v1751 = vsub.f32 %v1641, %v1750
  %1752 = vmatpush.xpose.msra.mxu0 %v1751
  %v1753 = vand.u32 %v1638, 4294901760
  %v1754 = vsub.f32 %v1638, %v1753
  %1755 = vmatpush.xpose.msra.mxu0 %v1754
  %v1756 = vand.u32 %v1629, 4294901760
  %v1757 = vsub.f32 %v1629, %v1756
  %1758 = vmatmul.f32.gmra.mxu0 %v1757
  %v1759 = vpop.f32.mrf.mxu0
  %v1760 = vadd.f32 %v1724, %v1759
  %v1761 = vand.u32 %v1632, 4294901760
  %v1762 = vsub.f32 %v1632, %v1761
  %1763 = vmatmul.f32.gmra.mxu0 %v1762
  %v1764 = vpop.f32.mrf.mxu0
  %v1765 = vadd.f32 %v1728, %v1764
  %v1766 = vand.u32 %v1635, 4294901760
  %v1767 = vsub.f32 %v1635, %v1766
  %1768 = vmatmul.f32.gmra.mxu0 %v1767
  %v1769 = vpop.f32.mrf.mxu0
  %v1770 = vadd.f32 %v1732, %v1769
  %1771 = vdwg.mxu0
  %1772 = vmatpush.xpose.msra.mxu0 0.0
  %1773 = vmatpush.xpose.msra.mxu0 0.0
  %1774 = vmatpush.xpose.msra.mxu0 0.0
  %1775 = vmatpush.xpose.msra.mxu0 0.0
  %1776 = vmatpush.xpose.msra.mxu0 0.0
  %1777 = vmatpush.xpose.msra.mxu0 0.0
  %1778 = vmatpush.xpose.msra.mxu0 0.0
  %1779 = vmatpush.xpose.msra.mxu0 0.0
  %1780 = vmatpush.xpose.msra.mxu0 0.0
  %1781 = vmatpush.xpose.msra.mxu0 0.0
  %1782 = vmatpush.xpose.msra.mxu0 0.0
  %1783 = vmatpush.xpose.msra.mxu0 0.0
  %1784 = vmatpush.xpose.msra.mxu0 0.0
  %v1785 = vand.u32 %v1644, 4294901760
  %1786 = vmatpush.xpose.msra.mxu0 %v1785
  %v1787 = vand.u32 %v1641, 4294901760
  %1788 = vmatpush.xpose.msra.mxu0 %v1787
  %v1789 = vand.u32 %v1638, 4294901760
  %1790 = vmatpush.xpose.msra.mxu0 %v1789
  %v1791 = vand.u32 %v1629, 4294901760
  %v1792 = vsub.f32 %v1629, %v1791
  %v1793 = vand.u32 %v1792, 4294901760
  %1794 = vmatmul.f32.gmra.mxu0 %v1793
  %v1795 = vpop.f32.mrf.mxu0
  %v1796 = vadd.f32 %v1760, %v1795
  %v1797 = vand.u32 %v1632, 4294901760
  %v1798 = vsub.f32 %v1632, %v1797
  %v1799 = vand.u32 %v1798, 4294901760
  %1800 = vmatmul.f32.gmra.mxu0 %v1799
  %v1801 = vpop.f32.mrf.mxu0
  %v1802 = vadd.f32 %v1765, %v1801
  %v1803 = vand.u32 %v1635, 4294901760
  %v1804 = vsub.f32 %v1635, %v1803
  %v1805 = vand.u32 %v1804, 4294901760
  %1806 = vmatmul.f32.gmra.mxu0 %v1805
  %v1807 = vpop.f32.mrf.mxu0
  %v1808 = vadd.f32 %v1770, %v1807
  %1809 = vdwg.mxu0
  %1810 = vmatpush.xpose.msra.mxu0 0.0
  %1811 = vmatpush.xpose.msra.mxu0 0.0
  %1812 = vmatpush.xpose.msra.mxu0 0.0
  %1813 = vmatpush.xpose.msra.mxu0 0.0
  %1814 = vmatpush.xpose.msra.mxu0 0.0
  %1815 = vmatpush.xpose.msra.mxu0 0.0
  %1816 = vmatpush.xpose.msra.mxu0 0.0
  %1817 = vmatpush.xpose.msra.mxu0 0.0
  %1818 = vmatpush.xpose.msra.mxu0 0.0
  %1819 = vmatpush.xpose.msra.mxu0 0.0
  %1820 = vmatpush.xpose.msra.mxu0 0.0
  %1821 = vmatpush.xpose.msra.mxu0 0.0
  %1822 = vmatpush.xpose.msra.mxu0 0.0
  %v1823 = vand.u32 %v1644, 4294901760
  %v1824 = vsub.f32 %v1644, %v1823
  %v1825 = vand.u32 %v1824, 4294901760
  %1826 = vmatpush.xpose.msra.mxu0 %v1825
  %v1827 = vand.u32 %v1641, 4294901760
  %v1828 = vsub.f32 %v1641, %v1827
  %v1829 = vand.u32 %v1828, 4294901760
  %1830 = vmatpush.xpose.msra.mxu0 %v1829
  %v1831 = vand.u32 %v1638, 4294901760
  %v1832 = vsub.f32 %v1638, %v1831
  %v1833 = vand.u32 %v1832, 4294901760
  %1834 = vmatpush.xpose.msra.mxu0 %v1833
  %v1835 = vand.u32 %v1629, 4294901760
  %1836 = vmatmul.f32.gmra.mxu0 %v1835
  %v1837 = vpop.f32.mrf.mxu0
  %v1838 = vadd.f32 %v1796, %v1837
  %v1839 = vand.u32 %v1632, 4294901760
  %1840 = vmatmul.f32.gmra.mxu0 %v1839
  %v1841 = vpop.f32.mrf.mxu0
  %v1842 = vadd.f32 %v1802, %v1841
  %v1843 = vand.u32 %v1635, 4294901760
  %1844 = vmatmul.f32.gmra.mxu0 %v1843
  %v1845 = vpop.f32.mrf.mxu0
  %v1846 = vadd.f32 %v1808, %v1845
  %1847 = vdwg.mxu0
  %1848 = vmatpush.xpose.msra.mxu0 0.0
  %1849 = vmatpush.xpose.msra.mxu0 0.0
  %1850 = vmatpush.xpose.msra.mxu0 0.0
  %1851 = vmatpush.xpose.msra.mxu0 0.0
  %1852 = vmatpush.xpose.msra.mxu0 0.0
  %1853 = vmatpush.xpose.msra.mxu0 0.0
  %1854 = vmatpush.xpose.msra.mxu0 0.0
  %1855 = vmatpush.xpose.msra.mxu0 0.0
  %1856 = vmatpush.xpose.msra.mxu0 0.0
  %1857 = vmatpush.xpose.msra.mxu0 0.0
  %1858 = vmatpush.xpose.msra.mxu0 0.0
  %1859 = vmatpush.xpose.msra.mxu0 0.0
  %1860 = vmatpush.xpose.msra.mxu0 0.0
  %v1861 = vand.u32 %v1644, 4294901760
  %1862 = vmatpush.xpose.msra.mxu0 %v1861
  %v1863 = vand.u32 %v1641, 4294901760
  %1864 = vmatpush.xpose.msra.mxu0 %v1863
  %v1865 = vand.u32 %v1638, 4294901760
  %1866 = vmatpush.xpose.msra.mxu0 %v1865
  %v1867 = vand.u32 %v1629, 4294901760
  %1868 = vmatmul.f32.gmra.mxu0 %v1867
  %v1869 = vpop.f32.mrf.mxu0
  %v1870 = vadd.f32 %v1838, %v1869
  %v1871 = vand.u32 %v1632, 4294901760
  %1872 = vmatmul.f32.gmra.mxu0 %v1871
  %v1873 = vpop.f32.mrf.mxu0
  %v1874 = vadd.f32 %v1842, %v1873
  %v1875 = vand.u32 %v1635, 4294901760
  %1876 = vmatmul.f32.gmra.mxu0 %v1875
  %v1877 = vpop.f32.mrf.mxu0
  %v1878 = vadd.f32 %v1846, %v1877
  %1879 = vdwg.mxu0
  %v1881 = vsel %vm115, %v112, 0
  %v1884 = vsel %vm115, %v113, 0
  %v1887 = vsel %vm115, %v114, 0
  %v1890 = vsel %vm115, %v64, 0
  %v1893 = vsel %vm115, %v65, 0
  %v1896 = vsel %vm115, %v66, 0
  %1898 = vmatpush.xpose.msra.mxu0 0.0
  %1899 = vmatpush.xpose.msra.mxu0 0.0
  %1900 = vmatpush.xpose.msra.mxu0 0.0
  %1901 = vmatpush.xpose.msra.mxu0 0.0
  %1902 = vmatpush.xpose.msra.mxu0 0.0
  %1903 = vmatpush.xpose.msra.mxu0 0.0
  %1904 = vmatpush.xpose.msra.mxu0 0.0
  %1905 = vmatpush.xpose.msra.mxu0 0.0
  %1906 = vmatpush.xpose.msra.mxu0 0.0
  %1907 = vmatpush.xpose.msra.mxu0 0.0
  %1908 = vmatpush.xpose.msra.mxu0 0.0
  %1909 = vmatpush.xpose.msra.mxu0 0.0
  %1910 = vmatpush.xpose.msra.mxu0 0.0
  %v1911 = vand.u32 %v1896, 4294901760
  %1912 = vmatpush.xpose.msra.mxu0 %v1911
  %v1913 = vand.u32 %v1893, 4294901760
  %1914 = vmatpush.xpose.msra.mxu0 %v1913
  %v1915 = vand.u32 %v1890, 4294901760
  %1916 = vmatpush.xpose.msra.mxu0 %v1915
  %v1917 = vand.u32 %v1881, 4294901760
  %v1918 = vsub.f32 %v1881, %v1917
  %v1919 = vand.u32 %v1918, 4294901760
  %v1920 = vsub.f32 %v1918, %v1919
  %v1921 = vand.u32 %v1920, 4294901760
  %1922 = vmatmul.f32.gmra.mxu0 %v1921
  %v1923 = vpop.f32.mrf.mxu0
  %v1924 = vadd.f32 0.0, %v1923
  %v1925 = vand.u32 %v1884, 4294901760
  %v1926 = vsub.f32 %v1884, %v1925
  %v1927 = vand.u32 %v1926, 4294901760
  %v1928 = vsub.f32 %v1926, %v1927
  %v1929 = vand.u32 %v1928, 4294901760
  %1930 = vmatmul.f32.gmra.mxu0 %v1929
  %v1931 = vpop.f32.mrf.mxu0
  %v1932 = vadd.f32 0.0, %v1931
  %v1933 = vand.u32 %v1887, 4294901760
  %v1934 = vsub.f32 %v1887, %v1933
  %v1935 = vand.u32 %v1934, 4294901760
  %v1936 = vsub.f32 %v1934, %v1935
  %v1937 = vand.u32 %v1936, 4294901760
  %1938 = vmatmul.f32.gmra.mxu0 %v1937
  %v1939 = vpop.f32.mrf.mxu0
  %v1940 = vadd.f32 0.0, %v1939
  %1941 = vdwg.mxu0
  %1942 = vmatpush.xpose.msra.mxu0 0.0
  %1943 = vmatpush.xpose.msra.mxu0 0.0
  %1944 = vmatpush.xpose.msra.mxu0 0.0
  %1945 = vmatpush.xpose.msra.mxu0 0.0
  %1946 = vmatpush.xpose.msra.mxu0 0.0
  %1947 = vmatpush.xpose.msra.mxu0 0.0
  %1948 = vmatpush.xpose.msra.mxu0 0.0
  %1949 = vmatpush.xpose.msra.mxu0 0.0
  %1950 = vmatpush.xpose.msra.mxu0 0.0
  %1951 = vmatpush.xpose.msra.mxu0 0.0
  %1952 = vmatpush.xpose.msra.mxu0 0.0
  %1953 = vmatpush.xpose.msra.mxu0 0.0
  %1954 = vmatpush.xpose.msra.mxu0 0.0
  %v1955 = vand.u32 %v1896, 4294901760
  %v1956 = vsub.f32 %v1896, %v1955
  %v1957 = vand.u32 %v1956, 4294901760
  %v1958 = vsub.f32 %v1956, %v1957
  %v1959 = vand.u32 %v1958, 4294901760
  %1960 = vmatpush.xpose.msra.mxu0 %v1959
  %v1961 = vand.u32 %v1893, 4294901760
  %v1962 = vsub.f32 %v1893, %v1961
  %v1963 = vand.u32 %v1962, 4294901760
  %v1964 = vsub.f32 %v1962, %v1963
  %v1965 = vand.u32 %v1964, 4294901760
  %1966 = vmatpush.xpose.msra.mxu0 %v1965
  %v1967 = vand.u32 %v1890, 4294901760
  %v1968 = vsub.f32 %v1890, %v1967
  %v1969 = vand.u32 %v1968, 4294901760
  %v1970 = vsub.f32 %v1968, %v1969
  %v1971 = vand.u32 %v1970, 4294901760
  %1972 = vmatpush.xpose.msra.mxu0 %v1971
  %v1973 = vand.u32 %v1881, 4294901760
  %1974 = vmatmul.f32.gmra.mxu0 %v1973
  %v1975 = vpop.f32.mrf.mxu0
  %v1976 = vadd.f32 %v1924, %v1975
  %v1977 = vand.u32 %v1884, 4294901760
  %1978 = vmatmul.f32.gmra.mxu0 %v1977
  %v1979 = vpop.f32.mrf.mxu0
  %v1980 = vadd.f32 %v1932, %v1979
  %v1981 = vand.u32 %v1887, 4294901760
  %1982 = vmatmul.f32.gmra.mxu0 %v1981
  %v1983 = vpop.f32.mrf.mxu0
  %v1984 = vadd.f32 %v1940, %v1983
  %1985 = vdwg.mxu0
  %1986 = vmatpush.xpose.msra.mxu0 0.0
  %1987 = vmatpush.xpose.msra.mxu0 0.0
  %1988 = vmatpush.xpose.msra.mxu0 0.0
  %1989 = vmatpush.xpose.msra.mxu0 0.0
  %1990 = vmatpush.xpose.msra.mxu0 0.0
  %1991 = vmatpush.xpose.msra.mxu0 0.0
  %1992 = vmatpush.xpose.msra.mxu0 0.0
  %1993 = vmatpush.xpose.msra.mxu0 0.0
  %1994 = vmatpush.xpose.msra.mxu0 0.0
  %1995 = vmatpush.xpose.msra.mxu0 0.0
  %1996 = vmatpush.xpose.msra.mxu0 0.0
  %1997 = vmatpush.xpose.msra.mxu0 0.0
  %1998 = vmatpush.xpose.msra.mxu0 0.0
  %v1999 = vand.u32 %v1896, 4294901760
  %v2000 = vsub.f32 %v1896, %v1999
  %2001 = vmatpush.xpose.msra.mxu0 %v2000
  %v2002 = vand.u32 %v1893, 4294901760
  %v2003 = vsub.f32 %v1893, %v2002
  %2004 = vmatpush.xpose.msra.mxu0 %v2003
  %v2005 = vand.u32 %v1890, 4294901760
  %v2006 = vsub.f32 %v1890, %v2005
  %2007 = vmatpush.xpose.msra.mxu0 %v2006
  %v2008 = vand.u32 %v1881, 4294901760
  %v2009 = vsub.f32 %v1881, %v2008
  %2010 = vmatmul.f32.gmra.mxu0 %v2009
  %v2011 = vpop.f32.mrf.mxu0
  %v2012 = vadd.f32 %v1976, %v2011
  %v2013 = vand.u32 %v1884, 4294901760
  %v2014 = vsub.f32 %v1884, %v2013
  %2015 = vmatmul.f32.gmra.mxu0 %v2014
  %v2016 = vpop.f32.mrf.mxu0
  %v2017 = vadd.f32 %v1980, %v2016
  %v2018 = vand.u32 %v1887, 4294901760
  %v2019 = vsub.f32 %v1887, %v2018
  %2020 = vmatmul.f32.gmra.mxu0 %v2019
  %v2021 = vpop.f32.mrf.mxu0
  %v2022 = vadd.f32 %v1984, %v2021
  %2023 = vdwg.mxu0
  %2024 = vmatpush.xpose.msra.mxu0 0.0
  %2025 = vmatpush.xpose.msra.mxu0 0.0
  %2026 = vmatpush.xpose.msra.mxu0 0.0
  %2027 = vmatpush.xpose.msra.mxu0 0.0
  %2028 = vmatpush.xpose.msra.mxu0 0.0
  %2029 = vmatpush.xpose.msra.mxu0 0.0
  %2030 = vmatpush.xpose.msra.mxu0 0.0
  %2031 = vmatpush.xpose.msra.mxu0 0.0
  %2032 = vmatpush.xpose.msra.mxu0 0.0
  %2033 = vmatpush.xpose.msra.mxu0 0.0
  %2034 = vmatpush.xpose.msra.mxu0 0.0
  %2035 = vmatpush.xpose.msra.mxu0 0.0
  %2036 = vmatpush.xpose.msra.mxu0 0.0
  %v2037 = vand.u32 %v1896, 4294901760
  %2038 = vmatpush.xpose.msra.mxu0 %v2037
  %v2039 = vand.u32 %v1893, 4294901760
  %2040 = vmatpush.xpose.msra.mxu0 %v2039
  %v2041 = vand.u32 %v1890, 4294901760
  %2042 = vmatpush.xpose.msra.mxu0 %v2041
  %v2043 = vand.u32 %v1881, 4294901760
  %v2044 = vsub.f32 %v1881, %v2043
  %v2045 = vand.u32 %v2044, 4294901760
  %2046 = vmatmul.f32.gmra.mxu0 %v2045
  %v2047 = vpop.f32.mrf.mxu0
  %v2048 = vadd.f32 %v2012, %v2047
  %v2049 = vand.u32 %v1884, 4294901760
  %v2050 = vsub.f32 %v1884, %v2049
  %v2051 = vand.u32 %v2050, 4294901760
  %2052 = vmatmul.f32.gmra.mxu0 %v2051
  %v2053 = vpop.f32.mrf.mxu0
  %v2054 = vadd.f32 %v2017, %v2053
  %v2055 = vand.u32 %v1887, 4294901760
  %v2056 = vsub.f32 %v1887, %v2055
  %v2057 = vand.u32 %v2056, 4294901760
  %2058 = vmatmul.f32.gmra.mxu0 %v2057
  %v2059 = vpop.f32.mrf.mxu0
  %v2060 = vadd.f32 %v2022, %v2059
  %2061 = vdwg.mxu0
  %2062 = vmatpush.xpose.msra.mxu0 0.0
  %2063 = vmatpush.xpose.msra.mxu0 0.0
  %2064 = vmatpush.xpose.msra.mxu0 0.0
  %2065 = vmatpush.xpose.msra.mxu0 0.0
  %2066 = vmatpush.xpose.msra.mxu0 0.0
  %2067 = vmatpush.xpose.msra.mxu0 0.0
  %2068 = vmatpush.xpose.msra.mxu0 0.0
  %2069 = vmatpush.xpose.msra.mxu0 0.0
  %2070 = vmatpush.xpose.msra.mxu0 0.0
  %2071 = vmatpush.xpose.msra.mxu0 0.0
  %2072 = vmatpush.xpose.msra.mxu0 0.0
  %2073 = vmatpush.xpose.msra.mxu0 0.0
  %2074 = vmatpush.xpose.msra.mxu0 0.0
  %v2075 = vand.u32 %v1896, 4294901760
  %v2076 = vsub.f32 %v1896, %v2075
  %v2077 = vand.u32 %v2076, 4294901760
  %2078 = vmatpush.xpose.msra.mxu0 %v2077
  %v2079 = vand.u32 %v1893, 4294901760
  %v2080 = vsub.f32 %v1893, %v2079
  %v2081 = vand.u32 %v2080, 4294901760
  %2082 = vmatpush.xpose.msra.mxu0 %v2081
  %v2083 = vand.u32 %v1890, 4294901760
  %v2084 = vsub.f32 %v1890, %v2083
  %v2085 = vand.u32 %v2084, 4294901760
  %2086 = vmatpush.xpose.msra.mxu0 %v2085
  %v2087 = vand.u32 %v1881, 4294901760
  %2088 = vmatmul.f32.gmra.mxu0 %v2087
  %v2089 = vpop.f32.mrf.mxu0
  %v2090 = vadd.f32 %v2048, %v2089
  %v2091 = vand.u32 %v1884, 4294901760
  %2092 = vmatmul.f32.gmra.mxu0 %v2091
  %v2093 = vpop.f32.mrf.mxu0
  %v2094 = vadd.f32 %v2054, %v2093
  %v2095 = vand.u32 %v1887, 4294901760
  %2096 = vmatmul.f32.gmra.mxu0 %v2095
  %v2097 = vpop.f32.mrf.mxu0
  %v2098 = vadd.f32 %v2060, %v2097
  %2099 = vdwg.mxu0
  %2100 = vmatpush.xpose.msra.mxu0 0.0
  %2101 = vmatpush.xpose.msra.mxu0 0.0
  %2102 = vmatpush.xpose.msra.mxu0 0.0
  %2103 = vmatpush.xpose.msra.mxu0 0.0
  %2104 = vmatpush.xpose.msra.mxu0 0.0
  %2105 = vmatpush.xpose.msra.mxu0 0.0
  %2106 = vmatpush.xpose.msra.mxu0 0.0
  %2107 = vmatpush.xpose.msra.mxu0 0.0
  %2108 = vmatpush.xpose.msra.mxu0 0.0
  %2109 = vmatpush.xpose.msra.mxu0 0.0
  %2110 = vmatpush.xpose.msra.mxu0 0.0
  %2111 = vmatpush.xpose.msra.mxu0 0.0
  %2112 = vmatpush.xpose.msra.mxu0 0.0
  %v2113 = vand.u32 %v1896, 4294901760
  %2114 = vmatpush.xpose.msra.mxu0 %v2113
  %v2115 = vand.u32 %v1893, 4294901760
  %2116 = vmatpush.xpose.msra.mxu0 %v2115
  %v2117 = vand.u32 %v1890, 4294901760
  %2118 = vmatpush.xpose.msra.mxu0 %v2117
  %v2119 = vand.u32 %v1881, 4294901760
  %2120 = vmatmul.f32.gmra.mxu0 %v2119
  %v2121 = vpop.f32.mrf.mxu0
  %v2122 = vadd.f32 %v2090, %v2121
  %v2123 = vand.u32 %v1884, 4294901760
  %2124 = vmatmul.f32.gmra.mxu0 %v2123
  %v2125 = vpop.f32.mrf.mxu0
  %v2126 = vadd.f32 %v2094, %v2125
  %v2127 = vand.u32 %v1887, 4294901760
  %2128 = vmatmul.f32.gmra.mxu0 %v2127
  %v2129 = vpop.f32.mrf.mxu0
  %v2130 = vadd.f32 %v2098, %v2129
  %2131 = vdwg.mxu0
  %2132 = vst.msk [vmem:[%s2] sm:$0xff] %vm115, %v358
  %2133 = vst.msk [vmem:[%s2 + $0x8] sm:$0xff] %vm115, %v362
  %2134 = vst.msk [vmem:[%s2 + $0x10] sm:$0xff] %vm115, %v366
  %2135 = vst.msk [vmem:[%s2 + $0x18] sm:$0xff] %vm115, %v610
  %2136 = vst.msk [vmem:[%s2 + $0x20] sm:$0xff] %vm115, %v614
  %2137 = vst.msk [vmem:[%s2 + $0x28] sm:$0xff] %vm115, %v618
  %2138 = vst.msk [vmem:[%s2 + $0x30] sm:$0xff] %vm115, %v862
  %2139 = vst.msk [vmem:[%s2 + $0x38] sm:$0xff] %vm115, %v866
  %2140 = vst.msk [vmem:[%s2 + $0x40] sm:$0xff] %vm115, %v870
  %2141 = vst.msk [vmem:[%s2 + $0x48] sm:$0xff] %vm115, %v1114
  %2142 = vst.msk [vmem:[%s2 + $0x50] sm:$0xff] %vm115, %v1118
  %2143 = vst.msk [vmem:[%s2 + $0x58] sm:$0xff] %vm115, %v1122
  %2144 = vst.msk [vmem:[%s2 + $0x60] sm:$0xff] %vm115, %v1366
  %2145 = vst.msk [vmem:[%s2 + $0x68] sm:$0xff] %vm115, %v1370
  %2146 = vst.msk [vmem:[%s2 + $0x70] sm:$0xff] %vm115, %v1374
  %2147 = vst.msk [vmem:[%s2 + $0x78] sm:$0xff] %vm115, %v1618
  %2148 = vst.msk [vmem:[%s2 + $0x80] sm:$0xff] %vm115, %v1622
  %2149 = vst.msk [vmem:[%s2 + $0x88] sm:$0xff] %vm115, %v1626
  %2150 = vst.msk [vmem:[%s2 + $0x90] sm:$0xff] %vm115, %v1870
  %2151 = vst.msk [vmem:[%s2 + $0x98] sm:$0xff] %vm115, %v1874
  %2152 = vst.msk [vmem:[%s2 + $0xa0] sm:$0xff] %vm115, %v1878
  %2153 = vst.msk [vmem:[%s2 + $0xa8] sm:$0xff] %vm115, %v2122
  %2154 = vst.msk [vmem:[%s2 + $0xb0] sm:$0xff] %vm115, %v2126
  %2155 = vst.msk [vmem:[%s2 + $0xb8] sm:$0xff] %vm115, %v2130
  // Predicated region
  $region10: #{graph_cspnet_forward.4} parent=0 // pred_check
    _
  $region11: #{graph_cspnet_forward.4} parent=0 // pred_check_branch
    %2157 = sbr.rel (0) target = $region13
  $region12: #{graph_cspnet_forward.4} parent=0 // pred_region
    _
  $region13: #{graph_cspnet_forward.4} parent=0 // pred_fallthru
    _
  // Predicated region
  $region14: #{graph_cspnet_forward.4} parent=0 // pred_check
    _
  $region15: #{graph_cspnet_forward.4} parent=0 // pred_check_branch
    %2159 = sbr.rel (0) target = $region17
  $region16: #{graph_cspnet_forward.4} parent=0 // pred_region
    _
  $region17: #{graph_cspnet_forward.4} parent=0 // pred_fallthru
    _

// kernel: graph_cspnet_forward.5
$region0: #{graph_cspnet_forward.5}
  #allocation0 [shape = 'u32[]', space=smem, size = 0x4, offset = 0x4, fixed_abs, tag = 'smem constant byte address 0x4 - core index']
  #allocation1 [shape = 'u32[72,128]{1,0:T(1,128)}', space=vmem, size = 0x9000, scoped, tag = 'internal scratch']
  %s0 = inlined_call_operand.vmem [shape: f32[2,2304], index: 0, kind: input, shape index: {}]
  %s1 = inlined_call_operand.vmem [shape: f32[4,2304], index: 1, kind: input, shape index: {}]
  %s2 = inlined_call_operand.vmem [shape: f32[1,4], index: 2, kind: input, shape index: {}]
  %s3 = inlined_call_operand.hbm [shape: f32[2,4], index: 3, kind: output, shape index: {}]
  %s4 = sld [smem:[#allocation0]]
  $region22: #{graph_cspnet_forward.5} parent=0
    _
  %s6 = ssub.s32 1, %s4
  %s7 = scalar_select 0, %s6, %s4
  $region1: #{graph_cspnet_forward.5} parent=0
    #allocation2 [shape = 'u8[1024]{0}', space=vmem, size = 0x400, scoped, tag = 'output window, operand 0, single buffered']
    #allocation3 [shape = 's32[1]{0}', space=sflag, size = 0x4, scoped, tag = 'scoped memory for graph_cspnet_forward.5']
    %8 = vsyncpa [#allocation3], 0
    // Predicated region
    $region2: #{graph_cspnet_forward.5} parent=1 // pred_check
      _
    $region3: #{graph_cspnet_forward.5} parent=1 // pred_check_branch
      %10 = sbr.rel (0) target = $region5
    $region4: #{graph_cspnet_forward.5} parent=1 // pred_region
      _
    $region5: #{graph_cspnet_forward.5} parent=1 // pred_fallthru
      _
    // Predicated region
    $region6: #{graph_cspnet_forward.5} parent=1 // pred_check
      _
    $region7: #{graph_cspnet_forward.5} parent=1 // pred_check_branch
      %12 = sbr.rel (0) target = $region9
    $region8: #{graph_cspnet_forward.5} parent=1 // pred_region
      _
    $region9: #{graph_cspnet_forward.5} parent=1 // pred_fallthru
      _
    // Predicated region
    $region10: #{graph_cspnet_forward.5} parent=1 // pred_check
      _
    $region11: #{graph_cspnet_forward.5} parent=1 // pred_check_branch
      %14 = sbr.rel (0) target = $region13
    $region12: #{graph_cspnet_forward.5} parent=1 // pred_region
      _
    $region13: #{graph_cspnet_forward.5} parent=1 // pred_fallthru
      _
    %v15 = vld [vmem:[%s0] sm:$0xff]
    %v16 = vld [vmem:[%s0 + $0x8] sm:$0xff]
    %v17 = vld [vmem:[%s0 + $0x10] sm:$0xff]
    %v18 = vld [vmem:[%s0 + $0x18] sm:$0xff]
    %v19 = vld [vmem:[%s0 + $0x20] sm:$0xf]
    %v20 = vld [vmem:[%s1] sm:$0xff]
    %v21 = vld [vmem:[%s1 + $0x8] sm:$0xff]
    %v22 = vld [vmem:[%s1 + $0x10] sm:$0xff]
    %v23 = vld [vmem:[%s1 + $0x18] sm:$0xff]
    %v24 = vld [vmem:[%s1 + $0x20] sm:$0xff]
    %v25 = vld [vmem:[%s1 + $0x28] sm:$0xff]
    %v26 = vld [vmem:[%s1 + $0x30] sm:$0xff]
    %v27 = vld [vmem:[%s1 + $0x38] sm:$0xff]
    %v28 = vld [vmem:[%s1 + $0x40] sm:$0xff]
    %v29 = vld [vmem:[%s2] sm:$0x1]
    %v31 = vperm.slane %v29, 0
    %38 = vst [vmem:[#allocation1] ss:$4 sm:$0xff] %v15
    %s39 = scalar_lea.vmem [#allocation1], 32
    %40 = vst [vmem:[%s39] ss:$4 sm:$0xff] %v16
    %v41 = vld.sshfl [vmem:[#allocation1] sm:$0xff pattern:$0x73625140]
    %v42 = vld.sshfl [vmem:[#allocation1 + $0x8] sm:$0xff pattern:$0x73625140]
    %v43 = vld.sshfl [vmem:[#allocation1 + $0x10] sm:$0xff pattern:$0x73625140]
    %v44 = vld.sshfl [vmem:[#allocation1 + $0x18] sm:$0xff pattern:$0x73625140]
    %v45 = vld.sshfl [vmem:[#allocation1 + $0x20] sm:$0xff pattern:$0x73625140]
    %v46 = vld.sshfl [vmem:[#allocation1 + $0x28] sm:$0xff pattern:$0x73625140]
    %v47 = vld.sshfl [vmem:[#allocation1 + $0x30] sm:$0xff pattern:$0x73625140]
    %v48 = vld.sshfl [vmem:[#allocation1 + $0x38] sm:$0xff pattern:$0x73625140]
    %49 = vst [vmem:[#allocation1] ss:$4 sm:$0xff] %v17
    %50 = vst [vmem:[%s39] ss:$4 sm:$0xff] %v18
    %v51 = vld.sshfl [vmem:[#allocation1] sm:$0xff pattern:$0x73625140]
    %v52 = vld.sshfl [vmem:[#allocation1 + $0x8] sm:$0xff pattern:$0x73625140]
    %v53 = vld.sshfl [vmem:[#allocation1 + $0x10] sm:$0xff pattern:$0x73625140]
    %v54 = vld.sshfl [vmem:[#allocation1 + $0x18] sm:$0xff pattern:$0x73625140]
    %v55 = vld.sshfl [vmem:[#allocation1 + $0x20] sm:$0xff pattern:$0x73625140]
    %v56 = vld.sshfl [vmem:[#allocation1 + $0x28] sm:$0xff pattern:$0x73625140]
    %v57 = vld.sshfl [vmem:[#allocation1 + $0x30] sm:$0xff pattern:$0x73625140]
    %v58 = vld.sshfl [vmem:[#allocation1 + $0x38] sm:$0xff pattern:$0x73625140]
    %59 = vst [vmem:[#allocation1] ss:$4 sm:$0xff] %v19
    %v60 = vld.sshfl [vmem:[#allocation1] sm:$0xff pattern:$0x73625140]
    %v61 = vld.sshfl [vmem:[#allocation1 + $0x8] sm:$0xff pattern:$0x73625140]
    %89 = vst [vmem:[#allocation1] ss:$2 sm:$0xff] %v20
    %s90 = scalar_lea.vmem [#allocation1], 16
    %91 = vst [vmem:[%s90] ss:$2 sm:$0xff] %v21
    %s92 = scalar_lea.vmem [#allocation1], 32
    %93 = vst [vmem:[%s92] ss:$2 sm:$0xff] %v22
    %s94 = scalar_lea.vmem [#allocation1], 48
    %95 = vst [vmem:[%s94] ss:$2 sm:$0xff] %v23
    %v96 = vld.sshfl [vmem:[#allocation1] sm:$0xff pattern:$0x75316420]
    %v97 = vld.sshfl [vmem:[#allocation1 + $0x8] sm:$0xff pattern:$0x75316420]
    %v98 = vld.sshfl [vmem:[#allocation1 + $0x10] sm:$0xff pattern:$0x75316420]
    %v99 = vld.sshfl [vmem:[#allocation1 + $0x18] sm:$0xff pattern:$0x75316420]
    %v100 = vld.sshfl [vmem:[#allocation1 + $0x20] sm:$0xff pattern:$0x75316420]
    %v101 = vld.sshfl [vmem:[#allocation1 + $0x28] sm:$0xff pattern:$0x75316420]
    %v102 = vld.sshfl [vmem:[#allocation1 + $0x30] sm:$0xff pattern:$0x75316420]
    %v103 = vld.sshfl [vmem:[#allocation1 + $0x38] sm:$0xff pattern:$0x75316420]
    %104 = vst [vmem:[#allocation1] ss:$2 sm:$0xff] %v24
    %105 = vst [vmem:[%s90] ss:$2 sm:$0xff] %v25
    %106 = vst [vmem:[%s92] ss:$2 sm:$0xff] %v26
    %107 = vst [vmem:[%s94] ss:$2 sm:$0xff] %v27
    %v108 = vld.sshfl [vmem:[#allocation1] sm:$0xff pattern:$0x75316420]
    %v109 = vld.sshfl [vmem:[#allocation1 + $0x8] sm:$0xff pattern:$0x75316420]
    %v110 = vld.sshfl [vmem:[#allocation1 + $0x10] sm:$0xff pattern:$0x75316420]
    %v111 = vld.sshfl [vmem:[#allocation1 + $0x18] sm:$0xff pattern:$0x75316420]
    %v112 = vld.sshfl [vmem:[#allocation1 + $0x20] sm:$0xff pattern:$0x75316420]
    %v113 = vld.sshfl [vmem:[#allocation1 + $0x28] sm:$0xff pattern:$0x75316420]
    %v114 = vld.sshfl [vmem:[#allocation1 + $0x30] sm:$0xff pattern:$0x75316420]
    %v115 = vld.sshfl [vmem:[#allocation1 + $0x38] sm:$0xff pattern:$0x75316420]
    %116 = vst [vmem:[#allocation1] ss:$2 sm:$0xff] %v28
    %v117 = vld.sshfl [vmem:[#allocation1] sm:$0xff pattern:$0x75316420]
    %v118 = vld.sshfl [vmem:[#allocation1 + $0x8] sm:$0xff pattern:$0x75316420]
    %137 = vmatpush.xpose.msra.mxu0 0.0
    %138 = vmatpush.xpose.msra.mxu0 0.0
    %139 = vmatpush.xpose.msra.mxu0 0.0
    %140 = vmatpush.xpose.msra.mxu0 0.0
    %141 = vmatpush.xpose.msra.mxu0 0.0
    %142 = vmatpush.xpose.msra.mxu0 0.0
    %143 = vmatpush.xpose.msra.mxu0 0.0
    %144 = vmatpush.xpose.msra.mxu0 0.0
    %145 = vmatpush.xpose.msra.mxu0 0.0
    %146 = vmatpush.xpose.msra.mxu0 0.0
    %147 = vmatpush.xpose.msra.mxu0 0.0
    %148 = vmatpush.xpose.msra.mxu0 0.0
    %149 = vmatpush.xpose.msra.mxu0 0.0
    %150 = vmatpush.xpose.msra.mxu0 0.0
    %151 = vmatpush.xpose.msra.mxu0 0.0
    %152 = vmatpush.xpose.msra.mxu0 %v96
    %153 = vmatmul.f32.gmra.mxu0 %v41
    %v154 = vpop.f32.mrf.mxu0
    %v155 = vadd.f32 %v31, %v154
    %156 = vdwg.mxu0
    %157 = vmatpush.xpose.msra.mxu0 0.0
    %158 = vmatpush.xpose.msra.mxu0 0.0
    %159 = vmatpush.xpose.msra.mxu0 0.0
    %160 = vmatpush.xpose.msra.mxu0 0.0
    %161 = vmatpush.xpose.msra.mxu0 0.0
    %162 = vmatpush.xpose.msra.mxu0 0.0
    %163 = vmatpush.xpose.msra.mxu0 0.0
    %164 = vmatpush.xpose.msra.mxu0 0.0
    %165 = vmatpush.xpose.msra.mxu0 0.0
    %166 = vmatpush.xpose.msra.mxu0 0.0
    %167 = vmatpush.xpose.msra.mxu0 0.0
    %168 = vmatpush.xpose.msra.mxu0 0.0
    %169 = vmatpush.xpose.msra.mxu0 0.0
    %170 = vmatpush.xpose.msra.mxu0 0.0
    %171 = vmatpush.xpose.msra.mxu0 0.0
    %172 = vmatpush.xpose.msra.mxu0 %v97
    %173 = vmatmul.f32.gmra.mxu0 %v42
    %v174 = vpop.f32.mrf.mxu0
    %v175 = vadd.f32 %v155, %v174
    %176 = vdwg.mxu0
    %177 = vmatpush.xpose.msra.mxu0 0.0
    %178 = vmatpush.xpose.msra.mxu0 0.0
    %179 = vmatpush.xpose.msra.mxu0 0.0
    %180 = vmatpush.xpose.msra.mxu0 0.0
    %181 = vmatpush.xpose.msra.mxu0 0.0
    %182 = vmatpush.xpose.msra.mxu0 0.0
    %183 = vmatpush.xpose.msra.mxu0 0.0
    %184 = vmatpush.xpose.msra.mxu0 0.0
    %185 = vmatpush.xpose.msra.mxu0 0.0
    %186 = vmatpush.xpose.msra.mxu0 0.0
    %187 = vmatpush.xpose.msra.mxu0 0.0
    %188 = vmatpush.xpose.msra.mxu0 0.0
    %189 = vmatpush.xpose.msra.mxu0 0.0
    %190 = vmatpush.xpose.msra.mxu0 0.0
    %191 = vmatpush.xpose.msra.mxu0 0.0
    %192 = vmatpush.xpose.msra.mxu0 %v98
    %193 = vmatmul.f32.gmra.mxu0 %v43
    %v194 = vpop.f32.mrf.mxu0
    %v195 = vadd.f32 %v175, %v194
    %196 = vdwg.mxu0
    %197 = vmatpush.xpose.msra.mxu0 0.0
    %198 = vmatpush.xpose.msra.mxu0 0.0
    %199 = vmatpush.xpose.msra.mxu0 0.0
    %200 = vmatpush.xpose.msra.mxu0 0.0
    %201 = vmatpush.xpose.msra.mxu0 0.0
    %202 = vmatpush.xpose.msra.mxu0 0.0
    %203 = vmatpush.xpose.msra.mxu0 0.0
    %204 = vmatpush.xpose.msra.mxu0 0.0
    %205 = vmatpush.xpose.msra.mxu0 0.0
    %206 = vmatpush.xpose.msra.mxu0 0.0
    %207 = vmatpush.xpose.msra.mxu0 0.0
    %208 = vmatpush.xpose.msra.mxu0 0.0
    %209 = vmatpush.xpose.msra.mxu0 0.0
    %210 = vmatpush.xpose.msra.mxu0 0.0
    %211 = vmatpush.xpose.msra.mxu0 0.0
    %212 = vmatpush.xpose.msra.mxu0 %v99
    %213 = vmatmul.f32.gmra.mxu0 %v44
    %v214 = vpop.f32.mrf.mxu0
    %v215 = vadd.f32 %v195, %v214
    %216 = vdwg.mxu0
    %217 = vmatpush.xpose.msra.mxu0 0.0
    %218 = vmatpush.xpose.msra.mxu0 0.0
    %219 = vmatpush.xpose.msra.mxu0 0.0
    %220 = vmatpush.xpose.msra.mxu0 0.0
    %221 = vmatpush.xpose.msra.mxu0 0.0
    %222 = vmatpush.xpose.msra.mxu0 0.0
    %223 = vmatpush.xpose.msra.mxu0 0.0
    %224 = vmatpush.xpose.msra.mxu0 0.0
    %225 = vmatpush.xpose.msra.mxu0 0.0
    %226 = vmatpush.xpose.msra.mxu0 0.0
    %227 = vmatpush.xpose.msra.mxu0 0.0
    %228 = vmatpush.xpose.msra.mxu0 0.0
    %229 = vmatpush.xpose.msra.mxu0 0.0
    %230 = vmatpush.xpose.msra.mxu0 0.0
    %231 = vmatpush.xpose.msra.mxu0 0.0
    %232 = vmatpush.xpose.msra.mxu0 %v100
    %233 = vmatmul.f32.gmra.mxu0 %v45
    %v234 = vpop.f32.mrf.mxu0
    %v235 = vadd.f32 %v215, %v234
    %236 = vdwg.mxu0
    %237 = vmatpush.xpose.msra.mxu0 0.0
    %238 = vmatpush.xpose.msra.mxu0 0.0
    %239 = vmatpush.xpose.msra.mxu0 0.0
    %240 = vmatpush.xpose.msra.mxu0 0.0
    %241 = vmatpush.xpose.msra.mxu0 0.0
    %242 = vmatpush.xpose.msra.mxu0 0.0
    %243 = vmatpush.xpose.msra.mxu0 0.0
    %244 = vmatpush.xpose.msra.mxu0 0.0
    %245 = vmatpush.xpose.msra.mxu0 0.0
    %246 = vmatpush.xpose.msra.mxu0 0.0
    %247 = vmatpush.xpose.msra.mxu0 0.0
    %248 = vmatpush.xpose.msra.mxu0 0.0
    %249 = vmatpush.xpose.msra.mxu0 0.0
    %250 = vmatpush.xpose.msra.mxu0 0.0
    %251 = vmatpush.xpose.msra.mxu0 0.0
    %252 = vmatpush.xpose.msra.mxu0 %v101
    %253 = vmatmul.f32.gmra.mxu0 %v46
    %v254 = vpop.f32.mrf.mxu0
    %v255 = vadd.f32 %v235, %v254
    %256 = vdwg.mxu0
    %257 = vmatpush.xpose.msra.mxu0 0.0
    %258 = vmatpush.xpose.msra.mxu0 0.0
    %259 = vmatpush.xpose.msra.mxu0 0.0
    %260 = vmatpush.xpose.msra.mxu0 0.0
    %261 = vmatpush.xpose.msra.mxu0 0.0
    %262 = vmatpush.xpose.msra.mxu0 0.0
    %263 = vmatpush.xpose.msra.mxu0 0.0
    %264 = vmatpush.xpose.msra.mxu0 0.0
    %265 = vmatpush.xpose.msra.mxu0 0.0
    %266 = vmatpush.xpose.msra.mxu0 0.0
    %267 = vmatpush.xpose.msra.mxu0 0.0
    %268 = vmatpush.xpose.msra.mxu0 0.0
    %269 = vmatpush.xpose.msra.mxu0 0.0
    %270 = vmatpush.xpose.msra.mxu0 0.0
    %271 = vmatpush.xpose.msra.mxu0 0.0
    %272 = vmatpush.xpose.msra.mxu0 %v102
    %273 = vmatmul.f32.gmra.mxu0 %v47
    %v274 = vpop.f32.mrf.mxu0
    %v275 = vadd.f32 %v255, %v274
    %276 = vdwg.mxu0
    %277 = vmatpush.xpose.msra.mxu0 0.0
    %278 = vmatpush.xpose.msra.mxu0 0.0
    %279 = vmatpush.xpose.msra.mxu0 0.0
    %280 = vmatpush.xpose.msra.mxu0 0.0
    %281 = vmatpush.xpose.msra.mxu0 0.0
    %282 = vmatpush.xpose.msra.mxu0 0.0
    %283 = vmatpush.xpose.msra.mxu0 0.0
    %284 = vmatpush.xpose.msra.mxu0 0.0
    %285 = vmatpush.xpose.msra.mxu0 0.0
    %286 = vmatpush.xpose.msra.mxu0 0.0
    %287 = vmatpush.xpose.msra.mxu0 0.0
    %288 = vmatpush.xpose.msra.mxu0 0.0
    %289 = vmatpush.xpose.msra.mxu0 0.0
    %290 = vmatpush.xpose.msra.mxu0 0.0
    %291 = vmatpush.xpose.msra.mxu0 0.0
    %292 = vmatpush.xpose.msra.mxu0 %v103
    %293 = vmatmul.f32.gmra.mxu0 %v48
    %v294 = vpop.f32.mrf.mxu0
    %v295 = vadd.f32 %v275, %v294
    %296 = vdwg.mxu0
    %297 = vmatpush.xpose.msra.mxu0 0.0
    %298 = vmatpush.xpose.msra.mxu0 0.0
    %299 = vmatpush.xpose.msra.mxu0 0.0
    %300 = vmatpush.xpose.msra.mxu0 0.0
    %301 = vmatpush.xpose.msra.mxu0 0.0
    %302 = vmatpush.xpose.msra.mxu0 0.0
    %303 = vmatpush.xpose.msra.mxu0 0.0
    %304 = vmatpush.xpose.msra.mxu0 0.0
    %305 = vmatpush.xpose.msra.mxu0 0.0
    %306 = vmatpush.xpose.msra.mxu0 0.0
    %307 = vmatpush.xpose.msra.mxu0 0.0
    %308 = vmatpush.xpose.msra.mxu0 0.0
    %309 = vmatpush.xpose.msra.mxu0 0.0
    %310 = vmatpush.xpose.msra.mxu0 0.0
    %311 = vmatpush.xpose.msra.mxu0 0.0
    %312 = vmatpush.xpose.msra.mxu0 %v108
    %313 = vmatmul.f32.gmra.mxu0 %v51
    %v314 = vpop.f32.mrf.mxu0
    %v315 = vadd.f32 %v295, %v314
    %316 = vdwg.mxu0
    %317 = vmatpush.xpose.msra.mxu0 0.0
    %318 = vmatpush.xpose.msra.mxu0 0.0
    %319 = vmatpush.xpose.msra.mxu0 0.0
    %320 = vmatpush.xpose.msra.mxu0 0.0
    %321 = vmatpush.xpose.msra.mxu0 0.0
    %322 = vmatpush.xpose.msra.mxu0 0.0
    %323 = vmatpush.xpose.msra.mxu0 0.0
    %324 = vmatpush.xpose.msra.mxu0 0.0
    %325 = vmatpush.xpose.msra.mxu0 0.0
    %326 = vmatpush.xpose.msra.mxu0 0.0
    %327 = vmatpush.xpose.msra.mxu0 0.0
    %328 = vmatpush.xpose.msra.mxu0 0.0
    %329 = vmatpush.xpose.msra.mxu0 0.0
    %330 = vmatpush.xpose.msra.mxu0 0.0
    %331 = vmatpush.xpose.msra.mxu0 0.0
    %332 = vmatpush.xpose.msra.mxu0 %v109
    %333 = vmatmul.f32.gmra.mxu0 %v52
    %v334 = vpop.f32.mrf.mxu0
    %v335 = vadd.f32 %v315, %v334
    %336 = vdwg.mxu0
    %337 = vmatpush.xpose.msra.mxu0 0.0
    %338 = vmatpush.xpose.msra.mxu0 0.0
    %339 = vmatpush.xpose.msra.mxu0 0.0
    %340 = vmatpush.xpose.msra.mxu0 0.0
    %341 = vmatpush.xpose.msra.mxu0 0.0
    %342 = vmatpush.xpose.msra.mxu0 0.0
    %343 = vmatpush.xpose.msra.mxu0 0.0
    %344 = vmatpush.xpose.msra.mxu0 0.0
    %345 = vmatpush.xpose.msra.mxu0 0.0
    %346 = vmatpush.xpose.msra.mxu0 0.0
    %347 = vmatpush.xpose.msra.mxu0 0.0
    %348 = vmatpush.xpose.msra.mxu0 0.0
    %349 = vmatpush.xpose.msra.mxu0 0.0
    %350 = vmatpush.xpose.msra.mxu0 0.0
    %351 = vmatpush.xpose.msra.mxu0 0.0
    %352 = vmatpush.xpose.msra.mxu0 %v110
    %353 = vmatmul.f32.gmra.mxu0 %v53
    %v354 = vpop.f32.mrf.mxu0
    %v355 = vadd.f32 %v335, %v354
    %356 = vdwg.mxu0
    %357 = vmatpush.xpose.msra.mxu0 0.0
    %358 = vmatpush.xpose.msra.mxu0 0.0
    %359 = vmatpush.xpose.msra.mxu0 0.0
    %360 = vmatpush.xpose.msra.mxu0 0.0
    %361 = vmatpush.xpose.msra.mxu0 0.0
    %362 = vmatpush.xpose.msra.mxu0 0.0
    %363 = vmatpush.xpose.msra.mxu0 0.0
    %364 = vmatpush.xpose.msra.mxu0 0.0
    %365 = vmatpush.xpose.msra.mxu0 0.0
    %366 = vmatpush.xpose.msra.mxu0 0.0
    %367 = vmatpush.xpose.msra.mxu0 0.0
    %368 = vmatpush.xpose.msra.mxu0 0.0
    %369 = vmatpush.xpose.msra.mxu0 0.0
    %370 = vmatpush.xpose.msra.mxu0 0.0
    %371 = vmatpush.xpose.msra.mxu0 0.0
    %372 = vmatpush.xpose.msra.mxu0 %v111
    %373 = vmatmul.f32.gmra.mxu0 %v54
    %v374 = vpop.f32.mrf.mxu0
    %v375 = vadd.f32 %v355, %v374
    %376 = vdwg.mxu0
    %377 = vmatpush.xpose.msra.mxu0 0.0
    %378 = vmatpush.xpose.msra.mxu0 0.0
    %379 = vmatpush.xpose.msra.mxu0 0.0
    %380 = vmatpush.xpose.msra.mxu0 0.0
    %381 = vmatpush.xpose.msra.mxu0 0.0
    %382 = vmatpush.xpose.msra.mxu0 0.0
    %383 = vmatpush.xpose.msra.mxu0 0.0
    %384 = vmatpush.xpose.msra.mxu0 0.0
    %385 = vmatpush.xpose.msra.mxu0 0.0
    %386 = vmatpush.xpose.msra.mxu0 0.0
    %387 = vmatpush.xpose.msra.mxu0 0.0
    %388 = vmatpush.xpose.msra.mxu0 0.0
    %389 = vmatpush.xpose.msra.mxu0 0.0
    %390 = vmatpush.xpose.msra.mxu0 0.0
    %391 = vmatpush.xpose.msra.mxu0 0.0
    %392 = vmatpush.xpose.msra.mxu0 %v112
    %393 = vmatmul.f32.gmra.mxu0 %v55
    %v394 = vpop.f32.mrf.mxu0
    %v395 = vadd.f32 %v375, %v394
    %396 = vdwg.mxu0
    %397 = vmatpush.xpose.msra.mxu0 0.0
    %398 = vmatpush.xpose.msra.mxu0 0.0
    %399 = vmatpush.xpose.msra.mxu0 0.0
    %400 = vmatpush.xpose.msra.mxu0 0.0
    %401 = vmatpush.xpose.msra.mxu0 0.0
    %402 = vmatpush.xpose.msra.mxu0 0.0
    %403 = vmatpush.xpose.msra.mxu0 0.0
    %404 = vmatpush.xpose.msra.mxu0 0.0
    %405 = vmatpush.xpose.msra.mxu0 0.0
    %406 = vmatpush.xpose.msra.mxu0 0.0
    %407 = vmatpush.xpose.msra.mxu0 0.0
    %408 = vmatpush.xpose.msra.mxu0 0.0
    %409 = vmatpush.xpose.msra.mxu0 0.0
    %410 = vmatpush.xpose.msra.mxu0 0.0
    %411 = vmatpush.xpose.msra.mxu0 0.0
    %412 = vmatpush.xpose.msra.mxu0 %v113
    %413 = vmatmul.f32.gmra.mxu0 %v56
    %v414 = vpop.f32.mrf.mxu0
    %v415 = vadd.f32 %v395, %v414
    %416 = vdwg.mxu0
    %417 = vmatpush.xpose.msra.mxu0 0.0
    %418 = vmatpush.xpose.msra.mxu0 0.0
    %419 = vmatpush.xpose.msra.mxu0 0.0
    %420 = vmatpush.xpose.msra.mxu0 0.0
    %421 = vmatpush.xpose.msra.mxu0 0.0
    %422 = vmatpush.xpose.msra.mxu0 0.0
    %423 = vmatpush.xpose.msra.mxu0 0.0
    %424 = vmatpush.xpose.msra.mxu0 0.0
    %425 = vmatpush.xpose.msra.mxu0 0.0
    %426 = vmatpush.xpose.msra.mxu0 0.0
    %427 = vmatpush.xpose.msra.mxu0 0.0
    %428 = vmatpush.xpose.msra.mxu0 0.0
    %429 = vmatpush.xpose.msra.mxu0 0.0
    %430 = vmatpush.xpose.msra.mxu0 0.0
    %431 = vmatpush.xpose.msra.mxu0 0.0
    %432 = vmatpush.xpose.msra.mxu0 %v114
    %433 = vmatmul.f32.gmra.mxu0 %v57
    %v434 = vpop.f32.mrf.mxu0
    %v435 = vadd.f32 %v415, %v434
    %436 = vdwg.mxu0
    %437 = vmatpush.xpose.msra.mxu0 0.0
    %438 = vmatpush.xpose.msra.mxu0 0.0
    %439 = vmatpush.xpose.msra.mxu0 0.0
    %440 = vmatpush.xpose.msra.mxu0 0.0
    %441 = vmatpush.xpose.msra.mxu0 0.0
    %442 = vmatpush.xpose.msra.mxu0 0.0
    %443 = vmatpush.xpose.msra.mxu0 0.0
    %444 = vmatpush.xpose.msra.mxu0 0.0
    %445 = vmatpush.xpose.msra.mxu0 0.0
    %446 = vmatpush.xpose.msra.mxu0 0.0
    %447 = vmatpush.xpose.msra.mxu0 0.0
    %448 = vmatpush.xpose.msra.mxu0 0.0
    %449 = vmatpush.xpose.msra.mxu0 0.0
    %450 = vmatpush.xpose.msra.mxu0 0.0
    %451 = vmatpush.xpose.msra.mxu0 0.0
    %452 = vmatpush.xpose.msra.mxu0 %v115
    %453 = vmatmul.f32.gmra.mxu0 %v58
    %v454 = vpop.f32.mrf.mxu0
    %v455 = vadd.f32 %v435, %v454
    %456 = vdwg.mxu0
    %457 = vmatpush.xpose.msra.mxu0 0.0
    %458 = vmatpush.xpose.msra.mxu0 0.0
    %459 = vmatpush.xpose.msra.mxu0 0.0
    %460 = vmatpush.xpose.msra.mxu0 0.0
    %461 = vmatpush.xpose.msra.mxu0 0.0
    %462 = vmatpush.xpose.msra.mxu0 0.0
    %463 = vmatpush.xpose.msra.mxu0 0.0
    %464 = vmatpush.xpose.msra.mxu0 0.0
    %465 = vmatpush.xpose.msra.mxu0 0.0
    %466 = vmatpush.xpose.msra.mxu0 0.0
    %467 = vmatpush.xpose.msra.mxu0 0.0
    %468 = vmatpush.xpose.msra.mxu0 0.0
    %469 = vmatpush.xpose.msra.mxu0 0.0
    %470 = vmatpush.xpose.msra.mxu0 0.0
    %471 = vmatpush.xpose.msra.mxu0 0.0
    %472 = vmatpush.xpose.msra.mxu0 %v117
    %473 = vmatmul.f32.gmra.mxu0 %v60
    %v474 = vpop.f32.mrf.mxu0
    %v475 = vadd.f32 %v455, %v474
    %476 = vdwg.mxu0
    %477 = vmatpush.xpose.msra.mxu0 0.0
    %478 = vmatpush.xpose.msra.mxu0 0.0
    %479 = vmatpush.xpose.msra.mxu0 0.0
    %480 = vmatpush.xpose.msra.mxu0 0.0
    %481 = vmatpush.xpose.msra.mxu0 0.0
    %482 = vmatpush.xpose.msra.mxu0 0.0
    %483 = vmatpush.xpose.msra.mxu0 0.0
    %484 = vmatpush.xpose.msra.mxu0 0.0
    %485 = vmatpush.xpose.msra.mxu0 0.0
    %486 = vmatpush.xpose.msra.mxu0 0.0
    %487 = vmatpush.xpose.msra.mxu0 0.0
    %488 = vmatpush.xpose.msra.mxu0 0.0
    %489 = vmatpush.xpose.msra.mxu0 0.0
    %490 = vmatpush.xpose.msra.mxu0 0.0
    %491 = vmatpush.xpose.msra.mxu0 0.0
    %492 = vmatpush.xpose.msra.mxu0 %v118
    %493 = vmatmul.f32.gmra.mxu0 %v61
    %v494 = vpop.f32.mrf.mxu0
    %v495 = vadd.f32 %v475, %v494
    %496 = vdwg.mxu0
    %vm497 = vcmask 25600
    %498 = vst.msk [vmem:[#allocation2] sm:$0x3] %vm497, %v495
    // Predicated region
    $region14: #{graph_cspnet_forward.5} parent=1 // pred_check
      _
    $region15: #{graph_cspnet_forward.5} parent=1 // pred_check_branch
      %500 = sbr.rel (0) target = $region17
    $region16: #{graph_cspnet_forward.5} parent=1 // pred_region
      %502 = vsyncadd [#allocation3], 0
      %s504 = sshll.u32 [#allocation2], 4
      %s505 = int_to_ptr.vmem [resolvable:$true] %s504
      %s506 = sshll.u32 %s3, 4
      %s507 = int_to_ptr.hbm [resolvable:$true] %s506
      %509 = dma.vmem_to_hbm [thread:$0]  %s505, 32, %s507, [#allocation3]
    $region17: #{graph_cspnet_forward.5} parent=1 // pred_fallthru
      _
    // Predicated region
    $region18: #{graph_cspnet_forward.5} parent=1 // pred_check
      _
    $region19: #{graph_cspnet_forward.5} parent=1 // pred_check_branch
      %511 = sbr.rel (0) target = $region21
    $region20: #{graph_cspnet_forward.5} parent=1 // pred_region
      %513 = dma.done [#allocation3], 32
    $region21: #{graph_cspnet_forward.5} parent=1 // pred_fallthru
      _
    %514 = vsyncpa [#allocation3], 1

</llo_original>
